<compile_context>
chip_gen: v7x
topology: tpu7x:2x2x1
jax: 0.10.0
libtpu: 0.0.40
codegen_flags: <defaults>
</compile_context>

<pallas_src>
import math
import functools

import jax
import jax.numpy as jnp
import numpy as np
from jax.experimental import pallas as pl
from jax.experimental.pallas import tpu as pltpu


def _layernorm(x, gamma, beta, eps=1e-5):
    # x: (M, D) f32; gamma/beta: (1, D) f32
    mu = jnp.mean(x, axis=-1, keepdims=True)
    var = jnp.mean((x - mu) ** 2, axis=-1, keepdims=True)
    return (x - mu) * jax.lax.rsqrt(var + eps) * gamma + beta


def prenorm_encoder_kernel(
    x_ref,       # (TB, S, D) f32
    wqkv_ref,    # (D, 3D)    cd   (in_proj_weight^T; q columns pre-scaled by 1/sqrt(hd))
    bqkv_ref,    # (1, 3D)    f32  (q part pre-scaled)
    wo_ref,      # (D, D)     cd   (out_proj.weight^T)
    bo_ref,      # (1, D)     f32
    w1_ref,      # (D, FF)    cd   (linear1.weight^T)
    b1_ref,      # (1, FF)    f32
    w2_ref,      # (FF, D)    cd   (linear2.weight^T)
    b2_ref,      # (1, D)     f32
    g1_ref,      # (1, D)     f32  norm1.weight
    be1_ref,     # (1, D)     f32  norm1.bias
    g2_ref,      # (1, D)     f32  norm2.weight
    be2_ref,     # (1, D)     f32  norm2.bias
    o_ref,       # (TB, S, D) f32
    *, nhead, ff_chunk, approx_recip, compute_dtype,
):
    cd = compute_dtype
    TB, S, D = x_ref.shape
    M = TB * S
    H = nhead
    hd = D // H

    # Fold the batch tile into the matmul M dimension (free leading-dim reshape).
    x = x_ref[...].astype(jnp.float32).reshape(M, D)

    # ---- pre-norm 1 + fused QKV projection (one wide MXU matmul, contraction = D) ----
    x2 = _layernorm(x, g1_ref[...], be1_ref[...]).astype(cd)
    qkv = (jnp.dot(x2, wqkv_ref[...], preferred_element_type=jnp.float32)
           + bqkv_ref[...]).astype(cd)                                    # (M, 3D)

    # Head split: value-level lane slices (no scratch, no masked stores), one sublane concat,
    # then free leading-dim reshape to a merged (head*batch, S, hd) batch axis.
    def heads(base):
        parts = [qkv[:, base + h * hd: base + (h + 1) * hd] for h in range(H)]   # (M, hd) each
        return jnp.concatenate(parts, axis=0).reshape(H * TB, S, hd)

    qh = heads(0)          # q already carries the 1/sqrt(hd) scale (folded into weights)
    kh = heads(D)
    vh = heads(2 * D)

    # ---- batched multi-head attention (single rank-3 einsum over the merged batch axis) ----
    s = jnp.einsum("bqd,bkd->bqk", qh, kh,
                   preferred_element_type=jnp.float32)                    # (H*TB, S, S) f32
    s = s - jnp.max(s, axis=-1, keepdims=True)
    p = jnp.exp(s)
    denom = jnp.sum(p, axis=-1, keepdims=True)
    ctx = jnp.einsum("bqk,bkd->bqd", p.astype(cd), vh,
                     preferred_element_type=jnp.float32)                  # (H*TB, S, hd) f32
    # Normalize the (.., hd) context instead of the (.., S) probabilities (less VPU work).
    ctx = ctx * pl.reciprocal(denom, approx=approx_recip)

    # Head merge: one lane concat back to (M, D), then a single wide output-projection matmul.
    ctx2 = ctx.reshape(H * M, hd)
    merged = jnp.concatenate([ctx2[h * M:(h + 1) * M] for h in range(H)], axis=-1)   # (M, D)
    attn = jnp.dot(merged.astype(cd), wo_ref[...],
                   preferred_element_type=jnp.float32) + bo_ref[...]      # (M, D) f32

    x = x + attn                                      # residual 1 (dropout1 = identity)

    # ---- pre-norm 2 + FFN, chunked over the FF dimension ----
    x2 = _layernorm(x, g2_ref[...], be2_ref[...]).astype(cd)
    FF = w1_ref.shape[1]
    n_chunks = FF // ff_chunk

    if n_chunks == 1:
        h1 = jnp.maximum(jnp.dot(x2, w1_ref[...], preferred_element_type=jnp.float32)
                         + b1_ref[...], 0.0).astype(cd)
        ff = jnp.dot(h1, w2_ref[...], preferred_element_type=jnp.float32)
    else:
        def body(c, acc):
            j = pl.multiple_of(c * ff_chunk, ff_chunk)
            h1 = (jnp.dot(x2, w1_ref[:, pl.ds(j, ff_chunk)],
                          preferred_element_type=jnp.float32)
                  + b1_ref[:, pl.ds(j, ff_chunk)])
            h1 = jnp.maximum(h1, 0.0).astype(cd)
            return acc + jnp.dot(h1, w2_ref[pl.ds(j, ff_chunk), :],
                                 preferred_element_type=jnp.float32)
        ff = jax.lax.fori_loop(0, n_chunks, body, jnp.zeros((M, D), jnp.float32))
    ff = ff + b2_ref[...]

    o_ref[...] = (x + ff).reshape(TB, S, D).astype(o_ref.dtype)   # residual 2 (dropout2 = id.)


def _pick_batch_tile(B, S, target_rows=512):
    """Largest divisor of B with tile*S <= target_rows, preferring >= 2 grid steps (v7x TCs)."""
    divisors = [d for d in range(1, B + 1) if B % d == 0]
    cands = [d for d in divisors if d * S <= max(target_rows, S) and (B // d >= 2 or B == 1)]
    if not cands:
        cands = [d for d in divisors if (B // d >= 2 or B == 1)] or [1]
    return max(cands)


def _pick_ff_chunk(FF, requested=512):
    """Largest chunk <= requested that divides FF and is 128-lane aligned (or FF itself)."""
    c = min(requested, FF)
    for cand in range(c, 0, -1):
        if FF % cand == 0 and (cand % 128 == 0 or cand == FF):
            return cand
    return FF


def _vmem_limit_bytes():
    cap = 64 * 1024 * 1024
    try:
        cap = int(getattr(pltpu.get_tpu_info(), "vmem_capacity_bytes", cap)) or cap
    except Exception:
        pass
    # ~48 MiB on v7x (64 MiB physical), ~96 MiB on v5e/v6e (128 MiB physical).
    return max(32 * 1024 * 1024, min((cap * 3) // 4, 112 * 1024 * 1024))


def prenorm_transformer_encoder_layer(src, params, nhead, *,
                                      compute_dtype=jnp.bfloat16, ff_chunk=512,
                                      batch_tile=None):
    """src: (B, S, D) f32. params: dict of PyTorch-layout weights."""
    B, S, D = src.shape
    assert D % nhead == 0, "d_model must be divisible by nhead"
    FF = params["w1"].shape[0]
    hd = D // nhead
    cd = compute_dtype
    f32 = jnp.float32
    scale = 1.0 / math.sqrt(hd)

    # ---- host-side layout plumbing: fold 1/sqrt(hd) into q, pre-transpose, cast ----
    wqkv = jnp.concatenate([params["wqkv"][:D] * scale, params["wqkv"][D:]], axis=0)
    bqkv = jnp.concatenate([params["bqkv"][:D] * scale, params["bqkv"][D:]], axis=0)

    wqkv_t = wqkv.T.astype(cd)                         # (D, 3D)
    wo_t   = params["wo"].T.astype(cd)                 # (D, D)
    w1_t   = params["w1"].T.astype(cd)                 # (D, FF)
    w2_t   = params["w2"].T.astype(cd)                 # (FF, D)
    bqkv = bqkv.reshape(1, 3 * D).astype(f32)
    bo   = params["bo"].reshape(1, D).astype(f32)
    b1   = params["b1"].reshape(1, FF).astype(f32)
    b2   = params["b2"].reshape(1, D).astype(f32)
    g1   = params["g1"].reshape(1, D).astype(f32)
    be1  = params["be1"].reshape(1, D).astype(f32)
    g2   = params["g2"].reshape(1, D).astype(f32)
    be2  = params["be2"].reshape(1, D).astype(f32)

    tb = batch_tile if batch_tile is not None else _pick_batch_tile(B, S)
    assert B % tb == 0, "batch tile must divide batch"
    ffc = _pick_ff_chunk(FF, ff_chunk)

    itemsize = 2 if cd == jnp.bfloat16 else 4
    cost = pl.CostEstimate(
        flops=int(B * S * (8 * D * D + 4 * D * FF) + 4 * B * S * S * D),
        transcendentals=int(B * nhead * S * S),
        bytes_accessed=int(2 * B * S * D * 4
                           + (4 * D * D + 2 * D * FF) * itemsize
                           + (9 * D + 2 * FF) * 4),
    )
    vmem_limit = _vmem_limit_bytes()

    kernel = functools.partial(
        prenorm_encoder_kernel,
        nhead=nhead, ff_chunk=ffc,
        approx_recip=(cd != f32), compute_dtype=cd)

    operands = (src, wqkv_t, bqkv, wo_t, bo, w1_t, b1, w2_t, b2, g1, be1, g2, be2)

    def run(single_buffer_weights):
        def const_spec(shape):
            nd = len(shape)
            kw = {"pipeline_mode": pl.Buffered(1)} if single_buffer_weights else {}
            return pl.BlockSpec(shape, lambda b, _nd=nd: (0,) * _nd, **kw)

        in_specs = [
            pl.BlockSpec((tb, S, D), lambda b: (b, 0, 0)),   # src (pipelined across the grid)
            const_spec((D, 3 * D)),                          # wqkv_t
            const_spec((1, 3 * D)),                          # bqkv
            const_spec((D, D)),                              # wo_t
            const_spec((1, D)),                              # bo
            const_spec((D, FF)),                             # w1_t
            const_spec((1, FF)),                             # b1
            const_spec((FF, D)),                             # w2_t
            const_spec((1, D)),                              # b2
            const_spec((1, D)),                              # g1
            const_spec((1, D)),                              # be1
            const_spec((1, D)),                              # g2
            const_spec((1, D)),                              # be2
        ]

        fn = pl.pallas_call(
            kernel,
            out_shape=jax.ShapeDtypeStruct((B, S, D), src.dtype),
            grid_spec=pltpu.PrefetchScalarGridSpec(
                num_scalar_prefetch=0,
                grid=(B // tb,),
                in_specs=in_specs,
                out_specs=pl.BlockSpec((tb, S, D), lambda b: (b, 0, 0)),
            ),
            compiler_params=pltpu.CompilerParams(
                dimension_semantics=("parallel",),
                vmem_limit_bytes=vmem_limit,
            ),
            cost_estimate=cost,
        )
        return fn(*operands)

    try:
        return run(True)
    except Exception:
        # Fallback: default double-buffered weight specs (correctness unaffected,
        # only costs extra VMEM) in case Buffered(1) is rejected by this JAX build.
        return run(False)


def reference_jax(src, params, nhead):
    """Pure-JAX f32 reference mirroring PyTorch semantics (eval mode, no masks)."""
    B, S, D = src.shape
    hd = D // nhead

    def ln(x, g, b):
        mu = jnp.mean(x, axis=-1, keepdims=True)
        var = jnp.mean((x - mu) ** 2, axis=-1, keepdims=True)
        return (x - mu) / jnp.sqrt(var + 1e-5) * g + b

    x = src
    x2 = ln(x, params["g1"], params["be1"])
    qkv = x2 @ params["wqkv"].T + params["bqkv"]       # (B, S, 3D)
    q, k, v = jnp.split(qkv, 3, axis=-1)

    def split_heads(t):                                # (B, S, D) -> (B, H, S, hd)
        return t.reshape(B, S, nhead, hd).transpose(0, 2, 1, 3)

    qh, kh, vh = map(split_heads, (q, k, v))
    s = jnp.einsum("bhqd,bhkd->bhqk", qh, kh) / math.sqrt(hd)
    p = jax.nn.softmax(s, axis=-1)
    attn = jnp.einsum("bhqk,bhkd->bhqd", p, vh).transpose(0, 2, 1, 3).reshape(B, S, D)
    attn = attn @ params["wo"].T + params["bo"]
    x = x + attn
    x2 = ln(x, params["g2"], params["be2"])
    ff = jnp.maximum(x2 @ params["w1"].T + params["b1"], 0.0) @ params["w2"].T + params["b2"]
    return x + ff


if __name__ == "__main__":
    # Small but lane-dense shapes: D and FF multiples of 128, S multiple of 8, B gives
    # a (TB=4, grid=2) batch-folded tiling (M = 64 rows per projection matmul).
    B, S, D, H, FF = 8, 16, 128, 4, 256

    key = jax.random.PRNGKey(0)
    ks = jax.random.split(key, 13)
    sc = 0.1
    params = {
        "wqkv": sc * jax.random.normal(ks[0], (3 * D, D), jnp.float32),
        "bqkv": sc * jax.random.normal(ks[1], (3 * D,), jnp.float32),
        "wo":   sc * jax.random.normal(ks[2], (D, D), jnp.float32),
        "bo":   sc * jax.random.normal(ks[3], (D,), jnp.float32),
        "w1":   sc * jax.random.normal(ks[4], (FF, D), jnp.float32),
        "b1":   sc * jax.random.normal(ks[5], (FF,), jnp.float32),
        "w2":   sc * jax.random.normal(ks[6], (D, FF), jnp.float32),
        "b2":   sc * jax.random.normal(ks[7], (D,), jnp.float32),
        "g1":   1.0 + 0.1 * jax.random.normal(ks[8], (D,), jnp.float32),
        "be1":  0.1 * jax.random.normal(ks[9], (D,), jnp.float32),
        "g2":   1.0 + 0.1 * jax.random.normal(ks[10], (D,), jnp.float32),
        "be2":  0.1 * jax.random.normal(ks[11], (D,), jnp.float32),
    }
    src = jax.random.normal(ks[12], (B, S, D), jnp.float32)

    ref = jax.block_until_ready(reference_jax(src, params, nhead=H))

    # 1) exactness check: full-f32 compute path (exact reciprocal, f32 MXU operands)
    out_f32 = jax.block_until_ready(
        prenorm_transformer_encoder_layer(src, params, H, compute_dtype=jnp.float32))
    np.testing.assert_allclose(np.asarray(out_f32), np.asarray(ref), atol=1e-3, rtol=1e-3)

    # 2) perf path: bf16 MXU operands, f32 accumulation / LN / softmax (loose tolerance)
    out_bf16 = jax.block_until_ready(
        prenorm_transformer_encoder_layer(src, params, H, compute_dtype=jnp.bfloat16))
    np.testing.assert_allclose(np.asarray(out_bf16), np.asarray(ref), atol=1e-1, rtol=1e-1)

    print("KERNEL_OK")
</pallas_src>

<mosaic_0001>
module attributes {stable_mosaic.version = 11 : i64} {
  func.func @prenorm_encoder_kernel(%arg0: i32, %arg1: memref<4x16x128xf32, #tpu.memory_space<vmem>>, %arg2: memref<128x384xf32, #tpu.memory_space<vmem>>, %arg3: memref<1x384xf32, #tpu.memory_space<vmem>>, %arg4: memref<128x128xf32, #tpu.memory_space<vmem>>, %arg5: memref<1x128xf32, #tpu.memory_space<vmem>>, %arg6: memref<128x256xf32, #tpu.memory_space<vmem>>, %arg7: memref<1x256xf32, #tpu.memory_space<vmem>>, %arg8: memref<256x128xf32, #tpu.memory_space<vmem>>, %arg9: memref<1x128xf32, #tpu.memory_space<vmem>>, %arg10: memref<1x128xf32, #tpu.memory_space<vmem>>, %arg11: memref<1x128xf32, #tpu.memory_space<vmem>>, %arg12: memref<1x128xf32, #tpu.memory_space<vmem>>, %arg13: memref<1x128xf32, #tpu.memory_space<vmem>>, %arg14: memref<4x16x128xf32, #tpu.memory_space<vmem>>) attributes {dimension_semantics = [#tpu.dimension_semantics<parallel>], iteration_bounds = array<i64: 2>, scalar_prefetch = 0 : i64, scratch_operands = 0 : i64, tpu.core_type = #tpu.core_type<tc>, window_params = [{transform_indices = @transform_0, window_bounds = array<i64: 4, 16, 128>}, {pipeline_mode = #tpu.pipeline_mode<synchronous>, transform_indices = @transform_1, window_bounds = array<i64: 128, 384>}, {pipeline_mode = #tpu.pipeline_mode<synchronous>, transform_indices = @transform_2, window_bounds = array<i64: 1, 384>}, {pipeline_mode = #tpu.pipeline_mode<synchronous>, transform_indices = @transform_3, window_bounds = array<i64: 128, 128>}, {pipeline_mode = #tpu.pipeline_mode<synchronous>, transform_indices = @transform_4, window_bounds = array<i64: 1, 128>}, {pipeline_mode = #tpu.pipeline_mode<synchronous>, transform_indices = @transform_5, window_bounds = array<i64: 128, 256>}, {pipeline_mode = #tpu.pipeline_mode<synchronous>, transform_indices = @transform_6, window_bounds = array<i64: 1, 256>}, {pipeline_mode = #tpu.pipeline_mode<synchronous>, transform_indices = @transform_7, window_bounds = array<i64: 256, 128>}, {pipeline_mode = #tpu.pipeline_mode<synchronous>, transform_indices = @transform_8, window_bounds = array<i64: 1, 128>}, {pipeline_mode = #tpu.pipeline_mode<synchronous>, transform_indices = @transform_9, window_bounds = array<i64: 1, 128>}, {pipeline_mode = #tpu.pipeline_mode<synchronous>, transform_indices = @transform_10, window_bounds = array<i64: 1, 128>}, {pipeline_mode = #tpu.pipeline_mode<synchronous>, transform_indices = @transform_11, window_bounds = array<i64: 1, 128>}, {pipeline_mode = #tpu.pipeline_mode<synchronous>, transform_indices = @transform_12, window_bounds = array<i64: 1, 128>}, {transform_indices = @transform_13, window_bounds = array<i64: 4, 16, 128>}]} {
    %c0 = arith.constant 0 : index
    %c0_0 = arith.constant 0 : index
    %c0_1 = arith.constant 0 : index
    %0 = vector.load %arg1[%c0, %c0_0, %c0_1] : memref<4x16x128xf32, #tpu.memory_space<vmem>>, vector<4x16x128xf32>
    %1 = vector.shape_cast %0 : vector<4x16x128xf32> to vector<64x128xf32>
    %c0_2 = arith.constant 0 : index
    %c0_3 = arith.constant 0 : index
    %2 = vector.load %arg10[%c0_2, %c0_3] : memref<1x128xf32, #tpu.memory_space<vmem>>, vector<1x128xf32>
    %c0_4 = arith.constant 0 : index
    %c0_5 = arith.constant 0 : index
    %3 = vector.load %arg11[%c0_4, %c0_5] : memref<1x128xf32, #tpu.memory_space<vmem>>, vector<1x128xf32>
    %cst = arith.constant dense<0.000000e+00> : vector<64xf32>
    %4 = vector.multi_reduction <add>, %1, %cst [1] : vector<64x128xf32> to vector<64xf32>
    %5 = vector.shape_cast %4 : vector<64xf32> to vector<64x1xf32>
    %cst_6 = arith.constant 1.280000e+02 : f32
    %6 = vector.broadcast %cst_6 : f32 to vector<64x1xf32>
    %7 = arith.divf %5, %6 : vector<64x1xf32>
    %8 = vector.broadcast %7 : vector<64x1xf32> to vector<64x128xf32>
    %9 = arith.subf %1, %8 : vector<64x128xf32>
    %10 = arith.mulf %9, %9 : vector<64x128xf32>
    %cst_7 = arith.constant dense<0.000000e+00> : vector<64xf32>
    %11 = vector.multi_reduction <add>, %10, %cst_7 [1] : vector<64x128xf32> to vector<64xf32>
    %12 = vector.shape_cast %11 : vector<64xf32> to vector<64x1xf32>
    %cst_8 = arith.constant 1.280000e+02 : f32
    %13 = vector.broadcast %cst_8 : f32 to vector<64x1xf32>
    %14 = arith.divf %12, %13 : vector<64x1xf32>
    %15 = vector.broadcast %7 : vector<64x1xf32> to vector<64x128xf32>
    %16 = arith.subf %1, %15 : vector<64x128xf32>
    %cst_9 = arith.constant 9.99999974E-6 : f32
    %17 = vector.broadcast %cst_9 : f32 to vector<64x1xf32>
    %18 = arith.addf %14, %17 : vector<64x1xf32>
    %19 = math.rsqrt %18 : vector<64x1xf32>
    %20 = vector.broadcast %19 : vector<64x1xf32> to vector<64x128xf32>
    %21 = arith.mulf %16, %20 : vector<64x128xf32>
    %22 = vector.broadcast %2 : vector<1x128xf32> to vector<64x128xf32>
    %23 = arith.mulf %21, %22 : vector<64x128xf32>
    %24 = vector.broadcast %3 : vector<1x128xf32> to vector<64x128xf32>
    %25 = arith.addf %23, %24 : vector<64x128xf32>
    %c0_10 = arith.constant 0 : index
    %c0_11 = arith.constant 0 : index
    %26 = vector.load %arg2[%c0_10, %c0_11] : memref<128x384xf32, #tpu.memory_space<vmem>>, vector<128x384xf32>
    %cst_12 = arith.constant dense<0.000000e+00> : vector<64x384xf32>
    %27 = tpu.matmul %25, %26, %cst_12 {dimension_numbers = #tpu.dot_dimension_numbers<[1], [0], [0], [1], [0, 0, 1, 1], [], []>} : vector<64x128xf32>, vector<128x384xf32>, vector<64x384xf32> -> vector<64x384xf32>
    %c0_13 = arith.constant 0 : index
    %c0_14 = arith.constant 0 : index
    %28 = vector.load %arg3[%c0_13, %c0_14] : memref<1x384xf32, #tpu.memory_space<vmem>>, vector<1x384xf32>
    %29 = vector.broadcast %28 : vector<1x384xf32> to vector<64x384xf32>
    %30 = arith.addf %27, %29 : vector<64x384xf32>
    %31 = vector.extract_strided_slice %30 {offsets = [0, 0], sizes = [64, 32], strides = [1, 1]} : vector<64x384xf32> to vector<64x32xf32>
    %32 = vector.extract_strided_slice %30 {offsets = [0, 32], sizes = [64, 32], strides = [1, 1]} : vector<64x384xf32> to vector<64x32xf32>
    %33 = vector.extract_strided_slice %30 {offsets = [0, 64], sizes = [64, 32], strides = [1, 1]} : vector<64x384xf32> to vector<64x32xf32>
    %34 = vector.extract_strided_slice %30 {offsets = [0, 96], sizes = [64, 32], strides = [1, 1]} : vector<64x384xf32> to vector<64x32xf32>
    %35 = tpu.concatenate %31, %32, %33, %34 in 0 : vector<64x32xf32>, vector<64x32xf32>, vector<64x32xf32>, vector<64x32xf32> -> vector<256x32xf32>
    %36 = vector.shape_cast %35 : vector<256x32xf32> to vector<16x16x32xf32>
    %37 = vector.extract_strided_slice %30 {offsets = [0, 128], sizes = [64, 32], strides = [1, 1]} : vector<64x384xf32> to vector<64x32xf32>
    %38 = vector.extract_strided_slice %30 {offsets = [0, 160], sizes = [64, 32], strides = [1, 1]} : vector<64x384xf32> to vector<64x32xf32>
    %39 = vector.extract_strided_slice %30 {offsets = [0, 192], sizes = [64, 32], strides = [1, 1]} : vector<64x384xf32> to vector<64x32xf32>
    %40 = vector.extract_strided_slice %30 {offsets = [0, 224], sizes = [64, 32], strides = [1, 1]} : vector<64x384xf32> to vector<64x32xf32>
    %41 = tpu.concatenate %37, %38, %39, %40 in 0 : vector<64x32xf32>, vector<64x32xf32>, vector<64x32xf32>, vector<64x32xf32> -> vector<256x32xf32>
    %42 = vector.shape_cast %41 : vector<256x32xf32> to vector<16x16x32xf32>
    %43 = vector.extract_strided_slice %30 {offsets = [0, 256], sizes = [64, 32], strides = [1, 1]} : vector<64x384xf32> to vector<64x32xf32>
    %44 = vector.extract_strided_slice %30 {offsets = [0, 288], sizes = [64, 32], strides = [1, 1]} : vector<64x384xf32> to vector<64x32xf32>
    %45 = vector.extract_strided_slice %30 {offsets = [0, 320], sizes = [64, 32], strides = [1, 1]} : vector<64x384xf32> to vector<64x32xf32>
    %46 = vector.extract_strided_slice %30 {offsets = [0, 352], sizes = [64, 32], strides = [1, 1]} : vector<64x384xf32> to vector<64x32xf32>
    %47 = tpu.concatenate %43, %44, %45, %46 in 0 : vector<64x32xf32>, vector<64x32xf32>, vector<64x32xf32>, vector<64x32xf32> -> vector<256x32xf32>
    %48 = vector.shape_cast %47 : vector<256x32xf32> to vector<16x16x32xf32>
    "tpu.trace_start"() <{level = 10 : i32, message = "bqd,bkd->bqk"}> : () -> ()
    %cst_15 = arith.constant dense<0.000000e+00> : vector<16x16x16xf32>
    %49 = tpu.matmul %36, %42, %cst_15 {dimension_numbers = #tpu.dot_dimension_numbers<[2], [2], [1], [1], [0, 0, 0, 1, 1, 1], [0], [0]>} : vector<16x16x32xf32>, vector<16x16x32xf32>, vector<16x16x16xf32> -> vector<16x16x16xf32>
    "tpu.trace_stop"() : () -> ()
    %cst_16 = arith.constant dense<0xFF800000> : vector<16x16xf32>
    %50 = vector.multi_reduction <maximumf>, %49, %cst_16 [2] : vector<16x16x16xf32> to vector<16x16xf32>
    %51 = vector.shape_cast %50 : vector<16x16xf32> to vector<16x16x1xf32>
    %52 = vector.broadcast %51 : vector<16x16x1xf32> to vector<16x16x16xf32>
    %53 = arith.subf %49, %52 : vector<16x16x16xf32>
    %54 = math.exp %53 : vector<16x16x16xf32>
    %cst_17 = arith.constant dense<0.000000e+00> : vector<16x16xf32>
    %55 = vector.multi_reduction <add>, %54, %cst_17 [2] : vector<16x16x16xf32> to vector<16x16xf32>
    %56 = vector.shape_cast %55 : vector<16x16xf32> to vector<16x16x1xf32>
    "tpu.trace_start"() <{level = 10 : i32, message = "bqk,bkd->bqd"}> : () -> ()
    %cst_18 = arith.constant dense<0.000000e+00> : vector<16x16x32xf32>
    %57 = tpu.matmul %54, %48, %cst_18 {dimension_numbers = #tpu.dot_dimension_numbers<[2], [1], [1], [2], [0, 0, 0, 1, 1, 2], [0], [0]>} : vector<16x16x16xf32>, vector<16x16x32xf32>, vector<16x16x32xf32> -> vector<16x16x32xf32>
    "tpu.trace_stop"() : () -> ()
    %58 = tpu.reciprocal %56 : vector<16x16x1xf32> -> vector<16x16x1xf32>
    %59 = vector.broadcast %58 : vector<16x16x1xf32> to vector<16x16x32xf32>
    %60 = arith.mulf %57, %59 : vector<16x16x32xf32>
    %61 = vector.shape_cast %60 : vector<16x16x32xf32> to vector<256x32xf32>
    %62 = vector.extract_strided_slice %61 {offsets = [0, 0], sizes = [64, 32], strides = [1, 1]} : vector<256x32xf32> to vector<64x32xf32>
    %63 = vector.extract_strided_slice %61 {offsets = [64, 0], sizes = [64, 32], strides = [1, 1]} : vector<256x32xf32> to vector<64x32xf32>
    %64 = vector.extract_strided_slice %61 {offsets = [128, 0], sizes = [64, 32], strides = [1, 1]} : vector<256x32xf32> to vector<64x32xf32>
    %65 = vector.extract_strided_slice %61 {offsets = [192, 0], sizes = [64, 32], strides = [1, 1]} : vector<256x32xf32> to vector<64x32xf32>
    %66 = tpu.concatenate %62, %63, %64, %65 in 1 : vector<64x32xf32>, vector<64x32xf32>, vector<64x32xf32>, vector<64x32xf32> -> vector<64x128xf32>
    %c0_19 = arith.constant 0 : index
    %c0_20 = arith.constant 0 : index
    %67 = vector.load %arg4[%c0_19, %c0_20] : memref<128x128xf32, #tpu.memory_space<vmem>>, vector<128x128xf32>
    %cst_21 = arith.constant dense<0.000000e+00> : vector<64x128xf32>
    %68 = tpu.matmul %66, %67, %cst_21 {dimension_numbers = #tpu.dot_dimension_numbers<[1], [0], [0], [1], [0, 0, 1, 1], [], []>} : vector<64x128xf32>, vector<128x128xf32>, vector<64x128xf32> -> vector<64x128xf32>
    %c0_22 = arith.constant 0 : index
    %c0_23 = arith.constant 0 : index
    %69 = vector.load %arg5[%c0_22, %c0_23] : memref<1x128xf32, #tpu.memory_space<vmem>>, vector<1x128xf32>
    %70 = vector.broadcast %69 : vector<1x128xf32> to vector<64x128xf32>
    %71 = arith.addf %68, %70 : vector<64x128xf32>
    %72 = arith.addf %1, %71 : vector<64x128xf32>
    %c0_24 = arith.constant 0 : index
    %c0_25 = arith.constant 0 : index
    %73 = vector.load %arg12[%c0_24, %c0_25] : memref<1x128xf32, #tpu.memory_space<vmem>>, vector<1x128xf32>
    %c0_26 = arith.constant 0 : index
    %c0_27 = arith.constant 0 : index
    %74 = vector.load %arg13[%c0_26, %c0_27] : memref<1x128xf32, #tpu.memory_space<vmem>>, vector<1x128xf32>
    %cst_28 = arith.constant dense<0.000000e+00> : vector<64xf32>
    %75 = vector.multi_reduction <add>, %72, %cst_28 [1] : vector<64x128xf32> to vector<64xf32>
    %76 = vector.shape_cast %75 : vector<64xf32> to vector<64x1xf32>
    %cst_29 = arith.constant 1.280000e+02 : f32
    %77 = vector.broadcast %cst_29 : f32 to vector<64x1xf32>
    %78 = arith.divf %76, %77 : vector<64x1xf32>
    %79 = vector.broadcast %78 : vector<64x1xf32> to vector<64x128xf32>
    %80 = arith.subf %72, %79 : vector<64x128xf32>
    %81 = arith.mulf %80, %80 : vector<64x128xf32>
    %cst_30 = arith.constant dense<0.000000e+00> : vector<64xf32>
    %82 = vector.multi_reduction <add>, %81, %cst_30 [1] : vector<64x128xf32> to vector<64xf32>
    %83 = vector.shape_cast %82 : vector<64xf32> to vector<64x1xf32>
    %cst_31 = arith.constant 1.280000e+02 : f32
    %84 = vector.broadcast %cst_31 : f32 to vector<64x1xf32>
    %85 = arith.divf %83, %84 : vector<64x1xf32>
    %86 = vector.broadcast %78 : vector<64x1xf32> to vector<64x128xf32>
    %87 = arith.subf %72, %86 : vector<64x128xf32>
    %cst_32 = arith.constant 9.99999974E-6 : f32
    %88 = vector.broadcast %cst_32 : f32 to vector<64x1xf32>
    %89 = arith.addf %85, %88 : vector<64x1xf32>
    %90 = math.rsqrt %89 : vector<64x1xf32>
    %91 = vector.broadcast %90 : vector<64x1xf32> to vector<64x128xf32>
    %92 = arith.mulf %87, %91 : vector<64x128xf32>
    %93 = vector.broadcast %73 : vector<1x128xf32> to vector<64x128xf32>
    %94 = arith.mulf %92, %93 : vector<64x128xf32>
    %95 = vector.broadcast %74 : vector<1x128xf32> to vector<64x128xf32>
    %96 = arith.addf %94, %95 : vector<64x128xf32>
    %c0_33 = arith.constant 0 : index
    %c0_34 = arith.constant 0 : index
    %97 = vector.load %arg6[%c0_33, %c0_34] : memref<128x256xf32, #tpu.memory_space<vmem>>, vector<128x256xf32>
    %cst_35 = arith.constant dense<0.000000e+00> : vector<64x256xf32>
    %98 = tpu.matmul %96, %97, %cst_35 {dimension_numbers = #tpu.dot_dimension_numbers<[1], [0], [0], [1], [0, 0, 1, 1], [], []>} : vector<64x128xf32>, vector<128x256xf32>, vector<64x256xf32> -> vector<64x256xf32>
    %c0_36 = arith.constant 0 : index
    %c0_37 = arith.constant 0 : index
    %99 = vector.load %arg7[%c0_36, %c0_37] : memref<1x256xf32, #tpu.memory_space<vmem>>, vector<1x256xf32>
    %100 = vector.broadcast %99 : vector<1x256xf32> to vector<64x256xf32>
    %101 = arith.addf %98, %100 : vector<64x256xf32>
    %cst_38 = arith.constant 0.000000e+00 : f32
    %102 = vector.broadcast %cst_38 : f32 to vector<64x256xf32>
    %103 = arith.maximumf %101, %102 : vector<64x256xf32>
    %c0_39 = arith.constant 0 : index
    %c0_40 = arith.constant 0 : index
    %104 = vector.load %arg8[%c0_39, %c0_40] : memref<256x128xf32, #tpu.memory_space<vmem>>, vector<256x128xf32>
    %cst_41 = arith.constant dense<0.000000e+00> : vector<64x128xf32>
    %105 = tpu.matmul %103, %104, %cst_41 {dimension_numbers = #tpu.dot_dimension_numbers<[1], [0], [0], [1], [0, 0, 1, 1], [], []>} : vector<64x256xf32>, vector<256x128xf32>, vector<64x128xf32> -> vector<64x128xf32>
    %c0_42 = arith.constant 0 : index
    %c0_43 = arith.constant 0 : index
    %106 = vector.load %arg9[%c0_42, %c0_43] : memref<1x128xf32, #tpu.memory_space<vmem>>, vector<1x128xf32>
    %107 = vector.broadcast %106 : vector<1x128xf32> to vector<64x128xf32>
    %108 = arith.addf %105, %107 : vector<64x128xf32>
    %109 = arith.addf %72, %108 : vector<64x128xf32>
    %110 = vector.shape_cast %109 : vector<64x128xf32> to vector<4x16x128xf32>
    %c0_44 = arith.constant 0 : index
    %c0_45 = arith.constant 0 : index
    %c0_46 = arith.constant 0 : index
    %111 = vector.load %arg14[%c0_44, %c0_45, %c0_46] : memref<4x16x128xf32, #tpu.memory_space<vmem>>, vector<4x16x128xf32>
    tpu.vector_store %arg14[%c0_44, %c0_45, %c0_46], %110 {strides = array<i32>} : memref<4x16x128xf32, #tpu.memory_space<vmem>>, vector<4x16x128xf32>,
    return
  }
  func.func @transform_0(%arg0: i32) -> (i32, i32, i32) {
    %c0_i32 = arith.constant 0 : i32
    %c0_i32_0 = arith.constant 0 : i32
    %c0_i32_1 = arith.constant 0 : i32
    return %arg0, %c0_i32, %c0_i32_0 : i32, i32, i32
  }
  func.func @transform_1(%arg0: i32) -> (i32, i32) {
    %c0_i32 = arith.constant 0 : i32
    %c0_i32_0 = arith.constant 0 : i32
    %c0_i32_1 = arith.constant 0 : i32
    return %c0_i32, %c0_i32_0 : i32, i32
  }
  func.func @transform_2(%arg0: i32) -> (i32, i32) {
    %c0_i32 = arith.constant 0 : i32
    %c0_i32_0 = arith.constant 0 : i32
    %c0_i32_1 = arith.constant 0 : i32
    return %c0_i32, %c0_i32_0 : i32, i32
  }
  func.func @transform_3(%arg0: i32) -> (i32, i32) {
    %c0_i32 = arith.constant 0 : i32
    %c0_i32_0 = arith.constant 0 : i32
    %c0_i32_1 = arith.constant 0 : i32
    return %c0_i32, %c0_i32_0 : i32, i32
  }
  func.func @transform_4(%arg0: i32) -> (i32, i32) {
    %c0_i32 = arith.constant 0 : i32
    %c0_i32_0 = arith.constant 0 : i32
    %c0_i32_1 = arith.constant 0 : i32
    return %c0_i32, %c0_i32_0 : i32, i32
  }
  func.func @transform_5(%arg0: i32) -> (i32, i32) {
    %c0_i32 = arith.constant 0 : i32
    %c0_i32_0 = arith.constant 0 : i32
    %c0_i32_1 = arith.constant 0 : i32
    return %c0_i32, %c0_i32_0 : i32, i32
  }
  func.func @transform_6(%arg0: i32) -> (i32, i32) {
    %c0_i32 = arith.constant 0 : i32
    %c0_i32_0 = arith.constant 0 : i32
    %c0_i32_1 = arith.constant 0 : i32
    return %c0_i32, %c0_i32_0 : i32, i32
  }
  func.func @transform_7(%arg0: i32) -> (i32, i32) {
    %c0_i32 = arith.constant 0 : i32
    %c0_i32_0 = arith.constant 0 : i32
    %c0_i32_1 = arith.constant 0 : i32
    return %c0_i32, %c0_i32_0 : i32, i32
  }
  func.func @transform_8(%arg0: i32) -> (i32, i32) {
    %c0_i32 = arith.constant 0 : i32
    %c0_i32_0 = arith.constant 0 : i32
    %c0_i32_1 = arith.constant 0 : i32
    return %c0_i32, %c0_i32_0 : i32, i32
  }
  func.func @transform_9(%arg0: i32) -> (i32, i32) {
    %c0_i32 = arith.constant 0 : i32
    %c0_i32_0 = arith.constant 0 : i32
    %c0_i32_1 = arith.constant 0 : i32
    return %c0_i32, %c0_i32_0 : i32, i32
  }
  func.func @transform_10(%arg0: i32) -> (i32, i32) {
    %c0_i32 = arith.constant 0 : i32
    %c0_i32_0 = arith.constant 0 : i32
    %c0_i32_1 = arith.constant 0 : i32
    return %c0_i32, %c0_i32_0 : i32, i32
  }
  func.func @transform_11(%arg0: i32) -> (i32, i32) {
    %c0_i32 = arith.constant 0 : i32
    %c0_i32_0 = arith.constant 0 : i32
    %c0_i32_1 = arith.constant 0 : i32
    return %c0_i32, %c0_i32_0 : i32, i32
  }
  func.func @transform_12(%arg0: i32) -> (i32, i32) {
    %c0_i32 = arith.constant 0 : i32
    %c0_i32_0 = arith.constant 0 : i32
    %c0_i32_1 = arith.constant 0 : i32
    return %c0_i32, %c0_i32_0 : i32, i32
  }
  func.func @transform_13(%arg0: i32) -> (i32, i32, i32) {
    %c0_i32 = arith.constant 0 : i32
    %c0_i32_0 = arith.constant 0 : i32
    %c0_i32_1 = arith.constant 0 : i32
    return %arg0, %c0_i32, %c0_i32_0 : i32, i32, i32
  }
}

module attributes {stable_mosaic.version = 11 : i64} {
  func.func @prenorm_encoder_kernel(%arg0: i32, %arg1: memref<4x16x128xf32, #tpu.memory_space<vmem>>, %arg2: memref<128x384xf32, #tpu.memory_space<vmem>>, %arg3: memref<1x384xf32, #tpu.memory_space<vmem>>, %arg4: memref<128x128xf32, #tpu.memory_space<vmem>>, %arg5: memref<1x128xf32, #tpu.memory_space<vmem>>, %arg6: memref<128x256xf32, #tpu.memory_space<vmem>>, %arg7: memref<1x256xf32, #tpu.memory_space<vmem>>, %arg8: memref<256x128xf32, #tpu.memory_space<vmem>>, %arg9: memref<1x128xf32, #tpu.memory_space<vmem>>, %arg10: memref<1x128xf32, #tpu.memory_space<vmem>>, %arg11: memref<1x128xf32, #tpu.memory_space<vmem>>, %arg12: memref<1x128xf32, #tpu.memory_space<vmem>>, %arg13: memref<1x128xf32, #tpu.memory_space<vmem>>, %arg14: memref<4x16x128xf32, #tpu.memory_space<vmem>>) attributes {dimension_semantics = [#tpu.dimension_semantics<parallel>], iteration_bounds = array<i64: 2>, scalar_prefetch = 0 : i64, scratch_operands = 0 : i64, tpu.core_type = #tpu.core_type<tc>, window_params = [{transform_indices = @transform_0, window_bounds = array<i64: 4, 16, 128>}, {pipeline_mode = #tpu.pipeline_mode<synchronous>, transform_indices = @transform_1, window_bounds = array<i64: 128, 384>}, {pipeline_mode = #tpu.pipeline_mode<synchronous>, transform_indices = @transform_2, window_bounds = array<i64: 1, 384>}, {pipeline_mode = #tpu.pipeline_mode<synchronous>, transform_indices = @transform_3, window_bounds = array<i64: 128, 128>}, {pipeline_mode = #tpu.pipeline_mode<synchronous>, transform_indices = @transform_4, window_bounds = array<i64: 1, 128>}, {pipeline_mode = #tpu.pipeline_mode<synchronous>, transform_indices = @transform_5, window_bounds = array<i64: 128, 256>}, {pipeline_mode = #tpu.pipeline_mode<synchronous>, transform_indices = @transform_6, window_bounds = array<i64: 1, 256>}, {pipeline_mode = #tpu.pipeline_mode<synchronous>, transform_indices = @transform_7, window_bounds = array<i64: 256, 128>}, {pipeline_mode = #tpu.pipeline_mode<synchronous>, transform_indices = @transform_8, window_bounds = array<i64: 1, 128>}, {pipeline_mode = #tpu.pipeline_mode<synchronous>, transform_indices = @transform_9, window_bounds = array<i64: 1, 128>}, {pipeline_mode = #tpu.pipeline_mode<synchronous>, transform_indices = @transform_10, window_bounds = array<i64: 1, 128>}, {pipeline_mode = #tpu.pipeline_mode<synchronous>, transform_indices = @transform_11, window_bounds = array<i64: 1, 128>}, {pipeline_mode = #tpu.pipeline_mode<synchronous>, transform_indices = @transform_12, window_bounds = array<i64: 1, 128>}, {transform_indices = @transform_13, window_bounds = array<i64: 4, 16, 128>}]} {
    %c0 = arith.constant 0 : index
    %c0_0 = arith.constant 0 : index
    %c0_1 = arith.constant 0 : index
    %0 = vector.load %arg1[%c0, %c0_0, %c0_1] : memref<4x16x128xf32, #tpu.memory_space<vmem>>, vector<4x16x128xf32>
    %1 = vector.shape_cast %0 : vector<4x16x128xf32> to vector<64x128xf32>
    %c0_2 = arith.constant 0 : index
    %c0_3 = arith.constant 0 : index
    %2 = vector.load %arg10[%c0_2, %c0_3] : memref<1x128xf32, #tpu.memory_space<vmem>>, vector<1x128xf32>
    %c0_4 = arith.constant 0 : index
    %c0_5 = arith.constant 0 : index
    %3 = vector.load %arg11[%c0_4, %c0_5] : memref<1x128xf32, #tpu.memory_space<vmem>>, vector<1x128xf32>
    %cst = arith.constant dense<0.000000e+00> : vector<64xf32>
    %4 = vector.multi_reduction <add>, %1, %cst [1] : vector<64x128xf32> to vector<64xf32>
    %5 = vector.shape_cast %4 : vector<64xf32> to vector<64x1xf32>
    %cst_6 = arith.constant 1.280000e+02 : f32
    %6 = vector.broadcast %cst_6 : f32 to vector<64x1xf32>
    %7 = arith.divf %5, %6 : vector<64x1xf32>
    %8 = vector.broadcast %7 : vector<64x1xf32> to vector<64x128xf32>
    %9 = arith.subf %1, %8 : vector<64x128xf32>
    %10 = arith.mulf %9, %9 : vector<64x128xf32>
    %cst_7 = arith.constant dense<0.000000e+00> : vector<64xf32>
    %11 = vector.multi_reduction <add>, %10, %cst_7 [1] : vector<64x128xf32> to vector<64xf32>
    %12 = vector.shape_cast %11 : vector<64xf32> to vector<64x1xf32>
    %cst_8 = arith.constant 1.280000e+02 : f32
    %13 = vector.broadcast %cst_8 : f32 to vector<64x1xf32>
    %14 = arith.divf %12, %13 : vector<64x1xf32>
    %15 = vector.broadcast %7 : vector<64x1xf32> to vector<64x128xf32>
    %16 = arith.subf %1, %15 : vector<64x128xf32>
    %cst_9 = arith.constant 9.99999974E-6 : f32
    %17 = vector.broadcast %cst_9 : f32 to vector<64x1xf32>
    %18 = arith.addf %14, %17 : vector<64x1xf32>
    %19 = math.rsqrt %18 : vector<64x1xf32>
    %20 = vector.broadcast %19 : vector<64x1xf32> to vector<64x128xf32>
    %21 = arith.mulf %16, %20 : vector<64x128xf32>
    %22 = vector.broadcast %2 : vector<1x128xf32> to vector<64x128xf32>
    %23 = arith.mulf %21, %22 : vector<64x128xf32>
    %24 = vector.broadcast %3 : vector<1x128xf32> to vector<64x128xf32>
    %25 = arith.addf %23, %24 : vector<64x128xf32>
    %c0_10 = arith.constant 0 : index
    %c0_11 = arith.constant 0 : index
    %26 = vector.load %arg2[%c0_10, %c0_11] : memref<128x384xf32, #tpu.memory_space<vmem>>, vector<128x384xf32>
    %cst_12 = arith.constant dense<0.000000e+00> : vector<64x384xf32>
    %27 = tpu.matmul %25, %26, %cst_12 {dimension_numbers = #tpu.dot_dimension_numbers<[1], [0], [0], [1], [0, 0, 1, 1], [], []>} : vector<64x128xf32>, vector<128x384xf32>, vector<64x384xf32> -> vector<64x384xf32>
    %c0_13 = arith.constant 0 : index
    %c0_14 = arith.constant 0 : index
    %28 = vector.load %arg3[%c0_13, %c0_14] : memref<1x384xf32, #tpu.memory_space<vmem>>, vector<1x384xf32>
    %29 = vector.broadcast %28 : vector<1x384xf32> to vector<64x384xf32>
    %30 = arith.addf %27, %29 : vector<64x384xf32>
    %31 = vector.extract_strided_slice %30 {offsets = [0, 0], sizes = [64, 32], strides = [1, 1]} : vector<64x384xf32> to vector<64x32xf32>
    %32 = vector.extract_strided_slice %30 {offsets = [0, 32], sizes = [64, 32], strides = [1, 1]} : vector<64x384xf32> to vector<64x32xf32>
    %33 = vector.extract_strided_slice %30 {offsets = [0, 64], sizes = [64, 32], strides = [1, 1]} : vector<64x384xf32> to vector<64x32xf32>
    %34 = vector.extract_strided_slice %30 {offsets = [0, 96], sizes = [64, 32], strides = [1, 1]} : vector<64x384xf32> to vector<64x32xf32>
    %35 = tpu.concatenate %31, %32, %33, %34 in 0 : vector<64x32xf32>, vector<64x32xf32>, vector<64x32xf32>, vector<64x32xf32> -> vector<256x32xf32>
    %36 = vector.shape_cast %35 : vector<256x32xf32> to vector<16x16x32xf32>
    %37 = vector.extract_strided_slice %30 {offsets = [0, 128], sizes = [64, 32], strides = [1, 1]} : vector<64x384xf32> to vector<64x32xf32>
    %38 = vector.extract_strided_slice %30 {offsets = [0, 160], sizes = [64, 32], strides = [1, 1]} : vector<64x384xf32> to vector<64x32xf32>
    %39 = vector.extract_strided_slice %30 {offsets = [0, 192], sizes = [64, 32], strides = [1, 1]} : vector<64x384xf32> to vector<64x32xf32>
    %40 = vector.extract_strided_slice %30 {offsets = [0, 224], sizes = [64, 32], strides = [1, 1]} : vector<64x384xf32> to vector<64x32xf32>
    %41 = tpu.concatenate %37, %38, %39, %40 in 0 : vector<64x32xf32>, vector<64x32xf32>, vector<64x32xf32>, vector<64x32xf32> -> vector<256x32xf32>
    %42 = vector.shape_cast %41 : vector<256x32xf32> to vector<16x16x32xf32>
    %43 = vector.extract_strided_slice %30 {offsets = [0, 256], sizes = [64, 32], strides = [1, 1]} : vector<64x384xf32> to vector<64x32xf32>
    %44 = vector.extract_strided_slice %30 {offsets = [0, 288], sizes = [64, 32], strides = [1, 1]} : vector<64x384xf32> to vector<64x32xf32>
    %45 = vector.extract_strided_slice %30 {offsets = [0, 320], sizes = [64, 32], strides = [1, 1]} : vector<64x384xf32> to vector<64x32xf32>
    %46 = vector.extract_strided_slice %30 {offsets = [0, 352], sizes = [64, 32], strides = [1, 1]} : vector<64x384xf32> to vector<64x32xf32>
    %47 = tpu.concatenate %43, %44, %45, %46 in 0 : vector<64x32xf32>, vector<64x32xf32>, vector<64x32xf32>, vector<64x32xf32> -> vector<256x32xf32>
    %48 = vector.shape_cast %47 : vector<256x32xf32> to vector<16x16x32xf32>
    "tpu.trace_start"() <{level = 10 : i32, message = "bqd,bkd->bqk"}> : () -> ()
    %cst_15 = arith.constant dense<0.000000e+00> : vector<16x16x16xf32>
    %49 = tpu.matmul %36, %42, %cst_15 {dimension_numbers = #tpu.dot_dimension_numbers<[2], [2], [1], [1], [0, 0, 0, 1, 1, 1], [0], [0]>} : vector<16x16x32xf32>, vector<16x16x32xf32>, vector<16x16x16xf32> -> vector<16x16x16xf32>
    "tpu.trace_stop"() : () -> ()
    %cst_16 = arith.constant dense<0xFF800000> : vector<16x16xf32>
    %50 = vector.multi_reduction <maximumf>, %49, %cst_16 [2] : vector<16x16x16xf32> to vector<16x16xf32>
    %51 = vector.shape_cast %50 : vector<16x16xf32> to vector<16x16x1xf32>
    %52 = vector.broadcast %51 : vector<16x16x1xf32> to vector<16x16x16xf32>
    %53 = arith.subf %49, %52 : vector<16x16x16xf32>
    %54 = math.exp %53 : vector<16x16x16xf32>
    %cst_17 = arith.constant dense<0.000000e+00> : vector<16x16xf32>
    %55 = vector.multi_reduction <add>, %54, %cst_17 [2] : vector<16x16x16xf32> to vector<16x16xf32>
    %56 = vector.shape_cast %55 : vector<16x16xf32> to vector<16x16x1xf32>
    "tpu.trace_start"() <{level = 10 : i32, message = "bqk,bkd->bqd"}> : () -> ()
    %cst_18 = arith.constant dense<0.000000e+00> : vector<16x16x32xf32>
    %57 = tpu.matmul %54, %48, %cst_18 {dimension_numbers = #tpu.dot_dimension_numbers<[2], [1], [1], [2], [0, 0, 0, 1, 1, 2], [0], [0]>} : vector<16x16x16xf32>, vector<16x16x32xf32>, vector<16x16x32xf32> -> vector<16x16x32xf32>
    "tpu.trace_stop"() : () -> ()
    %58 = tpu.reciprocal %56 : vector<16x16x1xf32> -> vector<16x16x1xf32>
    %59 = vector.broadcast %58 : vector<16x16x1xf32> to vector<16x16x32xf32>
    %60 = arith.mulf %57, %59 : vector<16x16x32xf32>
    %61 = vector.shape_cast %60 : vector<16x16x32xf32> to vector<256x32xf32>
    %62 = vector.extract_strided_slice %61 {offsets = [0, 0], sizes = [64, 32], strides = [1, 1]} : vector<256x32xf32> to vector<64x32xf32>
    %63 = vector.extract_strided_slice %61 {offsets = [64, 0], sizes = [64, 32], strides = [1, 1]} : vector<256x32xf32> to vector<64x32xf32>
    %64 = vector.extract_strided_slice %61 {offsets = [128, 0], sizes = [64, 32], strides = [1, 1]} : vector<256x32xf32> to vector<64x32xf32>
    %65 = vector.extract_strided_slice %61 {offsets = [192, 0], sizes = [64, 32], strides = [1, 1]} : vector<256x32xf32> to vector<64x32xf32>
    %66 = tpu.concatenate %62, %63, %64, %65 in 1 : vector<64x32xf32>, vector<64x32xf32>, vector<64x32xf32>, vector<64x32xf32> -> vector<64x128xf32>
    %c0_19 = arith.constant 0 : index
    %c0_20 = arith.constant 0 : index
    %67 = vector.load %arg4[%c0_19, %c0_20] : memref<128x128xf32, #tpu.memory_space<vmem>>, vector<128x128xf32>
    %cst_21 = arith.constant dense<0.000000e+00> : vector<64x128xf32>
    %68 = tpu.matmul %66, %67, %cst_21 {dimension_numbers = #tpu.dot_dimension_numbers<[1], [0], [0], [1], [0, 0, 1, 1], [], []>} : vector<64x128xf32>, vector<128x128xf32>, vector<64x128xf32> -> vector<64x128xf32>
    %c0_22 = arith.constant 0 : index
    %c0_23 = arith.constant 0 : index
    %69 = vector.load %arg5[%c0_22, %c0_23] : memref<1x128xf32, #tpu.memory_space<vmem>>, vector<1x128xf32>
    %70 = vector.broadcast %69 : vector<1x128xf32> to vector<64x128xf32>
    %71 = arith.addf %68, %70 : vector<64x128xf32>
    %72 = arith.addf %1, %71 : vector<64x128xf32>
    %c0_24 = arith.constant 0 : index
    %c0_25 = arith.constant 0 : index
    %73 = vector.load %arg12[%c0_24, %c0_25] : memref<1x128xf32, #tpu.memory_space<vmem>>, vector<1x128xf32>
    %c0_26 = arith.constant 0 : index
    %c0_27 = arith.constant 0 : index
    %74 = vector.load %arg13[%c0_26, %c0_27] : memref<1x128xf32, #tpu.memory_space<vmem>>, vector<1x128xf32>
    %cst_28 = arith.constant dense<0.000000e+00> : vector<64xf32>
    %75 = vector.multi_reduction <add>, %72, %cst_28 [1] : vector<64x128xf32> to vector<64xf32>
    %76 = vector.shape_cast %75 : vector<64xf32> to vector<64x1xf32>
    %cst_29 = arith.constant 1.280000e+02 : f32
    %77 = vector.broadcast %cst_29 : f32 to vector<64x1xf32>
    %78 = arith.divf %76, %77 : vector<64x1xf32>
    %79 = vector.broadcast %78 : vector<64x1xf32> to vector<64x128xf32>
    %80 = arith.subf %72, %79 : vector<64x128xf32>
    %81 = arith.mulf %80, %80 : vector<64x128xf32>
    %cst_30 = arith.constant dense<0.000000e+00> : vector<64xf32>
    %82 = vector.multi_reduction <add>, %81, %cst_30 [1] : vector<64x128xf32> to vector<64xf32>
    %83 = vector.shape_cast %82 : vector<64xf32> to vector<64x1xf32>
    %cst_31 = arith.constant 1.280000e+02 : f32
    %84 = vector.broadcast %cst_31 : f32 to vector<64x1xf32>
    %85 = arith.divf %83, %84 : vector<64x1xf32>
    %86 = vector.broadcast %78 : vector<64x1xf32> to vector<64x128xf32>
    %87 = arith.subf %72, %86 : vector<64x128xf32>
    %cst_32 = arith.constant 9.99999974E-6 : f32
    %88 = vector.broadcast %cst_32 : f32 to vector<64x1xf32>
    %89 = arith.addf %85, %88 : vector<64x1xf32>
    %90 = math.rsqrt %89 : vector<64x1xf32>
    %91 = vector.broadcast %90 : vector<64x1xf32> to vector<64x128xf32>
    %92 = arith.mulf %87, %91 : vector<64x128xf32>
    %93 = vector.broadcast %73 : vector<1x128xf32> to vector<64x128xf32>
    %94 = arith.mulf %92, %93 : vector<64x128xf32>
    %95 = vector.broadcast %74 : vector<1x128xf32> to vector<64x128xf32>
    %96 = arith.addf %94, %95 : vector<64x128xf32>
    %c0_33 = arith.constant 0 : index
    %c0_34 = arith.constant 0 : index
    %97 = vector.load %arg6[%c0_33, %c0_34] : memref<128x256xf32, #tpu.memory_space<vmem>>, vector<128x256xf32>
    %cst_35 = arith.constant dense<0.000000e+00> : vector<64x256xf32>
    %98 = tpu.matmul %96, %97, %cst_35 {dimension_numbers = #tpu.dot_dimension_numbers<[1], [0], [0], [1], [0, 0, 1, 1], [], []>} : vector<64x128xf32>, vector<128x256xf32>, vector<64x256xf32> -> vector<64x256xf32>
    %c0_36 = arith.constant 0 : index
    %c0_37 = arith.constant 0 : index
    %99 = vector.load %arg7[%c0_36, %c0_37] : memref<1x256xf32, #tpu.memory_space<vmem>>, vector<1x256xf32>
    %100 = vector.broadcast %99 : vector<1x256xf32> to vector<64x256xf32>
    %101 = arith.addf %98, %100 : vector<64x256xf32>
    %cst_38 = arith.constant 0.000000e+00 : f32
    %102 = vector.broadcast %cst_38 : f32 to vector<64x256xf32>
    %103 = arith.maximumf %101, %102 : vector<64x256xf32>
    %c0_39 = arith.constant 0 : index
    %c0_40 = arith.constant 0 : index
    %104 = vector.load %arg8[%c0_39, %c0_40] : memref<256x128xf32, #tpu.memory_space<vmem>>, vector<256x128xf32>
    %cst_41 = arith.constant dense<0.000000e+00> : vector<64x128xf32>
    %105 = tpu.matmul %103, %104, %cst_41 {dimension_numbers = #tpu.dot_dimension_numbers<[1], [0], [0], [1], [0, 0, 1, 1], [], []>} : vector<64x256xf32>, vector<256x128xf32>, vector<64x128xf32> -> vector<64x128xf32>
    %c0_42 = arith.constant 0 : index
    %c0_43 = arith.constant 0 : index
    %106 = vector.load %arg9[%c0_42, %c0_43] : memref<1x128xf32, #tpu.memory_space<vmem>>, vector<1x128xf32>
    %107 = vector.broadcast %106 : vector<1x128xf32> to vector<64x128xf32>
    %108 = arith.addf %105, %107 : vector<64x128xf32>
    %109 = arith.addf %72, %108 : vector<64x128xf32>
    %110 = vector.shape_cast %109 : vector<64x128xf32> to vector<4x16x128xf32>
    %c0_44 = arith.constant 0 : index
    %c0_45 = arith.constant 0 : index
    %c0_46 = arith.constant 0 : index
    %111 = vector.load %arg14[%c0_44, %c0_45, %c0_46] : memref<4x16x128xf32, #tpu.memory_space<vmem>>, vector<4x16x128xf32>
    tpu.vector_store %arg14[%c0_44, %c0_45, %c0_46], %110 {strides = array<i32>} : memref<4x16x128xf32, #tpu.memory_space<vmem>>, vector<4x16x128xf32>,
    return
  }
  func.func @transform_0(%arg0: i32) -> (i32, i32, i32) {
    %c0_i32 = arith.constant 0 : i32
    %c0_i32_0 = arith.constant 0 : i32
    %c0_i32_1 = arith.constant 0 : i32
    return %arg0, %c0_i32, %c0_i32_0 : i32, i32, i32
  }
  func.func @transform_1(%arg0: i32) -> (i32, i32) {
    %c0_i32 = arith.constant 0 : i32
    %c0_i32_0 = arith.constant 0 : i32
    %c0_i32_1 = arith.constant 0 : i32
    return %c0_i32, %c0_i32_0 : i32, i32
  }
  func.func @transform_2(%arg0: i32) -> (i32, i32) {
    %c0_i32 = arith.constant 0 : i32
    %c0_i32_0 = arith.constant 0 : i32
    %c0_i32_1 = arith.constant 0 : i32
    return %c0_i32, %c0_i32_0 : i32, i32
  }
  func.func @transform_3(%arg0: i32) -> (i32, i32) {
    %c0_i32 = arith.constant 0 : i32
    %c0_i32_0 = arith.constant 0 : i32
    %c0_i32_1 = arith.constant 0 : i32
    return %c0_i32, %c0_i32_0 : i32, i32
  }
  func.func @transform_4(%arg0: i32) -> (i32, i32) {
    %c0_i32 = arith.constant 0 : i32
    %c0_i32_0 = arith.constant 0 : i32
    %c0_i32_1 = arith.constant 0 : i32
    return %c0_i32, %c0_i32_0 : i32, i32
  }
  func.func @transform_5(%arg0: i32) -> (i32, i32) {
    %c0_i32 = arith.constant 0 : i32
    %c0_i32_0 = arith.constant 0 : i32
    %c0_i32_1 = arith.constant 0 : i32
    return %c0_i32, %c0_i32_0 : i32, i32
  }
  func.func @transform_6(%arg0: i32) -> (i32, i32) {
    %c0_i32 = arith.constant 0 : i32
    %c0_i32_0 = arith.constant 0 : i32
    %c0_i32_1 = arith.constant 0 : i32
    return %c0_i32, %c0_i32_0 : i32, i32
  }
  func.func @transform_7(%arg0: i32) -> (i32, i32) {
    %c0_i32 = arith.constant 0 : i32
    %c0_i32_0 = arith.constant 0 : i32
    %c0_i32_1 = arith.constant 0 : i32
    return %c0_i32, %c0_i32_0 : i32, i32
  }
  func.func @transform_8(%arg0: i32) -> (i32, i32) {
    %c0_i32 = arith.constant 0 : i32
    %c0_i32_0 = arith.constant 0 : i32
    %c0_i32_1 = arith.constant 0 : i32
    return %c0_i32, %c0_i32_0 : i32, i32
  }
  func.func @transform_9(%arg0: i32) -> (i32, i32) {
    %c0_i32 = arith.constant 0 : i32
    %c0_i32_0 = arith.constant 0 : i32
    %c0_i32_1 = arith.constant 0 : i32
    return %c0_i32, %c0_i32_0 : i32, i32
  }
  func.func @transform_10(%arg0: i32) -> (i32, i32) {
    %c0_i32 = arith.constant 0 : i32
    %c0_i32_0 = arith.constant 0 : i32
    %c0_i32_1 = arith.constant 0 : i32
    return %c0_i32, %c0_i32_0 : i32, i32
  }
  func.func @transform_11(%arg0: i32) -> (i32, i32) {
    %c0_i32 = arith.constant 0 : i32
    %c0_i32_0 = arith.constant 0 : i32
    %c0_i32_1 = arith.constant 0 : i32
    return %c0_i32, %c0_i32_0 : i32, i32
  }
  func.func @transform_12(%arg0: i32) -> (i32, i32) {
    %c0_i32 = arith.constant 0 : i32
    %c0_i32_0 = arith.constant 0 : i32
    %c0_i32_1 = arith.constant 0 : i32
    return %c0_i32, %c0_i32_0 : i32, i32
  }
  func.func @transform_13(%arg0: i32) -> (i32, i32, i32) {
    %c0_i32 = arith.constant 0 : i32
    %c0_i32_0 = arith.constant 0 : i32
    %c0_i32_1 = arith.constant 0 : i32
    return %arg0, %c0_i32, %c0_i32_0 : i32, i32, i32
  }
}

</mosaic_0001>

<llo_original>
// kernel: tpu_custom_call.1
$region0: #{tpu_custom_call.1}
  #allocation0 [shape = 'u32[]', space=smem, size = 0x4, offset = 0x4, fixed_abs, tag = 'smem constant byte address 0x4 - core index']
  #allocation1 [shape = 'u32[144,128]{1,0:T(1,128)}', space=vmem, size = 0x12000, scoped, tag = 'internal scratch']
  %s0 = inlined_call_operand.hbm [shape: f32[8,16,128], index: 0, kind: input, shape index: {}]
  %s1 = inlined_call_operand.hbm [shape: f32[128,384], index: 1, kind: input, shape index: {}]
  %s2 = inlined_call_operand.vmem [shape: f32[1,384], index: 2, kind: input, shape index: {}]
  %s3 = inlined_call_operand.hbm [shape: f32[128,128], index: 3, kind: input, shape index: {}]
  %s4 = inlined_call_operand.vmem [shape: f32[1,128], index: 4, kind: input, shape index: {}]
  %s5 = inlined_call_operand.hbm [shape: f32[128,256], index: 5, kind: input, shape index: {}]
  %s6 = inlined_call_operand.vmem [shape: f32[1,256], index: 6, kind: input, shape index: {}]
  %s7 = inlined_call_operand.hbm [shape: f32[256,128], index: 7, kind: input, shape index: {}]
  %s8 = inlined_call_operand.vmem [shape: f32[1,128], index: 8, kind: input, shape index: {}]
  %s9 = inlined_call_operand.vmem [shape: f32[1,128], index: 9, kind: input, shape index: {}]
  %s10 = inlined_call_operand.vmem [shape: f32[1,128], index: 10, kind: input, shape index: {}]
  %s11 = inlined_call_operand.vmem [shape: f32[1,128], index: 11, kind: input, shape index: {}]
  %s12 = inlined_call_operand.vmem [shape: f32[1,128], index: 12, kind: input, shape index: {}]
  %s13 = inlined_call_operand.hbm [shape: f32[8,16,128], index: 13, kind: output, shape index: {}]
  %s14 = sld [smem:[#allocation0]]
  $region105: #{tpu_custom_call.1} parent=0
    _
  %s16 = ssub.s32 1, %s14
  %s17 = scalar_select 0, %s16, %s14
  $region1: #{tpu_custom_call.1} parent=0
    #allocation2 [shape = 'u8[65536]{0}', space=vmem, size = 0x10000, scoped, tag = 'input window, operand 0']
    #allocation3 [shape = 's32[2]{0}', space=sflag, size = 0x8, scoped, tag = 'scoped memory for tpu_custom_call.1']
    #allocation4 [shape = 's32[2]{0}', space=sflag, size = 0x8, scoped, tag = 'scoped memory for tpu_custom_call.1']
    #allocation5 [shape = 'u8[196608]{0}', space=vmem, size = 0x30000, scoped, tag = 'input window, operand 1, single buffered']
    #allocation6 [shape = 's32[1]{0}', space=sflag, size = 0x4, scoped, tag = 'scoped memory for tpu_custom_call.1']
    #allocation7 [shape = 'u8[65536]{0}', space=vmem, size = 0x10000, scoped, tag = 'input window, operand 3, single buffered']
    #allocation8 [shape = 'u8[131072]{0}', space=vmem, size = 0x20000, scoped, tag = 'input window, operand 5, single buffered']
    #allocation9 [shape = 's32[1]{0}', space=sflag, size = 0x4, scoped, tag = 'scoped memory for tpu_custom_call.1']
    #allocation10 [shape = 'u8[131072]{0}', space=vmem, size = 0x20000, scoped, tag = 'input window, operand 7, single buffered']
    #allocation11 [shape = 'u8[65536]{0}', space=vmem, size = 0x10000, scoped, tag = 'output window, operand 0']
    %18 = vsyncpa [#allocation3], 0
    %s19 = scalar_lea.sflag [#allocation3], 1
    %20 = vsyncpa %s19, 0
    %21 = vsyncpa [#allocation6], 0
    %22 = vsyncpa [#allocation9], 0
    %23 = vsyncpa [#allocation4], 0
    %s24 = scalar_lea.sflag [#allocation4], 1
    %25 = vsyncpa %s24, 0
    loop: start=0, step=1, limit=4
    $region2: #{tpu_custom_call.1} parent=1 // loop_pre_header
      _
    $region3: #{tpu_custom_call.1} parent=1 // loop_header
      %s27 = sphi 0, %s31
      %p28 = scmp.ge.s32.totalorder %s27, 4
      %s37 = sphi 0, %s39
      %s40 = sphi 0, %s37
      %s41 = sphi 0, %s40
      %s57 = sphi 0, %s41
      %s61 = sphi 0, %s61
      %s63 = sphi 0, %s61
      %s64 = sphi 0, %s63
      %s78 = sphi 0, %s64
      %s82 = sphi 0, %s82
      %s84 = sphi 0, %s82
      %s85 = sphi 0, %s84
      %s99 = sphi 0, %s85
      %s103 = sphi 0, %s103
      %s105 = sphi 0, %s103
      %s106 = sphi 0, %s105
      %s120 = sphi 0, %s106
      %s124 = sphi 0, %s124
      %s126 = sphi 0, %s124
      %s127 = sphi 0, %s126
      %s141 = sphi 0, %s127
      %s145 = sphi 0, %s145
      %s147 = sphi 0, %s145
      %s148 = sphi 0, %s147
      %s162 = sphi 0, %s148
      %s166 = sphi 0, %s166
      %s168 = sphi 0, %s166
      %s169 = sphi 0, %s168
      %s183 = sphi 0, %s169
      %s187 = sphi 0, %s187
      %s189 = sphi 0, %s187
      %s190 = sphi 0, %s189
      %s204 = sphi 0, %s190
      %s208 = sphi 0, %s208
      %s210 = sphi 0, %s208
      %s211 = sphi 0, %s210
      %s225 = sphi 0, %s211
      %s229 = sphi 0, %s229
      %s231 = sphi 0, %s229
      %s232 = sphi 0, %s231
      %s246 = sphi 0, %s232
      %s250 = sphi 0, %s250
      %s252 = sphi 0, %s250
      %s253 = sphi 0, %s252
      %s267 = sphi 0, %s253
      %s271 = sphi 0, %s271
      %s273 = sphi 0, %s271
      %s274 = sphi 0, %s273
      %s288 = sphi 0, %s274
      %s292 = sphi 0, %s292
      %s294 = sphi 0, %s292
      %s295 = sphi 0, %s294
      %s309 = sphi 0, %s295
      %s315 = sphi 0, %s317
      %s318 = sphi 0, %s315
      %s319 = sphi 0, %s318
      %s335 = sphi 0, %s319
    $region4: #{tpu_custom_call.1} parent=1 // loop_header_branch
      %30 = sbr.rel (%p28) target = $region8
    $region5: #{tpu_custom_call.1} parent=1 // loop_body
      %s32 = ssub.s32 %s27, 1
      %s33 = ssub.s32 %s27, 2
      %s34 = sadd.s32 %s27, 1
      %s35 = ssub.s32 %s27, %s34
      %p36 = scmp.eq.s32.totalorder %s35, 0
      %s38 = sadd.s32 %s37, 1
      %s39 = scalar_select %p36, %s37, %s38
      %p42 = pneg %p36
      %p43 = scmp.eq.s32.totalorder %s27, 1
      %p44 = por %p42, %p43
      %p45 = scmp.ne.s32.totalorder %s37, %s40
      %p46 = scmp.eq.s32.totalorder %s27, 0
      %p47 = por %p45, %p46
      %p48 = scmp.ne.s32.totalorder %s37, %s40
      %p49 = scmp.eq.s32.totalorder %s32, 1
      %p50 = por %p48, %p49
      %p51 = scmp.ne.s32.totalorder %s40, %s41
      %p52 = scmp.eq.s32.totalorder %s32, 0
      %p53 = por %p51, %p52
      %p54 = scmp.ne.s32.totalorder %s40, %s41
      %p55 = scmp.eq.s32.totalorder %s33, 1
      %p56 = por %p54, %p55
      %p58 = scmp.ne.s32.totalorder %s41, %s57
      %p59 = scmp.eq.s32.totalorder %s33, 0
      %p60 = por %p58, %p59
      %s62 = sadd.s32 %s61, 1
      %p65 = scmp.eq.s32.totalorder %s27, 1
      %p66 = scmp.ne.s32.totalorder %s61, %s63
      %p67 = scmp.eq.s32.totalorder %s27, 0
      %p68 = por %p66, %p67
      %p69 = scmp.ne.s32.totalorder %s61, %s63
      %p70 = scmp.eq.s32.totalorder %s32, 1
      %p71 = por %p69, %p70
      %p72 = scmp.ne.s32.totalorder %s63, %s64
      %p73 = scmp.eq.s32.totalorder %s32, 0
      %p74 = por %p72, %p73
      %p75 = scmp.ne.s32.totalorder %s63, %s64
      %p76 = scmp.eq.s32.totalorder %s33, 1
      %p77 = por %p75, %p76
      %p79 = scmp.ne.s32.totalorder %s64, %s78
      %p80 = scmp.eq.s32.totalorder %s33, 0
      %p81 = por %p79, %p80
      %s83 = sadd.s32 %s82, 1
      %p86 = scmp.eq.s32.totalorder %s27, 1
      %p87 = scmp.ne.s32.totalorder %s82, %s84
      %p88 = scmp.eq.s32.totalorder %s27, 0
      %p89 = por %p87, %p88
      %p90 = scmp.ne.s32.totalorder %s82, %s84
      %p91 = scmp.eq.s32.totalorder %s32, 1
      %p92 = por %p90, %p91
      %p93 = scmp.ne.s32.totalorder %s84, %s85
      %p94 = scmp.eq.s32.totalorder %s32, 0
      %p95 = por %p93, %p94
      %p96 = scmp.ne.s32.totalorder %s84, %s85
      %p97 = scmp.eq.s32.totalorder %s33, 1
      %p98 = por %p96, %p97
      %p100 = scmp.ne.s32.totalorder %s85, %s99
      %p101 = scmp.eq.s32.totalorder %s33, 0
      %p102 = por %p100, %p101
      %s104 = sadd.s32 %s103, 1
      %p107 = scmp.eq.s32.totalorder %s27, 1
      %p108 = scmp.ne.s32.totalorder %s103, %s105
      %p109 = scmp.eq.s32.totalorder %s27, 0
      %p110 = por %p108, %p109
      %p111 = scmp.ne.s32.totalorder %s103, %s105
      %p112 = scmp.eq.s32.totalorder %s32, 1
      %p113 = por %p111, %p112
      %p114 = scmp.ne.s32.totalorder %s105, %s106
      %p115 = scmp.eq.s32.totalorder %s32, 0
      %p116 = por %p114, %p115
      %p117 = scmp.ne.s32.totalorder %s105, %s106
      %p118 = scmp.eq.s32.totalorder %s33, 1
      %p119 = por %p117, %p118
      %p121 = scmp.ne.s32.totalorder %s106, %s120
      %p122 = scmp.eq.s32.totalorder %s33, 0
      %p123 = por %p121, %p122
      %s125 = sadd.s32 %s124, 1
      %p128 = scmp.eq.s32.totalorder %s27, 1
      %p129 = scmp.ne.s32.totalorder %s124, %s126
      %p130 = scmp.eq.s32.totalorder %s27, 0
      %p131 = por %p129, %p130
      %p132 = scmp.ne.s32.totalorder %s124, %s126
      %p133 = scmp.eq.s32.totalorder %s32, 1
      %p134 = por %p132, %p133
      %p135 = scmp.ne.s32.totalorder %s126, %s127
      %p136 = scmp.eq.s32.totalorder %s32, 0
      %p137 = por %p135, %p136
      %p138 = scmp.ne.s32.totalorder %s126, %s127
      %p139 = scmp.eq.s32.totalorder %s33, 1
      %p140 = por %p138, %p139
      %p142 = scmp.ne.s32.totalorder %s127, %s141
      %p143 = scmp.eq.s32.totalorder %s33, 0
      %p144 = por %p142, %p143
      %s146 = sadd.s32 %s145, 1
      %p149 = scmp.eq.s32.totalorder %s27, 1
      %p150 = scmp.ne.s32.totalorder %s145, %s147
      %p151 = scmp.eq.s32.totalorder %s27, 0
      %p152 = por %p150, %p151
      %p153 = scmp.ne.s32.totalorder %s145, %s147
      %p154 = scmp.eq.s32.totalorder %s32, 1
      %p155 = por %p153, %p154
      %p156 = scmp.ne.s32.totalorder %s147, %s148
      %p157 = scmp.eq.s32.totalorder %s32, 0
      %p158 = por %p156, %p157
      %p159 = scmp.ne.s32.totalorder %s147, %s148
      %p160 = scmp.eq.s32.totalorder %s33, 1
      %p161 = por %p159, %p160
      %p163 = scmp.ne.s32.totalorder %s148, %s162
      %p164 = scmp.eq.s32.totalorder %s33, 0
      %p165 = por %p163, %p164
      %s167 = sadd.s32 %s166, 1
      %p170 = scmp.eq.s32.totalorder %s27, 1
      %p171 = scmp.ne.s32.totalorder %s166, %s168
      %p172 = scmp.eq.s32.totalorder %s27, 0
      %p173 = por %p171, %p172
      %p174 = scmp.ne.s32.totalorder %s166, %s168
      %p175 = scmp.eq.s32.totalorder %s32, 1
      %p176 = por %p174, %p175
      %p177 = scmp.ne.s32.totalorder %s168, %s169
      %p178 = scmp.eq.s32.totalorder %s32, 0
      %p179 = por %p177, %p178
      %p180 = scmp.ne.s32.totalorder %s168, %s169
      %p181 = scmp.eq.s32.totalorder %s33, 1
      %p182 = por %p180, %p181
      %p184 = scmp.ne.s32.totalorder %s169, %s183
      %p185 = scmp.eq.s32.totalorder %s33, 0
      %p186 = por %p184, %p185
      %s188 = sadd.s32 %s187, 1
      %p191 = scmp.eq.s32.totalorder %s27, 1
      %p192 = scmp.ne.s32.totalorder %s187, %s189
      %p193 = scmp.eq.s32.totalorder %s27, 0
      %p194 = por %p192, %p193
      %p195 = scmp.ne.s32.totalorder %s187, %s189
      %p196 = scmp.eq.s32.totalorder %s32, 1
      %p197 = por %p195, %p196
      %p198 = scmp.ne.s32.totalorder %s189, %s190
      %p199 = scmp.eq.s32.totalorder %s32, 0
      %p200 = por %p198, %p199
      %p201 = scmp.ne.s32.totalorder %s189, %s190
      %p202 = scmp.eq.s32.totalorder %s33, 1
      %p203 = por %p201, %p202
      %p205 = scmp.ne.s32.totalorder %s190, %s204
      %p206 = scmp.eq.s32.totalorder %s33, 0
      %p207 = por %p205, %p206
      %s209 = sadd.s32 %s208, 1
      %p212 = scmp.eq.s32.totalorder %s27, 1
      %p213 = scmp.ne.s32.totalorder %s208, %s210
      %p214 = scmp.eq.s32.totalorder %s27, 0
      %p215 = por %p213, %p214
      %p216 = scmp.ne.s32.totalorder %s208, %s210
      %p217 = scmp.eq.s32.totalorder %s32, 1
      %p218 = por %p216, %p217
      %p219 = scmp.ne.s32.totalorder %s210, %s211
      %p220 = scmp.eq.s32.totalorder %s32, 0
      %p221 = por %p219, %p220
      %p222 = scmp.ne.s32.totalorder %s210, %s211
      %p223 = scmp.eq.s32.totalorder %s33, 1
      %p224 = por %p222, %p223
      %p226 = scmp.ne.s32.totalorder %s211, %s225
      %p227 = scmp.eq.s32.totalorder %s33, 0
      %p228 = por %p226, %p227
      %s230 = sadd.s32 %s229, 1
      %p233 = scmp.eq.s32.totalorder %s27, 1
      %p234 = scmp.ne.s32.totalorder %s229, %s231
      %p235 = scmp.eq.s32.totalorder %s27, 0
      %p236 = por %p234, %p235
      %p237 = scmp.ne.s32.totalorder %s229, %s231
      %p238 = scmp.eq.s32.totalorder %s32, 1
      %p239 = por %p237, %p238
      %p240 = scmp.ne.s32.totalorder %s231, %s232
      %p241 = scmp.eq.s32.totalorder %s32, 0
      %p242 = por %p240, %p241
      %p243 = scmp.ne.s32.totalorder %s231, %s232
      %p244 = scmp.eq.s32.totalorder %s33, 1
      %p245 = por %p243, %p244
      %p247 = scmp.ne.s32.totalorder %s232, %s246
      %p248 = scmp.eq.s32.totalorder %s33, 0
      %p249 = por %p247, %p248
      %s251 = sadd.s32 %s250, 1
      %p254 = scmp.eq.s32.totalorder %s27, 1
      %p255 = scmp.ne.s32.totalorder %s250, %s252
      %p256 = scmp.eq.s32.totalorder %s27, 0
      %p257 = por %p255, %p256
      %p258 = scmp.ne.s32.totalorder %s250, %s252
      %p259 = scmp.eq.s32.totalorder %s32, 1
      %p260 = por %p258, %p259
      %p261 = scmp.ne.s32.totalorder %s252, %s253
      %p262 = scmp.eq.s32.totalorder %s32, 0
      %p263 = por %p261, %p262
      %p264 = scmp.ne.s32.totalorder %s252, %s253
      %p265 = scmp.eq.s32.totalorder %s33, 1
      %p266 = por %p264, %p265
      %p268 = scmp.ne.s32.totalorder %s253, %s267
      %p269 = scmp.eq.s32.totalorder %s33, 0
      %p270 = por %p268, %p269
      %s272 = sadd.s32 %s271, 1
      %p275 = scmp.eq.s32.totalorder %s27, 1
      %p276 = scmp.ne.s32.totalorder %s271, %s273
      %p277 = scmp.eq.s32.totalorder %s27, 0
      %p278 = por %p276, %p277
      %p279 = scmp.ne.s32.totalorder %s271, %s273
      %p280 = scmp.eq.s32.totalorder %s32, 1
      %p281 = por %p279, %p280
      %p282 = scmp.ne.s32.totalorder %s273, %s274
      %p283 = scmp.eq.s32.totalorder %s32, 0
      %p284 = por %p282, %p283
      %p285 = scmp.ne.s32.totalorder %s273, %s274
      %p286 = scmp.eq.s32.totalorder %s33, 1
      %p287 = por %p285, %p286
      %p289 = scmp.ne.s32.totalorder %s274, %s288
      %p290 = scmp.eq.s32.totalorder %s33, 0
      %p291 = por %p289, %p290
      %s293 = sadd.s32 %s292, 1
      %p296 = scmp.eq.s32.totalorder %s27, 1
      %p297 = scmp.ne.s32.totalorder %s292, %s294
      %p298 = scmp.eq.s32.totalorder %s27, 0
      %p299 = por %p297, %p298
      %p300 = scmp.ne.s32.totalorder %s292, %s294
      %p301 = scmp.eq.s32.totalorder %s32, 1
      %p302 = por %p300, %p301
      %p303 = scmp.ne.s32.totalorder %s294, %s295
      %p304 = scmp.eq.s32.totalorder %s32, 0
      %p305 = por %p303, %p304
      %p306 = scmp.ne.s32.totalorder %s294, %s295
      %p307 = scmp.eq.s32.totalorder %s33, 1
      %p308 = por %p306, %p307
      %p310 = scmp.ne.s32.totalorder %s295, %s309
      %p311 = scmp.eq.s32.totalorder %s33, 0
      %p312 = por %p310, %p311
      %s313 = ssub.s32 %s27, %s34
      %p314 = scmp.eq.s32.totalorder %s313, 0
      %s316 = sadd.s32 %s315, 1
      %s317 = scalar_select %p314, %s315, %s316
      %p320 = pneg %p314
      %p321 = scmp.eq.s32.totalorder %s27, 1
      %p322 = por %p320, %p321
      %p323 = scmp.ne.s32.totalorder %s315, %s318
      %p324 = scmp.eq.s32.totalorder %s27, 0
      %p325 = por %p323, %p324
      %p326 = scmp.ne.s32.totalorder %s315, %s318
      %p327 = scmp.eq.s32.totalorder %s32, 1
      %p328 = por %p326, %p327
      %p329 = scmp.ne.s32.totalorder %s318, %s319
      %p330 = scmp.eq.s32.totalorder %s32, 0
      %p331 = por %p329, %p330
      %p332 = scmp.ne.s32.totalorder %s318, %s319
      %p333 = scmp.eq.s32.totalorder %s33, 1
      %p334 = por %p332, %p333
      %p336 = scmp.ne.s32.totalorder %s319, %s335
      %p337 = scmp.eq.s32.totalorder %s33, 0
      %p338 = por %p336, %p337
      %p339 = scmp.le.s32.totalorder 1, %s27
      %p340 = scmp.lt.s32.totalorder %s27, 3
      %p341 = pnand %p339, %p340
      %p342 = pneg %p341
      // Predicated region
      $region9: #{tpu_custom_call.1} parent=5 // pred_check
        _
      $region10: #{tpu_custom_call.1} parent=5 // pred_check_branch
        %344 = sbr.rel (%p341) target = $region12
      $region11: #{tpu_custom_call.1} parent=5 // pred_region
        %s345 = ssub.s32 %s27, 1
        // Predicated region
        $region13: #{tpu_custom_call.1} parent=11 // pred_check
          %p346 = pneg %p74
        $region14: #{tpu_custom_call.1} parent=11 // pred_check_branch
          %348 = sbr.rel (%p346) target = $region16
        $region15: #{tpu_custom_call.1} parent=11 // pred_region
          %s350 = ssub.s32 6144, 6144
          %351 = vsyncadd [#allocation6], %s350
          %s352 = sshll.u32 [#allocation5], 4
          %s353 = int_to_ptr.vmem [resolvable:$true] %s352
          %358 = dma.hbm_to_vmem [thread:$0]  %s1, 6144, %s353, [#allocation6], 384, 384, 24
        $region16: #{tpu_custom_call.1} parent=11 // pred_fallthru
          _
        // Predicated region
        $region17: #{tpu_custom_call.1} parent=11 // pred_check
          %p359 = pneg %p95
        $region18: #{tpu_custom_call.1} parent=11 // pred_check_branch
          %361 = sbr.rel (%p359) target = $region20
        $region19: #{tpu_custom_call.1} parent=11 // pred_region
          _
        $region20: #{tpu_custom_call.1} parent=11 // pred_fallthru
          _
        // Predicated region
        $region21: #{tpu_custom_call.1} parent=11 // pred_check
          %p362 = pneg %p116
        $region22: #{tpu_custom_call.1} parent=11 // pred_check_branch
          %364 = sbr.rel (%p362) target = $region24
        $region23: #{tpu_custom_call.1} parent=11 // pred_region
          %s366 = ssub.s32 2048, 2048
          %367 = vsyncadd [#allocation6], %s366
          %s368 = sshll.u32 [#allocation7], 4
          %s369 = int_to_ptr.vmem [resolvable:$true] %s368
          %374 = dma.hbm_to_vmem [thread:$0]  %s3, 2048, %s369, [#allocation6], 128, 128, 8
        $region24: #{tpu_custom_call.1} parent=11 // pred_fallthru
          _
        // Predicated region
        $region25: #{tpu_custom_call.1} parent=11 // pred_check
          %p375 = pneg %p137
        $region26: #{tpu_custom_call.1} parent=11 // pred_check_branch
          %377 = sbr.rel (%p375) target = $region28
        $region27: #{tpu_custom_call.1} parent=11 // pred_region
          _
        $region28: #{tpu_custom_call.1} parent=11 // pred_fallthru
          _
        // Predicated region
        $region29: #{tpu_custom_call.1} parent=11 // pred_check
          %p378 = pneg %p158
        $region30: #{tpu_custom_call.1} parent=11 // pred_check_branch
          %380 = sbr.rel (%p378) target = $region32
        $region31: #{tpu_custom_call.1} parent=11 // pred_region
          %s382 = ssub.s32 4096, 4096
          %383 = vsyncadd [#allocation9], %s382
          %s384 = sshll.u32 [#allocation8], 4
          %s385 = int_to_ptr.vmem [resolvable:$true] %s384
          %390 = dma.hbm_to_vmem [thread:$0]  %s5, 4096, %s385, [#allocation9], 256, 256, 16
        $region32: #{tpu_custom_call.1} parent=11 // pred_fallthru
          _
        // Predicated region
        $region33: #{tpu_custom_call.1} parent=11 // pred_check
          %p391 = pneg %p179
        $region34: #{tpu_custom_call.1} parent=11 // pred_check_branch
          %393 = sbr.rel (%p391) target = $region36
        $region35: #{tpu_custom_call.1} parent=11 // pred_region
          _
        $region36: #{tpu_custom_call.1} parent=11 // pred_fallthru
          _
        // Predicated region
        $region37: #{tpu_custom_call.1} parent=11 // pred_check
          %p394 = pneg %p200
        $region38: #{tpu_custom_call.1} parent=11 // pred_check_branch
          %396 = sbr.rel (%p394) target = $region40
        $region39: #{tpu_custom_call.1} parent=11 // pred_region
          %s398 = ssub.s32 4096, 4096
          %399 = vsyncadd [#allocation9], %s398
          %s400 = sshll.u32 [#allocation10], 4
          %s401 = int_to_ptr.vmem [resolvable:$true] %s400
          %406 = dma.hbm_to_vmem [thread:$0]  %s7, 4096, %s401, [#allocation9], 128, 128, 8
        $region40: #{tpu_custom_call.1} parent=11 // pred_fallthru
          _
        // Predicated region
        $region41: #{tpu_custom_call.1} parent=11 // pred_check
          %p407 = pneg %p221
        $region42: #{tpu_custom_call.1} parent=11 // pred_check_branch
          %409 = sbr.rel (%p407) target = $region44
        $region43: #{tpu_custom_call.1} parent=11 // pred_region
          _
        $region44: #{tpu_custom_call.1} parent=11 // pred_fallthru
          _
        // Predicated region
        $region45: #{tpu_custom_call.1} parent=11 // pred_check
          %p410 = pneg %p242
        $region46: #{tpu_custom_call.1} parent=11 // pred_check_branch
          %412 = sbr.rel (%p410) target = $region48
        $region47: #{tpu_custom_call.1} parent=11 // pred_region
          _
        $region48: #{tpu_custom_call.1} parent=11 // pred_fallthru
          _
        // Predicated region
        $region49: #{tpu_custom_call.1} parent=11 // pred_check
          %p413 = pneg %p263
        $region50: #{tpu_custom_call.1} parent=11 // pred_check_branch
          %415 = sbr.rel (%p413) target = $region52
        $region51: #{tpu_custom_call.1} parent=11 // pred_region
          _
        $region52: #{tpu_custom_call.1} parent=11 // pred_fallthru
          _
        // Predicated region
        $region53: #{tpu_custom_call.1} parent=11 // pred_check
          %p416 = pneg %p284
        $region54: #{tpu_custom_call.1} parent=11 // pred_check_branch
          %418 = sbr.rel (%p416) target = $region56
        $region55: #{tpu_custom_call.1} parent=11 // pred_region
          _
        $region56: #{tpu_custom_call.1} parent=11 // pred_fallthru
          _
        // Predicated region
        $region57: #{tpu_custom_call.1} parent=11 // pred_check
          %p419 = pneg %p305
        $region58: #{tpu_custom_call.1} parent=11 // pred_check_branch
          %421 = sbr.rel (%p419) target = $region60
        $region59: #{tpu_custom_call.1} parent=11 // pred_region
          _
        $region60: #{tpu_custom_call.1} parent=11 // pred_fallthru
          _
      $region12: #{tpu_custom_call.1} parent=5 // pred_fallthru
        _
      %p422 = scmp.lt.s32.totalorder %s27, 2
      // Predicated region
      $region61: #{tpu_custom_call.1} parent=5 // pred_check
        %p423 = pneg %p422
      $region62: #{tpu_custom_call.1} parent=5 // pred_check_branch
        %425 = sbr.rel (%p423) target = $region64
      $region63: #{tpu_custom_call.1} parent=5 // pred_region
        // Predicated region
        $region65: #{tpu_custom_call.1} parent=63 // pred_check
          %p426 = pneg %p47
        $region66: #{tpu_custom_call.1} parent=63 // pred_check_branch
          %428 = sbr.rel (%p426) target = $region68
        $region67: #{tpu_custom_call.1} parent=63 // pred_region
          %s429 = sand.u32 %s37, 1
          %s430 = scalar_lea.sflag [#allocation3], %s429
          %s431 = sand.u32 %s37, 1
          %s432 = smul.addr %s431, 64
          %s433 = scalar_lea.vmem [#allocation2], %s432
          %s434 = smul.u32 4, %s27
          %s436 = ssub.s32 1024, 1024
          %437 = vsyncadd %s430, %s436
          %s438 = smul.addr %s434, 2
          %s439 = smul.addr %s438, 128
          %s440 = scalar_lea.hbm %s0, %s439
          %s441 = sshll.u32 %s433, 4
          %s442 = int_to_ptr.vmem [resolvable:$true] %s441
          %447 = dma.hbm_to_vmem [thread:$0]  %s440, 1024, %s442, %s430, 128, 128, 8
        $region68: #{tpu_custom_call.1} parent=63 // pred_fallthru
          _
      $region64: #{tpu_custom_call.1} parent=5 // pred_fallthru
        _
      %p448 = scmp.le.s32.totalorder 1, %s27
      %p449 = scmp.lt.s32.totalorder %s27, 3
      %p450 = pnand %p448, %p449
      %p451 = pneg %p450
      // Predicated region
      $region69: #{tpu_custom_call.1} parent=5 // pred_check
        _
      $region70: #{tpu_custom_call.1} parent=5 // pred_check_branch
        %453 = sbr.rel (%p450) target = $region72
      $region71: #{tpu_custom_call.1} parent=5 // pred_region
        %s454 = ssub.s32 %s27, 1
        %s455 = sand.u32 %s40, 1
        %s456 = scalar_lea.sflag [#allocation3], %s455
        %s457 = sand.u32 %s40, 1
        %s458 = smul.addr %s457, 64
        %s459 = scalar_lea.vmem [#allocation2], %s458
        // Predicated region
        $region73: #{tpu_custom_call.1} parent=71 // pred_check
          %p460 = pneg %p53
        $region74: #{tpu_custom_call.1} parent=71 // pred_check_branch
          %462 = sbr.rel (%p460) target = $region76
        $region75: #{tpu_custom_call.1} parent=71 // pred_region
          %463 = dma.done %s456, 1024
        $region76: #{tpu_custom_call.1} parent=71 // pred_fallthru
          _
        // Predicated region
        $region77: #{tpu_custom_call.1} parent=71 // pred_check
          %p464 = pneg %p74
        $region78: #{tpu_custom_call.1} parent=71 // pred_check_branch
          %466 = sbr.rel (%p464) target = $region80
        $region79: #{tpu_custom_call.1} parent=71 // pred_region
          %467 = dma.done [#allocation6], 6144
        $region80: #{tpu_custom_call.1} parent=71 // pred_fallthru
          _
        // Predicated region
        $region81: #{tpu_custom_call.1} parent=71 // pred_check
          %p468 = pneg %p116
        $region82: #{tpu_custom_call.1} parent=71 // pred_check_branch
          %470 = sbr.rel (%p468) target = $region84
        $region83: #{tpu_custom_call.1} parent=71 // pred_region
          %471 = dma.done [#allocation6], 2048
        $region84: #{tpu_custom_call.1} parent=71 // pred_fallthru
          _
        // Predicated region
        $region85: #{tpu_custom_call.1} parent=71 // pred_check
          %p472 = pneg %p158
        $region86: #{tpu_custom_call.1} parent=71 // pred_check_branch
          %474 = sbr.rel (%p472) target = $region88
        $region87: #{tpu_custom_call.1} parent=71 // pred_region
          %475 = dma.done [#allocation9], 4096
        $region88: #{tpu_custom_call.1} parent=71 // pred_fallthru
          _
        // Predicated region
        $region89: #{tpu_custom_call.1} parent=71 // pred_check
          %p476 = pneg %p200
        $region90: #{tpu_custom_call.1} parent=71 // pred_check_branch
          %478 = sbr.rel (%p476) target = $region92
        $region91: #{tpu_custom_call.1} parent=71 // pred_region
          %479 = dma.done [#allocation9], 4096
        $region92: #{tpu_custom_call.1} parent=71 // pred_fallthru
          _
        %s480 = sand.u32 %s40, 1
        %s481 = scalar_lea.sflag [#allocation3], %s480
        %s482 = sand.u32 %s40, 1
        %s483 = smul.addr %s482, 64
        %s484 = scalar_lea.vmem [#allocation2], %s483
        %p485 = pneg %p53
        %p486 = pneg %p50
        %p487 = pneg %p74
        %p488 = pneg %p71
        %p489 = pneg %p95
        %p490 = pneg %p92
        %p491 = pneg %p116
        %p492 = pneg %p113
        %p493 = pneg %p137
        %p494 = pneg %p134
        %p495 = pneg %p158
        %p496 = pneg %p155
        %p497 = pneg %p179
        %p498 = pneg %p176
        %p499 = pneg %p200
        %p500 = pneg %p197
        %p501 = pneg %p221
        %p502 = pneg %p218
        %p503 = pneg %p242
        %p504 = pneg %p239
        %p505 = pneg %p263
        %p506 = pneg %p260
        %p507 = pneg %p284
        %p508 = pneg %p281
        %p509 = pneg %p305
        %p510 = pneg %p302
        %p511 = pneg %p331
        %p512 = pneg %p328
        %s513 = sand.u32 %s318, 1
        %s514 = scalar_lea.sflag [#allocation4], %s513
        %s515 = sand.u32 %s318, 1
        %s516 = smul.addr %s515, 64
        %s517 = scalar_lea.vmem [#allocation11], %s516
        %s518 = smul.u32 4, %s32
        %s519 = smul.u32 4, %s32
        %v520 = vld [vmem:[%s459] sm:$0xff]
        %v521 = vld [vmem:[%s459 + $0x8] sm:$0xff]
        %v522 = vld [vmem:[%s459 + $0x10] sm:$0xff]
        %v523 = vld [vmem:[%s459 + $0x18] sm:$0xff]
        %v524 = vld [vmem:[%s459 + $0x20] sm:$0xff]
        %v525 = vld [vmem:[%s459 + $0x28] sm:$0xff]
        %v526 = vld [vmem:[%s459 + $0x30] sm:$0xff]
        %v527 = vld [vmem:[%s459 + $0x38] sm:$0xff]
        %v528 = vld [vmem:[%s9] sm:$0x1]
        %v529 = vld [vmem:[%s10] sm:$0x1]
        %530 = vadd.xlane.f32.xlu0 %v520
        %v531 = vpop.xlane.xlu0 %530
        %532 = vadd.xlane.f32.xlu0 %v521
        %v533 = vpop.xlane.xlu0 %532
        %534 = vadd.xlane.f32.xlu0 %v522
        %v535 = vpop.xlane.xlu0 %534
        %536 = vadd.xlane.f32.xlu0 %v523
        %v537 = vpop.xlane.xlu0 %536
        %538 = vadd.xlane.f32.xlu0 %v524
        %v539 = vpop.xlane.xlu0 %538
        %540 = vadd.xlane.f32.xlu0 %v525
        %v541 = vpop.xlane.xlu0 %540
        %542 = vadd.xlane.f32.xlu0 %v526
        %v543 = vpop.xlane.xlu0 %542
        %544 = vadd.xlane.f32.xlu0 %v527
        %v545 = vpop.xlane.xlu0 %544
        %v546 = vrcp.pop 128.0
        %v547 = vmul.f32 %v531, %v546
        %v548 = vmul.f32 %v533, %v546
        %v549 = vmul.f32 %v535, %v546
        %v550 = vmul.f32 %v537, %v546
        %v551 = vmul.f32 %v539, %v546
        %v552 = vmul.f32 %v541, %v546
        %v553 = vmul.f32 %v543, %v546
        %v554 = vmul.f32 %v545, %v546
        %v555 = vsub.f32 %v520, %v547
        %v556 = vsub.f32 %v521, %v548
        %v557 = vsub.f32 %v522, %v549
        %v558 = vsub.f32 %v523, %v550
        %v559 = vsub.f32 %v524, %v551
        %v560 = vsub.f32 %v525, %v552
        %v561 = vsub.f32 %v526, %v553
        %v562 = vsub.f32 %v527, %v554
        %v563 = vmul.f32 %v555, %v555
        %v564 = vmul.f32 %v556, %v556
        %v565 = vmul.f32 %v557, %v557
        %v566 = vmul.f32 %v558, %v558
        %v567 = vmul.f32 %v559, %v559
        %v568 = vmul.f32 %v560, %v560
        %v569 = vmul.f32 %v561, %v561
        %v570 = vmul.f32 %v562, %v562
        %571 = vadd.xlane.f32.xlu0 %v563
        %v572 = vpop.xlane.xlu0 %571
        %573 = vadd.xlane.f32.xlu0 %v564
        %v574 = vpop.xlane.xlu0 %573
        %575 = vadd.xlane.f32.xlu0 %v565
        %v576 = vpop.xlane.xlu0 %575
        %577 = vadd.xlane.f32.xlu0 %v566
        %v578 = vpop.xlane.xlu0 %577
        %579 = vadd.xlane.f32.xlu0 %v567
        %v580 = vpop.xlane.xlu0 %579
        %581 = vadd.xlane.f32.xlu0 %v568
        %v582 = vpop.xlane.xlu0 %581
        %583 = vadd.xlane.f32.xlu0 %v569
        %v584 = vpop.xlane.xlu0 %583
        %585 = vadd.xlane.f32.xlu0 %v570
        %v586 = vpop.xlane.xlu0 %585
        %v587 = vmul.f32 %v572, %v546
        %v588 = vmul.f32 %v574, %v546
        %v589 = vmul.f32 %v576, %v546
        %v590 = vmul.f32 %v578, %v546
        %v591 = vmul.f32 %v580, %v546
        %v592 = vmul.f32 %v582, %v546
        %v593 = vmul.f32 %v584, %v546
        %v594 = vmul.f32 %v586, %v546
        %v595 = vadd.f32 %v587, 1e-05
        %v596 = vadd.f32 %v588, 1e-05
        %v597 = vadd.f32 %v589, 1e-05
        %v598 = vadd.f32 %v590, 1e-05
        %v599 = vadd.f32 %v591, 1e-05
        %v600 = vadd.f32 %v592, 1e-05
        %v601 = vadd.f32 %v593, 1e-05
        %v602 = vadd.f32 %v594, 1e-05
        %v603 = vrsqrt.pop %v595
        %v604 = vrsqrt.pop %v596
        %v605 = vrsqrt.pop %v597
        %v606 = vrsqrt.pop %v598
        %v607 = vrsqrt.pop %v599
        %v608 = vrsqrt.pop %v600
        %v609 = vrsqrt.pop %v601
        %v610 = vrsqrt.pop %v602
        %v611 = vmul.f32 %v555, %v603
        %v612 = vmul.f32 %v556, %v604
        %v613 = vmul.f32 %v557, %v605
        %v614 = vmul.f32 %v558, %v606
        %v615 = vmul.f32 %v559, %v607
        %v616 = vmul.f32 %v560, %v608
        %v617 = vmul.f32 %v561, %v609
        %v618 = vmul.f32 %v562, %v610
        %v620 = vlaneseq
        %v621 = vshrl.u32 %v620, 7
        %v622 = vsub.s32 0, %v621
        %v623 = vrot.slane %v528, %v622
        %v625 = vmul.f32 %v611, %v623
        %v626 = vmul.f32 %v612, %v623
        %v627 = vmul.f32 %v613, %v623
        %v628 = vmul.f32 %v614, %v623
        %v629 = vmul.f32 %v615, %v623
        %v630 = vmul.f32 %v616, %v623
        %v631 = vmul.f32 %v617, %v623
        %v632 = vmul.f32 %v618, %v623
        %v634 = vlaneseq
        %v635 = vshrl.u32 %v634, 7
        %v636 = vsub.s32 0, %v635
        %v637 = vrot.slane %v529, %v636
        %v639 = vadd.f32 %v625, %v637
        %v640 = vadd.f32 %v626, %v637
        %v641 = vadd.f32 %v627, %v637
        %v642 = vadd.f32 %v628, %v637
        %v643 = vadd.f32 %v629, %v637
        %v644 = vadd.f32 %v630, %v637
        %v645 = vadd.f32 %v631, %v637
        %v646 = vadd.f32 %v632, %v637
        %v647 = vld [vmem:[#allocation5] sm:$0xff]
        %v648 = vld [vmem:[#allocation5 + $0x8] sm:$0xff]
        %v649 = vld [vmem:[#allocation5 + $0x10] sm:$0xff]
        %v650 = vld [vmem:[#allocation5 + $0x18] sm:$0xff]
        %v651 = vld [vmem:[#allocation5 + $0x20] sm:$0xff]
        %v652 = vld [vmem:[#allocation5 + $0x28] sm:$0xff]
        %v653 = vld [vmem:[#allocation5 + $0x30] sm:$0xff]
        %v654 = vld [vmem:[#allocation5 + $0x38] sm:$0xff]
        %v655 = vld [vmem:[#allocation5 + $0x40] sm:$0xff]
        %v656 = vld [vmem:[#allocation5 + $0x48] sm:$0xff]
        %v657 = vld [vmem:[#allocation5 + $0x50] sm:$0xff]
        %v658 = vld [vmem:[#allocation5 + $0x58] sm:$0xff]
        %v659 = vld [vmem:[#allocation5 + $0x60] sm:$0xff]
        %v660 = vld [vmem:[#allocation5 + $0x68] sm:$0xff]
        %v661 = vld [vmem:[#allocation5 + $0x70] sm:$0xff]
        %v662 = vld [vmem:[#allocation5 + $0x78] sm:$0xff]
        %v663 = vld [vmem:[#allocation5 + $0x80] sm:$0xff]
        %v664 = vld [vmem:[#allocation5 + $0x88] sm:$0xff]
        %v665 = vld [vmem:[#allocation5 + $0x90] sm:$0xff]
        %v666 = vld [vmem:[#allocation5 + $0x98] sm:$0xff]
        %v667 = vld [vmem:[#allocation5 + $0xa0] sm:$0xff]
        %v668 = vld [vmem:[#allocation5 + $0xa8] sm:$0xff]
        %v669 = vld [vmem:[#allocation5 + $0xb0] sm:$0xff]
        %v670 = vld [vmem:[#allocation5 + $0xb8] sm:$0xff]
        %v671 = vld [vmem:[#allocation5 + $0xc0] sm:$0xff]
        %v672 = vld [vmem:[#allocation5 + $0xc8] sm:$0xff]
        %v673 = vld [vmem:[#allocation5 + $0xd0] sm:$0xff]
        %v674 = vld [vmem:[#allocation5 + $0xd8] sm:$0xff]
        %v675 = vld [vmem:[#allocation5 + $0xe0] sm:$0xff]
        %v676 = vld [vmem:[#allocation5 + $0xe8] sm:$0xff]
        %v677 = vld [vmem:[#allocation5 + $0xf0] sm:$0xff]
        %v678 = vld [vmem:[#allocation5 + $0xf8] sm:$0xff]
        %v679 = vld [vmem:[#allocation5 + $0x100] sm:$0xff]
        %v680 = vld [vmem:[#allocation5 + $0x108] sm:$0xff]
        %v681 = vld [vmem:[#allocation5 + $0x110] sm:$0xff]
        %v682 = vld [vmem:[#allocation5 + $0x118] sm:$0xff]
        %v683 = vld [vmem:[#allocation5 + $0x120] sm:$0xff]
        %v684 = vld [vmem:[#allocation5 + $0x128] sm:$0xff]
        %v685 = vld [vmem:[#allocation5 + $0x130] sm:$0xff]
        %v686 = vld [vmem:[#allocation5 + $0x138] sm:$0xff]
        %v687 = vld [vmem:[#allocation5 + $0x140] sm:$0xff]
        %v688 = vld [vmem:[#allocation5 + $0x148] sm:$0xff]
        %v689 = vld [vmem:[#allocation5 + $0x150] sm:$0xff]
        %v690 = vld [vmem:[#allocation5 + $0x158] sm:$0xff]
        %v691 = vld [vmem:[#allocation5 + $0x160] sm:$0xff]
        %v692 = vld [vmem:[#allocation5 + $0x168] sm:$0xff]
        %v693 = vld [vmem:[#allocation5 + $0x170] sm:$0xff]
        %v694 = vld [vmem:[#allocation5 + $0x178] sm:$0xff]
        %v695 = vld [vmem:[%s2] sm:$0x7]
        %v697 = vlaneseq
        %v698 = vshrl.u32 %v697, 7
        %v699 = vsub.s32 0, %v698
        %v700 = vrot.slane %v695, %v699
        %v701 = vlaneseq
        %v702 = vshrl.u32 %v701, 7
        %v703 = vsub.s32 1, %v702
        %v704 = vrot.slane %v695, %v703
        %v705 = vlaneseq
        %v706 = vshrl.u32 %v705, 7
        %v707 = vsub.s32 2, %v706
        %v708 = vrot.slane %v695, %v707
        %712 = vmatprep.subr.mxu0 %v648
        %713 = vmatpush1.msra.mxu0 %v647
        %714 = vmatprep.subr.mxu0 %v651
        %715 = vmatpush1.msra.mxu0 %v650
        %716 = vmatprep.subr.mxu0 %v654
        %717 = vmatpush1.msra.mxu0 %v653
        %718 = vmatprep.subr.mxu0 %v657
        %719 = vmatpush1.msra.mxu0 %v656
        %720 = vmatprep.subr.mxu0 %v660
        %721 = vmatpush1.msra.mxu0 %v659
        %722 = vmatprep.subr.mxu0 %v663
        %723 = vmatpush1.msra.mxu0 %v662
        %724 = vmatprep.subr.mxu0 %v666
        %725 = vmatpush1.msra.mxu0 %v665
        %726 = vmatprep.subr.mxu0 %v669
        %727 = vmatpush1.msra.mxu0 %v668
        %728 = vmatprep.subr.mxu0 %v672
        %729 = vmatpush1.msra.mxu0 %v671
        %730 = vmatprep.subr.mxu0 %v675
        %731 = vmatpush1.msra.mxu0 %v674
        %732 = vmatprep.subr.mxu0 %v678
        %733 = vmatpush1.msra.mxu0 %v677
        %734 = vmatprep.subr.mxu0 %v681
        %735 = vmatpush1.msra.mxu0 %v680
        %736 = vmatprep.subr.mxu0 %v684
        %737 = vmatpush1.msra.mxu0 %v683
        %738 = vmatprep.subr.mxu0 %v687
        %739 = vmatpush1.msra.mxu0 %v686
        %740 = vmatprep.subr.mxu0 %v690
        %741 = vmatpush1.msra.mxu0 %v689
        %742 = vmatprep.subr.mxu0 %v693
        %743 = vmatpush1.msra.mxu0 %v692
        %744 = vmatprep.subr.mxu0 0.0
        %745 = vmatpush1.msra.mxu0 0.0
        %746 = vmatprep.subr.mxu0 0.0
        %747 = vmatpush1.msra.mxu0 0.0
        %748 = vmatprep.subr.mxu0 0.0
        %749 = vmatpush1.msra.mxu0 0.0
        %750 = vmatprep.subr.mxu0 0.0
        %751 = vmatpush1.msra.mxu0 0.0
        %752 = vmatprep.subr.mxu0 0.0
        %753 = vmatpush1.msra.mxu0 0.0
        %754 = vmatprep.subr.mxu0 0.0
        %755 = vmatpush1.msra.mxu0 0.0
        %756 = vmatprep.subr.mxu0 0.0
        %757 = vmatpush1.msra.mxu0 0.0
        %758 = vmatprep.subr.mxu0 0.0
        %759 = vmatpush1.msra.mxu0 0.0
        %760 = vmatprep.subr.mxu0 0.0
        %761 = vmatpush1.msra.mxu0 0.0
        %762 = vmatprep.subr.mxu0 0.0
        %763 = vmatpush1.msra.mxu0 0.0
        %764 = vmatprep.subr.mxu0 0.0
        %765 = vmatpush1.msra.mxu0 0.0
        %766 = vmatprep.subr.mxu0 0.0
        %767 = vmatpush1.msra.mxu0 0.0
        %768 = vmatprep.subr.mxu0 0.0
        %769 = vmatpush1.msra.mxu0 0.0
        %770 = vmatprep.subr.mxu0 0.0
        %771 = vmatpush1.msra.mxu0 0.0
        %772 = vmatprep.subr.mxu0 0.0
        %773 = vmatpush1.msra.mxu0 0.0
        %774 = vmatprep.subr.mxu0 0.0
        %775 = vmatpush1.msra.mxu0 0.0
        %776 = vmatprep.mubr.f32.mxu0 0.0
        %777 = vmatmul.mubr.f32.gmra.mrb[0].mxu0 %v639
        %v778 = vpop.f32.mrb[0].mxu0
        %v779 = vadd.f32 %v700, %v778
        %v780 = vpop.f32.mrb[0].mxu0
        %v781 = vadd.f32 %v704, %v780
        %782 = vmatprep.mubr.f32.mxu0 0.0
        %783 = vmatmul.mubr.f32.gmra.mrb[0].mxu0 %v640
        %v784 = vpop.f32.mrb[0].mxu0
        %v785 = vadd.f32 %v700, %v784
        %v786 = vpop.f32.mrb[0].mxu0
        %v787 = vadd.f32 %v704, %v786
        %788 = vmatprep.mubr.f32.mxu0 0.0
        %789 = vmatmul.mubr.f32.gmra.mrb[0].mxu0 %v641
        %v790 = vpop.f32.mrb[0].mxu0
        %v791 = vadd.f32 %v700, %v790
        %v792 = vpop.f32.mrb[0].mxu0
        %v793 = vadd.f32 %v704, %v792
        %794 = vmatprep.mubr.f32.mxu0 0.0
        %795 = vmatmul.mubr.f32.gmra.mrb[0].mxu0 %v642
        %v796 = vpop.f32.mrb[0].mxu0
        %v797 = vadd.f32 %v700, %v796
        %v798 = vpop.f32.mrb[0].mxu0
        %v799 = vadd.f32 %v704, %v798
        %800 = vmatprep.mubr.f32.mxu0 0.0
        %801 = vmatmul.mubr.f32.gmra.mrb[0].mxu0 %v643
        %v802 = vpop.f32.mrb[0].mxu0
        %v803 = vadd.f32 %v700, %v802
        %v804 = vpop.f32.mrb[0].mxu0
        %v805 = vadd.f32 %v704, %v804
        %806 = vmatprep.mubr.f32.mxu0 0.0
        %807 = vmatmul.mubr.f32.gmra.mrb[0].mxu0 %v644
        %v808 = vpop.f32.mrb[0].mxu0
        %v809 = vadd.f32 %v700, %v808
        %v810 = vpop.f32.mrb[0].mxu0
        %v811 = vadd.f32 %v704, %v810
        %812 = vmatprep.mubr.f32.mxu0 0.0
        %813 = vmatmul.mubr.f32.gmra.mrb[0].mxu0 %v645
        %v814 = vpop.f32.mrb[0].mxu0
        %v815 = vadd.f32 %v700, %v814
        %v816 = vpop.f32.mrb[0].mxu0
        %v817 = vadd.f32 %v704, %v816
        %818 = vmatprep.mubr.f32.mxu0 0.0
        %819 = vmatmul.mubr.f32.gmra.mrb[0].mxu0 %v646
        %v820 = vpop.f32.mrb[0].mxu0
        %v821 = vadd.f32 %v700, %v820
        %v822 = vpop.f32.mrb[0].mxu0
        %v823 = vadd.f32 %v704, %v822
        %824 = vdwg.mxu0
        %825 = vmatprep.subr.mxu0 0.0
        %826 = vmatpush1.msra.mxu0 %v649
        %827 = vmatprep.subr.mxu0 0.0
        %828 = vmatpush1.msra.mxu0 %v652
        %829 = vmatprep.subr.mxu0 0.0
        %830 = vmatpush1.msra.mxu0 %v655
        %831 = vmatprep.subr.mxu0 0.0
        %832 = vmatpush1.msra.mxu0 %v658
        %833 = vmatprep.subr.mxu0 0.0
        %834 = vmatpush1.msra.mxu0 %v661
        %835 = vmatprep.subr.mxu0 0.0
        %836 = vmatpush1.msra.mxu0 %v664
        %837 = vmatprep.subr.mxu0 0.0
        %838 = vmatpush1.msra.mxu0 %v667
        %839 = vmatprep.subr.mxu0 0.0
        %840 = vmatpush1.msra.mxu0 %v670
        %841 = vmatprep.subr.mxu0 0.0
        %842 = vmatpush1.msra.mxu0 %v673
        %843 = vmatprep.subr.mxu0 0.0
        %844 = vmatpush1.msra.mxu0 %v676
        %845 = vmatprep.subr.mxu0 0.0
        %846 = vmatpush1.msra.mxu0 %v679
        %847 = vmatprep.subr.mxu0 0.0
        %848 = vmatpush1.msra.mxu0 %v682
        %849 = vmatprep.subr.mxu0 0.0
        %850 = vmatpush1.msra.mxu0 %v685
        %851 = vmatprep.subr.mxu0 0.0
        %852 = vmatpush1.msra.mxu0 %v688
        %853 = vmatprep.subr.mxu0 0.0
        %854 = vmatpush1.msra.mxu0 %v691
        %855 = vmatprep.subr.mxu0 0.0
        %856 = vmatpush1.msra.mxu0 %v694
        %857 = vmatprep.subr.mxu0 0.0
        %858 = vmatpush1.msra.mxu0 0.0
        %859 = vmatprep.subr.mxu0 0.0
        %860 = vmatpush1.msra.mxu0 0.0
        %861 = vmatprep.subr.mxu0 0.0
        %862 = vmatpush1.msra.mxu0 0.0
        %863 = vmatprep.subr.mxu0 0.0
        %864 = vmatpush1.msra.mxu0 0.0
        %865 = vmatprep.subr.mxu0 0.0
        %866 = vmatpush1.msra.mxu0 0.0
        %867 = vmatprep.subr.mxu0 0.0
        %868 = vmatpush1.msra.mxu0 0.0
        %869 = vmatprep.subr.mxu0 0.0
        %870 = vmatpush1.msra.mxu0 0.0
        %871 = vmatprep.subr.mxu0 0.0
        %872 = vmatpush1.msra.mxu0 0.0
        %873 = vmatprep.subr.mxu0 0.0
        %874 = vmatpush1.msra.mxu0 0.0
        %875 = vmatprep.subr.mxu0 0.0
        %876 = vmatpush1.msra.mxu0 0.0
        %877 = vmatprep.subr.mxu0 0.0
        %878 = vmatpush1.msra.mxu0 0.0
        %879 = vmatprep.subr.mxu0 0.0
        %880 = vmatpush1.msra.mxu0 0.0
        %881 = vmatprep.subr.mxu0 0.0
        %882 = vmatpush1.msra.mxu0 0.0
        %883 = vmatprep.subr.mxu0 0.0
        %884 = vmatpush1.msra.mxu0 0.0
        %885 = vmatprep.subr.mxu0 0.0
        %886 = vmatpush1.msra.mxu0 0.0
        %887 = vmatprep.subr.mxu0 0.0
        %888 = vmatpush1.msra.mxu0 0.0
        %889 = vmatprep.mubr.f32.mxu0 0.0
        %890 = vmatmul.mubr.f32.gmra.mrb[0].mxu0 %v639
        %v891 = vpop.f32.mrb[0].mxu0
        %v892 = vadd.f32 %v708, %v891
        %v893 = vpop.f32.mrb[0].mxu0
        %894 = vmatprep.mubr.f32.mxu0 0.0
        %895 = vmatmul.mubr.f32.gmra.mrb[0].mxu0 %v640
        %v896 = vpop.f32.mrb[0].mxu0
        %v897 = vadd.f32 %v708, %v896
        %v898 = vpop.f32.mrb[0].mxu0
        %899 = vmatprep.mubr.f32.mxu0 0.0
        %900 = vmatmul.mubr.f32.gmra.mrb[0].mxu0 %v641
        %v901 = vpop.f32.mrb[0].mxu0
        %v902 = vadd.f32 %v708, %v901
        %v903 = vpop.f32.mrb[0].mxu0
        %904 = vmatprep.mubr.f32.mxu0 0.0
        %905 = vmatmul.mubr.f32.gmra.mrb[0].mxu0 %v642
        %v906 = vpop.f32.mrb[0].mxu0
        %v907 = vadd.f32 %v708, %v906
        %v908 = vpop.f32.mrb[0].mxu0
        %909 = vmatprep.mubr.f32.mxu0 0.0
        %910 = vmatmul.mubr.f32.gmra.mrb[0].mxu0 %v643
        %v911 = vpop.f32.mrb[0].mxu0
        %v912 = vadd.f32 %v708, %v911
        %v913 = vpop.f32.mrb[0].mxu0
        %914 = vmatprep.mubr.f32.mxu0 0.0
        %915 = vmatmul.mubr.f32.gmra.mrb[0].mxu0 %v644
        %v916 = vpop.f32.mrb[0].mxu0
        %v917 = vadd.f32 %v708, %v916
        %v918 = vpop.f32.mrb[0].mxu0
        %919 = vmatprep.mubr.f32.mxu0 0.0
        %920 = vmatmul.mubr.f32.gmra.mrb[0].mxu0 %v645
        %v921 = vpop.f32.mrb[0].mxu0
        %v922 = vadd.f32 %v708, %v921
        %v923 = vpop.f32.mrb[0].mxu0
        %924 = vmatprep.mubr.f32.mxu0 0.0
        %925 = vmatmul.mubr.f32.gmra.mrb[0].mxu0 %v646
        %v926 = vpop.f32.mrb[0].mxu0
        %v927 = vadd.f32 %v708, %v926
        %v928 = vpop.f32.mrb[0].mxu0
        %929 = vdwg.mxu0
        %938 = vrot.lane.b32.xlu0 %v779, 96
        %v939 = vpop.permute.xlu0 %938
        %940 = vrot.lane.b32.xlu0 %v785, 96
        %v941 = vpop.permute.xlu0 %940
        %942 = vrot.lane.b32.xlu0 %v791, 96
        %v943 = vpop.permute.xlu0 %942
        %944 = vrot.lane.b32.xlu0 %v797, 96
        %v945 = vpop.permute.xlu0 %944
        %946 = vrot.lane.b32.xlu0 %v803, 96
        %v947 = vpop.permute.xlu0 %946
        %948 = vrot.lane.b32.xlu0 %v809, 96
        %v949 = vpop.permute.xlu0 %948
        %950 = vrot.lane.b32.xlu0 %v815, 96
        %v951 = vpop.permute.xlu0 %950
        %952 = vrot.lane.b32.xlu0 %v821, 96
        %v953 = vpop.permute.xlu0 %952
        %954 = vrot.lane.b32.xlu0 %v779, 64
        %v955 = vpop.permute.xlu0 %954
        %956 = vrot.lane.b32.xlu0 %v785, 64
        %v957 = vpop.permute.xlu0 %956
        %958 = vrot.lane.b32.xlu0 %v791, 64
        %v959 = vpop.permute.xlu0 %958
        %960 = vrot.lane.b32.xlu0 %v797, 64
        %v961 = vpop.permute.xlu0 %960
        %962 = vrot.lane.b32.xlu0 %v803, 64
        %v963 = vpop.permute.xlu0 %962
        %964 = vrot.lane.b32.xlu0 %v809, 64
        %v965 = vpop.permute.xlu0 %964
        %966 = vrot.lane.b32.xlu0 %v815, 64
        %v967 = vpop.permute.xlu0 %966
        %968 = vrot.lane.b32.xlu0 %v821, 64
        %v969 = vpop.permute.xlu0 %968
        %970 = vrot.lane.b32.xlu0 %v779, 32
        %v971 = vpop.permute.xlu0 %970
        %972 = vrot.lane.b32.xlu0 %v785, 32
        %v973 = vpop.permute.xlu0 %972
        %974 = vrot.lane.b32.xlu0 %v791, 32
        %v975 = vpop.permute.xlu0 %974
        %976 = vrot.lane.b32.xlu0 %v797, 32
        %v977 = vpop.permute.xlu0 %976
        %978 = vrot.lane.b32.xlu0 %v803, 32
        %v979 = vpop.permute.xlu0 %978
        %980 = vrot.lane.b32.xlu0 %v809, 32
        %v981 = vpop.permute.xlu0 %980
        %982 = vrot.lane.b32.xlu0 %v815, 32
        %v983 = vpop.permute.xlu0 %982
        %984 = vrot.lane.b32.xlu0 %v821, 32
        %v985 = vpop.permute.xlu0 %984
        %994 = vrot.lane.b32.xlu0 %v781, 96
        %v995 = vpop.permute.xlu0 %994
        %996 = vrot.lane.b32.xlu0 %v787, 96
        %v997 = vpop.permute.xlu0 %996
        %998 = vrot.lane.b32.xlu0 %v793, 96
        %v999 = vpop.permute.xlu0 %998
        %1000 = vrot.lane.b32.xlu0 %v799, 96
        %v1001 = vpop.permute.xlu0 %1000
        %1002 = vrot.lane.b32.xlu0 %v805, 96
        %v1003 = vpop.permute.xlu0 %1002
        %1004 = vrot.lane.b32.xlu0 %v811, 96
        %v1005 = vpop.permute.xlu0 %1004
        %1006 = vrot.lane.b32.xlu0 %v817, 96
        %v1007 = vpop.permute.xlu0 %1006
        %1008 = vrot.lane.b32.xlu0 %v823, 96
        %v1009 = vpop.permute.xlu0 %1008
        %1010 = vrot.lane.b32.xlu0 %v781, 64
        %v1011 = vpop.permute.xlu0 %1010
        %1012 = vrot.lane.b32.xlu0 %v787, 64
        %v1013 = vpop.permute.xlu0 %1012
        %1014 = vrot.lane.b32.xlu0 %v793, 64
        %v1015 = vpop.permute.xlu0 %1014
        %1016 = vrot.lane.b32.xlu0 %v799, 64
        %v1017 = vpop.permute.xlu0 %1016
        %1018 = vrot.lane.b32.xlu0 %v805, 64
        %v1019 = vpop.permute.xlu0 %1018
        %1020 = vrot.lane.b32.xlu0 %v811, 64
        %v1021 = vpop.permute.xlu0 %1020
        %1022 = vrot.lane.b32.xlu0 %v817, 64
        %v1023 = vpop.permute.xlu0 %1022
        %1024 = vrot.lane.b32.xlu0 %v823, 64
        %v1025 = vpop.permute.xlu0 %1024
        %1026 = vrot.lane.b32.xlu0 %v781, 32
        %v1027 = vpop.permute.xlu0 %1026
        %1028 = vrot.lane.b32.xlu0 %v787, 32
        %v1029 = vpop.permute.xlu0 %1028
        %1030 = vrot.lane.b32.xlu0 %v793, 32
        %v1031 = vpop.permute.xlu0 %1030
        %1032 = vrot.lane.b32.xlu0 %v799, 32
        %v1033 = vpop.permute.xlu0 %1032
        %1034 = vrot.lane.b32.xlu0 %v805, 32
        %v1035 = vpop.permute.xlu0 %1034
        %1036 = vrot.lane.b32.xlu0 %v811, 32
        %v1037 = vpop.permute.xlu0 %1036
        %1038 = vrot.lane.b32.xlu0 %v817, 32
        %v1039 = vpop.permute.xlu0 %1038
        %1040 = vrot.lane.b32.xlu0 %v823, 32
        %v1041 = vpop.permute.xlu0 %1040
        %1050 = vrot.lane.b32.xlu0 %v892, 96
        %v1051 = vpop.permute.xlu0 %1050
        %1052 = vrot.lane.b32.xlu0 %v897, 96
        %v1053 = vpop.permute.xlu0 %1052
        %1054 = vrot.lane.b32.xlu0 %v902, 96
        %v1055 = vpop.permute.xlu0 %1054
        %1056 = vrot.lane.b32.xlu0 %v907, 96
        %v1057 = vpop.permute.xlu0 %1056
        %1058 = vrot.lane.b32.xlu0 %v912, 96
        %v1059 = vpop.permute.xlu0 %1058
        %1060 = vrot.lane.b32.xlu0 %v917, 96
        %v1061 = vpop.permute.xlu0 %1060
        %1062 = vrot.lane.b32.xlu0 %v922, 96
        %v1063 = vpop.permute.xlu0 %1062
        %1064 = vrot.lane.b32.xlu0 %v927, 96
        %v1065 = vpop.permute.xlu0 %1064
        %1074 = vrot.lane.b32.xlu0 %v892, 64
        %v1075 = vpop.permute.xlu0 %1074
        %1076 = vrot.lane.b32.xlu0 %v897, 64
        %v1077 = vpop.permute.xlu0 %1076
        %1078 = vrot.lane.b32.xlu0 %v902, 64
        %v1079 = vpop.permute.xlu0 %1078
        %1080 = vrot.lane.b32.xlu0 %v907, 64
        %v1081 = vpop.permute.xlu0 %1080
        %1082 = vrot.lane.b32.xlu0 %v912, 64
        %v1083 = vpop.permute.xlu0 %1082
        %1084 = vrot.lane.b32.xlu0 %v917, 64
        %v1085 = vpop.permute.xlu0 %1084
        %1086 = vrot.lane.b32.xlu0 %v922, 64
        %v1087 = vpop.permute.xlu0 %1086
        %1088 = vrot.lane.b32.xlu0 %v927, 64
        %v1089 = vpop.permute.xlu0 %1088
        %1098 = vrot.lane.b32.xlu0 %v892, 32
        %v1099 = vpop.permute.xlu0 %1098
        %1100 = vrot.lane.b32.xlu0 %v897, 32
        %v1101 = vpop.permute.xlu0 %1100
        %1102 = vrot.lane.b32.xlu0 %v902, 32
        %v1103 = vpop.permute.xlu0 %1102
        %1104 = vrot.lane.b32.xlu0 %v907, 32
        %v1105 = vpop.permute.xlu0 %1104
        %1106 = vrot.lane.b32.xlu0 %v912, 32
        %v1107 = vpop.permute.xlu0 %1106
        %1108 = vrot.lane.b32.xlu0 %v917, 32
        %v1109 = vpop.permute.xlu0 %1108
        %1110 = vrot.lane.b32.xlu0 %v922, 32
        %v1111 = vpop.permute.xlu0 %1110
        %1112 = vrot.lane.b32.xlu0 %v927, 32
        %v1113 = vpop.permute.xlu0 %1112
        %vm1122 = vcmask 261120
        %v1123 = vsel %vm1122, %v779, 0
        %v1125 = vsel %vm1122, %v785, 0
        %v1127 = vsel %vm1122, %v781, 0
        %v1129 = vsel %vm1122, %v787, 0
        %1131 = vmatprep.subr.mxu0 0.0
        %1132 = vmatpush1.xpose.msra.mxu0 %v1127
        %1133 = vmatprep.subr.mxu0 0.0
        %1134 = vmatpush1.xpose.msra.mxu0 %v1129
        %1135 = vmatprep.subr.mxu0 0.0
        %1136 = vmatpush1.xpose.msra.mxu0 0.0
        %1137 = vmatprep.subr.mxu0 0.0
        %1138 = vmatpush1.xpose.msra.mxu0 0.0
        %1139 = vmatprep.subr.mxu0 0.0
        %1140 = vmatpush1.xpose.msra.mxu0 0.0
        %1141 = vmatprep.subr.mxu0 0.0
        %1142 = vmatpush1.xpose.msra.mxu0 0.0
        %1143 = vmatprep.subr.mxu0 0.0
        %1144 = vmatpush1.xpose.msra.mxu0 0.0
        %1145 = vmatprep.subr.mxu0 0.0
        %1146 = vmatpush1.xpose.msra.mxu0 0.0
        %1147 = vmatprep.subr.mxu0 0.0
        %1148 = vmatpush1.xpose.msra.mxu0 0.0
        %1149 = vmatprep.subr.mxu0 0.0
        %1150 = vmatpush1.xpose.msra.mxu0 0.0
        %1151 = vmatprep.subr.mxu0 0.0
        %1152 = vmatpush1.xpose.msra.mxu0 0.0
        %1153 = vmatprep.subr.mxu0 0.0
        %1154 = vmatpush1.xpose.msra.mxu0 0.0
        %1155 = vmatprep.subr.mxu0 0.0
        %1156 = vmatpush1.xpose.msra.mxu0 0.0
        %1157 = vmatprep.subr.mxu0 0.0
        %1158 = vmatpush1.xpose.msra.mxu0 0.0
        %1159 = vmatprep.subr.mxu0 0.0
        %1160 = vmatpush1.xpose.msra.mxu0 0.0
        %1161 = vmatprep.subr.mxu0 0.0
        %1162 = vmatpush1.xpose.msra.mxu0 0.0
        %1163 = vmatprep.subr.mxu0 0.0
        %1164 = vmatpush1.xpose.msra.mxu0 0.0
        %1165 = vmatprep.subr.mxu0 0.0
        %1166 = vmatpush1.xpose.msra.mxu0 0.0
        %1167 = vmatprep.subr.mxu0 0.0
        %1168 = vmatpush1.xpose.msra.mxu0 0.0
        %1169 = vmatprep.subr.mxu0 0.0
        %1170 = vmatpush1.xpose.msra.mxu0 0.0
        %1171 = vmatprep.subr.mxu0 0.0
        %1172 = vmatpush1.xpose.msra.mxu0 0.0
        %1173 = vmatprep.subr.mxu0 0.0
        %1174 = vmatpush1.xpose.msra.mxu0 0.0
        %1175 = vmatprep.subr.mxu0 0.0
        %1176 = vmatpush1.xpose.msra.mxu0 0.0
        %1177 = vmatprep.subr.mxu0 0.0
        %1178 = vmatpush1.xpose.msra.mxu0 0.0
        %1179 = vmatprep.subr.mxu0 0.0
        %1180 = vmatpush1.xpose.msra.mxu0 0.0
        %1181 = vmatprep.subr.mxu0 0.0
        %1182 = vmatpush1.xpose.msra.mxu0 0.0
        %1183 = vmatprep.subr.mxu0 0.0
        %1184 = vmatpush1.xpose.msra.mxu0 0.0
        %1185 = vmatprep.subr.mxu0 0.0
        %1186 = vmatpush1.xpose.msra.mxu0 0.0
        %1187 = vmatprep.subr.mxu0 0.0
        %1188 = vmatpush1.xpose.msra.mxu0 0.0
        %1189 = vmatprep.subr.mxu0 0.0
        %1190 = vmatpush1.xpose.msra.mxu0 0.0
        %1191 = vmatprep.subr.mxu0 0.0
        %1192 = vmatpush1.xpose.msra.mxu0 0.0
        %1193 = vmatprep.subr.mxu0 0.0
        %1194 = vmatpush1.xpose.msra.mxu0 0.0
        %1195 = vmatprep.mubr.f32.mxu0 0.0
        %1196 = vmatmul.mubr.f32.gmra.mrb[0].mxu0 %v1123
        %v1197 = vpop.f32.mrb[0].mxu0
        %v1198 = vadd.f32 0.0, %v1197
        %v1199 = vpop.f32.mrb[0].mxu0
        %1200 = vmatprep.mubr.f32.mxu0 0.0
        %1201 = vmatmul.mubr.f32.gmra.mrb[0].mxu0 %v1125
        %v1202 = vpop.f32.mrb[0].mxu0
        %v1203 = vadd.f32 0.0, %v1202
        %v1204 = vpop.f32.mrb[0].mxu0
        %1205 = vdwg.mxu0
        %v1206 = vsel %vm1122, %v791, 0
        %v1208 = vsel %vm1122, %v797, 0
        %v1210 = vsel %vm1122, %v793, 0
        %v1212 = vsel %vm1122, %v799, 0
        %1214 = vmatprep.subr.mxu0 0.0
        %1215 = vmatpush1.xpose.msra.mxu0 %v1210
        %1216 = vmatprep.subr.mxu0 0.0
        %1217 = vmatpush1.xpose.msra.mxu0 %v1212
        %1218 = vmatprep.subr.mxu0 0.0
        %1219 = vmatpush1.xpose.msra.mxu0 0.0
        %1220 = vmatprep.subr.mxu0 0.0
        %1221 = vmatpush1.xpose.msra.mxu0 0.0
        %1222 = vmatprep.subr.mxu0 0.0
        %1223 = vmatpush1.xpose.msra.mxu0 0.0
        %1224 = vmatprep.subr.mxu0 0.0
        %1225 = vmatpush1.xpose.msra.mxu0 0.0
        %1226 = vmatprep.subr.mxu0 0.0
        %1227 = vmatpush1.xpose.msra.mxu0 0.0
        %1228 = vmatprep.subr.mxu0 0.0
        %1229 = vmatpush1.xpose.msra.mxu0 0.0
        %1230 = vmatprep.subr.mxu0 0.0
        %1231 = vmatpush1.xpose.msra.mxu0 0.0
        %1232 = vmatprep.subr.mxu0 0.0
        %1233 = vmatpush1.xpose.msra.mxu0 0.0
        %1234 = vmatprep.subr.mxu0 0.0
        %1235 = vmatpush1.xpose.msra.mxu0 0.0
        %1236 = vmatprep.subr.mxu0 0.0
        %1237 = vmatpush1.xpose.msra.mxu0 0.0
        %1238 = vmatprep.subr.mxu0 0.0
        %1239 = vmatpush1.xpose.msra.mxu0 0.0
        %1240 = vmatprep.subr.mxu0 0.0
        %1241 = vmatpush1.xpose.msra.mxu0 0.0
        %1242 = vmatprep.subr.mxu0 0.0
        %1243 = vmatpush1.xpose.msra.mxu0 0.0
        %1244 = vmatprep.subr.mxu0 0.0
        %1245 = vmatpush1.xpose.msra.mxu0 0.0
        %1246 = vmatprep.subr.mxu0 0.0
        %1247 = vmatpush1.xpose.msra.mxu0 0.0
        %1248 = vmatprep.subr.mxu0 0.0
        %1249 = vmatpush1.xpose.msra.mxu0 0.0
        %1250 = vmatprep.subr.mxu0 0.0
        %1251 = vmatpush1.xpose.msra.mxu0 0.0
        %1252 = vmatprep.subr.mxu0 0.0
        %1253 = vmatpush1.xpose.msra.mxu0 0.0
        %1254 = vmatprep.subr.mxu0 0.0
        %1255 = vmatpush1.xpose.msra.mxu0 0.0
        %1256 = vmatprep.subr.mxu0 0.0
        %1257 = vmatpush1.xpose.msra.mxu0 0.0
        %1258 = vmatprep.subr.mxu0 0.0
        %1259 = vmatpush1.xpose.msra.mxu0 0.0
        %1260 = vmatprep.subr.mxu0 0.0
        %1261 = vmatpush1.xpose.msra.mxu0 0.0
        %1262 = vmatprep.subr.mxu0 0.0
        %1263 = vmatpush1.xpose.msra.mxu0 0.0
        %1264 = vmatprep.subr.mxu0 0.0
        %1265 = vmatpush1.xpose.msra.mxu0 0.0
        %1266 = vmatprep.subr.mxu0 0.0
        %1267 = vmatpush1.xpose.msra.mxu0 0.0
        %1268 = vmatprep.subr.mxu0 0.0
        %1269 = vmatpush1.xpose.msra.mxu0 0.0
        %1270 = vmatprep.subr.mxu0 0.0
        %1271 = vmatpush1.xpose.msra.mxu0 0.0
        %1272 = vmatprep.subr.mxu0 0.0
        %1273 = vmatpush1.xpose.msra.mxu0 0.0
        %1274 = vmatprep.subr.mxu0 0.0
        %1275 = vmatpush1.xpose.msra.mxu0 0.0
        %1276 = vmatprep.subr.mxu0 0.0
        %1277 = vmatpush1.xpose.msra.mxu0 0.0
        %1278 = vmatprep.mubr.f32.mxu0 0.0
        %1279 = vmatmul.mubr.f32.gmra.mrb[0].mxu0 %v1206
        %v1280 = vpop.f32.mrb[0].mxu0
        %v1281 = vadd.f32 0.0, %v1280
        %v1282 = vpop.f32.mrb[0].mxu0
        %1283 = vmatprep.mubr.f32.mxu0 0.0
        %1284 = vmatmul.mubr.f32.gmra.mrb[0].mxu0 %v1208
        %v1285 = vpop.f32.mrb[0].mxu0
        %v1286 = vadd.f32 0.0, %v1285
        %v1287 = vpop.f32.mrb[0].mxu0
        %1288 = vdwg.mxu0
        %v1289 = vsel %vm1122, %v803, 0
        %v1291 = vsel %vm1122, %v809, 0
        %v1293 = vsel %vm1122, %v805, 0
        %v1295 = vsel %vm1122, %v811, 0
        %1297 = vmatprep.subr.mxu0 0.0
        %1298 = vmatpush1.xpose.msra.mxu0 %v1293
        %1299 = vmatprep.subr.mxu0 0.0
        %1300 = vmatpush1.xpose.msra.mxu0 %v1295
        %1301 = vmatprep.subr.mxu0 0.0
        %1302 = vmatpush1.xpose.msra.mxu0 0.0
        %1303 = vmatprep.subr.mxu0 0.0
        %1304 = vmatpush1.xpose.msra.mxu0 0.0
        %1305 = vmatprep.subr.mxu0 0.0
        %1306 = vmatpush1.xpose.msra.mxu0 0.0
        %1307 = vmatprep.subr.mxu0 0.0
        %1308 = vmatpush1.xpose.msra.mxu0 0.0
        %1309 = vmatprep.subr.mxu0 0.0
        %1310 = vmatpush1.xpose.msra.mxu0 0.0
        %1311 = vmatprep.subr.mxu0 0.0
        %1312 = vmatpush1.xpose.msra.mxu0 0.0
        %1313 = vmatprep.subr.mxu0 0.0
        %1314 = vmatpush1.xpose.msra.mxu0 0.0
        %1315 = vmatprep.subr.mxu0 0.0
        %1316 = vmatpush1.xpose.msra.mxu0 0.0
        %1317 = vmatprep.subr.mxu0 0.0
        %1318 = vmatpush1.xpose.msra.mxu0 0.0
        %1319 = vmatprep.subr.mxu0 0.0
        %1320 = vmatpush1.xpose.msra.mxu0 0.0
        %1321 = vmatprep.subr.mxu0 0.0
        %1322 = vmatpush1.xpose.msra.mxu0 0.0
        %1323 = vmatprep.subr.mxu0 0.0
        %1324 = vmatpush1.xpose.msra.mxu0 0.0
        %1325 = vmatprep.subr.mxu0 0.0
        %1326 = vmatpush1.xpose.msra.mxu0 0.0
        %1327 = vmatprep.subr.mxu0 0.0
        %1328 = vmatpush1.xpose.msra.mxu0 0.0
        %1329 = vmatprep.subr.mxu0 0.0
        %1330 = vmatpush1.xpose.msra.mxu0 0.0
        %1331 = vmatprep.subr.mxu0 0.0
        %1332 = vmatpush1.xpose.msra.mxu0 0.0
        %1333 = vmatprep.subr.mxu0 0.0
        %1334 = vmatpush1.xpose.msra.mxu0 0.0
        %1335 = vmatprep.subr.mxu0 0.0
        %1336 = vmatpush1.xpose.msra.mxu0 0.0
        %1337 = vmatprep.subr.mxu0 0.0
        %1338 = vmatpush1.xpose.msra.mxu0 0.0
        %1339 = vmatprep.subr.mxu0 0.0
        %1340 = vmatpush1.xpose.msra.mxu0 0.0
        %1341 = vmatprep.subr.mxu0 0.0
        %1342 = vmatpush1.xpose.msra.mxu0 0.0
        %1343 = vmatprep.subr.mxu0 0.0
        %1344 = vmatpush1.xpose.msra.mxu0 0.0
        %1345 = vmatprep.subr.mxu0 0.0
        %1346 = vmatpush1.xpose.msra.mxu0 0.0
        %1347 = vmatprep.subr.mxu0 0.0
        %1348 = vmatpush1.xpose.msra.mxu0 0.0
        %1349 = vmatprep.subr.mxu0 0.0
        %1350 = vmatpush1.xpose.msra.mxu0 0.0
        %1351 = vmatprep.subr.mxu0 0.0
        %1352 = vmatpush1.xpose.msra.mxu0 0.0
        %1353 = vmatprep.subr.mxu0 0.0
        %1354 = vmatpush1.xpose.msra.mxu0 0.0
        %1355 = vmatprep.subr.mxu0 0.0
        %1356 = vmatpush1.xpose.msra.mxu0 0.0
        %1357 = vmatprep.subr.mxu0 0.0
        %1358 = vmatpush1.xpose.msra.mxu0 0.0
        %1359 = vmatprep.subr.mxu0 0.0
        %1360 = vmatpush1.xpose.msra.mxu0 0.0
        %1361 = vmatprep.mubr.f32.mxu0 0.0
        %1362 = vmatmul.mubr.f32.gmra.mrb[0].mxu0 %v1289
        %v1363 = vpop.f32.mrb[0].mxu0
        %v1364 = vadd.f32 0.0, %v1363
        %v1365 = vpop.f32.mrb[0].mxu0
        %1366 = vmatprep.mubr.f32.mxu0 0.0
        %1367 = vmatmul.mubr.f32.gmra.mrb[0].mxu0 %v1291
        %v1368 = vpop.f32.mrb[0].mxu0
        %v1369 = vadd.f32 0.0, %v1368
        %v1370 = vpop.f32.mrb[0].mxu0
        %1371 = vdwg.mxu0
        %v1372 = vsel %vm1122, %v815, 0
        %v1374 = vsel %vm1122, %v821, 0
        %v1376 = vsel %vm1122, %v817, 0
        %v1378 = vsel %vm1122, %v823, 0
        %1380 = vmatprep.subr.mxu0 0.0
        %1381 = vmatpush1.xpose.msra.mxu0 %v1376
        %1382 = vmatprep.subr.mxu0 0.0
        %1383 = vmatpush1.xpose.msra.mxu0 %v1378
        %1384 = vmatprep.subr.mxu0 0.0
        %1385 = vmatpush1.xpose.msra.mxu0 0.0
        %1386 = vmatprep.subr.mxu0 0.0
        %1387 = vmatpush1.xpose.msra.mxu0 0.0
        %1388 = vmatprep.subr.mxu0 0.0
        %1389 = vmatpush1.xpose.msra.mxu0 0.0
        %1390 = vmatprep.subr.mxu0 0.0
        %1391 = vmatpush1.xpose.msra.mxu0 0.0
        %1392 = vmatprep.subr.mxu0 0.0
        %1393 = vmatpush1.xpose.msra.mxu0 0.0
        %1394 = vmatprep.subr.mxu0 0.0
        %1395 = vmatpush1.xpose.msra.mxu0 0.0
        %1396 = vmatprep.subr.mxu0 0.0
        %1397 = vmatpush1.xpose.msra.mxu0 0.0
        %1398 = vmatprep.subr.mxu0 0.0
        %1399 = vmatpush1.xpose.msra.mxu0 0.0
        %1400 = vmatprep.subr.mxu0 0.0
        %1401 = vmatpush1.xpose.msra.mxu0 0.0
        %1402 = vmatprep.subr.mxu0 0.0
        %1403 = vmatpush1.xpose.msra.mxu0 0.0
        %1404 = vmatprep.subr.mxu0 0.0
        %1405 = vmatpush1.xpose.msra.mxu0 0.0
        %1406 = vmatprep.subr.mxu0 0.0
        %1407 = vmatpush1.xpose.msra.mxu0 0.0
        %1408 = vmatprep.subr.mxu0 0.0
        %1409 = vmatpush1.xpose.msra.mxu0 0.0
        %1410 = vmatprep.subr.mxu0 0.0
        %1411 = vmatpush1.xpose.msra.mxu0 0.0
        %1412 = vmatprep.subr.mxu0 0.0
        %1413 = vmatpush1.xpose.msra.mxu0 0.0
        %1414 = vmatprep.subr.mxu0 0.0
        %1415 = vmatpush1.xpose.msra.mxu0 0.0
        %1416 = vmatprep.subr.mxu0 0.0
        %1417 = vmatpush1.xpose.msra.mxu0 0.0
        %1418 = vmatprep.subr.mxu0 0.0
        %1419 = vmatpush1.xpose.msra.mxu0 0.0
        %1420 = vmatprep.subr.mxu0 0.0
        %1421 = vmatpush1.xpose.msra.mxu0 0.0
        %1422 = vmatprep.subr.mxu0 0.0
        %1423 = vmatpush1.xpose.msra.mxu0 0.0
        %1424 = vmatprep.subr.mxu0 0.0
        %1425 = vmatpush1.xpose.msra.mxu0 0.0
        %1426 = vmatprep.subr.mxu0 0.0
        %1427 = vmatpush1.xpose.msra.mxu0 0.0
        %1428 = vmatprep.subr.mxu0 0.0
        %1429 = vmatpush1.xpose.msra.mxu0 0.0
        %1430 = vmatprep.subr.mxu0 0.0
        %1431 = vmatpush1.xpose.msra.mxu0 0.0
        %1432 = vmatprep.subr.mxu0 0.0
        %1433 = vmatpush1.xpose.msra.mxu0 0.0
        %1434 = vmatprep.subr.mxu0 0.0
        %1435 = vmatpush1.xpose.msra.mxu0 0.0
        %1436 = vmatprep.subr.mxu0 0.0
        %1437 = vmatpush1.xpose.msra.mxu0 0.0
        %1438 = vmatprep.subr.mxu0 0.0
        %1439 = vmatpush1.xpose.msra.mxu0 0.0
        %1440 = vmatprep.subr.mxu0 0.0
        %1441 = vmatpush1.xpose.msra.mxu0 0.0
        %1442 = vmatprep.subr.mxu0 0.0
        %1443 = vmatpush1.xpose.msra.mxu0 0.0
        %1444 = vmatprep.mubr.f32.mxu0 0.0
        %1445 = vmatmul.mubr.f32.gmra.mrb[0].mxu0 %v1372
        %v1446 = vpop.f32.mrb[0].mxu0
        %v1447 = vadd.f32 0.0, %v1446
        %v1448 = vpop.f32.mrb[0].mxu0
        %1449 = vmatprep.mubr.f32.mxu0 0.0
        %1450 = vmatmul.mubr.f32.gmra.mrb[0].mxu0 %v1374
        %v1451 = vpop.f32.mrb[0].mxu0
        %v1452 = vadd.f32 0.0, %v1451
        %v1453 = vpop.f32.mrb[0].mxu0
        %1454 = vdwg.mxu0
        %v1455 = vsel %vm1122, %v939, 0
        %v1457 = vsel %vm1122, %v941, 0
        %v1459 = vsel %vm1122, %v995, 0
        %v1461 = vsel %vm1122, %v997, 0
        %1463 = vmatprep.subr.mxu0 0.0
        %1464 = vmatpush1.xpose.msra.mxu0 %v1459
        %1465 = vmatprep.subr.mxu0 0.0
        %1466 = vmatpush1.xpose.msra.mxu0 %v1461
        %1467 = vmatprep.subr.mxu0 0.0
        %1468 = vmatpush1.xpose.msra.mxu0 0.0
        %1469 = vmatprep.subr.mxu0 0.0
        %1470 = vmatpush1.xpose.msra.mxu0 0.0
        %1471 = vmatprep.subr.mxu0 0.0
        %1472 = vmatpush1.xpose.msra.mxu0 0.0
        %1473 = vmatprep.subr.mxu0 0.0
        %1474 = vmatpush1.xpose.msra.mxu0 0.0
        %1475 = vmatprep.subr.mxu0 0.0
        %1476 = vmatpush1.xpose.msra.mxu0 0.0
        %1477 = vmatprep.subr.mxu0 0.0
        %1478 = vmatpush1.xpose.msra.mxu0 0.0
        %1479 = vmatprep.subr.mxu0 0.0
        %1480 = vmatpush1.xpose.msra.mxu0 0.0
        %1481 = vmatprep.subr.mxu0 0.0
        %1482 = vmatpush1.xpose.msra.mxu0 0.0
        %1483 = vmatprep.subr.mxu0 0.0
        %1484 = vmatpush1.xpose.msra.mxu0 0.0
        %1485 = vmatprep.subr.mxu0 0.0
        %1486 = vmatpush1.xpose.msra.mxu0 0.0
        %1487 = vmatprep.subr.mxu0 0.0
        %1488 = vmatpush1.xpose.msra.mxu0 0.0
        %1489 = vmatprep.subr.mxu0 0.0
        %1490 = vmatpush1.xpose.msra.mxu0 0.0
        %1491 = vmatprep.subr.mxu0 0.0
        %1492 = vmatpush1.xpose.msra.mxu0 0.0
        %1493 = vmatprep.subr.mxu0 0.0
        %1494 = vmatpush1.xpose.msra.mxu0 0.0
        %1495 = vmatprep.subr.mxu0 0.0
        %1496 = vmatpush1.xpose.msra.mxu0 0.0
        %1497 = vmatprep.subr.mxu0 0.0
        %1498 = vmatpush1.xpose.msra.mxu0 0.0
        %1499 = vmatprep.subr.mxu0 0.0
        %1500 = vmatpush1.xpose.msra.mxu0 0.0
        %1501 = vmatprep.subr.mxu0 0.0
        %1502 = vmatpush1.xpose.msra.mxu0 0.0
        %1503 = vmatprep.subr.mxu0 0.0
        %1504 = vmatpush1.xpose.msra.mxu0 0.0
        %1505 = vmatprep.subr.mxu0 0.0
        %1506 = vmatpush1.xpose.msra.mxu0 0.0
        %1507 = vmatprep.subr.mxu0 0.0
        %1508 = vmatpush1.xpose.msra.mxu0 0.0
        %1509 = vmatprep.subr.mxu0 0.0
        %1510 = vmatpush1.xpose.msra.mxu0 0.0
        %1511 = vmatprep.subr.mxu0 0.0
        %1512 = vmatpush1.xpose.msra.mxu0 0.0
        %1513 = vmatprep.subr.mxu0 0.0
        %1514 = vmatpush1.xpose.msra.mxu0 0.0
        %1515 = vmatprep.subr.mxu0 0.0
        %1516 = vmatpush1.xpose.msra.mxu0 0.0
        %1517 = vmatprep.subr.mxu0 0.0
        %1518 = vmatpush1.xpose.msra.mxu0 0.0
        %1519 = vmatprep.subr.mxu0 0.0
        %1520 = vmatpush1.xpose.msra.mxu0 0.0
        %1521 = vmatprep.subr.mxu0 0.0
        %1522 = vmatpush1.xpose.msra.mxu0 0.0
        %1523 = vmatprep.subr.mxu0 0.0
        %1524 = vmatpush1.xpose.msra.mxu0 0.0
        %1525 = vmatprep.subr.mxu0 0.0
        %1526 = vmatpush1.xpose.msra.mxu0 0.0
        %1527 = vmatprep.mubr.f32.mxu0 0.0
        %1528 = vmatmul.mubr.f32.gmra.mrb[0].mxu0 %v1455
        %v1529 = vpop.f32.mrb[0].mxu0
        %v1530 = vadd.f32 0.0, %v1529
        %v1531 = vpop.f32.mrb[0].mxu0
        %1532 = vmatprep.mubr.f32.mxu0 0.0
        %1533 = vmatmul.mubr.f32.gmra.mrb[0].mxu0 %v1457
        %v1534 = vpop.f32.mrb[0].mxu0
        %v1535 = vadd.f32 0.0, %v1534
        %v1536 = vpop.f32.mrb[0].mxu0
        %1537 = vdwg.mxu0
        %v1538 = vsel %vm1122, %v943, 0
        %v1540 = vsel %vm1122, %v945, 0
        %v1542 = vsel %vm1122, %v999, 0
        %v1544 = vsel %vm1122, %v1001, 0
        %1546 = vmatprep.subr.mxu0 0.0
        %1547 = vmatpush1.xpose.msra.mxu0 %v1542
        %1548 = vmatprep.subr.mxu0 0.0
        %1549 = vmatpush1.xpose.msra.mxu0 %v1544
        %1550 = vmatprep.subr.mxu0 0.0
        %1551 = vmatpush1.xpose.msra.mxu0 0.0
        %1552 = vmatprep.subr.mxu0 0.0
        %1553 = vmatpush1.xpose.msra.mxu0 0.0
        %1554 = vmatprep.subr.mxu0 0.0
        %1555 = vmatpush1.xpose.msra.mxu0 0.0
        %1556 = vmatprep.subr.mxu0 0.0
        %1557 = vmatpush1.xpose.msra.mxu0 0.0
        %1558 = vmatprep.subr.mxu0 0.0
        %1559 = vmatpush1.xpose.msra.mxu0 0.0
        %1560 = vmatprep.subr.mxu0 0.0
        %1561 = vmatpush1.xpose.msra.mxu0 0.0
        %1562 = vmatprep.subr.mxu0 0.0
        %1563 = vmatpush1.xpose.msra.mxu0 0.0
        %1564 = vmatprep.subr.mxu0 0.0
        %1565 = vmatpush1.xpose.msra.mxu0 0.0
        %1566 = vmatprep.subr.mxu0 0.0
        %1567 = vmatpush1.xpose.msra.mxu0 0.0
        %1568 = vmatprep.subr.mxu0 0.0
        %1569 = vmatpush1.xpose.msra.mxu0 0.0
        %1570 = vmatprep.subr.mxu0 0.0
        %1571 = vmatpush1.xpose.msra.mxu0 0.0
        %1572 = vmatprep.subr.mxu0 0.0
        %1573 = vmatpush1.xpose.msra.mxu0 0.0
        %1574 = vmatprep.subr.mxu0 0.0
        %1575 = vmatpush1.xpose.msra.mxu0 0.0
        %1576 = vmatprep.subr.mxu0 0.0
        %1577 = vmatpush1.xpose.msra.mxu0 0.0
        %1578 = vmatprep.subr.mxu0 0.0
        %1579 = vmatpush1.xpose.msra.mxu0 0.0
        %1580 = vmatprep.subr.mxu0 0.0
        %1581 = vmatpush1.xpose.msra.mxu0 0.0
        %1582 = vmatprep.subr.mxu0 0.0
        %1583 = vmatpush1.xpose.msra.mxu0 0.0
        %1584 = vmatprep.subr.mxu0 0.0
        %1585 = vmatpush1.xpose.msra.mxu0 0.0
        %1586 = vmatprep.subr.mxu0 0.0
        %1587 = vmatpush1.xpose.msra.mxu0 0.0
        %1588 = vmatprep.subr.mxu0 0.0
        %1589 = vmatpush1.xpose.msra.mxu0 0.0
        %1590 = vmatprep.subr.mxu0 0.0
        %1591 = vmatpush1.xpose.msra.mxu0 0.0
        %1592 = vmatprep.subr.mxu0 0.0
        %1593 = vmatpush1.xpose.msra.mxu0 0.0
        %1594 = vmatprep.subr.mxu0 0.0
        %1595 = vmatpush1.xpose.msra.mxu0 0.0
        %1596 = vmatprep.subr.mxu0 0.0
        %1597 = vmatpush1.xpose.msra.mxu0 0.0
        %1598 = vmatprep.subr.mxu0 0.0
        %1599 = vmatpush1.xpose.msra.mxu0 0.0
        %1600 = vmatprep.subr.mxu0 0.0
        %1601 = vmatpush1.xpose.msra.mxu0 0.0
        %1602 = vmatprep.subr.mxu0 0.0
        %1603 = vmatpush1.xpose.msra.mxu0 0.0
        %1604 = vmatprep.subr.mxu0 0.0
        %1605 = vmatpush1.xpose.msra.mxu0 0.0
        %1606 = vmatprep.subr.mxu0 0.0
        %1607 = vmatpush1.xpose.msra.mxu0 0.0
        %1608 = vmatprep.subr.mxu0 0.0
        %1609 = vmatpush1.xpose.msra.mxu0 0.0
        %1610 = vmatprep.mubr.f32.mxu0 0.0
        %1611 = vmatmul.mubr.f32.gmra.mrb[0].mxu0 %v1538
        %v1612 = vpop.f32.mrb[0].mxu0
        %v1613 = vadd.f32 0.0, %v1612
        %v1614 = vpop.f32.mrb[0].mxu0
        %1615 = vmatprep.mubr.f32.mxu0 0.0
        %1616 = vmatmul.mubr.f32.gmra.mrb[0].mxu0 %v1540
        %v1617 = vpop.f32.mrb[0].mxu0
        %v1618 = vadd.f32 0.0, %v1617
        %v1619 = vpop.f32.mrb[0].mxu0
        %1620 = vdwg.mxu0
        %v1621 = vsel %vm1122, %v947, 0
        %v1623 = vsel %vm1122, %v949, 0
        %v1625 = vsel %vm1122, %v1003, 0
        %v1627 = vsel %vm1122, %v1005, 0
        %1629 = vmatprep.subr.mxu0 0.0
        %1630 = vmatpush1.xpose.msra.mxu0 %v1625
        %1631 = vmatprep.subr.mxu0 0.0
        %1632 = vmatpush1.xpose.msra.mxu0 %v1627
        %1633 = vmatprep.subr.mxu0 0.0
        %1634 = vmatpush1.xpose.msra.mxu0 0.0
        %1635 = vmatprep.subr.mxu0 0.0
        %1636 = vmatpush1.xpose.msra.mxu0 0.0
        %1637 = vmatprep.subr.mxu0 0.0
        %1638 = vmatpush1.xpose.msra.mxu0 0.0
        %1639 = vmatprep.subr.mxu0 0.0
        %1640 = vmatpush1.xpose.msra.mxu0 0.0
        %1641 = vmatprep.subr.mxu0 0.0
        %1642 = vmatpush1.xpose.msra.mxu0 0.0
        %1643 = vmatprep.subr.mxu0 0.0
        %1644 = vmatpush1.xpose.msra.mxu0 0.0
        %1645 = vmatprep.subr.mxu0 0.0
        %1646 = vmatpush1.xpose.msra.mxu0 0.0
        %1647 = vmatprep.subr.mxu0 0.0
        %1648 = vmatpush1.xpose.msra.mxu0 0.0
        %1649 = vmatprep.subr.mxu0 0.0
        %1650 = vmatpush1.xpose.msra.mxu0 0.0
        %1651 = vmatprep.subr.mxu0 0.0
        %1652 = vmatpush1.xpose.msra.mxu0 0.0
        %1653 = vmatprep.subr.mxu0 0.0
        %1654 = vmatpush1.xpose.msra.mxu0 0.0
        %1655 = vmatprep.subr.mxu0 0.0
        %1656 = vmatpush1.xpose.msra.mxu0 0.0
        %1657 = vmatprep.subr.mxu0 0.0
        %1658 = vmatpush1.xpose.msra.mxu0 0.0
        %1659 = vmatprep.subr.mxu0 0.0
        %1660 = vmatpush1.xpose.msra.mxu0 0.0
        %1661 = vmatprep.subr.mxu0 0.0
        %1662 = vmatpush1.xpose.msra.mxu0 0.0
        %1663 = vmatprep.subr.mxu0 0.0
        %1664 = vmatpush1.xpose.msra.mxu0 0.0
        %1665 = vmatprep.subr.mxu0 0.0
        %1666 = vmatpush1.xpose.msra.mxu0 0.0
        %1667 = vmatprep.subr.mxu0 0.0
        %1668 = vmatpush1.xpose.msra.mxu0 0.0
        %1669 = vmatprep.subr.mxu0 0.0
        %1670 = vmatpush1.xpose.msra.mxu0 0.0
        %1671 = vmatprep.subr.mxu0 0.0
        %1672 = vmatpush1.xpose.msra.mxu0 0.0
        %1673 = vmatprep.subr.mxu0 0.0
        %1674 = vmatpush1.xpose.msra.mxu0 0.0
        %1675 = vmatprep.subr.mxu0 0.0
        %1676 = vmatpush1.xpose.msra.mxu0 0.0
        %1677 = vmatprep.subr.mxu0 0.0
        %1678 = vmatpush1.xpose.msra.mxu0 0.0
        %1679 = vmatprep.subr.mxu0 0.0
        %1680 = vmatpush1.xpose.msra.mxu0 0.0
        %1681 = vmatprep.subr.mxu0 0.0
        %1682 = vmatpush1.xpose.msra.mxu0 0.0
        %1683 = vmatprep.subr.mxu0 0.0
        %1684 = vmatpush1.xpose.msra.mxu0 0.0
        %1685 = vmatprep.subr.mxu0 0.0
        %1686 = vmatpush1.xpose.msra.mxu0 0.0
        %1687 = vmatprep.subr.mxu0 0.0
        %1688 = vmatpush1.xpose.msra.mxu0 0.0
        %1689 = vmatprep.subr.mxu0 0.0
        %1690 = vmatpush1.xpose.msra.mxu0 0.0
        %1691 = vmatprep.subr.mxu0 0.0
        %1692 = vmatpush1.xpose.msra.mxu0 0.0
        %1693 = vmatprep.mubr.f32.mxu0 0.0
        %1694 = vmatmul.mubr.f32.gmra.mrb[0].mxu0 %v1621
        %v1695 = vpop.f32.mrb[0].mxu0
        %v1696 = vadd.f32 0.0, %v1695
        %v1697 = vpop.f32.mrb[0].mxu0
        %1698 = vmatprep.mubr.f32.mxu0 0.0
        %1699 = vmatmul.mubr.f32.gmra.mrb[0].mxu0 %v1623
        %v1700 = vpop.f32.mrb[0].mxu0
        %v1701 = vadd.f32 0.0, %v1700
        %v1702 = vpop.f32.mrb[0].mxu0
        %1703 = vdwg.mxu0
        %v1704 = vsel %vm1122, %v951, 0
        %v1706 = vsel %vm1122, %v953, 0
        %v1708 = vsel %vm1122, %v1007, 0
        %v1710 = vsel %vm1122, %v1009, 0
        %1712 = vmatprep.subr.mxu0 0.0
        %1713 = vmatpush1.xpose.msra.mxu0 %v1708
        %1714 = vmatprep.subr.mxu0 0.0
        %1715 = vmatpush1.xpose.msra.mxu0 %v1710
        %1716 = vmatprep.subr.mxu0 0.0
        %1717 = vmatpush1.xpose.msra.mxu0 0.0
        %1718 = vmatprep.subr.mxu0 0.0
        %1719 = vmatpush1.xpose.msra.mxu0 0.0
        %1720 = vmatprep.subr.mxu0 0.0
        %1721 = vmatpush1.xpose.msra.mxu0 0.0
        %1722 = vmatprep.subr.mxu0 0.0
        %1723 = vmatpush1.xpose.msra.mxu0 0.0
        %1724 = vmatprep.subr.mxu0 0.0
        %1725 = vmatpush1.xpose.msra.mxu0 0.0
        %1726 = vmatprep.subr.mxu0 0.0
        %1727 = vmatpush1.xpose.msra.mxu0 0.0
        %1728 = vmatprep.subr.mxu0 0.0
        %1729 = vmatpush1.xpose.msra.mxu0 0.0
        %1730 = vmatprep.subr.mxu0 0.0
        %1731 = vmatpush1.xpose.msra.mxu0 0.0
        %1732 = vmatprep.subr.mxu0 0.0
        %1733 = vmatpush1.xpose.msra.mxu0 0.0
        %1734 = vmatprep.subr.mxu0 0.0
        %1735 = vmatpush1.xpose.msra.mxu0 0.0
        %1736 = vmatprep.subr.mxu0 0.0
        %1737 = vmatpush1.xpose.msra.mxu0 0.0
        %1738 = vmatprep.subr.mxu0 0.0
        %1739 = vmatpush1.xpose.msra.mxu0 0.0
        %1740 = vmatprep.subr.mxu0 0.0
        %1741 = vmatpush1.xpose.msra.mxu0 0.0
        %1742 = vmatprep.subr.mxu0 0.0
        %1743 = vmatpush1.xpose.msra.mxu0 0.0
        %1744 = vmatprep.subr.mxu0 0.0
        %1745 = vmatpush1.xpose.msra.mxu0 0.0
        %1746 = vmatprep.subr.mxu0 0.0
        %1747 = vmatpush1.xpose.msra.mxu0 0.0
        %1748 = vmatprep.subr.mxu0 0.0
        %1749 = vmatpush1.xpose.msra.mxu0 0.0
        %1750 = vmatprep.subr.mxu0 0.0
        %1751 = vmatpush1.xpose.msra.mxu0 0.0
        %1752 = vmatprep.subr.mxu0 0.0
        %1753 = vmatpush1.xpose.msra.mxu0 0.0
        %1754 = vmatprep.subr.mxu0 0.0
        %1755 = vmatpush1.xpose.msra.mxu0 0.0
        %1756 = vmatprep.subr.mxu0 0.0
        %1757 = vmatpush1.xpose.msra.mxu0 0.0
        %1758 = vmatprep.subr.mxu0 0.0
        %1759 = vmatpush1.xpose.msra.mxu0 0.0
        %1760 = vmatprep.subr.mxu0 0.0
        %1761 = vmatpush1.xpose.msra.mxu0 0.0
        %1762 = vmatprep.subr.mxu0 0.0
        %1763 = vmatpush1.xpose.msra.mxu0 0.0
        %1764 = vmatprep.subr.mxu0 0.0
        %1765 = vmatpush1.xpose.msra.mxu0 0.0
        %1766 = vmatprep.subr.mxu0 0.0
        %1767 = vmatpush1.xpose.msra.mxu0 0.0
        %1768 = vmatprep.subr.mxu0 0.0
        %1769 = vmatpush1.xpose.msra.mxu0 0.0
        %1770 = vmatprep.subr.mxu0 0.0
        %1771 = vmatpush1.xpose.msra.mxu0 0.0
        %1772 = vmatprep.subr.mxu0 0.0
        %1773 = vmatpush1.xpose.msra.mxu0 0.0
        %1774 = vmatprep.subr.mxu0 0.0
        %1775 = vmatpush1.xpose.msra.mxu0 0.0
        %1776 = vmatprep.mubr.f32.mxu0 0.0
        %1777 = vmatmul.mubr.f32.gmra.mrb[0].mxu0 %v1704
        %v1778 = vpop.f32.mrb[0].mxu0
        %v1779 = vadd.f32 0.0, %v1778
        %v1780 = vpop.f32.mrb[0].mxu0
        %1781 = vmatprep.mubr.f32.mxu0 0.0
        %1782 = vmatmul.mubr.f32.gmra.mrb[0].mxu0 %v1706
        %v1783 = vpop.f32.mrb[0].mxu0
        %v1784 = vadd.f32 0.0, %v1783
        %v1785 = vpop.f32.mrb[0].mxu0
        %1786 = vdwg.mxu0
        %v1787 = vsel %vm1122, %v955, 0
        %v1789 = vsel %vm1122, %v957, 0
        %v1791 = vsel %vm1122, %v1011, 0
        %v1793 = vsel %vm1122, %v1013, 0
        %1795 = vmatprep.subr.mxu0 0.0
        %1796 = vmatpush1.xpose.msra.mxu0 %v1791
        %1797 = vmatprep.subr.mxu0 0.0
        %1798 = vmatpush1.xpose.msra.mxu0 %v1793
        %1799 = vmatprep.subr.mxu0 0.0
        %1800 = vmatpush1.xpose.msra.mxu0 0.0
        %1801 = vmatprep.subr.mxu0 0.0
        %1802 = vmatpush1.xpose.msra.mxu0 0.0
        %1803 = vmatprep.subr.mxu0 0.0
        %1804 = vmatpush1.xpose.msra.mxu0 0.0
        %1805 = vmatprep.subr.mxu0 0.0
        %1806 = vmatpush1.xpose.msra.mxu0 0.0
        %1807 = vmatprep.subr.mxu0 0.0
        %1808 = vmatpush1.xpose.msra.mxu0 0.0
        %1809 = vmatprep.subr.mxu0 0.0
        %1810 = vmatpush1.xpose.msra.mxu0 0.0
        %1811 = vmatprep.subr.mxu0 0.0
        %1812 = vmatpush1.xpose.msra.mxu0 0.0
        %1813 = vmatprep.subr.mxu0 0.0
        %1814 = vmatpush1.xpose.msra.mxu0 0.0
        %1815 = vmatprep.subr.mxu0 0.0
        %1816 = vmatpush1.xpose.msra.mxu0 0.0
        %1817 = vmatprep.subr.mxu0 0.0
        %1818 = vmatpush1.xpose.msra.mxu0 0.0
        %1819 = vmatprep.subr.mxu0 0.0
        %1820 = vmatpush1.xpose.msra.mxu0 0.0
        %1821 = vmatprep.subr.mxu0 0.0
        %1822 = vmatpush1.xpose.msra.mxu0 0.0
        %1823 = vmatprep.subr.mxu0 0.0
        %1824 = vmatpush1.xpose.msra.mxu0 0.0
        %1825 = vmatprep.subr.mxu0 0.0
        %1826 = vmatpush1.xpose.msra.mxu0 0.0
        %1827 = vmatprep.subr.mxu0 0.0
        %1828 = vmatpush1.xpose.msra.mxu0 0.0
        %1829 = vmatprep.subr.mxu0 0.0
        %1830 = vmatpush1.xpose.msra.mxu0 0.0
        %1831 = vmatprep.subr.mxu0 0.0
        %1832 = vmatpush1.xpose.msra.mxu0 0.0
        %1833 = vmatprep.subr.mxu0 0.0
        %1834 = vmatpush1.xpose.msra.mxu0 0.0
        %1835 = vmatprep.subr.mxu0 0.0
        %1836 = vmatpush1.xpose.msra.mxu0 0.0
        %1837 = vmatprep.subr.mxu0 0.0
        %1838 = vmatpush1.xpose.msra.mxu0 0.0
        %1839 = vmatprep.subr.mxu0 0.0
        %1840 = vmatpush1.xpose.msra.mxu0 0.0
        %1841 = vmatprep.subr.mxu0 0.0
        %1842 = vmatpush1.xpose.msra.mxu0 0.0
        %1843 = vmatprep.subr.mxu0 0.0
        %1844 = vmatpush1.xpose.msra.mxu0 0.0
        %1845 = vmatprep.subr.mxu0 0.0
        %1846 = vmatpush1.xpose.msra.mxu0 0.0
        %1847 = vmatprep.subr.mxu0 0.0
        %1848 = vmatpush1.xpose.msra.mxu0 0.0
        %1849 = vmatprep.subr.mxu0 0.0
        %1850 = vmatpush1.xpose.msra.mxu0 0.0
        %1851 = vmatprep.subr.mxu0 0.0
        %1852 = vmatpush1.xpose.msra.mxu0 0.0
        %1853 = vmatprep.subr.mxu0 0.0
        %1854 = vmatpush1.xpose.msra.mxu0 0.0
        %1855 = vmatprep.subr.mxu0 0.0
        %1856 = vmatpush1.xpose.msra.mxu0 0.0
        %1857 = vmatprep.subr.mxu0 0.0
        %1858 = vmatpush1.xpose.msra.mxu0 0.0
        %1859 = vmatprep.mubr.f32.mxu0 0.0
        %1860 = vmatmul.mubr.f32.gmra.mrb[0].mxu0 %v1787
        %v1861 = vpop.f32.mrb[0].mxu0
        %v1862 = vadd.f32 0.0, %v1861
        %v1863 = vpop.f32.mrb[0].mxu0
        %1864 = vmatprep.mubr.f32.mxu0 0.0
        %1865 = vmatmul.mubr.f32.gmra.mrb[0].mxu0 %v1789
        %v1866 = vpop.f32.mrb[0].mxu0
        %v1867 = vadd.f32 0.0, %v1866
        %v1868 = vpop.f32.mrb[0].mxu0
        %1869 = vdwg.mxu0
        %v1870 = vsel %vm1122, %v959, 0
        %v1872 = vsel %vm1122, %v961, 0
        %v1874 = vsel %vm1122, %v1015, 0
        %v1876 = vsel %vm1122, %v1017, 0
        %1878 = vmatprep.subr.mxu0 0.0
        %1879 = vmatpush1.xpose.msra.mxu0 %v1874
        %1880 = vmatprep.subr.mxu0 0.0
        %1881 = vmatpush1.xpose.msra.mxu0 %v1876
        %1882 = vmatprep.subr.mxu0 0.0
        %1883 = vmatpush1.xpose.msra.mxu0 0.0
        %1884 = vmatprep.subr.mxu0 0.0
        %1885 = vmatpush1.xpose.msra.mxu0 0.0
        %1886 = vmatprep.subr.mxu0 0.0
        %1887 = vmatpush1.xpose.msra.mxu0 0.0
        %1888 = vmatprep.subr.mxu0 0.0
        %1889 = vmatpush1.xpose.msra.mxu0 0.0
        %1890 = vmatprep.subr.mxu0 0.0
        %1891 = vmatpush1.xpose.msra.mxu0 0.0
        %1892 = vmatprep.subr.mxu0 0.0
        %1893 = vmatpush1.xpose.msra.mxu0 0.0
        %1894 = vmatprep.subr.mxu0 0.0
        %1895 = vmatpush1.xpose.msra.mxu0 0.0
        %1896 = vmatprep.subr.mxu0 0.0
        %1897 = vmatpush1.xpose.msra.mxu0 0.0
        %1898 = vmatprep.subr.mxu0 0.0
        %1899 = vmatpush1.xpose.msra.mxu0 0.0
        %1900 = vmatprep.subr.mxu0 0.0
        %1901 = vmatpush1.xpose.msra.mxu0 0.0
        %1902 = vmatprep.subr.mxu0 0.0
        %1903 = vmatpush1.xpose.msra.mxu0 0.0
        %1904 = vmatprep.subr.mxu0 0.0
        %1905 = vmatpush1.xpose.msra.mxu0 0.0
        %1906 = vmatprep.subr.mxu0 0.0
        %1907 = vmatpush1.xpose.msra.mxu0 0.0
        %1908 = vmatprep.subr.mxu0 0.0
        %1909 = vmatpush1.xpose.msra.mxu0 0.0
        %1910 = vmatprep.subr.mxu0 0.0
        %1911 = vmatpush1.xpose.msra.mxu0 0.0
        %1912 = vmatprep.subr.mxu0 0.0
        %1913 = vmatpush1.xpose.msra.mxu0 0.0
        %1914 = vmatprep.subr.mxu0 0.0
        %1915 = vmatpush1.xpose.msra.mxu0 0.0
        %1916 = vmatprep.subr.mxu0 0.0
        %1917 = vmatpush1.xpose.msra.mxu0 0.0
        %1918 = vmatprep.subr.mxu0 0.0
        %1919 = vmatpush1.xpose.msra.mxu0 0.0
        %1920 = vmatprep.subr.mxu0 0.0
        %1921 = vmatpush1.xpose.msra.mxu0 0.0
        %1922 = vmatprep.subr.mxu0 0.0
        %1923 = vmatpush1.xpose.msra.mxu0 0.0
        %1924 = vmatprep.subr.mxu0 0.0
        %1925 = vmatpush1.xpose.msra.mxu0 0.0
        %1926 = vmatprep.subr.mxu0 0.0
        %1927 = vmatpush1.xpose.msra.mxu0 0.0
        %1928 = vmatprep.subr.mxu0 0.0
        %1929 = vmatpush1.xpose.msra.mxu0 0.0
        %1930 = vmatprep.subr.mxu0 0.0
        %1931 = vmatpush1.xpose.msra.mxu0 0.0
        %1932 = vmatprep.subr.mxu0 0.0
        %1933 = vmatpush1.xpose.msra.mxu0 0.0
        %1934 = vmatprep.subr.mxu0 0.0
        %1935 = vmatpush1.xpose.msra.mxu0 0.0
        %1936 = vmatprep.subr.mxu0 0.0
        %1937 = vmatpush1.xpose.msra.mxu0 0.0
        %1938 = vmatprep.subr.mxu0 0.0
        %1939 = vmatpush1.xpose.msra.mxu0 0.0
        %1940 = vmatprep.subr.mxu0 0.0
        %1941 = vmatpush1.xpose.msra.mxu0 0.0
        %1942 = vmatprep.mubr.f32.mxu0 0.0
        %1943 = vmatmul.mubr.f32.gmra.mrb[0].mxu0 %v1870
        %v1944 = vpop.f32.mrb[0].mxu0
        %v1945 = vadd.f32 0.0, %v1944
        %v1946 = vpop.f32.mrb[0].mxu0
        %1947 = vmatprep.mubr.f32.mxu0 0.0
        %1948 = vmatmul.mubr.f32.gmra.mrb[0].mxu0 %v1872
        %v1949 = vpop.f32.mrb[0].mxu0
        %v1950 = vadd.f32 0.0, %v1949
        %v1951 = vpop.f32.mrb[0].mxu0
        %1952 = vdwg.mxu0
        %v1953 = vsel %vm1122, %v963, 0
        %v1955 = vsel %vm1122, %v965, 0
        %v1957 = vsel %vm1122, %v1019, 0
        %v1959 = vsel %vm1122, %v1021, 0
        %1961 = vmatprep.subr.mxu0 0.0
        %1962 = vmatpush1.xpose.msra.mxu0 %v1957
        %1963 = vmatprep.subr.mxu0 0.0
        %1964 = vmatpush1.xpose.msra.mxu0 %v1959
        %1965 = vmatprep.subr.mxu0 0.0
        %1966 = vmatpush1.xpose.msra.mxu0 0.0
        %1967 = vmatprep.subr.mxu0 0.0
        %1968 = vmatpush1.xpose.msra.mxu0 0.0
        %1969 = vmatprep.subr.mxu0 0.0
        %1970 = vmatpush1.xpose.msra.mxu0 0.0
        %1971 = vmatprep.subr.mxu0 0.0
        %1972 = vmatpush1.xpose.msra.mxu0 0.0
        %1973 = vmatprep.subr.mxu0 0.0
        %1974 = vmatpush1.xpose.msra.mxu0 0.0
        %1975 = vmatprep.subr.mxu0 0.0
        %1976 = vmatpush1.xpose.msra.mxu0 0.0
        %1977 = vmatprep.subr.mxu0 0.0
        %1978 = vmatpush1.xpose.msra.mxu0 0.0
        %1979 = vmatprep.subr.mxu0 0.0
        %1980 = vmatpush1.xpose.msra.mxu0 0.0
        %1981 = vmatprep.subr.mxu0 0.0
        %1982 = vmatpush1.xpose.msra.mxu0 0.0
        %1983 = vmatprep.subr.mxu0 0.0
        %1984 = vmatpush1.xpose.msra.mxu0 0.0
        %1985 = vmatprep.subr.mxu0 0.0
        %1986 = vmatpush1.xpose.msra.mxu0 0.0
        %1987 = vmatprep.subr.mxu0 0.0
        %1988 = vmatpush1.xpose.msra.mxu0 0.0
        %1989 = vmatprep.subr.mxu0 0.0
        %1990 = vmatpush1.xpose.msra.mxu0 0.0
        %1991 = vmatprep.subr.mxu0 0.0
        %1992 = vmatpush1.xpose.msra.mxu0 0.0
        %1993 = vmatprep.subr.mxu0 0.0
        %1994 = vmatpush1.xpose.msra.mxu0 0.0
        %1995 = vmatprep.subr.mxu0 0.0
        %1996 = vmatpush1.xpose.msra.mxu0 0.0
        %1997 = vmatprep.subr.mxu0 0.0
        %1998 = vmatpush1.xpose.msra.mxu0 0.0
        %1999 = vmatprep.subr.mxu0 0.0
        %2000 = vmatpush1.xpose.msra.mxu0 0.0
        %2001 = vmatprep.subr.mxu0 0.0
        %2002 = vmatpush1.xpose.msra.mxu0 0.0
        %2003 = vmatprep.subr.mxu0 0.0
        %2004 = vmatpush1.xpose.msra.mxu0 0.0
        %2005 = vmatprep.subr.mxu0 0.0
        %2006 = vmatpush1.xpose.msra.mxu0 0.0
        %2007 = vmatprep.subr.mxu0 0.0
        %2008 = vmatpush1.xpose.msra.mxu0 0.0
        %2009 = vmatprep.subr.mxu0 0.0
        %2010 = vmatpush1.xpose.msra.mxu0 0.0
        %2011 = vmatprep.subr.mxu0 0.0
        %2012 = vmatpush1.xpose.msra.mxu0 0.0
        %2013 = vmatprep.subr.mxu0 0.0
        %2014 = vmatpush1.xpose.msra.mxu0 0.0
        %2015 = vmatprep.subr.mxu0 0.0
        %2016 = vmatpush1.xpose.msra.mxu0 0.0
        %2017 = vmatprep.subr.mxu0 0.0
        %2018 = vmatpush1.xpose.msra.mxu0 0.0
        %2019 = vmatprep.subr.mxu0 0.0
        %2020 = vmatpush1.xpose.msra.mxu0 0.0
        %2021 = vmatprep.subr.mxu0 0.0
        %2022 = vmatpush1.xpose.msra.mxu0 0.0
        %2023 = vmatprep.subr.mxu0 0.0
        %2024 = vmatpush1.xpose.msra.mxu0 0.0
        %2025 = vmatprep.mubr.f32.mxu0 0.0
        %2026 = vmatmul.mubr.f32.gmra.mrb[0].mxu0 %v1953
        %v2027 = vpop.f32.mrb[0].mxu0
        %v2028 = vadd.f32 0.0, %v2027
        %v2029 = vpop.f32.mrb[0].mxu0
        %2030 = vmatprep.mubr.f32.mxu0 0.0
        %2031 = vmatmul.mubr.f32.gmra.mrb[0].mxu0 %v1955
        %v2032 = vpop.f32.mrb[0].mxu0
        %v2033 = vadd.f32 0.0, %v2032
        %v2034 = vpop.f32.mrb[0].mxu0
        %2035 = vdwg.mxu0
        %v2036 = vsel %vm1122, %v967, 0
        %v2038 = vsel %vm1122, %v969, 0
        %v2040 = vsel %vm1122, %v1023, 0
        %v2042 = vsel %vm1122, %v1025, 0
        %2044 = vmatprep.subr.mxu0 0.0
        %2045 = vmatpush1.xpose.msra.mxu0 %v2040
        %2046 = vmatprep.subr.mxu0 0.0
        %2047 = vmatpush1.xpose.msra.mxu0 %v2042
        %2048 = vmatprep.subr.mxu0 0.0
        %2049 = vmatpush1.xpose.msra.mxu0 0.0
        %2050 = vmatprep.subr.mxu0 0.0
        %2051 = vmatpush1.xpose.msra.mxu0 0.0
        %2052 = vmatprep.subr.mxu0 0.0
        %2053 = vmatpush1.xpose.msra.mxu0 0.0
        %2054 = vmatprep.subr.mxu0 0.0
        %2055 = vmatpush1.xpose.msra.mxu0 0.0
        %2056 = vmatprep.subr.mxu0 0.0
        %2057 = vmatpush1.xpose.msra.mxu0 0.0
        %2058 = vmatprep.subr.mxu0 0.0
        %2059 = vmatpush1.xpose.msra.mxu0 0.0
        %2060 = vmatprep.subr.mxu0 0.0
        %2061 = vmatpush1.xpose.msra.mxu0 0.0
        %2062 = vmatprep.subr.mxu0 0.0
        %2063 = vmatpush1.xpose.msra.mxu0 0.0
        %2064 = vmatprep.subr.mxu0 0.0
        %2065 = vmatpush1.xpose.msra.mxu0 0.0
        %2066 = vmatprep.subr.mxu0 0.0
        %2067 = vmatpush1.xpose.msra.mxu0 0.0
        %2068 = vmatprep.subr.mxu0 0.0
        %2069 = vmatpush1.xpose.msra.mxu0 0.0
        %2070 = vmatprep.subr.mxu0 0.0
        %2071 = vmatpush1.xpose.msra.mxu0 0.0
        %2072 = vmatprep.subr.mxu0 0.0
        %2073 = vmatpush1.xpose.msra.mxu0 0.0
        %2074 = vmatprep.subr.mxu0 0.0
        %2075 = vmatpush1.xpose.msra.mxu0 0.0
        %2076 = vmatprep.subr.mxu0 0.0
        %2077 = vmatpush1.xpose.msra.mxu0 0.0
        %2078 = vmatprep.subr.mxu0 0.0
        %2079 = vmatpush1.xpose.msra.mxu0 0.0
        %2080 = vmatprep.subr.mxu0 0.0
        %2081 = vmatpush1.xpose.msra.mxu0 0.0
        %2082 = vmatprep.subr.mxu0 0.0
        %2083 = vmatpush1.xpose.msra.mxu0 0.0
        %2084 = vmatprep.subr.mxu0 0.0
        %2085 = vmatpush1.xpose.msra.mxu0 0.0
        %2086 = vmatprep.subr.mxu0 0.0
        %2087 = vmatpush1.xpose.msra.mxu0 0.0
        %2088 = vmatprep.subr.mxu0 0.0
        %2089 = vmatpush1.xpose.msra.mxu0 0.0
        %2090 = vmatprep.subr.mxu0 0.0
        %2091 = vmatpush1.xpose.msra.mxu0 0.0
        %2092 = vmatprep.subr.mxu0 0.0
        %2093 = vmatpush1.xpose.msra.mxu0 0.0
        %2094 = vmatprep.subr.mxu0 0.0
        %2095 = vmatpush1.xpose.msra.mxu0 0.0
        %2096 = vmatprep.subr.mxu0 0.0
        %2097 = vmatpush1.xpose.msra.mxu0 0.0
        %2098 = vmatprep.subr.mxu0 0.0
        %2099 = vmatpush1.xpose.msra.mxu0 0.0
        %2100 = vmatprep.subr.mxu0 0.0
        %2101 = vmatpush1.xpose.msra.mxu0 0.0
        %2102 = vmatprep.subr.mxu0 0.0
        %2103 = vmatpush1.xpose.msra.mxu0 0.0
        %2104 = vmatprep.subr.mxu0 0.0
        %2105 = vmatpush1.xpose.msra.mxu0 0.0
        %2106 = vmatprep.subr.mxu0 0.0
        %2107 = vmatpush1.xpose.msra.mxu0 0.0
        %2108 = vmatprep.mubr.f32.mxu0 0.0
        %2109 = vmatmul.mubr.f32.gmra.mrb[0].mxu0 %v2036
        %v2110 = vpop.f32.mrb[0].mxu0
        %v2111 = vadd.f32 0.0, %v2110
        %v2112 = vpop.f32.mrb[0].mxu0
        %2113 = vmatprep.mubr.f32.mxu0 0.0
        %2114 = vmatmul.mubr.f32.gmra.mrb[0].mxu0 %v2038
        %v2115 = vpop.f32.mrb[0].mxu0
        %v2116 = vadd.f32 0.0, %v2115
        %v2117 = vpop.f32.mrb[0].mxu0
        %2118 = vdwg.mxu0
        %v2119 = vsel %vm1122, %v971, 0
        %v2121 = vsel %vm1122, %v973, 0
        %v2123 = vsel %vm1122, %v1027, 0
        %v2125 = vsel %vm1122, %v1029, 0
        %2127 = vmatprep.subr.mxu0 0.0
        %2128 = vmatpush1.xpose.msra.mxu0 %v2123
        %2129 = vmatprep.subr.mxu0 0.0
        %2130 = vmatpush1.xpose.msra.mxu0 %v2125
        %2131 = vmatprep.subr.mxu0 0.0
        %2132 = vmatpush1.xpose.msra.mxu0 0.0
        %2133 = vmatprep.subr.mxu0 0.0
        %2134 = vmatpush1.xpose.msra.mxu0 0.0
        %2135 = vmatprep.subr.mxu0 0.0
        %2136 = vmatpush1.xpose.msra.mxu0 0.0
        %2137 = vmatprep.subr.mxu0 0.0
        %2138 = vmatpush1.xpose.msra.mxu0 0.0
        %2139 = vmatprep.subr.mxu0 0.0
        %2140 = vmatpush1.xpose.msra.mxu0 0.0
        %2141 = vmatprep.subr.mxu0 0.0
        %2142 = vmatpush1.xpose.msra.mxu0 0.0
        %2143 = vmatprep.subr.mxu0 0.0
        %2144 = vmatpush1.xpose.msra.mxu0 0.0
        %2145 = vmatprep.subr.mxu0 0.0
        %2146 = vmatpush1.xpose.msra.mxu0 0.0
        %2147 = vmatprep.subr.mxu0 0.0
        %2148 = vmatpush1.xpose.msra.mxu0 0.0
        %2149 = vmatprep.subr.mxu0 0.0
        %2150 = vmatpush1.xpose.msra.mxu0 0.0
        %2151 = vmatprep.subr.mxu0 0.0
        %2152 = vmatpush1.xpose.msra.mxu0 0.0
        %2153 = vmatprep.subr.mxu0 0.0
        %2154 = vmatpush1.xpose.msra.mxu0 0.0
        %2155 = vmatprep.subr.mxu0 0.0
        %2156 = vmatpush1.xpose.msra.mxu0 0.0
        %2157 = vmatprep.subr.mxu0 0.0
        %2158 = vmatpush1.xpose.msra.mxu0 0.0
        %2159 = vmatprep.subr.mxu0 0.0
        %2160 = vmatpush1.xpose.msra.mxu0 0.0
        %2161 = vmatprep.subr.mxu0 0.0
        %2162 = vmatpush1.xpose.msra.mxu0 0.0
        %2163 = vmatprep.subr.mxu0 0.0
        %2164 = vmatpush1.xpose.msra.mxu0 0.0
        %2165 = vmatprep.subr.mxu0 0.0
        %2166 = vmatpush1.xpose.msra.mxu0 0.0
        %2167 = vmatprep.subr.mxu0 0.0
        %2168 = vmatpush1.xpose.msra.mxu0 0.0
        %2169 = vmatprep.subr.mxu0 0.0
        %2170 = vmatpush1.xpose.msra.mxu0 0.0
        %2171 = vmatprep.subr.mxu0 0.0
        %2172 = vmatpush1.xpose.msra.mxu0 0.0
        %2173 = vmatprep.subr.mxu0 0.0
        %2174 = vmatpush1.xpose.msra.mxu0 0.0
        %2175 = vmatprep.subr.mxu0 0.0
        %2176 = vmatpush1.xpose.msra.mxu0 0.0
        %2177 = vmatprep.subr.mxu0 0.0
        %2178 = vmatpush1.xpose.msra.mxu0 0.0
        %2179 = vmatprep.subr.mxu0 0.0
        %2180 = vmatpush1.xpose.msra.mxu0 0.0
        %2181 = vmatprep.subr.mxu0 0.0
        %2182 = vmatpush1.xpose.msra.mxu0 0.0
        %2183 = vmatprep.subr.mxu0 0.0
        %2184 = vmatpush1.xpose.msra.mxu0 0.0
        %2185 = vmatprep.subr.mxu0 0.0
        %2186 = vmatpush1.xpose.msra.mxu0 0.0
        %2187 = vmatprep.subr.mxu0 0.0
        %2188 = vmatpush1.xpose.msra.mxu0 0.0
        %2189 = vmatprep.subr.mxu0 0.0
        %2190 = vmatpush1.xpose.msra.mxu0 0.0
        %2191 = vmatprep.mubr.f32.mxu0 0.0
        %2192 = vmatmul.mubr.f32.gmra.mrb[0].mxu0 %v2119
        %v2193 = vpop.f32.mrb[0].mxu0
        %v2194 = vadd.f32 0.0, %v2193
        %v2195 = vpop.f32.mrb[0].mxu0
        %2196 = vmatprep.mubr.f32.mxu0 0.0
        %2197 = vmatmul.mubr.f32.gmra.mrb[0].mxu0 %v2121
        %v2198 = vpop.f32.mrb[0].mxu0
        %v2199 = vadd.f32 0.0, %v2198
        %v2200 = vpop.f32.mrb[0].mxu0
        %2201 = vdwg.mxu0
        %v2202 = vsel %vm1122, %v975, 0
        %v2204 = vsel %vm1122, %v977, 0
        %v2206 = vsel %vm1122, %v1031, 0
        %v2208 = vsel %vm1122, %v1033, 0
        %2210 = vmatprep.subr.mxu0 0.0
        %2211 = vmatpush1.xpose.msra.mxu0 %v2206
        %2212 = vmatprep.subr.mxu0 0.0
        %2213 = vmatpush1.xpose.msra.mxu0 %v2208
        %2214 = vmatprep.subr.mxu0 0.0
        %2215 = vmatpush1.xpose.msra.mxu0 0.0
        %2216 = vmatprep.subr.mxu0 0.0
        %2217 = vmatpush1.xpose.msra.mxu0 0.0
        %2218 = vmatprep.subr.mxu0 0.0
        %2219 = vmatpush1.xpose.msra.mxu0 0.0
        %2220 = vmatprep.subr.mxu0 0.0
        %2221 = vmatpush1.xpose.msra.mxu0 0.0
        %2222 = vmatprep.subr.mxu0 0.0
        %2223 = vmatpush1.xpose.msra.mxu0 0.0
        %2224 = vmatprep.subr.mxu0 0.0
        %2225 = vmatpush1.xpose.msra.mxu0 0.0
        %2226 = vmatprep.subr.mxu0 0.0
        %2227 = vmatpush1.xpose.msra.mxu0 0.0
        %2228 = vmatprep.subr.mxu0 0.0
        %2229 = vmatpush1.xpose.msra.mxu0 0.0
        %2230 = vmatprep.subr.mxu0 0.0
        %2231 = vmatpush1.xpose.msra.mxu0 0.0
        %2232 = vmatprep.subr.mxu0 0.0
        %2233 = vmatpush1.xpose.msra.mxu0 0.0
        %2234 = vmatprep.subr.mxu0 0.0
        %2235 = vmatpush1.xpose.msra.mxu0 0.0
        %2236 = vmatprep.subr.mxu0 0.0
        %2237 = vmatpush1.xpose.msra.mxu0 0.0
        %2238 = vmatprep.subr.mxu0 0.0
        %2239 = vmatpush1.xpose.msra.mxu0 0.0
        %2240 = vmatprep.subr.mxu0 0.0
        %2241 = vmatpush1.xpose.msra.mxu0 0.0
        %2242 = vmatprep.subr.mxu0 0.0
        %2243 = vmatpush1.xpose.msra.mxu0 0.0
        %2244 = vmatprep.subr.mxu0 0.0
        %2245 = vmatpush1.xpose.msra.mxu0 0.0
        %2246 = vmatprep.subr.mxu0 0.0
        %2247 = vmatpush1.xpose.msra.mxu0 0.0
        %2248 = vmatprep.subr.mxu0 0.0
        %2249 = vmatpush1.xpose.msra.mxu0 0.0
        %2250 = vmatprep.subr.mxu0 0.0
        %2251 = vmatpush1.xpose.msra.mxu0 0.0
        %2252 = vmatprep.subr.mxu0 0.0
        %2253 = vmatpush1.xpose.msra.mxu0 0.0
        %2254 = vmatprep.subr.mxu0 0.0
        %2255 = vmatpush1.xpose.msra.mxu0 0.0
        %2256 = vmatprep.subr.mxu0 0.0
        %2257 = vmatpush1.xpose.msra.mxu0 0.0
        %2258 = vmatprep.subr.mxu0 0.0
        %2259 = vmatpush1.xpose.msra.mxu0 0.0
        %2260 = vmatprep.subr.mxu0 0.0
        %2261 = vmatpush1.xpose.msra.mxu0 0.0
        %2262 = vmatprep.subr.mxu0 0.0
        %2263 = vmatpush1.xpose.msra.mxu0 0.0
        %2264 = vmatprep.subr.mxu0 0.0
        %2265 = vmatpush1.xpose.msra.mxu0 0.0
        %2266 = vmatprep.subr.mxu0 0.0
        %2267 = vmatpush1.xpose.msra.mxu0 0.0
        %2268 = vmatprep.subr.mxu0 0.0
        %2269 = vmatpush1.xpose.msra.mxu0 0.0
        %2270 = vmatprep.subr.mxu0 0.0
        %2271 = vmatpush1.xpose.msra.mxu0 0.0
        %2272 = vmatprep.subr.mxu0 0.0
        %2273 = vmatpush1.xpose.msra.mxu0 0.0
        %2274 = vmatprep.mubr.f32.mxu0 0.0
        %2275 = vmatmul.mubr.f32.gmra.mrb[0].mxu0 %v2202
        %v2276 = vpop.f32.mrb[0].mxu0
        %v2277 = vadd.f32 0.0, %v2276
        %v2278 = vpop.f32.mrb[0].mxu0
        %2279 = vmatprep.mubr.f32.mxu0 0.0
        %2280 = vmatmul.mubr.f32.gmra.mrb[0].mxu0 %v2204
        %v2281 = vpop.f32.mrb[0].mxu0
        %v2282 = vadd.f32 0.0, %v2281
        %v2283 = vpop.f32.mrb[0].mxu0
        %2284 = vdwg.mxu0
        %v2285 = vsel %vm1122, %v979, 0
        %v2287 = vsel %vm1122, %v981, 0
        %v2289 = vsel %vm1122, %v1035, 0
        %v2291 = vsel %vm1122, %v1037, 0
        %2293 = vmatprep.subr.mxu0 0.0
        %2294 = vmatpush1.xpose.msra.mxu0 %v2289
        %2295 = vmatprep.subr.mxu0 0.0
        %2296 = vmatpush1.xpose.msra.mxu0 %v2291
        %2297 = vmatprep.subr.mxu0 0.0
        %2298 = vmatpush1.xpose.msra.mxu0 0.0
        %2299 = vmatprep.subr.mxu0 0.0
        %2300 = vmatpush1.xpose.msra.mxu0 0.0
        %2301 = vmatprep.subr.mxu0 0.0
        %2302 = vmatpush1.xpose.msra.mxu0 0.0
        %2303 = vmatprep.subr.mxu0 0.0
        %2304 = vmatpush1.xpose.msra.mxu0 0.0
        %2305 = vmatprep.subr.mxu0 0.0
        %2306 = vmatpush1.xpose.msra.mxu0 0.0
        %2307 = vmatprep.subr.mxu0 0.0
        %2308 = vmatpush1.xpose.msra.mxu0 0.0
        %2309 = vmatprep.subr.mxu0 0.0
        %2310 = vmatpush1.xpose.msra.mxu0 0.0
        %2311 = vmatprep.subr.mxu0 0.0
        %2312 = vmatpush1.xpose.msra.mxu0 0.0
        %2313 = vmatprep.subr.mxu0 0.0
        %2314 = vmatpush1.xpose.msra.mxu0 0.0
        %2315 = vmatprep.subr.mxu0 0.0
        %2316 = vmatpush1.xpose.msra.mxu0 0.0
        %2317 = vmatprep.subr.mxu0 0.0
        %2318 = vmatpush1.xpose.msra.mxu0 0.0
        %2319 = vmatprep.subr.mxu0 0.0
        %2320 = vmatpush1.xpose.msra.mxu0 0.0
        %2321 = vmatprep.subr.mxu0 0.0
        %2322 = vmatpush1.xpose.msra.mxu0 0.0
        %2323 = vmatprep.subr.mxu0 0.0
        %2324 = vmatpush1.xpose.msra.mxu0 0.0
        %2325 = vmatprep.subr.mxu0 0.0
        %2326 = vmatpush1.xpose.msra.mxu0 0.0
        %2327 = vmatprep.subr.mxu0 0.0
        %2328 = vmatpush1.xpose.msra.mxu0 0.0
        %2329 = vmatprep.subr.mxu0 0.0
        %2330 = vmatpush1.xpose.msra.mxu0 0.0
        %2331 = vmatprep.subr.mxu0 0.0
        %2332 = vmatpush1.xpose.msra.mxu0 0.0
        %2333 = vmatprep.subr.mxu0 0.0
        %2334 = vmatpush1.xpose.msra.mxu0 0.0
        %2335 = vmatprep.subr.mxu0 0.0
        %2336 = vmatpush1.xpose.msra.mxu0 0.0
        %2337 = vmatprep.subr.mxu0 0.0
        %2338 = vmatpush1.xpose.msra.mxu0 0.0
        %2339 = vmatprep.subr.mxu0 0.0
        %2340 = vmatpush1.xpose.msra.mxu0 0.0
        %2341 = vmatprep.subr.mxu0 0.0
        %2342 = vmatpush1.xpose.msra.mxu0 0.0
        %2343 = vmatprep.subr.mxu0 0.0
        %2344 = vmatpush1.xpose.msra.mxu0 0.0
        %2345 = vmatprep.subr.mxu0 0.0
        %2346 = vmatpush1.xpose.msra.mxu0 0.0
        %2347 = vmatprep.subr.mxu0 0.0
        %2348 = vmatpush1.xpose.msra.mxu0 0.0
        %2349 = vmatprep.subr.mxu0 0.0
        %2350 = vmatpush1.xpose.msra.mxu0 0.0
        %2351 = vmatprep.subr.mxu0 0.0
        %2352 = vmatpush1.xpose.msra.mxu0 0.0
        %2353 = vmatprep.subr.mxu0 0.0
        %2354 = vmatpush1.xpose.msra.mxu0 0.0
        %2355 = vmatprep.subr.mxu0 0.0
        %2356 = vmatpush1.xpose.msra.mxu0 0.0
        %2357 = vmatprep.mubr.f32.mxu0 0.0
        %2358 = vmatmul.mubr.f32.gmra.mrb[0].mxu0 %v2285
        %v2359 = vpop.f32.mrb[0].mxu0
        %v2360 = vadd.f32 0.0, %v2359
        %v2361 = vpop.f32.mrb[0].mxu0
        %2362 = vmatprep.mubr.f32.mxu0 0.0
        %2363 = vmatmul.mubr.f32.gmra.mrb[0].mxu0 %v2287
        %v2364 = vpop.f32.mrb[0].mxu0
        %v2365 = vadd.f32 0.0, %v2364
        %v2366 = vpop.f32.mrb[0].mxu0
        %2367 = vdwg.mxu0
        %v2368 = vsel %vm1122, %v983, 0
        %v2370 = vsel %vm1122, %v985, 0
        %v2372 = vsel %vm1122, %v1039, 0
        %v2374 = vsel %vm1122, %v1041, 0
        %2376 = vmatprep.subr.mxu0 0.0
        %2377 = vmatpush1.xpose.msra.mxu0 %v2372
        %2378 = vmatprep.subr.mxu0 0.0
        %2379 = vmatpush1.xpose.msra.mxu0 %v2374
        %2380 = vmatprep.subr.mxu0 0.0
        %2381 = vmatpush1.xpose.msra.mxu0 0.0
        %2382 = vmatprep.subr.mxu0 0.0
        %2383 = vmatpush1.xpose.msra.mxu0 0.0
        %2384 = vmatprep.subr.mxu0 0.0
        %2385 = vmatpush1.xpose.msra.mxu0 0.0
        %2386 = vmatprep.subr.mxu0 0.0
        %2387 = vmatpush1.xpose.msra.mxu0 0.0
        %2388 = vmatprep.subr.mxu0 0.0
        %2389 = vmatpush1.xpose.msra.mxu0 0.0
        %2390 = vmatprep.subr.mxu0 0.0
        %2391 = vmatpush1.xpose.msra.mxu0 0.0
        %2392 = vmatprep.subr.mxu0 0.0
        %2393 = vmatpush1.xpose.msra.mxu0 0.0
        %2394 = vmatprep.subr.mxu0 0.0
        %2395 = vmatpush1.xpose.msra.mxu0 0.0
        %2396 = vmatprep.subr.mxu0 0.0
        %2397 = vmatpush1.xpose.msra.mxu0 0.0
        %2398 = vmatprep.subr.mxu0 0.0
        %2399 = vmatpush1.xpose.msra.mxu0 0.0
        %2400 = vmatprep.subr.mxu0 0.0
        %2401 = vmatpush1.xpose.msra.mxu0 0.0
        %2402 = vmatprep.subr.mxu0 0.0
        %2403 = vmatpush1.xpose.msra.mxu0 0.0
        %2404 = vmatprep.subr.mxu0 0.0
        %2405 = vmatpush1.xpose.msra.mxu0 0.0
        %2406 = vmatprep.subr.mxu0 0.0
        %2407 = vmatpush1.xpose.msra.mxu0 0.0
        %2408 = vmatprep.subr.mxu0 0.0
        %2409 = vmatpush1.xpose.msra.mxu0 0.0
        %2410 = vmatprep.subr.mxu0 0.0
        %2411 = vmatpush1.xpose.msra.mxu0 0.0
        %2412 = vmatprep.subr.mxu0 0.0
        %2413 = vmatpush1.xpose.msra.mxu0 0.0
        %2414 = vmatprep.subr.mxu0 0.0
        %2415 = vmatpush1.xpose.msra.mxu0 0.0
        %2416 = vmatprep.subr.mxu0 0.0
        %2417 = vmatpush1.xpose.msra.mxu0 0.0
        %2418 = vmatprep.subr.mxu0 0.0
        %2419 = vmatpush1.xpose.msra.mxu0 0.0
        %2420 = vmatprep.subr.mxu0 0.0
        %2421 = vmatpush1.xpose.msra.mxu0 0.0
        %2422 = vmatprep.subr.mxu0 0.0
        %2423 = vmatpush1.xpose.msra.mxu0 0.0
        %2424 = vmatprep.subr.mxu0 0.0
        %2425 = vmatpush1.xpose.msra.mxu0 0.0
        %2426 = vmatprep.subr.mxu0 0.0
        %2427 = vmatpush1.xpose.msra.mxu0 0.0
        %2428 = vmatprep.subr.mxu0 0.0
        %2429 = vmatpush1.xpose.msra.mxu0 0.0
        %2430 = vmatprep.subr.mxu0 0.0
        %2431 = vmatpush1.xpose.msra.mxu0 0.0
        %2432 = vmatprep.subr.mxu0 0.0
        %2433 = vmatpush1.xpose.msra.mxu0 0.0
        %2434 = vmatprep.subr.mxu0 0.0
        %2435 = vmatpush1.xpose.msra.mxu0 0.0
        %2436 = vmatprep.subr.mxu0 0.0
        %2437 = vmatpush1.xpose.msra.mxu0 0.0
        %2438 = vmatprep.subr.mxu0 0.0
        %2439 = vmatpush1.xpose.msra.mxu0 0.0
        %2440 = vmatprep.mubr.f32.mxu0 0.0
        %2441 = vmatmul.mubr.f32.gmra.mrb[0].mxu0 %v2368
        %v2442 = vpop.f32.mrb[0].mxu0
        %v2443 = vadd.f32 0.0, %v2442
        %v2444 = vpop.f32.mrb[0].mxu0
        %2445 = vmatprep.mubr.f32.mxu0 0.0
        %2446 = vmatmul.mubr.f32.gmra.mrb[0].mxu0 %v2370
        %v2447 = vpop.f32.mrb[0].mxu0
        %v2448 = vadd.f32 0.0, %v2447
        %v2449 = vpop.f32.mrb[0].mxu0
        %2450 = vdwg.mxu0
        %vm2451 = vcmask 130048
        %v2452 = vsel %vm2451, %v1198, -inf
        %2453 = vmax.xlane.f32.xlu0 %v2452
        %v2454 = vpop.xlane.xlu0 %2453
        %v2455 = vsel %vm2451, %v1203, -inf
        %2456 = vmax.xlane.f32.xlu0 %v2455
        %v2457 = vpop.xlane.xlu0 %2456
        %v2458 = vsel %vm2451, %v1281, -inf
        %2459 = vmax.xlane.f32.xlu0 %v2458
        %v2460 = vpop.xlane.xlu0 %2459
        %v2461 = vsel %vm2451, %v1286, -inf
        %2462 = vmax.xlane.f32.xlu0 %v2461
        %v2463 = vpop.xlane.xlu0 %2462
        %v2464 = vsel %vm2451, %v1364, -inf
        %2465 = vmax.xlane.f32.xlu0 %v2464
        %v2466 = vpop.xlane.xlu0 %2465
        %v2467 = vsel %vm2451, %v1369, -inf
        %2468 = vmax.xlane.f32.xlu0 %v2467
        %v2469 = vpop.xlane.xlu0 %2468
        %v2470 = vsel %vm2451, %v1447, -inf
        %2471 = vmax.xlane.f32.xlu0 %v2470
        %v2472 = vpop.xlane.xlu0 %2471
        %v2473 = vsel %vm2451, %v1452, -inf
        %2474 = vmax.xlane.f32.xlu0 %v2473
        %v2475 = vpop.xlane.xlu0 %2474
        %v2476 = vsel %vm2451, %v1530, -inf
        %2477 = vmax.xlane.f32.xlu0 %v2476
        %v2478 = vpop.xlane.xlu0 %2477
        %v2479 = vsel %vm2451, %v1535, -inf
        %2480 = vmax.xlane.f32.xlu0 %v2479
        %v2481 = vpop.xlane.xlu0 %2480
        %v2482 = vsel %vm2451, %v1613, -inf
        %2483 = vmax.xlane.f32.xlu0 %v2482
        %v2484 = vpop.xlane.xlu0 %2483
        %v2485 = vsel %vm2451, %v1618, -inf
        %2486 = vmax.xlane.f32.xlu0 %v2485
        %v2487 = vpop.xlane.xlu0 %2486
        %v2488 = vsel %vm2451, %v1696, -inf
        %2489 = vmax.xlane.f32.xlu0 %v2488
        %v2490 = vpop.xlane.xlu0 %2489
        %v2491 = vsel %vm2451, %v1701, -inf
        %2492 = vmax.xlane.f32.xlu0 %v2491
        %v2493 = vpop.xlane.xlu0 %2492
        %v2494 = vsel %vm2451, %v1779, -inf
        %2495 = vmax.xlane.f32.xlu0 %v2494
        %v2496 = vpop.xlane.xlu0 %2495
        %v2497 = vsel %vm2451, %v1784, -inf
        %2498 = vmax.xlane.f32.xlu0 %v2497
        %v2499 = vpop.xlane.xlu0 %2498
        %v2500 = vsel %vm2451, %v1862, -inf
        %2501 = vmax.xlane.f32.xlu0 %v2500
        %v2502 = vpop.xlane.xlu0 %2501
        %v2503 = vsel %vm2451, %v1867, -inf
        %2504 = vmax.xlane.f32.xlu0 %v2503
        %v2505 = vpop.xlane.xlu0 %2504
        %v2506 = vsel %vm2451, %v1945, -inf
        %2507 = vmax.xlane.f32.xlu0 %v2506
        %v2508 = vpop.xlane.xlu0 %2507
        %v2509 = vsel %vm2451, %v1950, -inf
        %2510 = vmax.xlane.f32.xlu0 %v2509
        %v2511 = vpop.xlane.xlu0 %2510
        %v2512 = vsel %vm2451, %v2028, -inf
        %2513 = vmax.xlane.f32.xlu0 %v2512
        %v2514 = vpop.xlane.xlu0 %2513
        %v2515 = vsel %vm2451, %v2033, -inf
        %2516 = vmax.xlane.f32.xlu0 %v2515
        %v2517 = vpop.xlane.xlu0 %2516
        %v2518 = vsel %vm2451, %v2111, -inf
        %2519 = vmax.xlane.f32.xlu0 %v2518
        %v2520 = vpop.xlane.xlu0 %2519
        %v2521 = vsel %vm2451, %v2116, -inf
        %2522 = vmax.xlane.f32.xlu0 %v2521
        %v2523 = vpop.xlane.xlu0 %2522
        %v2524 = vsel %vm2451, %v2194, -inf
        %2525 = vmax.xlane.f32.xlu0 %v2524
        %v2526 = vpop.xlane.xlu0 %2525
        %v2527 = vsel %vm2451, %v2199, -inf
        %2528 = vmax.xlane.f32.xlu0 %v2527
        %v2529 = vpop.xlane.xlu0 %2528
        %v2530 = vsel %vm2451, %v2277, -inf
        %2531 = vmax.xlane.f32.xlu0 %v2530
        %v2532 = vpop.xlane.xlu0 %2531
        %v2533 = vsel %vm2451, %v2282, -inf
        %2534 = vmax.xlane.f32.xlu0 %v2533
        %v2535 = vpop.xlane.xlu0 %2534
        %v2536 = vsel %vm2451, %v2360, -inf
        %2537 = vmax.xlane.f32.xlu0 %v2536
        %v2538 = vpop.xlane.xlu0 %2537
        %v2539 = vsel %vm2451, %v2365, -inf
        %2540 = vmax.xlane.f32.xlu0 %v2539
        %v2541 = vpop.xlane.xlu0 %2540
        %v2542 = vsel %vm2451, %v2443, -inf
        %2543 = vmax.xlane.f32.xlu0 %v2542
        %v2544 = vpop.xlane.xlu0 %2543
        %v2545 = vsel %vm2451, %v2448, -inf
        %2546 = vmax.xlane.f32.xlu0 %v2545
        %v2547 = vpop.xlane.xlu0 %2546
        %v2548 = vsub.f32 %v1198, %v2454
        %v2549 = vsub.f32 %v1203, %v2457
        %v2550 = vsub.f32 %v1281, %v2460
        %v2551 = vsub.f32 %v1286, %v2463
        %v2552 = vsub.f32 %v1364, %v2466
        %v2553 = vsub.f32 %v1369, %v2469
        %v2554 = vsub.f32 %v1447, %v2472
        %v2555 = vsub.f32 %v1452, %v2475
        %v2556 = vsub.f32 %v1530, %v2478
        %v2557 = vsub.f32 %v1535, %v2481
        %v2558 = vsub.f32 %v1613, %v2484
        %v2559 = vsub.f32 %v1618, %v2487
        %v2560 = vsub.f32 %v1696, %v2490
        %v2561 = vsub.f32 %v1701, %v2493
        %v2562 = vsub.f32 %v1779, %v2496
        %v2563 = vsub.f32 %v1784, %v2499
        %v2564 = vsub.f32 %v1862, %v2502
        %v2565 = vsub.f32 %v1867, %v2505
        %v2566 = vsub.f32 %v1945, %v2508
        %v2567 = vsub.f32 %v1950, %v2511
        %v2568 = vsub.f32 %v2028, %v2514
        %v2569 = vsub.f32 %v2033, %v2517
        %v2570 = vsub.f32 %v2111, %v2520
        %v2571 = vsub.f32 %v2116, %v2523
        %v2572 = vsub.f32 %v2194, %v2526
        %v2573 = vsub.f32 %v2199, %v2529
        %v2574 = vsub.f32 %v2277, %v2532
        %v2575 = vsub.f32 %v2282, %v2535
        %v2576 = vsub.f32 %v2360, %v2538
        %v2577 = vsub.f32 %v2365, %v2541
        %v2578 = vsub.f32 %v2443, %v2544
        %v2579 = vsub.f32 %v2448, %v2547
        %v2580 = vmul.f32 %v2548, 1.442695
        %v2581 = vpow.pop %v2580
        %v2582 = vmul.f32 %v2549, 1.442695
        %v2583 = vpow.pop %v2582
        %v2584 = vmul.f32 %v2550, 1.442695
        %v2585 = vpow.pop %v2584
        %v2586 = vmul.f32 %v2551, 1.442695
        %v2587 = vpow.pop %v2586
        %v2588 = vmul.f32 %v2552, 1.442695
        %v2589 = vpow.pop %v2588
        %v2590 = vmul.f32 %v2553, 1.442695
        %v2591 = vpow.pop %v2590
        %v2592 = vmul.f32 %v2554, 1.442695
        %v2593 = vpow.pop %v2592
        %v2594 = vmul.f32 %v2555, 1.442695
        %v2595 = vpow.pop %v2594
        %v2596 = vmul.f32 %v2556, 1.442695
        %v2597 = vpow.pop %v2596
        %v2598 = vmul.f32 %v2557, 1.442695
        %v2599 = vpow.pop %v2598
        %v2600 = vmul.f32 %v2558, 1.442695
        %v2601 = vpow.pop %v2600
        %v2602 = vmul.f32 %v2559, 1.442695
        %v2603 = vpow.pop %v2602
        %v2604 = vmul.f32 %v2560, 1.442695
        %v2605 = vpow.pop %v2604
        %v2606 = vmul.f32 %v2561, 1.442695
        %v2607 = vpow.pop %v2606
        %v2608 = vmul.f32 %v2562, 1.442695
        %v2609 = vpow.pop %v2608
        %v2610 = vmul.f32 %v2563, 1.442695
        %v2611 = vpow.pop %v2610
        %v2612 = vmul.f32 %v2564, 1.442695
        %v2613 = vpow.pop %v2612
        %v2614 = vmul.f32 %v2565, 1.442695
        %v2615 = vpow.pop %v2614
        %v2616 = vmul.f32 %v2566, 1.442695
        %v2617 = vpow.pop %v2616
        %v2618 = vmul.f32 %v2567, 1.442695
        %v2619 = vpow.pop %v2618
        %v2620 = vmul.f32 %v2568, 1.442695
        %v2621 = vpow.pop %v2620
        %v2622 = vmul.f32 %v2569, 1.442695
        %v2623 = vpow.pop %v2622
        %v2624 = vmul.f32 %v2570, 1.442695
        %v2625 = vpow.pop %v2624
        %v2626 = vmul.f32 %v2571, 1.442695
        %v2627 = vpow.pop %v2626
        %v2628 = vmul.f32 %v2572, 1.442695
        %v2629 = vpow.pop %v2628
        %v2630 = vmul.f32 %v2573, 1.442695
        %v2631 = vpow.pop %v2630
        %v2632 = vmul.f32 %v2574, 1.442695
        %v2633 = vpow.pop %v2632
        %v2634 = vmul.f32 %v2575, 1.442695
        %v2635 = vpow.pop %v2634
        %v2636 = vmul.f32 %v2576, 1.442695
        %v2637 = vpow.pop %v2636
        %v2638 = vmul.f32 %v2577, 1.442695
        %v2639 = vpow.pop %v2638
        %v2640 = vmul.f32 %v2578, 1.442695
        %v2641 = vpow.pop %v2640
        %v2642 = vmul.f32 %v2579, 1.442695
        %v2643 = vpow.pop %v2642
        %v2644 = vsel %vm2451, %v2581, 0.0
        %2645 = vadd.xlane.f32.xlu0 %v2644
        %v2646 = vpop.xlane.xlu0 %2645
        %v2647 = vsel %vm2451, %v2583, 0.0
        %2648 = vadd.xlane.f32.xlu0 %v2647
        %v2649 = vpop.xlane.xlu0 %2648
        %v2650 = vsel %vm2451, %v2585, 0.0
        %2651 = vadd.xlane.f32.xlu0 %v2650
        %v2652 = vpop.xlane.xlu0 %2651
        %v2653 = vsel %vm2451, %v2587, 0.0
        %2654 = vadd.xlane.f32.xlu0 %v2653
        %v2655 = vpop.xlane.xlu0 %2654
        %v2656 = vsel %vm2451, %v2589, 0.0
        %2657 = vadd.xlane.f32.xlu0 %v2656
        %v2658 = vpop.xlane.xlu0 %2657
        %v2659 = vsel %vm2451, %v2591, 0.0
        %2660 = vadd.xlane.f32.xlu0 %v2659
        %v2661 = vpop.xlane.xlu0 %2660
        %v2662 = vsel %vm2451, %v2593, 0.0
        %2663 = vadd.xlane.f32.xlu0 %v2662
        %v2664 = vpop.xlane.xlu0 %2663
        %v2665 = vsel %vm2451, %v2595, 0.0
        %2666 = vadd.xlane.f32.xlu0 %v2665
        %v2667 = vpop.xlane.xlu0 %2666
        %v2668 = vsel %vm2451, %v2597, 0.0
        %2669 = vadd.xlane.f32.xlu0 %v2668
        %v2670 = vpop.xlane.xlu0 %2669
        %v2671 = vsel %vm2451, %v2599, 0.0
        %2672 = vadd.xlane.f32.xlu0 %v2671
        %v2673 = vpop.xlane.xlu0 %2672
        %v2674 = vsel %vm2451, %v2601, 0.0
        %2675 = vadd.xlane.f32.xlu0 %v2674
        %v2676 = vpop.xlane.xlu0 %2675
        %v2677 = vsel %vm2451, %v2603, 0.0
        %2678 = vadd.xlane.f32.xlu0 %v2677
        %v2679 = vpop.xlane.xlu0 %2678
        %v2680 = vsel %vm2451, %v2605, 0.0
        %2681 = vadd.xlane.f32.xlu0 %v2680
        %v2682 = vpop.xlane.xlu0 %2681
        %v2683 = vsel %vm2451, %v2607, 0.0
        %2684 = vadd.xlane.f32.xlu0 %v2683
        %v2685 = vpop.xlane.xlu0 %2684
        %v2686 = vsel %vm2451, %v2609, 0.0
        %2687 = vadd.xlane.f32.xlu0 %v2686
        %v2688 = vpop.xlane.xlu0 %2687
        %v2689 = vsel %vm2451, %v2611, 0.0
        %2690 = vadd.xlane.f32.xlu0 %v2689
        %v2691 = vpop.xlane.xlu0 %2690
        %v2692 = vsel %vm2451, %v2613, 0.0
        %2693 = vadd.xlane.f32.xlu0 %v2692
        %v2694 = vpop.xlane.xlu0 %2693
        %v2695 = vsel %vm2451, %v2615, 0.0
        %2696 = vadd.xlane.f32.xlu0 %v2695
        %v2697 = vpop.xlane.xlu0 %2696
        %v2698 = vsel %vm2451, %v2617, 0.0
        %2699 = vadd.xlane.f32.xlu0 %v2698
        %v2700 = vpop.xlane.xlu0 %2699
        %v2701 = vsel %vm2451, %v2619, 0.0
        %2702 = vadd.xlane.f32.xlu0 %v2701
        %v2703 = vpop.xlane.xlu0 %2702
        %v2704 = vsel %vm2451, %v2621, 0.0
        %2705 = vadd.xlane.f32.xlu0 %v2704
        %v2706 = vpop.xlane.xlu0 %2705
        %v2707 = vsel %vm2451, %v2623, 0.0
        %2708 = vadd.xlane.f32.xlu0 %v2707
        %v2709 = vpop.xlane.xlu0 %2708
        %v2710 = vsel %vm2451, %v2625, 0.0
        %2711 = vadd.xlane.f32.xlu0 %v2710
        %v2712 = vpop.xlane.xlu0 %2711
        %v2713 = vsel %vm2451, %v2627, 0.0
        %2714 = vadd.xlane.f32.xlu0 %v2713
        %v2715 = vpop.xlane.xlu0 %2714
        %v2716 = vsel %vm2451, %v2629, 0.0
        %2717 = vadd.xlane.f32.xlu0 %v2716
        %v2718 = vpop.xlane.xlu0 %2717
        %v2719 = vsel %vm2451, %v2631, 0.0
        %2720 = vadd.xlane.f32.xlu0 %v2719
        %v2721 = vpop.xlane.xlu0 %2720
        %v2722 = vsel %vm2451, %v2633, 0.0
        %2723 = vadd.xlane.f32.xlu0 %v2722
        %v2724 = vpop.xlane.xlu0 %2723
        %v2725 = vsel %vm2451, %v2635, 0.0
        %2726 = vadd.xlane.f32.xlu0 %v2725
        %v2727 = vpop.xlane.xlu0 %2726
        %v2728 = vsel %vm2451, %v2637, 0.0
        %2729 = vadd.xlane.f32.xlu0 %v2728
        %v2730 = vpop.xlane.xlu0 %2729
        %v2731 = vsel %vm2451, %v2639, 0.0
        %2732 = vadd.xlane.f32.xlu0 %v2731
        %v2733 = vpop.xlane.xlu0 %2732
        %v2734 = vsel %vm2451, %v2641, 0.0
        %2735 = vadd.xlane.f32.xlu0 %v2734
        %v2736 = vpop.xlane.xlu0 %2735
        %v2737 = vsel %vm2451, %v2643, 0.0
        %2738 = vadd.xlane.f32.xlu0 %v2737
        %v2739 = vpop.xlane.xlu0 %2738
        %v2741 = vsel %vm2451, %v2581, 0
        %v2744 = vsel %vm2451, %v2583, 0
        %2746 = vmatprep.subr.mxu0 0.0
        %2747 = vmatpush1.msra.mxu0 %v892
        %2748 = vmatprep.subr.mxu0 0.0
        %2749 = vmatpush1.msra.mxu0 %v897
        %2750 = vmatprep.subr.mxu0 0.0
        %2751 = vmatpush1.msra.mxu0 0.0
        %2752 = vmatprep.subr.mxu0 0.0
        %2753 = vmatpush1.msra.mxu0 0.0
        %2754 = vmatprep.subr.mxu0 0.0
        %2755 = vmatpush1.msra.mxu0 0.0
        %2756 = vmatprep.subr.mxu0 0.0
        %2757 = vmatpush1.msra.mxu0 0.0
        %2758 = vmatprep.subr.mxu0 0.0
        %2759 = vmatpush1.msra.mxu0 0.0
        %2760 = vmatprep.subr.mxu0 0.0
        %2761 = vmatpush1.msra.mxu0 0.0
        %2762 = vmatprep.subr.mxu0 0.0
        %2763 = vmatpush1.msra.mxu0 0.0
        %2764 = vmatprep.subr.mxu0 0.0
        %2765 = vmatpush1.msra.mxu0 0.0
        %2766 = vmatprep.subr.mxu0 0.0
        %2767 = vmatpush1.msra.mxu0 0.0
        %2768 = vmatprep.subr.mxu0 0.0
        %2769 = vmatpush1.msra.mxu0 0.0
        %2770 = vmatprep.subr.mxu0 0.0
        %2771 = vmatpush1.msra.mxu0 0.0
        %2772 = vmatprep.subr.mxu0 0.0
        %2773 = vmatpush1.msra.mxu0 0.0
        %2774 = vmatprep.subr.mxu0 0.0
        %2775 = vmatpush1.msra.mxu0 0.0
        %2776 = vmatprep.subr.mxu0 0.0
        %2777 = vmatpush1.msra.mxu0 0.0
        %2778 = vmatprep.subr.mxu0 0.0
        %2779 = vmatpush1.msra.mxu0 0.0
        %2780 = vmatprep.subr.mxu0 0.0
        %2781 = vmatpush1.msra.mxu0 0.0
        %2782 = vmatprep.subr.mxu0 0.0
        %2783 = vmatpush1.msra.mxu0 0.0
        %2784 = vmatprep.subr.mxu0 0.0
        %2785 = vmatpush1.msra.mxu0 0.0
        %2786 = vmatprep.subr.mxu0 0.0
        %2787 = vmatpush1.msra.mxu0 0.0
        %2788 = vmatprep.subr.mxu0 0.0
        %2789 = vmatpush1.msra.mxu0 0.0
        %2790 = vmatprep.subr.mxu0 0.0
        %2791 = vmatpush1.msra.mxu0 0.0
        %2792 = vmatprep.subr.mxu0 0.0
        %2793 = vmatpush1.msra.mxu0 0.0
        %2794 = vmatprep.subr.mxu0 0.0
        %2795 = vmatpush1.msra.mxu0 0.0
        %2796 = vmatprep.subr.mxu0 0.0
        %2797 = vmatpush1.msra.mxu0 0.0
        %2798 = vmatprep.subr.mxu0 0.0
        %2799 = vmatpush1.msra.mxu0 0.0
        %2800 = vmatprep.subr.mxu0 0.0
        %2801 = vmatpush1.msra.mxu0 0.0
        %2802 = vmatprep.subr.mxu0 0.0
        %2803 = vmatpush1.msra.mxu0 0.0
        %2804 = vmatprep.subr.mxu0 0.0
        %2805 = vmatpush1.msra.mxu0 0.0
        %2806 = vmatprep.subr.mxu0 0.0
        %2807 = vmatpush1.msra.mxu0 0.0
        %2808 = vmatprep.subr.mxu0 0.0
        %2809 = vmatpush1.msra.mxu0 0.0
        %2810 = vmatprep.mubr.f32.mxu0 0.0
        %2811 = vmatmul.mubr.f32.gmra.mrb[0].mxu0 %v2741
        %v2812 = vpop.f32.mrb[0].mxu0
        %v2813 = vadd.f32 0.0, %v2812
        %v2814 = vpop.f32.mrb[0].mxu0
        %2815 = vmatprep.mubr.f32.mxu0 0.0
        %2816 = vmatmul.mubr.f32.gmra.mrb[0].mxu0 %v2744
        %v2817 = vpop.f32.mrb[0].mxu0
        %v2818 = vadd.f32 0.0, %v2817
        %v2819 = vpop.f32.mrb[0].mxu0
        %2820 = vdwg.mxu0
        %v2822 = vsel %vm2451, %v2585, 0
        %v2825 = vsel %vm2451, %v2587, 0
        %2827 = vmatprep.subr.mxu0 0.0
        %2828 = vmatpush1.msra.mxu0 %v902
        %2829 = vmatprep.subr.mxu0 0.0
        %2830 = vmatpush1.msra.mxu0 %v907
        %2831 = vmatprep.subr.mxu0 0.0
        %2832 = vmatpush1.msra.mxu0 0.0
        %2833 = vmatprep.subr.mxu0 0.0
        %2834 = vmatpush1.msra.mxu0 0.0
        %2835 = vmatprep.subr.mxu0 0.0
        %2836 = vmatpush1.msra.mxu0 0.0
        %2837 = vmatprep.subr.mxu0 0.0
        %2838 = vmatpush1.msra.mxu0 0.0
        %2839 = vmatprep.subr.mxu0 0.0
        %2840 = vmatpush1.msra.mxu0 0.0
        %2841 = vmatprep.subr.mxu0 0.0
        %2842 = vmatpush1.msra.mxu0 0.0
        %2843 = vmatprep.subr.mxu0 0.0
        %2844 = vmatpush1.msra.mxu0 0.0
        %2845 = vmatprep.subr.mxu0 0.0
        %2846 = vmatpush1.msra.mxu0 0.0
        %2847 = vmatprep.subr.mxu0 0.0
        %2848 = vmatpush1.msra.mxu0 0.0
        %2849 = vmatprep.subr.mxu0 0.0
        %2850 = vmatpush1.msra.mxu0 0.0
        %2851 = vmatprep.subr.mxu0 0.0
        %2852 = vmatpush1.msra.mxu0 0.0
        %2853 = vmatprep.subr.mxu0 0.0
        %2854 = vmatpush1.msra.mxu0 0.0
        %2855 = vmatprep.subr.mxu0 0.0
        %2856 = vmatpush1.msra.mxu0 0.0
        %2857 = vmatprep.subr.mxu0 0.0
        %2858 = vmatpush1.msra.mxu0 0.0
        %2859 = vmatprep.subr.mxu0 0.0
        %2860 = vmatpush1.msra.mxu0 0.0
        %2861 = vmatprep.subr.mxu0 0.0
        %2862 = vmatpush1.msra.mxu0 0.0
        %2863 = vmatprep.subr.mxu0 0.0
        %2864 = vmatpush1.msra.mxu0 0.0
        %2865 = vmatprep.subr.mxu0 0.0
        %2866 = vmatpush1.msra.mxu0 0.0
        %2867 = vmatprep.subr.mxu0 0.0
        %2868 = vmatpush1.msra.mxu0 0.0
        %2869 = vmatprep.subr.mxu0 0.0
        %2870 = vmatpush1.msra.mxu0 0.0
        %2871 = vmatprep.subr.mxu0 0.0
        %2872 = vmatpush1.msra.mxu0 0.0
        %2873 = vmatprep.subr.mxu0 0.0
        %2874 = vmatpush1.msra.mxu0 0.0
        %2875 = vmatprep.subr.mxu0 0.0
        %2876 = vmatpush1.msra.mxu0 0.0
        %2877 = vmatprep.subr.mxu0 0.0
        %2878 = vmatpush1.msra.mxu0 0.0
        %2879 = vmatprep.subr.mxu0 0.0
        %2880 = vmatpush1.msra.mxu0 0.0
        %2881 = vmatprep.subr.mxu0 0.0
        %2882 = vmatpush1.msra.mxu0 0.0
        %2883 = vmatprep.subr.mxu0 0.0
        %2884 = vmatpush1.msra.mxu0 0.0
        %2885 = vmatprep.subr.mxu0 0.0
        %2886 = vmatpush1.msra.mxu0 0.0
        %2887 = vmatprep.subr.mxu0 0.0
        %2888 = vmatpush1.msra.mxu0 0.0
        %2889 = vmatprep.subr.mxu0 0.0
        %2890 = vmatpush1.msra.mxu0 0.0
        %2891 = vmatprep.mubr.f32.mxu0 0.0
        %2892 = vmatmul.mubr.f32.gmra.mrb[0].mxu0 %v2822
        %v2893 = vpop.f32.mrb[0].mxu0
        %v2894 = vadd.f32 0.0, %v2893
        %v2895 = vpop.f32.mrb[0].mxu0
        %2896 = vmatprep.mubr.f32.mxu0 0.0
        %2897 = vmatmul.mubr.f32.gmra.mrb[0].mxu0 %v2825
        %v2898 = vpop.f32.mrb[0].mxu0
        %v2899 = vadd.f32 0.0, %v2898
        %v2900 = vpop.f32.mrb[0].mxu0
        %2901 = vdwg.mxu0
        %v2903 = vsel %vm2451, %v2589, 0
        %v2906 = vsel %vm2451, %v2591, 0
        %2908 = vmatprep.subr.mxu0 0.0
        %2909 = vmatpush1.msra.mxu0 %v912
        %2910 = vmatprep.subr.mxu0 0.0
        %2911 = vmatpush1.msra.mxu0 %v917
        %2912 = vmatprep.subr.mxu0 0.0
        %2913 = vmatpush1.msra.mxu0 0.0
        %2914 = vmatprep.subr.mxu0 0.0
        %2915 = vmatpush1.msra.mxu0 0.0
        %2916 = vmatprep.subr.mxu0 0.0
        %2917 = vmatpush1.msra.mxu0 0.0
        %2918 = vmatprep.subr.mxu0 0.0
        %2919 = vmatpush1.msra.mxu0 0.0
        %2920 = vmatprep.subr.mxu0 0.0
        %2921 = vmatpush1.msra.mxu0 0.0
        %2922 = vmatprep.subr.mxu0 0.0
        %2923 = vmatpush1.msra.mxu0 0.0
        %2924 = vmatprep.subr.mxu0 0.0
        %2925 = vmatpush1.msra.mxu0 0.0
        %2926 = vmatprep.subr.mxu0 0.0
        %2927 = vmatpush1.msra.mxu0 0.0
        %2928 = vmatprep.subr.mxu0 0.0
        %2929 = vmatpush1.msra.mxu0 0.0
        %2930 = vmatprep.subr.mxu0 0.0
        %2931 = vmatpush1.msra.mxu0 0.0
        %2932 = vmatprep.subr.mxu0 0.0
        %2933 = vmatpush1.msra.mxu0 0.0
        %2934 = vmatprep.subr.mxu0 0.0
        %2935 = vmatpush1.msra.mxu0 0.0
        %2936 = vmatprep.subr.mxu0 0.0
        %2937 = vmatpush1.msra.mxu0 0.0
        %2938 = vmatprep.subr.mxu0 0.0
        %2939 = vmatpush1.msra.mxu0 0.0
        %2940 = vmatprep.subr.mxu0 0.0
        %2941 = vmatpush1.msra.mxu0 0.0
        %2942 = vmatprep.subr.mxu0 0.0
        %2943 = vmatpush1.msra.mxu0 0.0
        %2944 = vmatprep.subr.mxu0 0.0
        %2945 = vmatpush1.msra.mxu0 0.0
        %2946 = vmatprep.subr.mxu0 0.0
        %2947 = vmatpush1.msra.mxu0 0.0
        %2948 = vmatprep.subr.mxu0 0.0
        %2949 = vmatpush1.msra.mxu0 0.0
        %2950 = vmatprep.subr.mxu0 0.0
        %2951 = vmatpush1.msra.mxu0 0.0
        %2952 = vmatprep.subr.mxu0 0.0
        %2953 = vmatpush1.msra.mxu0 0.0
        %2954 = vmatprep.subr.mxu0 0.0
        %2955 = vmatpush1.msra.mxu0 0.0
        %2956 = vmatprep.subr.mxu0 0.0
        %2957 = vmatpush1.msra.mxu0 0.0
        %2958 = vmatprep.subr.mxu0 0.0
        %2959 = vmatpush1.msra.mxu0 0.0
        %2960 = vmatprep.subr.mxu0 0.0
        %2961 = vmatpush1.msra.mxu0 0.0
        %2962 = vmatprep.subr.mxu0 0.0
        %2963 = vmatpush1.msra.mxu0 0.0
        %2964 = vmatprep.subr.mxu0 0.0
        %2965 = vmatpush1.msra.mxu0 0.0
        %2966 = vmatprep.subr.mxu0 0.0
        %2967 = vmatpush1.msra.mxu0 0.0
        %2968 = vmatprep.subr.mxu0 0.0
        %2969 = vmatpush1.msra.mxu0 0.0
        %2970 = vmatprep.subr.mxu0 0.0
        %2971 = vmatpush1.msra.mxu0 0.0
        %2972 = vmatprep.mubr.f32.mxu0 0.0
        %2973 = vmatmul.mubr.f32.gmra.mrb[0].mxu0 %v2903
        %v2974 = vpop.f32.mrb[0].mxu0
        %v2975 = vadd.f32 0.0, %v2974
        %v2976 = vpop.f32.mrb[0].mxu0
        %2977 = vmatprep.mubr.f32.mxu0 0.0
        %2978 = vmatmul.mubr.f32.gmra.mrb[0].mxu0 %v2906
        %v2979 = vpop.f32.mrb[0].mxu0
        %v2980 = vadd.f32 0.0, %v2979
        %v2981 = vpop.f32.mrb[0].mxu0
        %2982 = vdwg.mxu0
        %v2984 = vsel %vm2451, %v2593, 0
        %v2987 = vsel %vm2451, %v2595, 0
        %2989 = vmatprep.subr.mxu0 0.0
        %2990 = vmatpush1.msra.mxu0 %v922
        %2991 = vmatprep.subr.mxu0 0.0
        %2992 = vmatpush1.msra.mxu0 %v927
        %2993 = vmatprep.subr.mxu0 0.0
        %2994 = vmatpush1.msra.mxu0 0.0
        %2995 = vmatprep.subr.mxu0 0.0
        %2996 = vmatpush1.msra.mxu0 0.0
        %2997 = vmatprep.subr.mxu0 0.0
        %2998 = vmatpush1.msra.mxu0 0.0
        %2999 = vmatprep.subr.mxu0 0.0
        %3000 = vmatpush1.msra.mxu0 0.0
        %3001 = vmatprep.subr.mxu0 0.0
        %3002 = vmatpush1.msra.mxu0 0.0
        %3003 = vmatprep.subr.mxu0 0.0
        %3004 = vmatpush1.msra.mxu0 0.0
        %3005 = vmatprep.subr.mxu0 0.0
        %3006 = vmatpush1.msra.mxu0 0.0
        %3007 = vmatprep.subr.mxu0 0.0
        %3008 = vmatpush1.msra.mxu0 0.0
        %3009 = vmatprep.subr.mxu0 0.0
        %3010 = vmatpush1.msra.mxu0 0.0
        %3011 = vmatprep.subr.mxu0 0.0
        %3012 = vmatpush1.msra.mxu0 0.0
        %3013 = vmatprep.subr.mxu0 0.0
        %3014 = vmatpush1.msra.mxu0 0.0
        %3015 = vmatprep.subr.mxu0 0.0
        %3016 = vmatpush1.msra.mxu0 0.0
        %3017 = vmatprep.subr.mxu0 0.0
        %3018 = vmatpush1.msra.mxu0 0.0
        %3019 = vmatprep.subr.mxu0 0.0
        %3020 = vmatpush1.msra.mxu0 0.0
        %3021 = vmatprep.subr.mxu0 0.0
        %3022 = vmatpush1.msra.mxu0 0.0
        %3023 = vmatprep.subr.mxu0 0.0
        %3024 = vmatpush1.msra.mxu0 0.0
        %3025 = vmatprep.subr.mxu0 0.0
        %3026 = vmatpush1.msra.mxu0 0.0
        %3027 = vmatprep.subr.mxu0 0.0
        %3028 = vmatpush1.msra.mxu0 0.0
        %3029 = vmatprep.subr.mxu0 0.0
        %3030 = vmatpush1.msra.mxu0 0.0
        %3031 = vmatprep.subr.mxu0 0.0
        %3032 = vmatpush1.msra.mxu0 0.0
        %3033 = vmatprep.subr.mxu0 0.0
        %3034 = vmatpush1.msra.mxu0 0.0
        %3035 = vmatprep.subr.mxu0 0.0
        %3036 = vmatpush1.msra.mxu0 0.0
        %3037 = vmatprep.subr.mxu0 0.0
        %3038 = vmatpush1.msra.mxu0 0.0
        %3039 = vmatprep.subr.mxu0 0.0
        %3040 = vmatpush1.msra.mxu0 0.0
        %3041 = vmatprep.subr.mxu0 0.0
        %3042 = vmatpush1.msra.mxu0 0.0
        %3043 = vmatprep.subr.mxu0 0.0
        %3044 = vmatpush1.msra.mxu0 0.0
        %3045 = vmatprep.subr.mxu0 0.0
        %3046 = vmatpush1.msra.mxu0 0.0
        %3047 = vmatprep.subr.mxu0 0.0
        %3048 = vmatpush1.msra.mxu0 0.0
        %3049 = vmatprep.subr.mxu0 0.0
        %3050 = vmatpush1.msra.mxu0 0.0
        %3051 = vmatprep.subr.mxu0 0.0
        %3052 = vmatpush1.msra.mxu0 0.0
        %3053 = vmatprep.mubr.f32.mxu0 0.0
        %3054 = vmatmul.mubr.f32.gmra.mrb[0].mxu0 %v2984
        %v3055 = vpop.f32.mrb[0].mxu0
        %v3056 = vadd.f32 0.0, %v3055
        %v3057 = vpop.f32.mrb[0].mxu0
        %3058 = vmatprep.mubr.f32.mxu0 0.0
        %3059 = vmatmul.mubr.f32.gmra.mrb[0].mxu0 %v2987
        %v3060 = vpop.f32.mrb[0].mxu0
        %v3061 = vadd.f32 0.0, %v3060
        %v3062 = vpop.f32.mrb[0].mxu0
        %3063 = vdwg.mxu0
        %v3065 = vsel %vm2451, %v2597, 0
        %v3068 = vsel %vm2451, %v2599, 0
        %3070 = vmatprep.subr.mxu0 0.0
        %3071 = vmatpush1.msra.mxu0 %v1051
        %3072 = vmatprep.subr.mxu0 0.0
        %3073 = vmatpush1.msra.mxu0 %v1053
        %3074 = vmatprep.subr.mxu0 0.0
        %3075 = vmatpush1.msra.mxu0 0.0
        %3076 = vmatprep.subr.mxu0 0.0
        %3077 = vmatpush1.msra.mxu0 0.0
        %3078 = vmatprep.subr.mxu0 0.0
        %3079 = vmatpush1.msra.mxu0 0.0
        %3080 = vmatprep.subr.mxu0 0.0
        %3081 = vmatpush1.msra.mxu0 0.0
        %3082 = vmatprep.subr.mxu0 0.0
        %3083 = vmatpush1.msra.mxu0 0.0
        %3084 = vmatprep.subr.mxu0 0.0
        %3085 = vmatpush1.msra.mxu0 0.0
        %3086 = vmatprep.subr.mxu0 0.0
        %3087 = vmatpush1.msra.mxu0 0.0
        %3088 = vmatprep.subr.mxu0 0.0
        %3089 = vmatpush1.msra.mxu0 0.0
        %3090 = vmatprep.subr.mxu0 0.0
        %3091 = vmatpush1.msra.mxu0 0.0
        %3092 = vmatprep.subr.mxu0 0.0
        %3093 = vmatpush1.msra.mxu0 0.0
        %3094 = vmatprep.subr.mxu0 0.0
        %3095 = vmatpush1.msra.mxu0 0.0
        %3096 = vmatprep.subr.mxu0 0.0
        %3097 = vmatpush1.msra.mxu0 0.0
        %3098 = vmatprep.subr.mxu0 0.0
        %3099 = vmatpush1.msra.mxu0 0.0
        %3100 = vmatprep.subr.mxu0 0.0
        %3101 = vmatpush1.msra.mxu0 0.0
        %3102 = vmatprep.subr.mxu0 0.0
        %3103 = vmatpush1.msra.mxu0 0.0
        %3104 = vmatprep.subr.mxu0 0.0
        %3105 = vmatpush1.msra.mxu0 0.0
        %3106 = vmatprep.subr.mxu0 0.0
        %3107 = vmatpush1.msra.mxu0 0.0
        %3108 = vmatprep.subr.mxu0 0.0
        %3109 = vmatpush1.msra.mxu0 0.0
        %3110 = vmatprep.subr.mxu0 0.0
        %3111 = vmatpush1.msra.mxu0 0.0
        %3112 = vmatprep.subr.mxu0 0.0
        %3113 = vmatpush1.msra.mxu0 0.0
        %3114 = vmatprep.subr.mxu0 0.0
        %3115 = vmatpush1.msra.mxu0 0.0
        %3116 = vmatprep.subr.mxu0 0.0
        %3117 = vmatpush1.msra.mxu0 0.0
        %3118 = vmatprep.subr.mxu0 0.0
        %3119 = vmatpush1.msra.mxu0 0.0
        %3120 = vmatprep.subr.mxu0 0.0
        %3121 = vmatpush1.msra.mxu0 0.0
        %3122 = vmatprep.subr.mxu0 0.0
        %3123 = vmatpush1.msra.mxu0 0.0
        %3124 = vmatprep.subr.mxu0 0.0
        %3125 = vmatpush1.msra.mxu0 0.0
        %3126 = vmatprep.subr.mxu0 0.0
        %3127 = vmatpush1.msra.mxu0 0.0
        %3128 = vmatprep.subr.mxu0 0.0
        %3129 = vmatpush1.msra.mxu0 0.0
        %3130 = vmatprep.subr.mxu0 0.0
        %3131 = vmatpush1.msra.mxu0 0.0
        %3132 = vmatprep.subr.mxu0 0.0
        %3133 = vmatpush1.msra.mxu0 0.0
        %3134 = vmatprep.mubr.f32.mxu0 0.0
        %3135 = vmatmul.mubr.f32.gmra.mrb[0].mxu0 %v3065
        %v3136 = vpop.f32.mrb[0].mxu0
        %v3137 = vadd.f32 0.0, %v3136
        %v3138 = vpop.f32.mrb[0].mxu0
        %3139 = vmatprep.mubr.f32.mxu0 0.0
        %3140 = vmatmul.mubr.f32.gmra.mrb[0].mxu0 %v3068
        %v3141 = vpop.f32.mrb[0].mxu0
        %v3142 = vadd.f32 0.0, %v3141
        %v3143 = vpop.f32.mrb[0].mxu0
        %3144 = vdwg.mxu0
        %v3146 = vsel %vm2451, %v2601, 0
        %v3149 = vsel %vm2451, %v2603, 0
        %3151 = vmatprep.subr.mxu0 0.0
        %3152 = vmatpush1.msra.mxu0 %v1055
        %3153 = vmatprep.subr.mxu0 0.0
        %3154 = vmatpush1.msra.mxu0 %v1057
        %3155 = vmatprep.subr.mxu0 0.0
        %3156 = vmatpush1.msra.mxu0 0.0
        %3157 = vmatprep.subr.mxu0 0.0
        %3158 = vmatpush1.msra.mxu0 0.0
        %3159 = vmatprep.subr.mxu0 0.0
        %3160 = vmatpush1.msra.mxu0 0.0
        %3161 = vmatprep.subr.mxu0 0.0
        %3162 = vmatpush1.msra.mxu0 0.0
        %3163 = vmatprep.subr.mxu0 0.0
        %3164 = vmatpush1.msra.mxu0 0.0
        %3165 = vmatprep.subr.mxu0 0.0
        %3166 = vmatpush1.msra.mxu0 0.0
        %3167 = vmatprep.subr.mxu0 0.0
        %3168 = vmatpush1.msra.mxu0 0.0
        %3169 = vmatprep.subr.mxu0 0.0
        %3170 = vmatpush1.msra.mxu0 0.0
        %3171 = vmatprep.subr.mxu0 0.0
        %3172 = vmatpush1.msra.mxu0 0.0
        %3173 = vmatprep.subr.mxu0 0.0
        %3174 = vmatpush1.msra.mxu0 0.0
        %3175 = vmatprep.subr.mxu0 0.0
        %3176 = vmatpush1.msra.mxu0 0.0
        %3177 = vmatprep.subr.mxu0 0.0
        %3178 = vmatpush1.msra.mxu0 0.0
        %3179 = vmatprep.subr.mxu0 0.0
        %3180 = vmatpush1.msra.mxu0 0.0
        %3181 = vmatprep.subr.mxu0 0.0
        %3182 = vmatpush1.msra.mxu0 0.0
        %3183 = vmatprep.subr.mxu0 0.0
        %3184 = vmatpush1.msra.mxu0 0.0
        %3185 = vmatprep.subr.mxu0 0.0
        %3186 = vmatpush1.msra.mxu0 0.0
        %3187 = vmatprep.subr.mxu0 0.0
        %3188 = vmatpush1.msra.mxu0 0.0
        %3189 = vmatprep.subr.mxu0 0.0
        %3190 = vmatpush1.msra.mxu0 0.0
        %3191 = vmatprep.subr.mxu0 0.0
        %3192 = vmatpush1.msra.mxu0 0.0
        %3193 = vmatprep.subr.mxu0 0.0
        %3194 = vmatpush1.msra.mxu0 0.0
        %3195 = vmatprep.subr.mxu0 0.0
        %3196 = vmatpush1.msra.mxu0 0.0
        %3197 = vmatprep.subr.mxu0 0.0
        %3198 = vmatpush1.msra.mxu0 0.0
        %3199 = vmatprep.subr.mxu0 0.0
        %3200 = vmatpush1.msra.mxu0 0.0
        %3201 = vmatprep.subr.mxu0 0.0
        %3202 = vmatpush1.msra.mxu0 0.0
        %3203 = vmatprep.subr.mxu0 0.0
        %3204 = vmatpush1.msra.mxu0 0.0
        %3205 = vmatprep.subr.mxu0 0.0
        %3206 = vmatpush1.msra.mxu0 0.0
        %3207 = vmatprep.subr.mxu0 0.0
        %3208 = vmatpush1.msra.mxu0 0.0
        %3209 = vmatprep.subr.mxu0 0.0
        %3210 = vmatpush1.msra.mxu0 0.0
        %3211 = vmatprep.subr.mxu0 0.0
        %3212 = vmatpush1.msra.mxu0 0.0
        %3213 = vmatprep.subr.mxu0 0.0
        %3214 = vmatpush1.msra.mxu0 0.0
        %3215 = vmatprep.mubr.f32.mxu0 0.0
        %3216 = vmatmul.mubr.f32.gmra.mrb[0].mxu0 %v3146
        %v3217 = vpop.f32.mrb[0].mxu0
        %v3218 = vadd.f32 0.0, %v3217
        %v3219 = vpop.f32.mrb[0].mxu0
        %3220 = vmatprep.mubr.f32.mxu0 0.0
        %3221 = vmatmul.mubr.f32.gmra.mrb[0].mxu0 %v3149
        %v3222 = vpop.f32.mrb[0].mxu0
        %v3223 = vadd.f32 0.0, %v3222
        %v3224 = vpop.f32.mrb[0].mxu0
        %3225 = vdwg.mxu0
        %v3227 = vsel %vm2451, %v2605, 0
        %v3230 = vsel %vm2451, %v2607, 0
        %3232 = vmatprep.subr.mxu0 0.0
        %3233 = vmatpush1.msra.mxu0 %v1059
        %3234 = vmatprep.subr.mxu0 0.0
        %3235 = vmatpush1.msra.mxu0 %v1061
        %3236 = vmatprep.subr.mxu0 0.0
        %3237 = vmatpush1.msra.mxu0 0.0
        %3238 = vmatprep.subr.mxu0 0.0
        %3239 = vmatpush1.msra.mxu0 0.0
        %3240 = vmatprep.subr.mxu0 0.0
        %3241 = vmatpush1.msra.mxu0 0.0
        %3242 = vmatprep.subr.mxu0 0.0
        %3243 = vmatpush1.msra.mxu0 0.0
        %3244 = vmatprep.subr.mxu0 0.0
        %3245 = vmatpush1.msra.mxu0 0.0
        %3246 = vmatprep.subr.mxu0 0.0
        %3247 = vmatpush1.msra.mxu0 0.0
        %3248 = vmatprep.subr.mxu0 0.0
        %3249 = vmatpush1.msra.mxu0 0.0
        %3250 = vmatprep.subr.mxu0 0.0
        %3251 = vmatpush1.msra.mxu0 0.0
        %3252 = vmatprep.subr.mxu0 0.0
        %3253 = vmatpush1.msra.mxu0 0.0
        %3254 = vmatprep.subr.mxu0 0.0
        %3255 = vmatpush1.msra.mxu0 0.0
        %3256 = vmatprep.subr.mxu0 0.0
        %3257 = vmatpush1.msra.mxu0 0.0
        %3258 = vmatprep.subr.mxu0 0.0
        %3259 = vmatpush1.msra.mxu0 0.0
        %3260 = vmatprep.subr.mxu0 0.0
        %3261 = vmatpush1.msra.mxu0 0.0
        %3262 = vmatprep.subr.mxu0 0.0
        %3263 = vmatpush1.msra.mxu0 0.0
        %3264 = vmatprep.subr.mxu0 0.0
        %3265 = vmatpush1.msra.mxu0 0.0
        %3266 = vmatprep.subr.mxu0 0.0
        %3267 = vmatpush1.msra.mxu0 0.0
        %3268 = vmatprep.subr.mxu0 0.0
        %3269 = vmatpush1.msra.mxu0 0.0
        %3270 = vmatprep.subr.mxu0 0.0
        %3271 = vmatpush1.msra.mxu0 0.0
        %3272 = vmatprep.subr.mxu0 0.0
        %3273 = vmatpush1.msra.mxu0 0.0
        %3274 = vmatprep.subr.mxu0 0.0
        %3275 = vmatpush1.msra.mxu0 0.0
        %3276 = vmatprep.subr.mxu0 0.0
        %3277 = vmatpush1.msra.mxu0 0.0
        %3278 = vmatprep.subr.mxu0 0.0
        %3279 = vmatpush1.msra.mxu0 0.0
        %3280 = vmatprep.subr.mxu0 0.0
        %3281 = vmatpush1.msra.mxu0 0.0
        %3282 = vmatprep.subr.mxu0 0.0
        %3283 = vmatpush1.msra.mxu0 0.0
        %3284 = vmatprep.subr.mxu0 0.0
        %3285 = vmatpush1.msra.mxu0 0.0
        %3286 = vmatprep.subr.mxu0 0.0
        %3287 = vmatpush1.msra.mxu0 0.0
        %3288 = vmatprep.subr.mxu0 0.0
        %3289 = vmatpush1.msra.mxu0 0.0
        %3290 = vmatprep.subr.mxu0 0.0
        %3291 = vmatpush1.msra.mxu0 0.0
        %3292 = vmatprep.subr.mxu0 0.0
        %3293 = vmatpush1.msra.mxu0 0.0
        %3294 = vmatprep.subr.mxu0 0.0
        %3295 = vmatpush1.msra.mxu0 0.0
        %3296 = vmatprep.mubr.f32.mxu0 0.0
        %3297 = vmatmul.mubr.f32.gmra.mrb[0].mxu0 %v3227
        %v3298 = vpop.f32.mrb[0].mxu0
        %v3299 = vadd.f32 0.0, %v3298
        %v3300 = vpop.f32.mrb[0].mxu0
        %3301 = vmatprep.mubr.f32.mxu0 0.0
        %3302 = vmatmul.mubr.f32.gmra.mrb[0].mxu0 %v3230
        %v3303 = vpop.f32.mrb[0].mxu0
        %v3304 = vadd.f32 0.0, %v3303
        %v3305 = vpop.f32.mrb[0].mxu0
        %3306 = vdwg.mxu0
        %v3308 = vsel %vm2451, %v2609, 0
        %v3311 = vsel %vm2451, %v2611, 0
        %3313 = vmatprep.subr.mxu0 0.0
        %3314 = vmatpush1.msra.mxu0 %v1063
        %3315 = vmatprep.subr.mxu0 0.0
        %3316 = vmatpush1.msra.mxu0 %v1065
        %3317 = vmatprep.subr.mxu0 0.0
        %3318 = vmatpush1.msra.mxu0 0.0
        %3319 = vmatprep.subr.mxu0 0.0
        %3320 = vmatpush1.msra.mxu0 0.0
        %3321 = vmatprep.subr.mxu0 0.0
        %3322 = vmatpush1.msra.mxu0 0.0
        %3323 = vmatprep.subr.mxu0 0.0
        %3324 = vmatpush1.msra.mxu0 0.0
        %3325 = vmatprep.subr.mxu0 0.0
        %3326 = vmatpush1.msra.mxu0 0.0
        %3327 = vmatprep.subr.mxu0 0.0
        %3328 = vmatpush1.msra.mxu0 0.0
        %3329 = vmatprep.subr.mxu0 0.0
        %3330 = vmatpush1.msra.mxu0 0.0
        %3331 = vmatprep.subr.mxu0 0.0
        %3332 = vmatpush1.msra.mxu0 0.0
        %3333 = vmatprep.subr.mxu0 0.0
        %3334 = vmatpush1.msra.mxu0 0.0
        %3335 = vmatprep.subr.mxu0 0.0
        %3336 = vmatpush1.msra.mxu0 0.0
        %3337 = vmatprep.subr.mxu0 0.0
        %3338 = vmatpush1.msra.mxu0 0.0
        %3339 = vmatprep.subr.mxu0 0.0
        %3340 = vmatpush1.msra.mxu0 0.0
        %3341 = vmatprep.subr.mxu0 0.0
        %3342 = vmatpush1.msra.mxu0 0.0
        %3343 = vmatprep.subr.mxu0 0.0
        %3344 = vmatpush1.msra.mxu0 0.0
        %3345 = vmatprep.subr.mxu0 0.0
        %3346 = vmatpush1.msra.mxu0 0.0
        %3347 = vmatprep.subr.mxu0 0.0
        %3348 = vmatpush1.msra.mxu0 0.0
        %3349 = vmatprep.subr.mxu0 0.0
        %3350 = vmatpush1.msra.mxu0 0.0
        %3351 = vmatprep.subr.mxu0 0.0
        %3352 = vmatpush1.msra.mxu0 0.0
        %3353 = vmatprep.subr.mxu0 0.0
        %3354 = vmatpush1.msra.mxu0 0.0
        %3355 = vmatprep.subr.mxu0 0.0
        %3356 = vmatpush1.msra.mxu0 0.0
        %3357 = vmatprep.subr.mxu0 0.0
        %3358 = vmatpush1.msra.mxu0 0.0
        %3359 = vmatprep.subr.mxu0 0.0
        %3360 = vmatpush1.msra.mxu0 0.0
        %3361 = vmatprep.subr.mxu0 0.0
        %3362 = vmatpush1.msra.mxu0 0.0
        %3363 = vmatprep.subr.mxu0 0.0
        %3364 = vmatpush1.msra.mxu0 0.0
        %3365 = vmatprep.subr.mxu0 0.0
        %3366 = vmatpush1.msra.mxu0 0.0
        %3367 = vmatprep.subr.mxu0 0.0
        %3368 = vmatpush1.msra.mxu0 0.0
        %3369 = vmatprep.subr.mxu0 0.0
        %3370 = vmatpush1.msra.mxu0 0.0
        %3371 = vmatprep.subr.mxu0 0.0
        %3372 = vmatpush1.msra.mxu0 0.0
        %3373 = vmatprep.subr.mxu0 0.0
        %3374 = vmatpush1.msra.mxu0 0.0
        %3375 = vmatprep.subr.mxu0 0.0
        %3376 = vmatpush1.msra.mxu0 0.0
        %3377 = vmatprep.mubr.f32.mxu0 0.0
        %3378 = vmatmul.mubr.f32.gmra.mrb[0].mxu0 %v3308
        %v3379 = vpop.f32.mrb[0].mxu0
        %v3380 = vadd.f32 0.0, %v3379
        %v3381 = vpop.f32.mrb[0].mxu0
        %3382 = vmatprep.mubr.f32.mxu0 0.0
        %3383 = vmatmul.mubr.f32.gmra.mrb[0].mxu0 %v3311
        %v3384 = vpop.f32.mrb[0].mxu0
        %v3385 = vadd.f32 0.0, %v3384
        %v3386 = vpop.f32.mrb[0].mxu0
        %3387 = vdwg.mxu0
        %v3389 = vsel %vm2451, %v2613, 0
        %v3392 = vsel %vm2451, %v2615, 0
        %3394 = vmatprep.subr.mxu0 0.0
        %3395 = vmatpush1.msra.mxu0 %v1075
        %3396 = vmatprep.subr.mxu0 0.0
        %3397 = vmatpush1.msra.mxu0 %v1077
        %3398 = vmatprep.subr.mxu0 0.0
        %3399 = vmatpush1.msra.mxu0 0.0
        %3400 = vmatprep.subr.mxu0 0.0
        %3401 = vmatpush1.msra.mxu0 0.0
        %3402 = vmatprep.subr.mxu0 0.0
        %3403 = vmatpush1.msra.mxu0 0.0
        %3404 = vmatprep.subr.mxu0 0.0
        %3405 = vmatpush1.msra.mxu0 0.0
        %3406 = vmatprep.subr.mxu0 0.0
        %3407 = vmatpush1.msra.mxu0 0.0
        %3408 = vmatprep.subr.mxu0 0.0
        %3409 = vmatpush1.msra.mxu0 0.0
        %3410 = vmatprep.subr.mxu0 0.0
        %3411 = vmatpush1.msra.mxu0 0.0
        %3412 = vmatprep.subr.mxu0 0.0
        %3413 = vmatpush1.msra.mxu0 0.0
        %3414 = vmatprep.subr.mxu0 0.0
        %3415 = vmatpush1.msra.mxu0 0.0
        %3416 = vmatprep.subr.mxu0 0.0
        %3417 = vmatpush1.msra.mxu0 0.0
        %3418 = vmatprep.subr.mxu0 0.0
        %3419 = vmatpush1.msra.mxu0 0.0
        %3420 = vmatprep.subr.mxu0 0.0
        %3421 = vmatpush1.msra.mxu0 0.0
        %3422 = vmatprep.subr.mxu0 0.0
        %3423 = vmatpush1.msra.mxu0 0.0
        %3424 = vmatprep.subr.mxu0 0.0
        %3425 = vmatpush1.msra.mxu0 0.0
        %3426 = vmatprep.subr.mxu0 0.0
        %3427 = vmatpush1.msra.mxu0 0.0
        %3428 = vmatprep.subr.mxu0 0.0
        %3429 = vmatpush1.msra.mxu0 0.0
        %3430 = vmatprep.subr.mxu0 0.0
        %3431 = vmatpush1.msra.mxu0 0.0
        %3432 = vmatprep.subr.mxu0 0.0
        %3433 = vmatpush1.msra.mxu0 0.0
        %3434 = vmatprep.subr.mxu0 0.0
        %3435 = vmatpush1.msra.mxu0 0.0
        %3436 = vmatprep.subr.mxu0 0.0
        %3437 = vmatpush1.msra.mxu0 0.0
        %3438 = vmatprep.subr.mxu0 0.0
        %3439 = vmatpush1.msra.mxu0 0.0
        %3440 = vmatprep.subr.mxu0 0.0
        %3441 = vmatpush1.msra.mxu0 0.0
        %3442 = vmatprep.subr.mxu0 0.0
        %3443 = vmatpush1.msra.mxu0 0.0
        %3444 = vmatprep.subr.mxu0 0.0
        %3445 = vmatpush1.msra.mxu0 0.0
        %3446 = vmatprep.subr.mxu0 0.0
        %3447 = vmatpush1.msra.mxu0 0.0
        %3448 = vmatprep.subr.mxu0 0.0
        %3449 = vmatpush1.msra.mxu0 0.0
        %3450 = vmatprep.subr.mxu0 0.0
        %3451 = vmatpush1.msra.mxu0 0.0
        %3452 = vmatprep.subr.mxu0 0.0
        %3453 = vmatpush1.msra.mxu0 0.0
        %3454 = vmatprep.subr.mxu0 0.0
        %3455 = vmatpush1.msra.mxu0 0.0
        %3456 = vmatprep.subr.mxu0 0.0
        %3457 = vmatpush1.msra.mxu0 0.0
        %3458 = vmatprep.mubr.f32.mxu0 0.0
        %3459 = vmatmul.mubr.f32.gmra.mrb[0].mxu0 %v3389
        %v3460 = vpop.f32.mrb[0].mxu0
        %v3461 = vadd.f32 0.0, %v3460
        %v3462 = vpop.f32.mrb[0].mxu0
        %3463 = vmatprep.mubr.f32.mxu0 0.0
        %3464 = vmatmul.mubr.f32.gmra.mrb[0].mxu0 %v3392
        %v3465 = vpop.f32.mrb[0].mxu0
        %v3466 = vadd.f32 0.0, %v3465
        %v3467 = vpop.f32.mrb[0].mxu0
        %3468 = vdwg.mxu0
        %v3470 = vsel %vm2451, %v2617, 0
        %v3473 = vsel %vm2451, %v2619, 0
        %3475 = vmatprep.subr.mxu0 0.0
        %3476 = vmatpush1.msra.mxu0 %v1079
        %3477 = vmatprep.subr.mxu0 0.0
        %3478 = vmatpush1.msra.mxu0 %v1081
        %3479 = vmatprep.subr.mxu0 0.0
        %3480 = vmatpush1.msra.mxu0 0.0
        %3481 = vmatprep.subr.mxu0 0.0
        %3482 = vmatpush1.msra.mxu0 0.0
        %3483 = vmatprep.subr.mxu0 0.0
        %3484 = vmatpush1.msra.mxu0 0.0
        %3485 = vmatprep.subr.mxu0 0.0
        %3486 = vmatpush1.msra.mxu0 0.0
        %3487 = vmatprep.subr.mxu0 0.0
        %3488 = vmatpush1.msra.mxu0 0.0
        %3489 = vmatprep.subr.mxu0 0.0
        %3490 = vmatpush1.msra.mxu0 0.0
        %3491 = vmatprep.subr.mxu0 0.0
        %3492 = vmatpush1.msra.mxu0 0.0
        %3493 = vmatprep.subr.mxu0 0.0
        %3494 = vmatpush1.msra.mxu0 0.0
        %3495 = vmatprep.subr.mxu0 0.0
        %3496 = vmatpush1.msra.mxu0 0.0
        %3497 = vmatprep.subr.mxu0 0.0
        %3498 = vmatpush1.msra.mxu0 0.0
        %3499 = vmatprep.subr.mxu0 0.0
        %3500 = vmatpush1.msra.mxu0 0.0
        %3501 = vmatprep.subr.mxu0 0.0
        %3502 = vmatpush1.msra.mxu0 0.0
        %3503 = vmatprep.subr.mxu0 0.0
        %3504 = vmatpush1.msra.mxu0 0.0
        %3505 = vmatprep.subr.mxu0 0.0
        %3506 = vmatpush1.msra.mxu0 0.0
        %3507 = vmatprep.subr.mxu0 0.0
        %3508 = vmatpush1.msra.mxu0 0.0
        %3509 = vmatprep.subr.mxu0 0.0
        %3510 = vmatpush1.msra.mxu0 0.0
        %3511 = vmatprep.subr.mxu0 0.0
        %3512 = vmatpush1.msra.mxu0 0.0
        %3513 = vmatprep.subr.mxu0 0.0
        %3514 = vmatpush1.msra.mxu0 0.0
        %3515 = vmatprep.subr.mxu0 0.0
        %3516 = vmatpush1.msra.mxu0 0.0
        %3517 = vmatprep.subr.mxu0 0.0
        %3518 = vmatpush1.msra.mxu0 0.0
        %3519 = vmatprep.subr.mxu0 0.0
        %3520 = vmatpush1.msra.mxu0 0.0
        %3521 = vmatprep.subr.mxu0 0.0
        %3522 = vmatpush1.msra.mxu0 0.0
        %3523 = vmatprep.subr.mxu0 0.0
        %3524 = vmatpush1.msra.mxu0 0.0
        %3525 = vmatprep.subr.mxu0 0.0
        %3526 = vmatpush1.msra.mxu0 0.0
        %3527 = vmatprep.subr.mxu0 0.0
        %3528 = vmatpush1.msra.mxu0 0.0
        %3529 = vmatprep.subr.mxu0 0.0
        %3530 = vmatpush1.msra.mxu0 0.0
        %3531 = vmatprep.subr.mxu0 0.0
        %3532 = vmatpush1.msra.mxu0 0.0
        %3533 = vmatprep.subr.mxu0 0.0
        %3534 = vmatpush1.msra.mxu0 0.0
        %3535 = vmatprep.subr.mxu0 0.0
        %3536 = vmatpush1.msra.mxu0 0.0
        %3537 = vmatprep.subr.mxu0 0.0
        %3538 = vmatpush1.msra.mxu0 0.0
        %3539 = vmatprep.mubr.f32.mxu0 0.0
        %3540 = vmatmul.mubr.f32.gmra.mrb[0].mxu0 %v3470
        %v3541 = vpop.f32.mrb[0].mxu0
        %v3542 = vadd.f32 0.0, %v3541
        %v3543 = vpop.f32.mrb[0].mxu0
        %3544 = vmatprep.mubr.f32.mxu0 0.0
        %3545 = vmatmul.mubr.f32.gmra.mrb[0].mxu0 %v3473
        %v3546 = vpop.f32.mrb[0].mxu0
        %v3547 = vadd.f32 0.0, %v3546
        %v3548 = vpop.f32.mrb[0].mxu0
        %3549 = vdwg.mxu0
        %v3551 = vsel %vm2451, %v2621, 0
        %v3554 = vsel %vm2451, %v2623, 0
        %3556 = vmatprep.subr.mxu0 0.0
        %3557 = vmatpush1.msra.mxu0 %v1083
        %3558 = vmatprep.subr.mxu0 0.0
        %3559 = vmatpush1.msra.mxu0 %v1085
        %3560 = vmatprep.subr.mxu0 0.0
        %3561 = vmatpush1.msra.mxu0 0.0
        %3562 = vmatprep.subr.mxu0 0.0
        %3563 = vmatpush1.msra.mxu0 0.0
        %3564 = vmatprep.subr.mxu0 0.0
        %3565 = vmatpush1.msra.mxu0 0.0
        %3566 = vmatprep.subr.mxu0 0.0
        %3567 = vmatpush1.msra.mxu0 0.0
        %3568 = vmatprep.subr.mxu0 0.0
        %3569 = vmatpush1.msra.mxu0 0.0
        %3570 = vmatprep.subr.mxu0 0.0
        %3571 = vmatpush1.msra.mxu0 0.0
        %3572 = vmatprep.subr.mxu0 0.0
        %3573 = vmatpush1.msra.mxu0 0.0
        %3574 = vmatprep.subr.mxu0 0.0
        %3575 = vmatpush1.msra.mxu0 0.0
        %3576 = vmatprep.subr.mxu0 0.0
        %3577 = vmatpush1.msra.mxu0 0.0
        %3578 = vmatprep.subr.mxu0 0.0
        %3579 = vmatpush1.msra.mxu0 0.0
        %3580 = vmatprep.subr.mxu0 0.0
        %3581 = vmatpush1.msra.mxu0 0.0
        %3582 = vmatprep.subr.mxu0 0.0
        %3583 = vmatpush1.msra.mxu0 0.0
        %3584 = vmatprep.subr.mxu0 0.0
        %3585 = vmatpush1.msra.mxu0 0.0
        %3586 = vmatprep.subr.mxu0 0.0
        %3587 = vmatpush1.msra.mxu0 0.0
        %3588 = vmatprep.subr.mxu0 0.0
        %3589 = vmatpush1.msra.mxu0 0.0
        %3590 = vmatprep.subr.mxu0 0.0
        %3591 = vmatpush1.msra.mxu0 0.0
        %3592 = vmatprep.subr.mxu0 0.0
        %3593 = vmatpush1.msra.mxu0 0.0
        %3594 = vmatprep.subr.mxu0 0.0
        %3595 = vmatpush1.msra.mxu0 0.0
        %3596 = vmatprep.subr.mxu0 0.0
        %3597 = vmatpush1.msra.mxu0 0.0
        %3598 = vmatprep.subr.mxu0 0.0
        %3599 = vmatpush1.msra.mxu0 0.0
        %3600 = vmatprep.subr.mxu0 0.0
        %3601 = vmatpush1.msra.mxu0 0.0
        %3602 = vmatprep.subr.mxu0 0.0
        %3603 = vmatpush1.msra.mxu0 0.0
        %3604 = vmatprep.subr.mxu0 0.0
        %3605 = vmatpush1.msra.mxu0 0.0
        %3606 = vmatprep.subr.mxu0 0.0
        %3607 = vmatpush1.msra.mxu0 0.0
        %3608 = vmatprep.subr.mxu0 0.0
        %3609 = vmatpush1.msra.mxu0 0.0
        %3610 = vmatprep.subr.mxu0 0.0
        %3611 = vmatpush1.msra.mxu0 0.0
        %3612 = vmatprep.subr.mxu0 0.0
        %3613 = vmatpush1.msra.mxu0 0.0
        %3614 = vmatprep.subr.mxu0 0.0
        %3615 = vmatpush1.msra.mxu0 0.0
        %3616 = vmatprep.subr.mxu0 0.0
        %3617 = vmatpush1.msra.mxu0 0.0
        %3618 = vmatprep.subr.mxu0 0.0
        %3619 = vmatpush1.msra.mxu0 0.0
        %3620 = vmatprep.mubr.f32.mxu0 0.0
        %3621 = vmatmul.mubr.f32.gmra.mrb[0].mxu0 %v3551
        %v3622 = vpop.f32.mrb[0].mxu0
        %v3623 = vadd.f32 0.0, %v3622
        %v3624 = vpop.f32.mrb[0].mxu0
        %3625 = vmatprep.mubr.f32.mxu0 0.0
        %3626 = vmatmul.mubr.f32.gmra.mrb[0].mxu0 %v3554
        %v3627 = vpop.f32.mrb[0].mxu0
        %v3628 = vadd.f32 0.0, %v3627
        %v3629 = vpop.f32.mrb[0].mxu0
        %3630 = vdwg.mxu0
        %v3632 = vsel %vm2451, %v2625, 0
        %v3635 = vsel %vm2451, %v2627, 0
        %3637 = vmatprep.subr.mxu0 0.0
        %3638 = vmatpush1.msra.mxu0 %v1087
        %3639 = vmatprep.subr.mxu0 0.0
        %3640 = vmatpush1.msra.mxu0 %v1089
        %3641 = vmatprep.subr.mxu0 0.0
        %3642 = vmatpush1.msra.mxu0 0.0
        %3643 = vmatprep.subr.mxu0 0.0
        %3644 = vmatpush1.msra.mxu0 0.0
        %3645 = vmatprep.subr.mxu0 0.0
        %3646 = vmatpush1.msra.mxu0 0.0
        %3647 = vmatprep.subr.mxu0 0.0
        %3648 = vmatpush1.msra.mxu0 0.0
        %3649 = vmatprep.subr.mxu0 0.0
        %3650 = vmatpush1.msra.mxu0 0.0
        %3651 = vmatprep.subr.mxu0 0.0
        %3652 = vmatpush1.msra.mxu0 0.0
        %3653 = vmatprep.subr.mxu0 0.0
        %3654 = vmatpush1.msra.mxu0 0.0
        %3655 = vmatprep.subr.mxu0 0.0
        %3656 = vmatpush1.msra.mxu0 0.0
        %3657 = vmatprep.subr.mxu0 0.0
        %3658 = vmatpush1.msra.mxu0 0.0
        %3659 = vmatprep.subr.mxu0 0.0
        %3660 = vmatpush1.msra.mxu0 0.0
        %3661 = vmatprep.subr.mxu0 0.0
        %3662 = vmatpush1.msra.mxu0 0.0
        %3663 = vmatprep.subr.mxu0 0.0
        %3664 = vmatpush1.msra.mxu0 0.0
        %3665 = vmatprep.subr.mxu0 0.0
        %3666 = vmatpush1.msra.mxu0 0.0
        %3667 = vmatprep.subr.mxu0 0.0
        %3668 = vmatpush1.msra.mxu0 0.0
        %3669 = vmatprep.subr.mxu0 0.0
        %3670 = vmatpush1.msra.mxu0 0.0
        %3671 = vmatprep.subr.mxu0 0.0
        %3672 = vmatpush1.msra.mxu0 0.0
        %3673 = vmatprep.subr.mxu0 0.0
        %3674 = vmatpush1.msra.mxu0 0.0
        %3675 = vmatprep.subr.mxu0 0.0
        %3676 = vmatpush1.msra.mxu0 0.0
        %3677 = vmatprep.subr.mxu0 0.0
        %3678 = vmatpush1.msra.mxu0 0.0
        %3679 = vmatprep.subr.mxu0 0.0
        %3680 = vmatpush1.msra.mxu0 0.0
        %3681 = vmatprep.subr.mxu0 0.0
        %3682 = vmatpush1.msra.mxu0 0.0
        %3683 = vmatprep.subr.mxu0 0.0
        %3684 = vmatpush1.msra.mxu0 0.0
        %3685 = vmatprep.subr.mxu0 0.0
        %3686 = vmatpush1.msra.mxu0 0.0
        %3687 = vmatprep.subr.mxu0 0.0
        %3688 = vmatpush1.msra.mxu0 0.0
        %3689 = vmatprep.subr.mxu0 0.0
        %3690 = vmatpush1.msra.mxu0 0.0
        %3691 = vmatprep.subr.mxu0 0.0
        %3692 = vmatpush1.msra.mxu0 0.0
        %3693 = vmatprep.subr.mxu0 0.0
        %3694 = vmatpush1.msra.mxu0 0.0
        %3695 = vmatprep.subr.mxu0 0.0
        %3696 = vmatpush1.msra.mxu0 0.0
        %3697 = vmatprep.subr.mxu0 0.0
        %3698 = vmatpush1.msra.mxu0 0.0
        %3699 = vmatprep.subr.mxu0 0.0
        %3700 = vmatpush1.msra.mxu0 0.0
        %3701 = vmatprep.mubr.f32.mxu0 0.0
        %3702 = vmatmul.mubr.f32.gmra.mrb[0].mxu0 %v3632
        %v3703 = vpop.f32.mrb[0].mxu0
        %v3704 = vadd.f32 0.0, %v3703
        %v3705 = vpop.f32.mrb[0].mxu0
        %3706 = vmatprep.mubr.f32.mxu0 0.0
        %3707 = vmatmul.mubr.f32.gmra.mrb[0].mxu0 %v3635
        %v3708 = vpop.f32.mrb[0].mxu0
        %v3709 = vadd.f32 0.0, %v3708
        %v3710 = vpop.f32.mrb[0].mxu0
        %3711 = vdwg.mxu0
        %v3713 = vsel %vm2451, %v2629, 0
        %v3716 = vsel %vm2451, %v2631, 0
        %3718 = vmatprep.subr.mxu0 0.0
        %3719 = vmatpush1.msra.mxu0 %v1099
        %3720 = vmatprep.subr.mxu0 0.0
        %3721 = vmatpush1.msra.mxu0 %v1101
        %3722 = vmatprep.subr.mxu0 0.0
        %3723 = vmatpush1.msra.mxu0 0.0
        %3724 = vmatprep.subr.mxu0 0.0
        %3725 = vmatpush1.msra.mxu0 0.0
        %3726 = vmatprep.subr.mxu0 0.0
        %3727 = vmatpush1.msra.mxu0 0.0
        %3728 = vmatprep.subr.mxu0 0.0
        %3729 = vmatpush1.msra.mxu0 0.0
        %3730 = vmatprep.subr.mxu0 0.0
        %3731 = vmatpush1.msra.mxu0 0.0
        %3732 = vmatprep.subr.mxu0 0.0
        %3733 = vmatpush1.msra.mxu0 0.0
        %3734 = vmatprep.subr.mxu0 0.0
        %3735 = vmatpush1.msra.mxu0 0.0
        %3736 = vmatprep.subr.mxu0 0.0
        %3737 = vmatpush1.msra.mxu0 0.0
        %3738 = vmatprep.subr.mxu0 0.0
        %3739 = vmatpush1.msra.mxu0 0.0
        %3740 = vmatprep.subr.mxu0 0.0
        %3741 = vmatpush1.msra.mxu0 0.0
        %3742 = vmatprep.subr.mxu0 0.0
        %3743 = vmatpush1.msra.mxu0 0.0
        %3744 = vmatprep.subr.mxu0 0.0
        %3745 = vmatpush1.msra.mxu0 0.0
        %3746 = vmatprep.subr.mxu0 0.0
        %3747 = vmatpush1.msra.mxu0 0.0
        %3748 = vmatprep.subr.mxu0 0.0
        %3749 = vmatpush1.msra.mxu0 0.0
        %3750 = vmatprep.subr.mxu0 0.0
        %3751 = vmatpush1.msra.mxu0 0.0
        %3752 = vmatprep.subr.mxu0 0.0
        %3753 = vmatpush1.msra.mxu0 0.0
        %3754 = vmatprep.subr.mxu0 0.0
        %3755 = vmatpush1.msra.mxu0 0.0
        %3756 = vmatprep.subr.mxu0 0.0
        %3757 = vmatpush1.msra.mxu0 0.0
        %3758 = vmatprep.subr.mxu0 0.0
        %3759 = vmatpush1.msra.mxu0 0.0
        %3760 = vmatprep.subr.mxu0 0.0
        %3761 = vmatpush1.msra.mxu0 0.0
        %3762 = vmatprep.subr.mxu0 0.0
        %3763 = vmatpush1.msra.mxu0 0.0
        %3764 = vmatprep.subr.mxu0 0.0
        %3765 = vmatpush1.msra.mxu0 0.0
        %3766 = vmatprep.subr.mxu0 0.0
        %3767 = vmatpush1.msra.mxu0 0.0
        %3768 = vmatprep.subr.mxu0 0.0
        %3769 = vmatpush1.msra.mxu0 0.0
        %3770 = vmatprep.subr.mxu0 0.0
        %3771 = vmatpush1.msra.mxu0 0.0
        %3772 = vmatprep.subr.mxu0 0.0
        %3773 = vmatpush1.msra.mxu0 0.0
        %3774 = vmatprep.subr.mxu0 0.0
        %3775 = vmatpush1.msra.mxu0 0.0
        %3776 = vmatprep.subr.mxu0 0.0
        %3777 = vmatpush1.msra.mxu0 0.0
        %3778 = vmatprep.subr.mxu0 0.0
        %3779 = vmatpush1.msra.mxu0 0.0
        %3780 = vmatprep.subr.mxu0 0.0
        %3781 = vmatpush1.msra.mxu0 0.0
        %3782 = vmatprep.mubr.f32.mxu0 0.0
        %3783 = vmatmul.mubr.f32.gmra.mrb[0].mxu0 %v3713
        %v3784 = vpop.f32.mrb[0].mxu0
        %v3785 = vadd.f32 0.0, %v3784
        %v3786 = vpop.f32.mrb[0].mxu0
        %3787 = vmatprep.mubr.f32.mxu0 0.0
        %3788 = vmatmul.mubr.f32.gmra.mrb[0].mxu0 %v3716
        %v3789 = vpop.f32.mrb[0].mxu0
        %v3790 = vadd.f32 0.0, %v3789
        %v3791 = vpop.f32.mrb[0].mxu0
        %3792 = vdwg.mxu0
        %v3794 = vsel %vm2451, %v2633, 0
        %v3797 = vsel %vm2451, %v2635, 0
        %3799 = vmatprep.subr.mxu0 0.0
        %3800 = vmatpush1.msra.mxu0 %v1103
        %3801 = vmatprep.subr.mxu0 0.0
        %3802 = vmatpush1.msra.mxu0 %v1105
        %3803 = vmatprep.subr.mxu0 0.0
        %3804 = vmatpush1.msra.mxu0 0.0
        %3805 = vmatprep.subr.mxu0 0.0
        %3806 = vmatpush1.msra.mxu0 0.0
        %3807 = vmatprep.subr.mxu0 0.0
        %3808 = vmatpush1.msra.mxu0 0.0
        %3809 = vmatprep.subr.mxu0 0.0
        %3810 = vmatpush1.msra.mxu0 0.0
        %3811 = vmatprep.subr.mxu0 0.0
        %3812 = vmatpush1.msra.mxu0 0.0
        %3813 = vmatprep.subr.mxu0 0.0
        %3814 = vmatpush1.msra.mxu0 0.0
        %3815 = vmatprep.subr.mxu0 0.0
        %3816 = vmatpush1.msra.mxu0 0.0
        %3817 = vmatprep.subr.mxu0 0.0
        %3818 = vmatpush1.msra.mxu0 0.0
        %3819 = vmatprep.subr.mxu0 0.0
        %3820 = vmatpush1.msra.mxu0 0.0
        %3821 = vmatprep.subr.mxu0 0.0
        %3822 = vmatpush1.msra.mxu0 0.0
        %3823 = vmatprep.subr.mxu0 0.0
        %3824 = vmatpush1.msra.mxu0 0.0
        %3825 = vmatprep.subr.mxu0 0.0
        %3826 = vmatpush1.msra.mxu0 0.0
        %3827 = vmatprep.subr.mxu0 0.0
        %3828 = vmatpush1.msra.mxu0 0.0
        %3829 = vmatprep.subr.mxu0 0.0
        %3830 = vmatpush1.msra.mxu0 0.0
        %3831 = vmatprep.subr.mxu0 0.0
        %3832 = vmatpush1.msra.mxu0 0.0
        %3833 = vmatprep.subr.mxu0 0.0
        %3834 = vmatpush1.msra.mxu0 0.0
        %3835 = vmatprep.subr.mxu0 0.0
        %3836 = vmatpush1.msra.mxu0 0.0
        %3837 = vmatprep.subr.mxu0 0.0
        %3838 = vmatpush1.msra.mxu0 0.0
        %3839 = vmatprep.subr.mxu0 0.0
        %3840 = vmatpush1.msra.mxu0 0.0
        %3841 = vmatprep.subr.mxu0 0.0
        %3842 = vmatpush1.msra.mxu0 0.0
        %3843 = vmatprep.subr.mxu0 0.0
        %3844 = vmatpush1.msra.mxu0 0.0
        %3845 = vmatprep.subr.mxu0 0.0
        %3846 = vmatpush1.msra.mxu0 0.0
        %3847 = vmatprep.subr.mxu0 0.0
        %3848 = vmatpush1.msra.mxu0 0.0
        %3849 = vmatprep.subr.mxu0 0.0
        %3850 = vmatpush1.msra.mxu0 0.0
        %3851 = vmatprep.subr.mxu0 0.0
        %3852 = vmatpush1.msra.mxu0 0.0
        %3853 = vmatprep.subr.mxu0 0.0
        %3854 = vmatpush1.msra.mxu0 0.0
        %3855 = vmatprep.subr.mxu0 0.0
        %3856 = vmatpush1.msra.mxu0 0.0
        %3857 = vmatprep.subr.mxu0 0.0
        %3858 = vmatpush1.msra.mxu0 0.0
        %3859 = vmatprep.subr.mxu0 0.0
        %3860 = vmatpush1.msra.mxu0 0.0
        %3861 = vmatprep.subr.mxu0 0.0
        %3862 = vmatpush1.msra.mxu0 0.0
        %3863 = vmatprep.mubr.f32.mxu0 0.0
        %3864 = vmatmul.mubr.f32.gmra.mrb[0].mxu0 %v3794
        %v3865 = vpop.f32.mrb[0].mxu0
        %v3866 = vadd.f32 0.0, %v3865
        %v3867 = vpop.f32.mrb[0].mxu0
        %3868 = vmatprep.mubr.f32.mxu0 0.0
        %3869 = vmatmul.mubr.f32.gmra.mrb[0].mxu0 %v3797
        %v3870 = vpop.f32.mrb[0].mxu0
        %v3871 = vadd.f32 0.0, %v3870
        %v3872 = vpop.f32.mrb[0].mxu0
        %3873 = vdwg.mxu0
        %v3875 = vsel %vm2451, %v2637, 0
        %v3878 = vsel %vm2451, %v2639, 0
        %3880 = vmatprep.subr.mxu0 0.0
        %3881 = vmatpush1.msra.mxu0 %v1107
        %3882 = vmatprep.subr.mxu0 0.0
        %3883 = vmatpush1.msra.mxu0 %v1109
        %3884 = vmatprep.subr.mxu0 0.0
        %3885 = vmatpush1.msra.mxu0 0.0
        %3886 = vmatprep.subr.mxu0 0.0
        %3887 = vmatpush1.msra.mxu0 0.0
        %3888 = vmatprep.subr.mxu0 0.0
        %3889 = vmatpush1.msra.mxu0 0.0
        %3890 = vmatprep.subr.mxu0 0.0
        %3891 = vmatpush1.msra.mxu0 0.0
        %3892 = vmatprep.subr.mxu0 0.0
        %3893 = vmatpush1.msra.mxu0 0.0
        %3894 = vmatprep.subr.mxu0 0.0
        %3895 = vmatpush1.msra.mxu0 0.0
        %3896 = vmatprep.subr.mxu0 0.0
        %3897 = vmatpush1.msra.mxu0 0.0
        %3898 = vmatprep.subr.mxu0 0.0
        %3899 = vmatpush1.msra.mxu0 0.0
        %3900 = vmatprep.subr.mxu0 0.0
        %3901 = vmatpush1.msra.mxu0 0.0
        %3902 = vmatprep.subr.mxu0 0.0
        %3903 = vmatpush1.msra.mxu0 0.0
        %3904 = vmatprep.subr.mxu0 0.0
        %3905 = vmatpush1.msra.mxu0 0.0
        %3906 = vmatprep.subr.mxu0 0.0
        %3907 = vmatpush1.msra.mxu0 0.0
        %3908 = vmatprep.subr.mxu0 0.0
        %3909 = vmatpush1.msra.mxu0 0.0
        %3910 = vmatprep.subr.mxu0 0.0
        %3911 = vmatpush1.msra.mxu0 0.0
        %3912 = vmatprep.subr.mxu0 0.0
        %3913 = vmatpush1.msra.mxu0 0.0
        %3914 = vmatprep.subr.mxu0 0.0
        %3915 = vmatpush1.msra.mxu0 0.0
        %3916 = vmatprep.subr.mxu0 0.0
        %3917 = vmatpush1.msra.mxu0 0.0
        %3918 = vmatprep.subr.mxu0 0.0
        %3919 = vmatpush1.msra.mxu0 0.0
        %3920 = vmatprep.subr.mxu0 0.0
        %3921 = vmatpush1.msra.mxu0 0.0
        %3922 = vmatprep.subr.mxu0 0.0
        %3923 = vmatpush1.msra.mxu0 0.0
        %3924 = vmatprep.subr.mxu0 0.0
        %3925 = vmatpush1.msra.mxu0 0.0
        %3926 = vmatprep.subr.mxu0 0.0
        %3927 = vmatpush1.msra.mxu0 0.0
        %3928 = vmatprep.subr.mxu0 0.0
        %3929 = vmatpush1.msra.mxu0 0.0
        %3930 = vmatprep.subr.mxu0 0.0
        %3931 = vmatpush1.msra.mxu0 0.0
        %3932 = vmatprep.subr.mxu0 0.0
        %3933 = vmatpush1.msra.mxu0 0.0
        %3934 = vmatprep.subr.mxu0 0.0
        %3935 = vmatpush1.msra.mxu0 0.0
        %3936 = vmatprep.subr.mxu0 0.0
        %3937 = vmatpush1.msra.mxu0 0.0
        %3938 = vmatprep.subr.mxu0 0.0
        %3939 = vmatpush1.msra.mxu0 0.0
        %3940 = vmatprep.subr.mxu0 0.0
        %3941 = vmatpush1.msra.mxu0 0.0
        %3942 = vmatprep.subr.mxu0 0.0
        %3943 = vmatpush1.msra.mxu0 0.0
        %3944 = vmatprep.mubr.f32.mxu0 0.0
        %3945 = vmatmul.mubr.f32.gmra.mrb[0].mxu0 %v3875
        %v3946 = vpop.f32.mrb[0].mxu0
        %v3947 = vadd.f32 0.0, %v3946
        %v3948 = vpop.f32.mrb[0].mxu0
        %3949 = vmatprep.mubr.f32.mxu0 0.0
        %3950 = vmatmul.mubr.f32.gmra.mrb[0].mxu0 %v3878
        %v3951 = vpop.f32.mrb[0].mxu0
        %v3952 = vadd.f32 0.0, %v3951
        %v3953 = vpop.f32.mrb[0].mxu0
        %3954 = vdwg.mxu0
        %v3956 = vsel %vm2451, %v2641, 0
        %v3959 = vsel %vm2451, %v2643, 0
        %3961 = vmatprep.subr.mxu0 0.0
        %3962 = vmatpush1.msra.mxu0 %v1111
        %3963 = vmatprep.subr.mxu0 0.0
        %3964 = vmatpush1.msra.mxu0 %v1113
        %3965 = vmatprep.subr.mxu0 0.0
        %3966 = vmatpush1.msra.mxu0 0.0
        %3967 = vmatprep.subr.mxu0 0.0
        %3968 = vmatpush1.msra.mxu0 0.0
        %3969 = vmatprep.subr.mxu0 0.0
        %3970 = vmatpush1.msra.mxu0 0.0
        %3971 = vmatprep.subr.mxu0 0.0
        %3972 = vmatpush1.msra.mxu0 0.0
        %3973 = vmatprep.subr.mxu0 0.0
        %3974 = vmatpush1.msra.mxu0 0.0
        %3975 = vmatprep.subr.mxu0 0.0
        %3976 = vmatpush1.msra.mxu0 0.0
        %3977 = vmatprep.subr.mxu0 0.0
        %3978 = vmatpush1.msra.mxu0 0.0
        %3979 = vmatprep.subr.mxu0 0.0
        %3980 = vmatpush1.msra.mxu0 0.0
        %3981 = vmatprep.subr.mxu0 0.0
        %3982 = vmatpush1.msra.mxu0 0.0
        %3983 = vmatprep.subr.mxu0 0.0
        %3984 = vmatpush1.msra.mxu0 0.0
        %3985 = vmatprep.subr.mxu0 0.0
        %3986 = vmatpush1.msra.mxu0 0.0
        %3987 = vmatprep.subr.mxu0 0.0
        %3988 = vmatpush1.msra.mxu0 0.0
        %3989 = vmatprep.subr.mxu0 0.0
        %3990 = vmatpush1.msra.mxu0 0.0
        %3991 = vmatprep.subr.mxu0 0.0
        %3992 = vmatpush1.msra.mxu0 0.0
        %3993 = vmatprep.subr.mxu0 0.0
        %3994 = vmatpush1.msra.mxu0 0.0
        %3995 = vmatprep.subr.mxu0 0.0
        %3996 = vmatpush1.msra.mxu0 0.0
        %3997 = vmatprep.subr.mxu0 0.0
        %3998 = vmatpush1.msra.mxu0 0.0
        %3999 = vmatprep.subr.mxu0 0.0
        %4000 = vmatpush1.msra.mxu0 0.0
        %4001 = vmatprep.subr.mxu0 0.0
        %4002 = vmatpush1.msra.mxu0 0.0
        %4003 = vmatprep.subr.mxu0 0.0
        %4004 = vmatpush1.msra.mxu0 0.0
        %4005 = vmatprep.subr.mxu0 0.0
        %4006 = vmatpush1.msra.mxu0 0.0
        %4007 = vmatprep.subr.mxu0 0.0
        %4008 = vmatpush1.msra.mxu0 0.0
        %4009 = vmatprep.subr.mxu0 0.0
        %4010 = vmatpush1.msra.mxu0 0.0
        %4011 = vmatprep.subr.mxu0 0.0
        %4012 = vmatpush1.msra.mxu0 0.0
        %4013 = vmatprep.subr.mxu0 0.0
        %4014 = vmatpush1.msra.mxu0 0.0
        %4015 = vmatprep.subr.mxu0 0.0
        %4016 = vmatpush1.msra.mxu0 0.0
        %4017 = vmatprep.subr.mxu0 0.0
        %4018 = vmatpush1.msra.mxu0 0.0
        %4019 = vmatprep.subr.mxu0 0.0
        %4020 = vmatpush1.msra.mxu0 0.0
        %4021 = vmatprep.subr.mxu0 0.0
        %4022 = vmatpush1.msra.mxu0 0.0
        %4023 = vmatprep.subr.mxu0 0.0
        %4024 = vmatpush1.msra.mxu0 0.0
        %4025 = vmatprep.mubr.f32.mxu0 0.0
        %4026 = vmatmul.mubr.f32.gmra.mrb[0].mxu0 %v3956
        %v4027 = vpop.f32.mrb[0].mxu0
        %v4028 = vadd.f32 0.0, %v4027
        %v4029 = vpop.f32.mrb[0].mxu0
        %4030 = vmatprep.mubr.f32.mxu0 0.0
        %4031 = vmatmul.mubr.f32.gmra.mrb[0].mxu0 %v3959
        %v4032 = vpop.f32.mrb[0].mxu0
        %v4033 = vadd.f32 0.0, %v4032
        %v4034 = vpop.f32.mrb[0].mxu0
        %4035 = vdwg.mxu0
        %v4036 = vrcp.pop %v2646
        %v4037 = vrcp.pop %v2649
        %v4038 = vrcp.pop %v2652
        %v4039 = vrcp.pop %v2655
        %v4040 = vrcp.pop %v2658
        %v4041 = vrcp.pop %v2661
        %v4042 = vrcp.pop %v2664
        %v4043 = vrcp.pop %v2667
        %v4044 = vrcp.pop %v2670
        %v4045 = vrcp.pop %v2673
        %v4046 = vrcp.pop %v2676
        %v4047 = vrcp.pop %v2679
        %v4048 = vrcp.pop %v2682
        %v4049 = vrcp.pop %v2685
        %v4050 = vrcp.pop %v2688
        %v4051 = vrcp.pop %v2691
        %v4052 = vrcp.pop %v2694
        %v4053 = vrcp.pop %v2697
        %v4054 = vrcp.pop %v2700
        %v4055 = vrcp.pop %v2703
        %v4056 = vrcp.pop %v2706
        %v4057 = vrcp.pop %v2709
        %v4058 = vrcp.pop %v2712
        %v4059 = vrcp.pop %v2715
        %v4060 = vrcp.pop %v2718
        %v4061 = vrcp.pop %v2721
        %v4062 = vrcp.pop %v2724
        %v4063 = vrcp.pop %v2727
        %v4064 = vrcp.pop %v2730
        %v4065 = vrcp.pop %v2733
        %v4066 = vrcp.pop %v2736
        %v4067 = vrcp.pop %v2739
        %v4068 = vmul.f32 %v2813, %v4036
        %v4069 = vmul.f32 %v2818, %v4037
        %v4070 = vmul.f32 %v2894, %v4038
        %v4071 = vmul.f32 %v2899, %v4039
        %v4072 = vmul.f32 %v2975, %v4040
        %v4073 = vmul.f32 %v2980, %v4041
        %v4074 = vmul.f32 %v3056, %v4042
        %v4075 = vmul.f32 %v3061, %v4043
        %v4076 = vmul.f32 %v3137, %v4044
        %v4077 = vmul.f32 %v3142, %v4045
        %v4078 = vmul.f32 %v3218, %v4046
        %v4079 = vmul.f32 %v3223, %v4047
        %v4080 = vmul.f32 %v3299, %v4048
        %v4081 = vmul.f32 %v3304, %v4049
        %v4082 = vmul.f32 %v3380, %v4050
        %v4083 = vmul.f32 %v3385, %v4051
        %v4084 = vmul.f32 %v3461, %v4052
        %v4085 = vmul.f32 %v3466, %v4053
        %v4086 = vmul.f32 %v3542, %v4054
        %v4087 = vmul.f32 %v3547, %v4055
        %v4088 = vmul.f32 %v3623, %v4056
        %v4089 = vmul.f32 %v3628, %v4057
        %v4090 = vmul.f32 %v3704, %v4058
        %v4091 = vmul.f32 %v3709, %v4059
        %v4092 = vmul.f32 %v3785, %v4060
        %v4093 = vmul.f32 %v3790, %v4061
        %v4094 = vmul.f32 %v3866, %v4062
        %v4095 = vmul.f32 %v3871, %v4063
        %v4096 = vmul.f32 %v3947, %v4064
        %v4097 = vmul.f32 %v3952, %v4065
        %v4098 = vmul.f32 %v4028, %v4066
        %v4099 = vmul.f32 %v4033, %v4067
        %4108 = vrot.lane.b32.xlu0 %v4076, 32
        %v4109 = vpop.permute.xlu0 %4108
        %4110 = vrot.lane.b32.xlu0 %v4077, 32
        %v4111 = vpop.permute.xlu0 %4110
        %4112 = vrot.lane.b32.xlu0 %v4078, 32
        %v4113 = vpop.permute.xlu0 %4112
        %4114 = vrot.lane.b32.xlu0 %v4079, 32
        %v4115 = vpop.permute.xlu0 %4114
        %4116 = vrot.lane.b32.xlu0 %v4080, 32
        %v4117 = vpop.permute.xlu0 %4116
        %4118 = vrot.lane.b32.xlu0 %v4081, 32
        %v4119 = vpop.permute.xlu0 %4118
        %4120 = vrot.lane.b32.xlu0 %v4082, 32
        %v4121 = vpop.permute.xlu0 %4120
        %4122 = vrot.lane.b32.xlu0 %v4083, 32
        %v4123 = vpop.permute.xlu0 %4122
        %4140 = vrot.lane.b32.xlu0 %v4084, 64
        %v4141 = vpop.permute.xlu0 %4140
        %4142 = vrot.lane.b32.xlu0 %v4085, 64
        %v4143 = vpop.permute.xlu0 %4142
        %4144 = vrot.lane.b32.xlu0 %v4086, 64
        %v4145 = vpop.permute.xlu0 %4144
        %4146 = vrot.lane.b32.xlu0 %v4087, 64
        %v4147 = vpop.permute.xlu0 %4146
        %4148 = vrot.lane.b32.xlu0 %v4088, 64
        %v4149 = vpop.permute.xlu0 %4148
        %4150 = vrot.lane.b32.xlu0 %v4089, 64
        %v4151 = vpop.permute.xlu0 %4150
        %4152 = vrot.lane.b32.xlu0 %v4090, 64
        %v4153 = vpop.permute.xlu0 %4152
        %4154 = vrot.lane.b32.xlu0 %v4091, 64
        %v4155 = vpop.permute.xlu0 %4154
        %4172 = vrot.lane.b32.xlu0 %v4092, 96
        %v4173 = vpop.permute.xlu0 %4172
        %4174 = vrot.lane.b32.xlu0 %v4093, 96
        %v4175 = vpop.permute.xlu0 %4174
        %4176 = vrot.lane.b32.xlu0 %v4094, 96
        %v4177 = vpop.permute.xlu0 %4176
        %4178 = vrot.lane.b32.xlu0 %v4095, 96
        %v4179 = vpop.permute.xlu0 %4178
        %4180 = vrot.lane.b32.xlu0 %v4096, 96
        %v4181 = vpop.permute.xlu0 %4180
        %4182 = vrot.lane.b32.xlu0 %v4097, 96
        %v4183 = vpop.permute.xlu0 %4182
        %4184 = vrot.lane.b32.xlu0 %v4098, 96
        %v4185 = vpop.permute.xlu0 %4184
        %4186 = vrot.lane.b32.xlu0 %v4099, 96
        %v4187 = vpop.permute.xlu0 %4186
        %v4196 = vsel %vm1122, %v4068, %v4109
        %v4197 = vsel %vm1122, %v4069, %v4111
        %v4198 = vsel %vm1122, %v4070, %v4113
        %v4199 = vsel %vm1122, %v4071, %v4115
        %v4200 = vsel %vm1122, %v4072, %v4117
        %v4201 = vsel %vm1122, %v4073, %v4119
        %v4202 = vsel %vm1122, %v4074, %v4121
        %v4203 = vsel %vm1122, %v4075, %v4123
        %vm4204 = vcmask 523264
        %v4205 = vsel %vm4204, %v4196, %v4141
        %v4206 = vsel %vm4204, %v4197, %v4143
        %v4207 = vsel %vm4204, %v4198, %v4145
        %v4208 = vsel %vm4204, %v4199, %v4147
        %v4209 = vsel %vm4204, %v4200, %v4149
        %v4210 = vsel %vm4204, %v4201, %v4151
        %v4211 = vsel %vm4204, %v4202, %v4153
        %v4212 = vsel %vm4204, %v4203, %v4155
        %vm4213 = vcmask 785408
        %v4214 = vsel %vm4213, %v4205, %v4173
        %v4215 = vsel %vm4213, %v4206, %v4175
        %v4216 = vsel %vm4213, %v4207, %v4177
        %v4217 = vsel %vm4213, %v4208, %v4179
        %v4218 = vsel %vm4213, %v4209, %v4181
        %v4219 = vsel %vm4213, %v4210, %v4183
        %v4220 = vsel %vm4213, %v4211, %v4185
        %v4221 = vsel %vm4213, %v4212, %v4187
        %v4222 = vld [vmem:[#allocation7] sm:$0xff]
        %v4223 = vld [vmem:[#allocation7 + $0x8] sm:$0xff]
        %v4224 = vld [vmem:[#allocation7 + $0x10] sm:$0xff]
        %v4225 = vld [vmem:[#allocation7 + $0x18] sm:$0xff]
        %v4226 = vld [vmem:[#allocation7 + $0x20] sm:$0xff]
        %v4227 = vld [vmem:[#allocation7 + $0x28] sm:$0xff]
        %v4228 = vld [vmem:[#allocation7 + $0x30] sm:$0xff]
        %v4229 = vld [vmem:[#allocation7 + $0x38] sm:$0xff]
        %v4230 = vld [vmem:[#allocation7 + $0x40] sm:$0xff]
        %v4231 = vld [vmem:[#allocation7 + $0x48] sm:$0xff]
        %v4232 = vld [vmem:[#allocation7 + $0x50] sm:$0xff]
        %v4233 = vld [vmem:[#allocation7 + $0x58] sm:$0xff]
        %v4234 = vld [vmem:[#allocation7 + $0x60] sm:$0xff]
        %v4235 = vld [vmem:[#allocation7 + $0x68] sm:$0xff]
        %v4236 = vld [vmem:[#allocation7 + $0x70] sm:$0xff]
        %v4237 = vld [vmem:[#allocation7 + $0x78] sm:$0xff]
        %v4238 = vld [vmem:[%s4] sm:$0x1]
        %v4240 = vlaneseq
        %v4241 = vshrl.u32 %v4240, 7
        %v4242 = vsub.s32 0, %v4241
        %v4243 = vrot.slane %v4238, %v4242
        %4245 = vmatprep.subr.mxu0 0.0
        %4246 = vmatpush1.msra.mxu0 %v4222
        %4247 = vmatprep.subr.mxu0 0.0
        %4248 = vmatpush1.msra.mxu0 %v4223
        %4249 = vmatprep.subr.mxu0 0.0
        %4250 = vmatpush1.msra.mxu0 %v4224
        %4251 = vmatprep.subr.mxu0 0.0
        %4252 = vmatpush1.msra.mxu0 %v4225
        %4253 = vmatprep.subr.mxu0 0.0
        %4254 = vmatpush1.msra.mxu0 %v4226
        %4255 = vmatprep.subr.mxu0 0.0
        %4256 = vmatpush1.msra.mxu0 %v4227
        %4257 = vmatprep.subr.mxu0 0.0
        %4258 = vmatpush1.msra.mxu0 %v4228
        %4259 = vmatprep.subr.mxu0 0.0
        %4260 = vmatpush1.msra.mxu0 %v4229
        %4261 = vmatprep.subr.mxu0 0.0
        %4262 = vmatpush1.msra.mxu0 %v4230
        %4263 = vmatprep.subr.mxu0 0.0
        %4264 = vmatpush1.msra.mxu0 %v4231
        %4265 = vmatprep.subr.mxu0 0.0
        %4266 = vmatpush1.msra.mxu0 %v4232
        %4267 = vmatprep.subr.mxu0 0.0
        %4268 = vmatpush1.msra.mxu0 %v4233
        %4269 = vmatprep.subr.mxu0 0.0
        %4270 = vmatpush1.msra.mxu0 %v4234
        %4271 = vmatprep.subr.mxu0 0.0
        %4272 = vmatpush1.msra.mxu0 %v4235
        %4273 = vmatprep.subr.mxu0 0.0
        %4274 = vmatpush1.msra.mxu0 %v4236
        %4275 = vmatprep.subr.mxu0 0.0
        %4276 = vmatpush1.msra.mxu0 %v4237
        %4277 = vmatprep.subr.mxu0 0.0
        %4278 = vmatpush1.msra.mxu0 0.0
        %4279 = vmatprep.subr.mxu0 0.0
        %4280 = vmatpush1.msra.mxu0 0.0
        %4281 = vmatprep.subr.mxu0 0.0
        %4282 = vmatpush1.msra.mxu0 0.0
        %4283 = vmatprep.subr.mxu0 0.0
        %4284 = vmatpush1.msra.mxu0 0.0
        %4285 = vmatprep.subr.mxu0 0.0
        %4286 = vmatpush1.msra.mxu0 0.0
        %4287 = vmatprep.subr.mxu0 0.0
        %4288 = vmatpush1.msra.mxu0 0.0
        %4289 = vmatprep.subr.mxu0 0.0
        %4290 = vmatpush1.msra.mxu0 0.0
        %4291 = vmatprep.subr.mxu0 0.0
        %4292 = vmatpush1.msra.mxu0 0.0
        %4293 = vmatprep.subr.mxu0 0.0
        %4294 = vmatpush1.msra.mxu0 0.0
        %4295 = vmatprep.subr.mxu0 0.0
        %4296 = vmatpush1.msra.mxu0 0.0
        %4297 = vmatprep.subr.mxu0 0.0
        %4298 = vmatpush1.msra.mxu0 0.0
        %4299 = vmatprep.subr.mxu0 0.0
        %4300 = vmatpush1.msra.mxu0 0.0
        %4301 = vmatprep.subr.mxu0 0.0
        %4302 = vmatpush1.msra.mxu0 0.0
        %4303 = vmatprep.subr.mxu0 0.0
        %4304 = vmatpush1.msra.mxu0 0.0
        %4305 = vmatprep.subr.mxu0 0.0
        %4306 = vmatpush1.msra.mxu0 0.0
        %4307 = vmatprep.subr.mxu0 0.0
        %4308 = vmatpush1.msra.mxu0 0.0
        %4309 = vmatprep.mubr.f32.mxu0 0.0
        %4310 = vmatmul.mubr.f32.gmra.mrb[0].mxu0 %v4214
        %v4311 = vpop.f32.mrb[0].mxu0
        %v4312 = vadd.f32 %v4243, %v4311
        %v4313 = vpop.f32.mrb[0].mxu0
        %4314 = vmatprep.mubr.f32.mxu0 0.0
        %4315 = vmatmul.mubr.f32.gmra.mrb[0].mxu0 %v4215
        %v4316 = vpop.f32.mrb[0].mxu0
        %v4317 = vadd.f32 %v4243, %v4316
        %v4318 = vpop.f32.mrb[0].mxu0
        %4319 = vmatprep.mubr.f32.mxu0 0.0
        %4320 = vmatmul.mubr.f32.gmra.mrb[0].mxu0 %v4216
        %v4321 = vpop.f32.mrb[0].mxu0
        %v4322 = vadd.f32 %v4243, %v4321
        %v4323 = vpop.f32.mrb[0].mxu0
        %4324 = vmatprep.mubr.f32.mxu0 0.0
        %4325 = vmatmul.mubr.f32.gmra.mrb[0].mxu0 %v4217
        %v4326 = vpop.f32.mrb[0].mxu0
        %v4327 = vadd.f32 %v4243, %v4326
        %v4328 = vpop.f32.mrb[0].mxu0
        %4329 = vmatprep.mubr.f32.mxu0 0.0
        %4330 = vmatmul.mubr.f32.gmra.mrb[0].mxu0 %v4218
        %v4331 = vpop.f32.mrb[0].mxu0
        %v4332 = vadd.f32 %v4243, %v4331
        %v4333 = vpop.f32.mrb[0].mxu0
        %4334 = vmatprep.mubr.f32.mxu0 0.0
        %4335 = vmatmul.mubr.f32.gmra.mrb[0].mxu0 %v4219
        %v4336 = vpop.f32.mrb[0].mxu0
        %v4337 = vadd.f32 %v4243, %v4336
        %v4338 = vpop.f32.mrb[0].mxu0
        %4339 = vmatprep.mubr.f32.mxu0 0.0
        %4340 = vmatmul.mubr.f32.gmra.mrb[0].mxu0 %v4220
        %v4341 = vpop.f32.mrb[0].mxu0
        %v4342 = vadd.f32 %v4243, %v4341
        %v4343 = vpop.f32.mrb[0].mxu0
        %4344 = vmatprep.mubr.f32.mxu0 0.0
        %4345 = vmatmul.mubr.f32.gmra.mrb[0].mxu0 %v4221
        %v4346 = vpop.f32.mrb[0].mxu0
        %v4347 = vadd.f32 %v4243, %v4346
        %v4348 = vpop.f32.mrb[0].mxu0
        %4349 = vdwg.mxu0
        %v4350 = vadd.f32 %v520, %v4312
        %v4351 = vadd.f32 %v521, %v4317
        %v4352 = vadd.f32 %v522, %v4322
        %v4353 = vadd.f32 %v523, %v4327
        %v4354 = vadd.f32 %v524, %v4332
        %v4355 = vadd.f32 %v525, %v4337
        %v4356 = vadd.f32 %v526, %v4342
        %v4357 = vadd.f32 %v527, %v4347
        %v4358 = vld [vmem:[%s11] sm:$0x1]
        %v4359 = vld [vmem:[%s12] sm:$0x1]
        %4360 = vadd.xlane.f32.xlu0 %v4350
        %v4361 = vpop.xlane.xlu0 %4360
        %4362 = vadd.xlane.f32.xlu0 %v4351
        %v4363 = vpop.xlane.xlu0 %4362
        %4364 = vadd.xlane.f32.xlu0 %v4352
        %v4365 = vpop.xlane.xlu0 %4364
        %4366 = vadd.xlane.f32.xlu0 %v4353
        %v4367 = vpop.xlane.xlu0 %4366
        %4368 = vadd.xlane.f32.xlu0 %v4354
        %v4369 = vpop.xlane.xlu0 %4368
        %4370 = vadd.xlane.f32.xlu0 %v4355
        %v4371 = vpop.xlane.xlu0 %4370
        %4372 = vadd.xlane.f32.xlu0 %v4356
        %v4373 = vpop.xlane.xlu0 %4372
        %4374 = vadd.xlane.f32.xlu0 %v4357
        %v4375 = vpop.xlane.xlu0 %4374
        %v4376 = vmul.f32 %v4361, %v546
        %v4377 = vmul.f32 %v4363, %v546
        %v4378 = vmul.f32 %v4365, %v546
        %v4379 = vmul.f32 %v4367, %v546
        %v4380 = vmul.f32 %v4369, %v546
        %v4381 = vmul.f32 %v4371, %v546
        %v4382 = vmul.f32 %v4373, %v546
        %v4383 = vmul.f32 %v4375, %v546
        %v4384 = vsub.f32 %v4350, %v4376
        %v4385 = vsub.f32 %v4351, %v4377
        %v4386 = vsub.f32 %v4352, %v4378
        %v4387 = vsub.f32 %v4353, %v4379
        %v4388 = vsub.f32 %v4354, %v4380
        %v4389 = vsub.f32 %v4355, %v4381
        %v4390 = vsub.f32 %v4356, %v4382
        %v4391 = vsub.f32 %v4357, %v4383
        %v4392 = vmul.f32 %v4384, %v4384
        %v4393 = vmul.f32 %v4385, %v4385
        %v4394 = vmul.f32 %v4386, %v4386
        %v4395 = vmul.f32 %v4387, %v4387
        %v4396 = vmul.f32 %v4388, %v4388
        %v4397 = vmul.f32 %v4389, %v4389
        %v4398 = vmul.f32 %v4390, %v4390
        %v4399 = vmul.f32 %v4391, %v4391
        %4400 = vadd.xlane.f32.xlu0 %v4392
        %v4401 = vpop.xlane.xlu0 %4400
        %4402 = vadd.xlane.f32.xlu0 %v4393
        %v4403 = vpop.xlane.xlu0 %4402
        %4404 = vadd.xlane.f32.xlu0 %v4394
        %v4405 = vpop.xlane.xlu0 %4404
        %4406 = vadd.xlane.f32.xlu0 %v4395
        %v4407 = vpop.xlane.xlu0 %4406
        %4408 = vadd.xlane.f32.xlu0 %v4396
        %v4409 = vpop.xlane.xlu0 %4408
        %4410 = vadd.xlane.f32.xlu0 %v4397
        %v4411 = vpop.xlane.xlu0 %4410
        %4412 = vadd.xlane.f32.xlu0 %v4398
        %v4413 = vpop.xlane.xlu0 %4412
        %4414 = vadd.xlane.f32.xlu0 %v4399
        %v4415 = vpop.xlane.xlu0 %4414
        %v4416 = vmul.f32 %v4401, %v546
        %v4417 = vmul.f32 %v4403, %v546
        %v4418 = vmul.f32 %v4405, %v546
        %v4419 = vmul.f32 %v4407, %v546
        %v4420 = vmul.f32 %v4409, %v546
        %v4421 = vmul.f32 %v4411, %v546
        %v4422 = vmul.f32 %v4413, %v546
        %v4423 = vmul.f32 %v4415, %v546
        %v4424 = vadd.f32 %v4416, 1e-05
        %v4425 = vadd.f32 %v4417, 1e-05
        %v4426 = vadd.f32 %v4418, 1e-05
        %v4427 = vadd.f32 %v4419, 1e-05
        %v4428 = vadd.f32 %v4420, 1e-05
        %v4429 = vadd.f32 %v4421, 1e-05
        %v4430 = vadd.f32 %v4422, 1e-05
        %v4431 = vadd.f32 %v4423, 1e-05
        %v4432 = vrsqrt.pop %v4424
        %v4433 = vrsqrt.pop %v4425
        %v4434 = vrsqrt.pop %v4426
        %v4435 = vrsqrt.pop %v4427
        %v4436 = vrsqrt.pop %v4428
        %v4437 = vrsqrt.pop %v4429
        %v4438 = vrsqrt.pop %v4430
        %v4439 = vrsqrt.pop %v4431
        %v4440 = vmul.f32 %v4384, %v4432
        %v4441 = vmul.f32 %v4385, %v4433
        %v4442 = vmul.f32 %v4386, %v4434
        %v4443 = vmul.f32 %v4387, %v4435
        %v4444 = vmul.f32 %v4388, %v4436
        %v4445 = vmul.f32 %v4389, %v4437
        %v4446 = vmul.f32 %v4390, %v4438
        %v4447 = vmul.f32 %v4391, %v4439
        %v4449 = vlaneseq
        %v4450 = vshrl.u32 %v4449, 7
        %v4451 = vsub.s32 0, %v4450
        %v4452 = vrot.slane %v4358, %v4451
        %v4454 = vmul.f32 %v4440, %v4452
        %v4455 = vmul.f32 %v4441, %v4452
        %v4456 = vmul.f32 %v4442, %v4452
        %v4457 = vmul.f32 %v4443, %v4452
        %v4458 = vmul.f32 %v4444, %v4452
        %v4459 = vmul.f32 %v4445, %v4452
        %v4460 = vmul.f32 %v4446, %v4452
        %v4461 = vmul.f32 %v4447, %v4452
        %v4463 = vlaneseq
        %v4464 = vshrl.u32 %v4463, 7
        %v4465 = vsub.s32 0, %v4464
        %v4466 = vrot.slane %v4359, %v4465
        %v4468 = vadd.f32 %v4454, %v4466
        %v4469 = vadd.f32 %v4455, %v4466
        %v4470 = vadd.f32 %v4456, %v4466
        %v4471 = vadd.f32 %v4457, %v4466
        %v4472 = vadd.f32 %v4458, %v4466
        %v4473 = vadd.f32 %v4459, %v4466
        %v4474 = vadd.f32 %v4460, %v4466
        %v4475 = vadd.f32 %v4461, %v4466
        %v4476 = vld [vmem:[#allocation8] sm:$0xff]
        %v4477 = vld [vmem:[#allocation8 + $0x8] sm:$0xff]
        %v4478 = vld [vmem:[#allocation8 + $0x10] sm:$0xff]
        %v4479 = vld [vmem:[#allocation8 + $0x18] sm:$0xff]
        %v4480 = vld [vmem:[#allocation8 + $0x20] sm:$0xff]
        %v4481 = vld [vmem:[#allocation8 + $0x28] sm:$0xff]
        %v4482 = vld [vmem:[#allocation8 + $0x30] sm:$0xff]
        %v4483 = vld [vmem:[#allocation8 + $0x38] sm:$0xff]
        %v4484 = vld [vmem:[#allocation8 + $0x40] sm:$0xff]
        %v4485 = vld [vmem:[#allocation8 + $0x48] sm:$0xff]
        %v4486 = vld [vmem:[#allocation8 + $0x50] sm:$0xff]
        %v4487 = vld [vmem:[#allocation8 + $0x58] sm:$0xff]
        %v4488 = vld [vmem:[#allocation8 + $0x60] sm:$0xff]
        %v4489 = vld [vmem:[#allocation8 + $0x68] sm:$0xff]
        %v4490 = vld [vmem:[#allocation8 + $0x70] sm:$0xff]
        %v4491 = vld [vmem:[#allocation8 + $0x78] sm:$0xff]
        %v4492 = vld [vmem:[#allocation8 + $0x80] sm:$0xff]
        %v4493 = vld [vmem:[#allocation8 + $0x88] sm:$0xff]
        %v4494 = vld [vmem:[#allocation8 + $0x90] sm:$0xff]
        %v4495 = vld [vmem:[#allocation8 + $0x98] sm:$0xff]
        %v4496 = vld [vmem:[#allocation8 + $0xa0] sm:$0xff]
        %v4497 = vld [vmem:[#allocation8 + $0xa8] sm:$0xff]
        %v4498 = vld [vmem:[#allocation8 + $0xb0] sm:$0xff]
        %v4499 = vld [vmem:[#allocation8 + $0xb8] sm:$0xff]
        %v4500 = vld [vmem:[#allocation8 + $0xc0] sm:$0xff]
        %v4501 = vld [vmem:[#allocation8 + $0xc8] sm:$0xff]
        %v4502 = vld [vmem:[#allocation8 + $0xd0] sm:$0xff]
        %v4503 = vld [vmem:[#allocation8 + $0xd8] sm:$0xff]
        %v4504 = vld [vmem:[#allocation8 + $0xe0] sm:$0xff]
        %v4505 = vld [vmem:[#allocation8 + $0xe8] sm:$0xff]
        %v4506 = vld [vmem:[#allocation8 + $0xf0] sm:$0xff]
        %v4507 = vld [vmem:[#allocation8 + $0xf8] sm:$0xff]
        %v4508 = vld [vmem:[%s6] sm:$0x3]
        %v4510 = vlaneseq
        %v4511 = vshrl.u32 %v4510, 7
        %v4512 = vsub.s32 0, %v4511
        %v4513 = vrot.slane %v4508, %v4512
        %v4514 = vlaneseq
        %v4515 = vshrl.u32 %v4514, 7
        %v4516 = vsub.s32 1, %v4515
        %v4517 = vrot.slane %v4508, %v4516
        %4520 = vmatprep.subr.mxu0 %v4477
        %4521 = vmatpush1.msra.mxu0 %v4476
        %4522 = vmatprep.subr.mxu0 %v4479
        %4523 = vmatpush1.msra.mxu0 %v4478
        %4524 = vmatprep.subr.mxu0 %v4481
        %4525 = vmatpush1.msra.mxu0 %v4480
        %4526 = vmatprep.subr.mxu0 %v4483
        %4527 = vmatpush1.msra.mxu0 %v4482
        %4528 = vmatprep.subr.mxu0 %v4485
        %4529 = vmatpush1.msra.mxu0 %v4484
        %4530 = vmatprep.subr.mxu0 %v4487
        %4531 = vmatpush1.msra.mxu0 %v4486
        %4532 = vmatprep.subr.mxu0 %v4489
        %4533 = vmatpush1.msra.mxu0 %v4488
        %4534 = vmatprep.subr.mxu0 %v4491
        %4535 = vmatpush1.msra.mxu0 %v4490
        %4536 = vmatprep.subr.mxu0 %v4493
        %4537 = vmatpush1.msra.mxu0 %v4492
        %4538 = vmatprep.subr.mxu0 %v4495
        %4539 = vmatpush1.msra.mxu0 %v4494
        %4540 = vmatprep.subr.mxu0 %v4497
        %4541 = vmatpush1.msra.mxu0 %v4496
        %4542 = vmatprep.subr.mxu0 %v4499
        %4543 = vmatpush1.msra.mxu0 %v4498
        %4544 = vmatprep.subr.mxu0 %v4501
        %4545 = vmatpush1.msra.mxu0 %v4500
        %4546 = vmatprep.subr.mxu0 %v4503
        %4547 = vmatpush1.msra.mxu0 %v4502
        %4548 = vmatprep.subr.mxu0 %v4505
        %4549 = vmatpush1.msra.mxu0 %v4504
        %4550 = vmatprep.subr.mxu0 %v4507
        %4551 = vmatpush1.msra.mxu0 %v4506
        %4552 = vmatprep.subr.mxu0 0.0
        %4553 = vmatpush1.msra.mxu0 0.0
        %4554 = vmatprep.subr.mxu0 0.0
        %4555 = vmatpush1.msra.mxu0 0.0
        %4556 = vmatprep.subr.mxu0 0.0
        %4557 = vmatpush1.msra.mxu0 0.0
        %4558 = vmatprep.subr.mxu0 0.0
        %4559 = vmatpush1.msra.mxu0 0.0
        %4560 = vmatprep.subr.mxu0 0.0
        %4561 = vmatpush1.msra.mxu0 0.0
        %4562 = vmatprep.subr.mxu0 0.0
        %4563 = vmatpush1.msra.mxu0 0.0
        %4564 = vmatprep.subr.mxu0 0.0
        %4565 = vmatpush1.msra.mxu0 0.0
        %4566 = vmatprep.subr.mxu0 0.0
        %4567 = vmatpush1.msra.mxu0 0.0
        %4568 = vmatprep.subr.mxu0 0.0
        %4569 = vmatpush1.msra.mxu0 0.0
        %4570 = vmatprep.subr.mxu0 0.0
        %4571 = vmatpush1.msra.mxu0 0.0
        %4572 = vmatprep.subr.mxu0 0.0
        %4573 = vmatpush1.msra.mxu0 0.0
        %4574 = vmatprep.subr.mxu0 0.0
        %4575 = vmatpush1.msra.mxu0 0.0
        %4576 = vmatprep.subr.mxu0 0.0
        %4577 = vmatpush1.msra.mxu0 0.0
        %4578 = vmatprep.subr.mxu0 0.0
        %4579 = vmatpush1.msra.mxu0 0.0
        %4580 = vmatprep.subr.mxu0 0.0
        %4581 = vmatpush1.msra.mxu0 0.0
        %4582 = vmatprep.subr.mxu0 0.0
        %4583 = vmatpush1.msra.mxu0 0.0
        %4584 = vmatprep.mubr.f32.mxu0 0.0
        %4585 = vmatmul.mubr.f32.gmra.mrb[0].mxu0 %v4468
        %v4586 = vpop.f32.mrb[0].mxu0
        %v4587 = vadd.f32 %v4513, %v4586
        %v4588 = vpop.f32.mrb[0].mxu0
        %v4589 = vadd.f32 %v4517, %v4588
        %4590 = vmatprep.mubr.f32.mxu0 0.0
        %4591 = vmatmul.mubr.f32.gmra.mrb[0].mxu0 %v4469
        %v4592 = vpop.f32.mrb[0].mxu0
        %v4593 = vadd.f32 %v4513, %v4592
        %v4594 = vpop.f32.mrb[0].mxu0
        %v4595 = vadd.f32 %v4517, %v4594
        %4596 = vmatprep.mubr.f32.mxu0 0.0
        %4597 = vmatmul.mubr.f32.gmra.mrb[0].mxu0 %v4470
        %v4598 = vpop.f32.mrb[0].mxu0
        %v4599 = vadd.f32 %v4513, %v4598
        %v4600 = vpop.f32.mrb[0].mxu0
        %v4601 = vadd.f32 %v4517, %v4600
        %4602 = vmatprep.mubr.f32.mxu0 0.0
        %4603 = vmatmul.mubr.f32.gmra.mrb[0].mxu0 %v4471
        %v4604 = vpop.f32.mrb[0].mxu0
        %v4605 = vadd.f32 %v4513, %v4604
        %v4606 = vpop.f32.mrb[0].mxu0
        %v4607 = vadd.f32 %v4517, %v4606
        %4608 = vmatprep.mubr.f32.mxu0 0.0
        %4609 = vmatmul.mubr.f32.gmra.mrb[0].mxu0 %v4472
        %v4610 = vpop.f32.mrb[0].mxu0
        %v4611 = vadd.f32 %v4513, %v4610
        %v4612 = vpop.f32.mrb[0].mxu0
        %v4613 = vadd.f32 %v4517, %v4612
        %4614 = vmatprep.mubr.f32.mxu0 0.0
        %4615 = vmatmul.mubr.f32.gmra.mrb[0].mxu0 %v4473
        %v4616 = vpop.f32.mrb[0].mxu0
        %v4617 = vadd.f32 %v4513, %v4616
        %v4618 = vpop.f32.mrb[0].mxu0
        %v4619 = vadd.f32 %v4517, %v4618
        %4620 = vmatprep.mubr.f32.mxu0 0.0
        %4621 = vmatmul.mubr.f32.gmra.mrb[0].mxu0 %v4474
        %v4622 = vpop.f32.mrb[0].mxu0
        %v4623 = vadd.f32 %v4513, %v4622
        %v4624 = vpop.f32.mrb[0].mxu0
        %v4625 = vadd.f32 %v4517, %v4624
        %4626 = vmatprep.mubr.f32.mxu0 0.0
        %4627 = vmatmul.mubr.f32.gmra.mrb[0].mxu0 %v4475
        %v4628 = vpop.f32.mrb[0].mxu0
        %v4629 = vadd.f32 %v4513, %v4628
        %v4630 = vpop.f32.mrb[0].mxu0
        %v4631 = vadd.f32 %v4517, %v4630
        %4632 = vdwg.mxu0
        %v4633 = vmax.f32 %v4587, 0.0
        %v4634 = vmax.f32 %v4589, 0.0
        %v4635 = vmax.f32 %v4593, 0.0
        %v4636 = vmax.f32 %v4595, 0.0
        %v4637 = vmax.f32 %v4599, 0.0
        %v4638 = vmax.f32 %v4601, 0.0
        %v4639 = vmax.f32 %v4605, 0.0
        %v4640 = vmax.f32 %v4607, 0.0
        %v4641 = vmax.f32 %v4611, 0.0
        %v4642 = vmax.f32 %v4613, 0.0
        %v4643 = vmax.f32 %v4617, 0.0
        %v4644 = vmax.f32 %v4619, 0.0
        %v4645 = vmax.f32 %v4623, 0.0
        %v4646 = vmax.f32 %v4625, 0.0
        %v4647 = vmax.f32 %v4629, 0.0
        %v4648 = vmax.f32 %v4631, 0.0
        %v4649 = vld [vmem:[#allocation10] sm:$0xff]
        %v4650 = vld [vmem:[#allocation10 + $0x8] sm:$0xff]
        %v4651 = vld [vmem:[#allocation10 + $0x10] sm:$0xff]
        %v4652 = vld [vmem:[#allocation10 + $0x18] sm:$0xff]
        %v4653 = vld [vmem:[#allocation10 + $0x20] sm:$0xff]
        %v4654 = vld [vmem:[#allocation10 + $0x28] sm:$0xff]
        %v4655 = vld [vmem:[#allocation10 + $0x30] sm:$0xff]
        %v4656 = vld [vmem:[#allocation10 + $0x38] sm:$0xff]
        %v4657 = vld [vmem:[#allocation10 + $0x40] sm:$0xff]
        %v4658 = vld [vmem:[#allocation10 + $0x48] sm:$0xff]
        %v4659 = vld [vmem:[#allocation10 + $0x50] sm:$0xff]
        %v4660 = vld [vmem:[#allocation10 + $0x58] sm:$0xff]
        %v4661 = vld [vmem:[#allocation10 + $0x60] sm:$0xff]
        %v4662 = vld [vmem:[#allocation10 + $0x68] sm:$0xff]
        %v4663 = vld [vmem:[#allocation10 + $0x70] sm:$0xff]
        %v4664 = vld [vmem:[#allocation10 + $0x78] sm:$0xff]
        %v4665 = vld [vmem:[#allocation10 + $0x80] sm:$0xff]
        %v4666 = vld [vmem:[#allocation10 + $0x88] sm:$0xff]
        %v4667 = vld [vmem:[#allocation10 + $0x90] sm:$0xff]
        %v4668 = vld [vmem:[#allocation10 + $0x98] sm:$0xff]
        %v4669 = vld [vmem:[#allocation10 + $0xa0] sm:$0xff]
        %v4670 = vld [vmem:[#allocation10 + $0xa8] sm:$0xff]
        %v4671 = vld [vmem:[#allocation10 + $0xb0] sm:$0xff]
        %v4672 = vld [vmem:[#allocation10 + $0xb8] sm:$0xff]
        %v4673 = vld [vmem:[#allocation10 + $0xc0] sm:$0xff]
        %v4674 = vld [vmem:[#allocation10 + $0xc8] sm:$0xff]
        %v4675 = vld [vmem:[#allocation10 + $0xd0] sm:$0xff]
        %v4676 = vld [vmem:[#allocation10 + $0xd8] sm:$0xff]
        %v4677 = vld [vmem:[#allocation10 + $0xe0] sm:$0xff]
        %v4678 = vld [vmem:[#allocation10 + $0xe8] sm:$0xff]
        %v4679 = vld [vmem:[#allocation10 + $0xf0] sm:$0xff]
        %v4680 = vld [vmem:[#allocation10 + $0xf8] sm:$0xff]
        %v4681 = vld [vmem:[%s8] sm:$0x1]
        %v4683 = vlaneseq
        %v4684 = vshrl.u32 %v4683, 7
        %v4685 = vsub.s32 0, %v4684
        %v4686 = vrot.slane %v4681, %v4685
        %4688 = vmatprep.subr.mxu0 0.0
        %4689 = vmatpush1.msra.mxu0 %v4649
        %4690 = vmatprep.subr.mxu0 0.0
        %4691 = vmatpush1.msra.mxu0 %v4650
        %4692 = vmatprep.subr.mxu0 0.0
        %4693 = vmatpush1.msra.mxu0 %v4651
        %4694 = vmatprep.subr.mxu0 0.0
        %4695 = vmatpush1.msra.mxu0 %v4652
        %4696 = vmatprep.subr.mxu0 0.0
        %4697 = vmatpush1.msra.mxu0 %v4653
        %4698 = vmatprep.subr.mxu0 0.0
        %4699 = vmatpush1.msra.mxu0 %v4654
        %4700 = vmatprep.subr.mxu0 0.0
        %4701 = vmatpush1.msra.mxu0 %v4655
        %4702 = vmatprep.subr.mxu0 0.0
        %4703 = vmatpush1.msra.mxu0 %v4656
        %4704 = vmatprep.subr.mxu0 0.0
        %4705 = vmatpush1.msra.mxu0 %v4657
        %4706 = vmatprep.subr.mxu0 0.0
        %4707 = vmatpush1.msra.mxu0 %v4658
        %4708 = vmatprep.subr.mxu0 0.0
        %4709 = vmatpush1.msra.mxu0 %v4659
        %4710 = vmatprep.subr.mxu0 0.0
        %4711 = vmatpush1.msra.mxu0 %v4660
        %4712 = vmatprep.subr.mxu0 0.0
        %4713 = vmatpush1.msra.mxu0 %v4661
        %4714 = vmatprep.subr.mxu0 0.0
        %4715 = vmatpush1.msra.mxu0 %v4662
        %4716 = vmatprep.subr.mxu0 0.0
        %4717 = vmatpush1.msra.mxu0 %v4663
        %4718 = vmatprep.subr.mxu0 0.0
        %4719 = vmatpush1.msra.mxu0 %v4664
        %4720 = vmatprep.subr.mxu0 0.0
        %4721 = vmatpush1.msra.mxu0 %v4665
        %4722 = vmatprep.subr.mxu0 0.0
        %4723 = vmatpush1.msra.mxu0 %v4666
        %4724 = vmatprep.subr.mxu0 0.0
        %4725 = vmatpush1.msra.mxu0 %v4667
        %4726 = vmatprep.subr.mxu0 0.0
        %4727 = vmatpush1.msra.mxu0 %v4668
        %4728 = vmatprep.subr.mxu0 0.0
        %4729 = vmatpush1.msra.mxu0 %v4669
        %4730 = vmatprep.subr.mxu0 0.0
        %4731 = vmatpush1.msra.mxu0 %v4670
        %4732 = vmatprep.subr.mxu0 0.0
        %4733 = vmatpush1.msra.mxu0 %v4671
        %4734 = vmatprep.subr.mxu0 0.0
        %4735 = vmatpush1.msra.mxu0 %v4672
        %4736 = vmatprep.subr.mxu0 0.0
        %4737 = vmatpush1.msra.mxu0 %v4673
        %4738 = vmatprep.subr.mxu0 0.0
        %4739 = vmatpush1.msra.mxu0 %v4674
        %4740 = vmatprep.subr.mxu0 0.0
        %4741 = vmatpush1.msra.mxu0 %v4675
        %4742 = vmatprep.subr.mxu0 0.0
        %4743 = vmatpush1.msra.mxu0 %v4676
        %4744 = vmatprep.subr.mxu0 0.0
        %4745 = vmatpush1.msra.mxu0 %v4677
        %4746 = vmatprep.subr.mxu0 0.0
        %4747 = vmatpush1.msra.mxu0 %v4678
        %4748 = vmatprep.subr.mxu0 0.0
        %4749 = vmatpush1.msra.mxu0 %v4679
        %4750 = vmatprep.subr.mxu0 0.0
        %4751 = vmatpush1.msra.mxu0 %v4680
        %4752 = vmatprep.mubr.f32.mxu0 %v4634
        %4753 = vmatmul.mubr.f32.gmra.mrb[0].mxu0 %v4633
        %v4754 = vpop.f32.mrb[0].mxu0
        %v4755 = vadd.f32 %v4686, %v4754
        %v4756 = vpop.f32.mrb[0].mxu0
        %4757 = vmatprep.mubr.f32.mxu0 %v4636
        %4758 = vmatmul.mubr.f32.gmra.mrb[0].mxu0 %v4635
        %v4759 = vpop.f32.mrb[0].mxu0
        %v4760 = vadd.f32 %v4686, %v4759
        %v4761 = vpop.f32.mrb[0].mxu0
        %4762 = vmatprep.mubr.f32.mxu0 %v4638
        %4763 = vmatmul.mubr.f32.gmra.mrb[0].mxu0 %v4637
        %v4764 = vpop.f32.mrb[0].mxu0
        %v4765 = vadd.f32 %v4686, %v4764
        %v4766 = vpop.f32.mrb[0].mxu0
        %4767 = vmatprep.mubr.f32.mxu0 %v4640
        %4768 = vmatmul.mubr.f32.gmra.mrb[0].mxu0 %v4639
        %v4769 = vpop.f32.mrb[0].mxu0
        %v4770 = vadd.f32 %v4686, %v4769
        %v4771 = vpop.f32.mrb[0].mxu0
        %4772 = vmatprep.mubr.f32.mxu0 %v4642
        %4773 = vmatmul.mubr.f32.gmra.mrb[0].mxu0 %v4641
        %v4774 = vpop.f32.mrb[0].mxu0
        %v4775 = vadd.f32 %v4686, %v4774
        %v4776 = vpop.f32.mrb[0].mxu0
        %4777 = vmatprep.mubr.f32.mxu0 %v4644
        %4778 = vmatmul.mubr.f32.gmra.mrb[0].mxu0 %v4643
        %v4779 = vpop.f32.mrb[0].mxu0
        %v4780 = vadd.f32 %v4686, %v4779
        %v4781 = vpop.f32.mrb[0].mxu0
        %4782 = vmatprep.mubr.f32.mxu0 %v4646
        %4783 = vmatmul.mubr.f32.gmra.mrb[0].mxu0 %v4645
        %v4784 = vpop.f32.mrb[0].mxu0
        %v4785 = vadd.f32 %v4686, %v4784
        %v4786 = vpop.f32.mrb[0].mxu0
        %4787 = vmatprep.mubr.f32.mxu0 %v4648
        %4788 = vmatmul.mubr.f32.gmra.mrb[0].mxu0 %v4647
        %v4789 = vpop.f32.mrb[0].mxu0
        %v4790 = vadd.f32 %v4686, %v4789
        %v4791 = vpop.f32.mrb[0].mxu0
        %4792 = vdwg.mxu0
        %v4793 = vadd.f32 %v4350, %v4755
        %v4794 = vadd.f32 %v4351, %v4760
        %v4795 = vadd.f32 %v4352, %v4765
        %v4796 = vadd.f32 %v4353, %v4770
        %v4797 = vadd.f32 %v4354, %v4775
        %v4798 = vadd.f32 %v4355, %v4780
        %v4799 = vadd.f32 %v4356, %v4785
        %v4800 = vadd.f32 %v4357, %v4790
        %4801 = vst [vmem:[%s517] sm:$0xff] %v4793
        %4802 = vst [vmem:[%s517 + $0x8] sm:$0xff] %v4794
        %4803 = vst [vmem:[%s517 + $0x10] sm:$0xff] %v4795
        %4804 = vst [vmem:[%s517 + $0x18] sm:$0xff] %v4796
        %4805 = vst [vmem:[%s517 + $0x20] sm:$0xff] %v4797
        %4806 = vst [vmem:[%s517 + $0x28] sm:$0xff] %v4798
        %4807 = vst [vmem:[%s517 + $0x30] sm:$0xff] %v4799
        %4808 = vst [vmem:[%s517 + $0x38] sm:$0xff] %v4800
        %s4809 = sand.u32 %s318, 1
        %s4810 = scalar_lea.sflag [#allocation4], %s4809
        %s4811 = sand.u32 %s318, 1
        %s4812 = smul.addr %s4811, 64
        %s4813 = scalar_lea.vmem [#allocation11], %s4812
        // Predicated region
        $region93: #{tpu_custom_call.1} parent=71 // pred_check
          %p4814 = pneg %p328
        $region94: #{tpu_custom_call.1} parent=71 // pred_check_branch
          %4816 = sbr.rel (%p4814) target = $region96
        $region95: #{tpu_custom_call.1} parent=71 // pred_region
          %s4817 = smul.u32 4, %s32
          %s4819 = ssub.s32 1024, 1024
          %4820 = vsyncadd %s4810, %s4819
          %s4821 = smul.addr %s4817, 2
          %s4822 = smul.addr %s4821, 128
          %s4823 = scalar_lea.hbm %s13, %s4822
          %s4824 = sshll.u32 %s4813, 4
          %s4825 = int_to_ptr.vmem [resolvable:$true] %s4824
          %4830 = dma.vmem_to_hbm [thread:$0]  %s4825, 1024, %s4823, %s4810, 128, 128, 8
        $region96: #{tpu_custom_call.1} parent=71 // pred_fallthru
          _
      $region72: #{tpu_custom_call.1} parent=5 // pred_fallthru
        _
      %p4831 = scmp.le.s32.totalorder 2, %s27
      // Predicated region
      $region97: #{tpu_custom_call.1} parent=5 // pred_check
        %p4832 = pneg %p4831
      $region98: #{tpu_custom_call.1} parent=5 // pred_check_branch
        %4834 = sbr.rel (%p4832) target = $region100
      $region99: #{tpu_custom_call.1} parent=5 // pred_region
        %s4835 = ssub.s32 %s27, 2
        // Predicated region
        $region101: #{tpu_custom_call.1} parent=99 // pred_check
          %p4836 = pneg %p334
        $region102: #{tpu_custom_call.1} parent=99 // pred_check_branch
          %4838 = sbr.rel (%p4836) target = $region104
        $region103: #{tpu_custom_call.1} parent=99 // pred_region
          %s4839 = sand.u32 %s319, 1
          %s4840 = scalar_lea.sflag [#allocation4], %s4839
          %s4841 = sand.u32 %s319, 1
          %s4842 = smul.addr %s4841, 64
          %s4843 = scalar_lea.vmem [#allocation11], %s4842
          %4844 = dma.done %s4840, 1024
        $region104: #{tpu_custom_call.1} parent=99 // pred_fallthru
          _
      $region100: #{tpu_custom_call.1} parent=5 // pred_fallthru
        _
    $region6: #{tpu_custom_call.1} parent=1 // loop_footer
      %s31 = sadd.s32 1, %s27
    $region7: #{tpu_custom_call.1} parent=1 // loop_footer_branch
      %26 = sbr.rel target = $region3
    $region8: #{tpu_custom_call.1} parent=1 // loop_exit
      _
    %4845 = vsyncpa [#allocation3], 1
    %s4846 = scalar_lea.sflag [#allocation3], 1
    %4847 = vsyncpa %s4846, 1
    %4848 = vsyncpa [#allocation6], 1
    %4849 = vsyncpa [#allocation9], 1
    %4850 = vsyncpa [#allocation4], 1
    %s4851 = scalar_lea.sflag [#allocation4], 1
    %4852 = vsyncpa %s4851, 1

// kernel: tpu_custom_call.1
$region0: #{tpu_custom_call.1}
  #allocation0 [shape = 'u32[]', space=smem, size = 0x4, offset = 0x4, fixed_abs, tag = 'smem constant byte address 0x4 - core index']
  #allocation1 [shape = 'u32[144,128]{1,0:T(1,128)}', space=vmem, size = 0x12000, scoped, tag = 'internal scratch']
  %s0 = inlined_call_operand.hbm [shape: f32[8,16,128], index: 0, kind: input, shape index: {}]
  %s1 = inlined_call_operand.hbm [shape: f32[128,384], index: 1, kind: input, shape index: {}]
  %s2 = inlined_call_operand.vmem [shape: f32[1,384], index: 2, kind: input, shape index: {}]
  %s3 = inlined_call_operand.hbm [shape: f32[128,128], index: 3, kind: input, shape index: {}]
  %s4 = inlined_call_operand.vmem [shape: f32[1,128], index: 4, kind: input, shape index: {}]
  %s5 = inlined_call_operand.hbm [shape: f32[128,256], index: 5, kind: input, shape index: {}]
  %s6 = inlined_call_operand.vmem [shape: f32[1,256], index: 6, kind: input, shape index: {}]
  %s7 = inlined_call_operand.hbm [shape: f32[256,128], index: 7, kind: input, shape index: {}]
  %s8 = inlined_call_operand.vmem [shape: f32[1,128], index: 8, kind: input, shape index: {}]
  %s9 = inlined_call_operand.vmem [shape: f32[1,128], index: 9, kind: input, shape index: {}]
  %s10 = inlined_call_operand.vmem [shape: f32[1,128], index: 10, kind: input, shape index: {}]
  %s11 = inlined_call_operand.vmem [shape: f32[1,128], index: 11, kind: input, shape index: {}]
  %s12 = inlined_call_operand.vmem [shape: f32[1,128], index: 12, kind: input, shape index: {}]
  %s13 = inlined_call_operand.hbm [shape: f32[8,16,128], index: 13, kind: output, shape index: {}]
  %s14 = sld [smem:[#allocation0]]
  $region105: #{tpu_custom_call.1} parent=0
    _
  %s16 = ssub.s32 1, %s14
  %s17 = scalar_select 0, %s16, %s14
  $region1: #{tpu_custom_call.1} parent=0
    #allocation2 [shape = 'u8[65536]{0}', space=vmem, size = 0x10000, scoped, tag = 'input window, operand 0']
    #allocation3 [shape = 's32[2]{0}', space=sflag, size = 0x8, scoped, tag = 'scoped memory for tpu_custom_call.1']
    #allocation4 [shape = 's32[2]{0}', space=sflag, size = 0x8, scoped, tag = 'scoped memory for tpu_custom_call.1']
    #allocation5 [shape = 'u8[196608]{0}', space=vmem, size = 0x30000, scoped, tag = 'input window, operand 1, single buffered']
    #allocation6 [shape = 's32[1]{0}', space=sflag, size = 0x4, scoped, tag = 'scoped memory for tpu_custom_call.1']
    #allocation7 [shape = 'u8[65536]{0}', space=vmem, size = 0x10000, scoped, tag = 'input window, operand 3, single buffered']
    #allocation8 [shape = 'u8[131072]{0}', space=vmem, size = 0x20000, scoped, tag = 'input window, operand 5, single buffered']
    #allocation9 [shape = 's32[1]{0}', space=sflag, size = 0x4, scoped, tag = 'scoped memory for tpu_custom_call.1']
    #allocation10 [shape = 'u8[131072]{0}', space=vmem, size = 0x20000, scoped, tag = 'input window, operand 7, single buffered']
    #allocation11 [shape = 'u8[65536]{0}', space=vmem, size = 0x10000, scoped, tag = 'output window, operand 0']
    %18 = vsyncpa [#allocation3], 0
    %s19 = scalar_lea.sflag [#allocation3], 1
    %20 = vsyncpa %s19, 0
    %21 = vsyncpa [#allocation6], 0
    %22 = vsyncpa [#allocation9], 0
    %23 = vsyncpa [#allocation4], 0
    %s24 = scalar_lea.sflag [#allocation4], 1
    %25 = vsyncpa %s24, 0
    loop: start=0, step=1, limit=4
    $region2: #{tpu_custom_call.1} parent=1 // loop_pre_header
      _
    $region3: #{tpu_custom_call.1} parent=1 // loop_header
      %s27 = sphi 0, %s31
      %p28 = scmp.ge.s32.totalorder %s27, 4
      %s37 = sphi 0, %s39
      %s40 = sphi 0, %s37
      %s41 = sphi 0, %s40
      %s57 = sphi 0, %s41
      %s61 = sphi 0, %s61
      %s63 = sphi 0, %s61
      %s64 = sphi 0, %s63
      %s78 = sphi 0, %s64
      %s82 = sphi 0, %s82
      %s84 = sphi 0, %s82
      %s85 = sphi 0, %s84
      %s99 = sphi 0, %s85
      %s103 = sphi 0, %s103
      %s105 = sphi 0, %s103
      %s106 = sphi 0, %s105
      %s120 = sphi 0, %s106
      %s124 = sphi 0, %s124
      %s126 = sphi 0, %s124
      %s127 = sphi 0, %s126
      %s141 = sphi 0, %s127
      %s145 = sphi 0, %s145
      %s147 = sphi 0, %s145
      %s148 = sphi 0, %s147
      %s162 = sphi 0, %s148
      %s166 = sphi 0, %s166
      %s168 = sphi 0, %s166
      %s169 = sphi 0, %s168
      %s183 = sphi 0, %s169
      %s187 = sphi 0, %s187
      %s189 = sphi 0, %s187
      %s190 = sphi 0, %s189
      %s204 = sphi 0, %s190
      %s208 = sphi 0, %s208
      %s210 = sphi 0, %s208
      %s211 = sphi 0, %s210
      %s225 = sphi 0, %s211
      %s229 = sphi 0, %s229
      %s231 = sphi 0, %s229
      %s232 = sphi 0, %s231
      %s246 = sphi 0, %s232
      %s250 = sphi 0, %s250
      %s252 = sphi 0, %s250
      %s253 = sphi 0, %s252
      %s267 = sphi 0, %s253
      %s271 = sphi 0, %s271
      %s273 = sphi 0, %s271
      %s274 = sphi 0, %s273
      %s288 = sphi 0, %s274
      %s292 = sphi 0, %s292
      %s294 = sphi 0, %s292
      %s295 = sphi 0, %s294
      %s309 = sphi 0, %s295
      %s315 = sphi 0, %s317
      %s318 = sphi 0, %s315
      %s319 = sphi 0, %s318
      %s335 = sphi 0, %s319
    $region4: #{tpu_custom_call.1} parent=1 // loop_header_branch
      %30 = sbr.rel (%p28) target = $region8
    $region5: #{tpu_custom_call.1} parent=1 // loop_body
      %s32 = ssub.s32 %s27, 1
      %s33 = ssub.s32 %s27, 2
      %s34 = sadd.s32 %s27, 1
      %s35 = ssub.s32 %s27, %s34
      %p36 = scmp.eq.s32.totalorder %s35, 0
      %s38 = sadd.s32 %s37, 1
      %s39 = scalar_select %p36, %s37, %s38
      %p42 = pneg %p36
      %p43 = scmp.eq.s32.totalorder %s27, 1
      %p44 = por %p42, %p43
      %p45 = scmp.ne.s32.totalorder %s37, %s40
      %p46 = scmp.eq.s32.totalorder %s27, 0
      %p47 = por %p45, %p46
      %p48 = scmp.ne.s32.totalorder %s37, %s40
      %p49 = scmp.eq.s32.totalorder %s32, 1
      %p50 = por %p48, %p49
      %p51 = scmp.ne.s32.totalorder %s40, %s41
      %p52 = scmp.eq.s32.totalorder %s32, 0
      %p53 = por %p51, %p52
      %p54 = scmp.ne.s32.totalorder %s40, %s41
      %p55 = scmp.eq.s32.totalorder %s33, 1
      %p56 = por %p54, %p55
      %p58 = scmp.ne.s32.totalorder %s41, %s57
      %p59 = scmp.eq.s32.totalorder %s33, 0
      %p60 = por %p58, %p59
      %s62 = sadd.s32 %s61, 1
      %p65 = scmp.eq.s32.totalorder %s27, 1
      %p66 = scmp.ne.s32.totalorder %s61, %s63
      %p67 = scmp.eq.s32.totalorder %s27, 0
      %p68 = por %p66, %p67
      %p69 = scmp.ne.s32.totalorder %s61, %s63
      %p70 = scmp.eq.s32.totalorder %s32, 1
      %p71 = por %p69, %p70
      %p72 = scmp.ne.s32.totalorder %s63, %s64
      %p73 = scmp.eq.s32.totalorder %s32, 0
      %p74 = por %p72, %p73
      %p75 = scmp.ne.s32.totalorder %s63, %s64
      %p76 = scmp.eq.s32.totalorder %s33, 1
      %p77 = por %p75, %p76
      %p79 = scmp.ne.s32.totalorder %s64, %s78
      %p80 = scmp.eq.s32.totalorder %s33, 0
      %p81 = por %p79, %p80
      %s83 = sadd.s32 %s82, 1
      %p86 = scmp.eq.s32.totalorder %s27, 1
      %p87 = scmp.ne.s32.totalorder %s82, %s84
      %p88 = scmp.eq.s32.totalorder %s27, 0
      %p89 = por %p87, %p88
      %p90 = scmp.ne.s32.totalorder %s82, %s84
      %p91 = scmp.eq.s32.totalorder %s32, 1
      %p92 = por %p90, %p91
      %p93 = scmp.ne.s32.totalorder %s84, %s85
      %p94 = scmp.eq.s32.totalorder %s32, 0
      %p95 = por %p93, %p94
      %p96 = scmp.ne.s32.totalorder %s84, %s85
      %p97 = scmp.eq.s32.totalorder %s33, 1
      %p98 = por %p96, %p97
      %p100 = scmp.ne.s32.totalorder %s85, %s99
      %p101 = scmp.eq.s32.totalorder %s33, 0
      %p102 = por %p100, %p101
      %s104 = sadd.s32 %s103, 1
      %p107 = scmp.eq.s32.totalorder %s27, 1
      %p108 = scmp.ne.s32.totalorder %s103, %s105
      %p109 = scmp.eq.s32.totalorder %s27, 0
      %p110 = por %p108, %p109
      %p111 = scmp.ne.s32.totalorder %s103, %s105
      %p112 = scmp.eq.s32.totalorder %s32, 1
      %p113 = por %p111, %p112
      %p114 = scmp.ne.s32.totalorder %s105, %s106
      %p115 = scmp.eq.s32.totalorder %s32, 0
      %p116 = por %p114, %p115
      %p117 = scmp.ne.s32.totalorder %s105, %s106
      %p118 = scmp.eq.s32.totalorder %s33, 1
      %p119 = por %p117, %p118
      %p121 = scmp.ne.s32.totalorder %s106, %s120
      %p122 = scmp.eq.s32.totalorder %s33, 0
      %p123 = por %p121, %p122
      %s125 = sadd.s32 %s124, 1
      %p128 = scmp.eq.s32.totalorder %s27, 1
      %p129 = scmp.ne.s32.totalorder %s124, %s126
      %p130 = scmp.eq.s32.totalorder %s27, 0
      %p131 = por %p129, %p130
      %p132 = scmp.ne.s32.totalorder %s124, %s126
      %p133 = scmp.eq.s32.totalorder %s32, 1
      %p134 = por %p132, %p133
      %p135 = scmp.ne.s32.totalorder %s126, %s127
      %p136 = scmp.eq.s32.totalorder %s32, 0
      %p137 = por %p135, %p136
      %p138 = scmp.ne.s32.totalorder %s126, %s127
      %p139 = scmp.eq.s32.totalorder %s33, 1
      %p140 = por %p138, %p139
      %p142 = scmp.ne.s32.totalorder %s127, %s141
      %p143 = scmp.eq.s32.totalorder %s33, 0
      %p144 = por %p142, %p143
      %s146 = sadd.s32 %s145, 1
      %p149 = scmp.eq.s32.totalorder %s27, 1
      %p150 = scmp.ne.s32.totalorder %s145, %s147
      %p151 = scmp.eq.s32.totalorder %s27, 0
      %p152 = por %p150, %p151
      %p153 = scmp.ne.s32.totalorder %s145, %s147
      %p154 = scmp.eq.s32.totalorder %s32, 1
      %p155 = por %p153, %p154
      %p156 = scmp.ne.s32.totalorder %s147, %s148
      %p157 = scmp.eq.s32.totalorder %s32, 0
      %p158 = por %p156, %p157
      %p159 = scmp.ne.s32.totalorder %s147, %s148
      %p160 = scmp.eq.s32.totalorder %s33, 1
      %p161 = por %p159, %p160
      %p163 = scmp.ne.s32.totalorder %s148, %s162
      %p164 = scmp.eq.s32.totalorder %s33, 0
      %p165 = por %p163, %p164
      %s167 = sadd.s32 %s166, 1
      %p170 = scmp.eq.s32.totalorder %s27, 1
      %p171 = scmp.ne.s32.totalorder %s166, %s168
      %p172 = scmp.eq.s32.totalorder %s27, 0
      %p173 = por %p171, %p172
      %p174 = scmp.ne.s32.totalorder %s166, %s168
      %p175 = scmp.eq.s32.totalorder %s32, 1
      %p176 = por %p174, %p175
      %p177 = scmp.ne.s32.totalorder %s168, %s169
      %p178 = scmp.eq.s32.totalorder %s32, 0
      %p179 = por %p177, %p178
      %p180 = scmp.ne.s32.totalorder %s168, %s169
      %p181 = scmp.eq.s32.totalorder %s33, 1
      %p182 = por %p180, %p181
      %p184 = scmp.ne.s32.totalorder %s169, %s183
      %p185 = scmp.eq.s32.totalorder %s33, 0
      %p186 = por %p184, %p185
      %s188 = sadd.s32 %s187, 1
      %p191 = scmp.eq.s32.totalorder %s27, 1
      %p192 = scmp.ne.s32.totalorder %s187, %s189
      %p193 = scmp.eq.s32.totalorder %s27, 0
      %p194 = por %p192, %p193
      %p195 = scmp.ne.s32.totalorder %s187, %s189
      %p196 = scmp.eq.s32.totalorder %s32, 1
      %p197 = por %p195, %p196
      %p198 = scmp.ne.s32.totalorder %s189, %s190
      %p199 = scmp.eq.s32.totalorder %s32, 0
      %p200 = por %p198, %p199
      %p201 = scmp.ne.s32.totalorder %s189, %s190
      %p202 = scmp.eq.s32.totalorder %s33, 1
      %p203 = por %p201, %p202
      %p205 = scmp.ne.s32.totalorder %s190, %s204
      %p206 = scmp.eq.s32.totalorder %s33, 0
      %p207 = por %p205, %p206
      %s209 = sadd.s32 %s208, 1
      %p212 = scmp.eq.s32.totalorder %s27, 1
      %p213 = scmp.ne.s32.totalorder %s208, %s210
      %p214 = scmp.eq.s32.totalorder %s27, 0
      %p215 = por %p213, %p214
      %p216 = scmp.ne.s32.totalorder %s208, %s210
      %p217 = scmp.eq.s32.totalorder %s32, 1
      %p218 = por %p216, %p217
      %p219 = scmp.ne.s32.totalorder %s210, %s211
      %p220 = scmp.eq.s32.totalorder %s32, 0
      %p221 = por %p219, %p220
      %p222 = scmp.ne.s32.totalorder %s210, %s211
      %p223 = scmp.eq.s32.totalorder %s33, 1
      %p224 = por %p222, %p223
      %p226 = scmp.ne.s32.totalorder %s211, %s225
      %p227 = scmp.eq.s32.totalorder %s33, 0
      %p228 = por %p226, %p227
      %s230 = sadd.s32 %s229, 1
      %p233 = scmp.eq.s32.totalorder %s27, 1
      %p234 = scmp.ne.s32.totalorder %s229, %s231
      %p235 = scmp.eq.s32.totalorder %s27, 0
      %p236 = por %p234, %p235
      %p237 = scmp.ne.s32.totalorder %s229, %s231
      %p238 = scmp.eq.s32.totalorder %s32, 1
      %p239 = por %p237, %p238
      %p240 = scmp.ne.s32.totalorder %s231, %s232
      %p241 = scmp.eq.s32.totalorder %s32, 0
      %p242 = por %p240, %p241
      %p243 = scmp.ne.s32.totalorder %s231, %s232
      %p244 = scmp.eq.s32.totalorder %s33, 1
      %p245 = por %p243, %p244
      %p247 = scmp.ne.s32.totalorder %s232, %s246
      %p248 = scmp.eq.s32.totalorder %s33, 0
      %p249 = por %p247, %p248
      %s251 = sadd.s32 %s250, 1
      %p254 = scmp.eq.s32.totalorder %s27, 1
      %p255 = scmp.ne.s32.totalorder %s250, %s252
      %p256 = scmp.eq.s32.totalorder %s27, 0
      %p257 = por %p255, %p256
      %p258 = scmp.ne.s32.totalorder %s250, %s252
      %p259 = scmp.eq.s32.totalorder %s32, 1
      %p260 = por %p258, %p259
      %p261 = scmp.ne.s32.totalorder %s252, %s253
      %p262 = scmp.eq.s32.totalorder %s32, 0
      %p263 = por %p261, %p262
      %p264 = scmp.ne.s32.totalorder %s252, %s253
      %p265 = scmp.eq.s32.totalorder %s33, 1
      %p266 = por %p264, %p265
      %p268 = scmp.ne.s32.totalorder %s253, %s267
      %p269 = scmp.eq.s32.totalorder %s33, 0
      %p270 = por %p268, %p269
      %s272 = sadd.s32 %s271, 1
      %p275 = scmp.eq.s32.totalorder %s27, 1
      %p276 = scmp.ne.s32.totalorder %s271, %s273
      %p277 = scmp.eq.s32.totalorder %s27, 0
      %p278 = por %p276, %p277
      %p279 = scmp.ne.s32.totalorder %s271, %s273
      %p280 = scmp.eq.s32.totalorder %s32, 1
      %p281 = por %p279, %p280
      %p282 = scmp.ne.s32.totalorder %s273, %s274
      %p283 = scmp.eq.s32.totalorder %s32, 0
      %p284 = por %p282, %p283
      %p285 = scmp.ne.s32.totalorder %s273, %s274
      %p286 = scmp.eq.s32.totalorder %s33, 1
      %p287 = por %p285, %p286
      %p289 = scmp.ne.s32.totalorder %s274, %s288
      %p290 = scmp.eq.s32.totalorder %s33, 0
      %p291 = por %p289, %p290
      %s293 = sadd.s32 %s292, 1
      %p296 = scmp.eq.s32.totalorder %s27, 1
      %p297 = scmp.ne.s32.totalorder %s292, %s294
      %p298 = scmp.eq.s32.totalorder %s27, 0
      %p299 = por %p297, %p298
      %p300 = scmp.ne.s32.totalorder %s292, %s294
      %p301 = scmp.eq.s32.totalorder %s32, 1
      %p302 = por %p300, %p301
      %p303 = scmp.ne.s32.totalorder %s294, %s295
      %p304 = scmp.eq.s32.totalorder %s32, 0
      %p305 = por %p303, %p304
      %p306 = scmp.ne.s32.totalorder %s294, %s295
      %p307 = scmp.eq.s32.totalorder %s33, 1
      %p308 = por %p306, %p307
      %p310 = scmp.ne.s32.totalorder %s295, %s309
      %p311 = scmp.eq.s32.totalorder %s33, 0
      %p312 = por %p310, %p311
      %s313 = ssub.s32 %s27, %s34
      %p314 = scmp.eq.s32.totalorder %s313, 0
      %s316 = sadd.s32 %s315, 1
      %s317 = scalar_select %p314, %s315, %s316
      %p320 = pneg %p314
      %p321 = scmp.eq.s32.totalorder %s27, 1
      %p322 = por %p320, %p321
      %p323 = scmp.ne.s32.totalorder %s315, %s318
      %p324 = scmp.eq.s32.totalorder %s27, 0
      %p325 = por %p323, %p324
      %p326 = scmp.ne.s32.totalorder %s315, %s318
      %p327 = scmp.eq.s32.totalorder %s32, 1
      %p328 = por %p326, %p327
      %p329 = scmp.ne.s32.totalorder %s318, %s319
      %p330 = scmp.eq.s32.totalorder %s32, 0
      %p331 = por %p329, %p330
      %p332 = scmp.ne.s32.totalorder %s318, %s319
      %p333 = scmp.eq.s32.totalorder %s33, 1
      %p334 = por %p332, %p333
      %p336 = scmp.ne.s32.totalorder %s319, %s335
      %p337 = scmp.eq.s32.totalorder %s33, 0
      %p338 = por %p336, %p337
      %p339 = scmp.le.s32.totalorder 1, %s27
      %p340 = scmp.lt.s32.totalorder %s27, 3
      %p341 = pnand %p339, %p340
      %p342 = pneg %p341
      // Predicated region
      $region9: #{tpu_custom_call.1} parent=5 // pred_check
        _
      $region10: #{tpu_custom_call.1} parent=5 // pred_check_branch
        %344 = sbr.rel (%p341) target = $region12
      $region11: #{tpu_custom_call.1} parent=5 // pred_region
        %s345 = ssub.s32 %s27, 1
        // Predicated region
        $region13: #{tpu_custom_call.1} parent=11 // pred_check
          %p346 = pneg %p74
        $region14: #{tpu_custom_call.1} parent=11 // pred_check_branch
          %348 = sbr.rel (%p346) target = $region16
        $region15: #{tpu_custom_call.1} parent=11 // pred_region
          %s350 = ssub.s32 6144, 6144
          %351 = vsyncadd [#allocation6], %s350
          %s352 = sshll.u32 [#allocation5], 4
          %s353 = int_to_ptr.vmem [resolvable:$true] %s352
          %358 = dma.hbm_to_vmem [thread:$0]  %s1, 6144, %s353, [#allocation6], 384, 384, 24
        $region16: #{tpu_custom_call.1} parent=11 // pred_fallthru
          _
        // Predicated region
        $region17: #{tpu_custom_call.1} parent=11 // pred_check
          %p359 = pneg %p95
        $region18: #{tpu_custom_call.1} parent=11 // pred_check_branch
          %361 = sbr.rel (%p359) target = $region20
        $region19: #{tpu_custom_call.1} parent=11 // pred_region
          _
        $region20: #{tpu_custom_call.1} parent=11 // pred_fallthru
          _
        // Predicated region
        $region21: #{tpu_custom_call.1} parent=11 // pred_check
          %p362 = pneg %p116
        $region22: #{tpu_custom_call.1} parent=11 // pred_check_branch
          %364 = sbr.rel (%p362) target = $region24
        $region23: #{tpu_custom_call.1} parent=11 // pred_region
          %s366 = ssub.s32 2048, 2048
          %367 = vsyncadd [#allocation6], %s366
          %s368 = sshll.u32 [#allocation7], 4
          %s369 = int_to_ptr.vmem [resolvable:$true] %s368
          %374 = dma.hbm_to_vmem [thread:$0]  %s3, 2048, %s369, [#allocation6], 128, 128, 8
        $region24: #{tpu_custom_call.1} parent=11 // pred_fallthru
          _
        // Predicated region
        $region25: #{tpu_custom_call.1} parent=11 // pred_check
          %p375 = pneg %p137
        $region26: #{tpu_custom_call.1} parent=11 // pred_check_branch
          %377 = sbr.rel (%p375) target = $region28
        $region27: #{tpu_custom_call.1} parent=11 // pred_region
          _
        $region28: #{tpu_custom_call.1} parent=11 // pred_fallthru
          _
        // Predicated region
        $region29: #{tpu_custom_call.1} parent=11 // pred_check
          %p378 = pneg %p158
        $region30: #{tpu_custom_call.1} parent=11 // pred_check_branch
          %380 = sbr.rel (%p378) target = $region32
        $region31: #{tpu_custom_call.1} parent=11 // pred_region
          %s382 = ssub.s32 4096, 4096
          %383 = vsyncadd [#allocation9], %s382
          %s384 = sshll.u32 [#allocation8], 4
          %s385 = int_to_ptr.vmem [resolvable:$true] %s384
          %390 = dma.hbm_to_vmem [thread:$0]  %s5, 4096, %s385, [#allocation9], 256, 256, 16
        $region32: #{tpu_custom_call.1} parent=11 // pred_fallthru
          _
        // Predicated region
        $region33: #{tpu_custom_call.1} parent=11 // pred_check
          %p391 = pneg %p179
        $region34: #{tpu_custom_call.1} parent=11 // pred_check_branch
          %393 = sbr.rel (%p391) target = $region36
        $region35: #{tpu_custom_call.1} parent=11 // pred_region
          _
        $region36: #{tpu_custom_call.1} parent=11 // pred_fallthru
          _
        // Predicated region
        $region37: #{tpu_custom_call.1} parent=11 // pred_check
          %p394 = pneg %p200
        $region38: #{tpu_custom_call.1} parent=11 // pred_check_branch
          %396 = sbr.rel (%p394) target = $region40
        $region39: #{tpu_custom_call.1} parent=11 // pred_region
          %s398 = ssub.s32 4096, 4096
          %399 = vsyncadd [#allocation9], %s398
          %s400 = sshll.u32 [#allocation10], 4
          %s401 = int_to_ptr.vmem [resolvable:$true] %s400
          %406 = dma.hbm_to_vmem [thread:$0]  %s7, 4096, %s401, [#allocation9], 128, 128, 8
        $region40: #{tpu_custom_call.1} parent=11 // pred_fallthru
          _
        // Predicated region
        $region41: #{tpu_custom_call.1} parent=11 // pred_check
          %p407 = pneg %p221
        $region42: #{tpu_custom_call.1} parent=11 // pred_check_branch
          %409 = sbr.rel (%p407) target = $region44
        $region43: #{tpu_custom_call.1} parent=11 // pred_region
          _
        $region44: #{tpu_custom_call.1} parent=11 // pred_fallthru
          _
        // Predicated region
        $region45: #{tpu_custom_call.1} parent=11 // pred_check
          %p410 = pneg %p242
        $region46: #{tpu_custom_call.1} parent=11 // pred_check_branch
          %412 = sbr.rel (%p410) target = $region48
        $region47: #{tpu_custom_call.1} parent=11 // pred_region
          _
        $region48: #{tpu_custom_call.1} parent=11 // pred_fallthru
          _
        // Predicated region
        $region49: #{tpu_custom_call.1} parent=11 // pred_check
          %p413 = pneg %p263
        $region50: #{tpu_custom_call.1} parent=11 // pred_check_branch
          %415 = sbr.rel (%p413) target = $region52
        $region51: #{tpu_custom_call.1} parent=11 // pred_region
          _
        $region52: #{tpu_custom_call.1} parent=11 // pred_fallthru
          _
        // Predicated region
        $region53: #{tpu_custom_call.1} parent=11 // pred_check
          %p416 = pneg %p284
        $region54: #{tpu_custom_call.1} parent=11 // pred_check_branch
          %418 = sbr.rel (%p416) target = $region56
        $region55: #{tpu_custom_call.1} parent=11 // pred_region
          _
        $region56: #{tpu_custom_call.1} parent=11 // pred_fallthru
          _
        // Predicated region
        $region57: #{tpu_custom_call.1} parent=11 // pred_check
          %p419 = pneg %p305
        $region58: #{tpu_custom_call.1} parent=11 // pred_check_branch
          %421 = sbr.rel (%p419) target = $region60
        $region59: #{tpu_custom_call.1} parent=11 // pred_region
          _
        $region60: #{tpu_custom_call.1} parent=11 // pred_fallthru
          _
      $region12: #{tpu_custom_call.1} parent=5 // pred_fallthru
        _
      %p422 = scmp.lt.s32.totalorder %s27, 2
      // Predicated region
      $region61: #{tpu_custom_call.1} parent=5 // pred_check
        %p423 = pneg %p422
      $region62: #{tpu_custom_call.1} parent=5 // pred_check_branch
        %425 = sbr.rel (%p423) target = $region64
      $region63: #{tpu_custom_call.1} parent=5 // pred_region
        // Predicated region
        $region65: #{tpu_custom_call.1} parent=63 // pred_check
          %p426 = pneg %p47
        $region66: #{tpu_custom_call.1} parent=63 // pred_check_branch
          %428 = sbr.rel (%p426) target = $region68
        $region67: #{tpu_custom_call.1} parent=63 // pred_region
          %s429 = sand.u32 %s37, 1
          %s430 = scalar_lea.sflag [#allocation3], %s429
          %s431 = sand.u32 %s37, 1
          %s432 = smul.addr %s431, 64
          %s433 = scalar_lea.vmem [#allocation2], %s432
          %s434 = smul.u32 4, %s27
          %s436 = ssub.s32 1024, 1024
          %437 = vsyncadd %s430, %s436
          %s438 = smul.addr %s434, 2
          %s439 = smul.addr %s438, 128
          %s440 = scalar_lea.hbm %s0, %s439
          %s441 = sshll.u32 %s433, 4
          %s442 = int_to_ptr.vmem [resolvable:$true] %s441
          %447 = dma.hbm_to_vmem [thread:$0]  %s440, 1024, %s442, %s430, 128, 128, 8
        $region68: #{tpu_custom_call.1} parent=63 // pred_fallthru
          _
      $region64: #{tpu_custom_call.1} parent=5 // pred_fallthru
        _
      %p448 = scmp.le.s32.totalorder 1, %s27
      %p449 = scmp.lt.s32.totalorder %s27, 3
      %p450 = pnand %p448, %p449
      %p451 = pneg %p450
      // Predicated region
      $region69: #{tpu_custom_call.1} parent=5 // pred_check
        _
      $region70: #{tpu_custom_call.1} parent=5 // pred_check_branch
        %453 = sbr.rel (%p450) target = $region72
      $region71: #{tpu_custom_call.1} parent=5 // pred_region
        %s454 = ssub.s32 %s27, 1
        %s455 = sand.u32 %s40, 1
        %s456 = scalar_lea.sflag [#allocation3], %s455
        %s457 = sand.u32 %s40, 1
        %s458 = smul.addr %s457, 64
        %s459 = scalar_lea.vmem [#allocation2], %s458
        // Predicated region
        $region73: #{tpu_custom_call.1} parent=71 // pred_check
          %p460 = pneg %p53
        $region74: #{tpu_custom_call.1} parent=71 // pred_check_branch
          %462 = sbr.rel (%p460) target = $region76
        $region75: #{tpu_custom_call.1} parent=71 // pred_region
          %463 = dma.done %s456, 1024
        $region76: #{tpu_custom_call.1} parent=71 // pred_fallthru
          _
        // Predicated region
        $region77: #{tpu_custom_call.1} parent=71 // pred_check
          %p464 = pneg %p74
        $region78: #{tpu_custom_call.1} parent=71 // pred_check_branch
          %466 = sbr.rel (%p464) target = $region80
        $region79: #{tpu_custom_call.1} parent=71 // pred_region
          %467 = dma.done [#allocation6], 6144
        $region80: #{tpu_custom_call.1} parent=71 // pred_fallthru
          _
        // Predicated region
        $region81: #{tpu_custom_call.1} parent=71 // pred_check
          %p468 = pneg %p116
        $region82: #{tpu_custom_call.1} parent=71 // pred_check_branch
          %470 = sbr.rel (%p468) target = $region84
        $region83: #{tpu_custom_call.1} parent=71 // pred_region
          %471 = dma.done [#allocation6], 2048
        $region84: #{tpu_custom_call.1} parent=71 // pred_fallthru
          _
        // Predicated region
        $region85: #{tpu_custom_call.1} parent=71 // pred_check
          %p472 = pneg %p158
        $region86: #{tpu_custom_call.1} parent=71 // pred_check_branch
          %474 = sbr.rel (%p472) target = $region88
        $region87: #{tpu_custom_call.1} parent=71 // pred_region
          %475 = dma.done [#allocation9], 4096
        $region88: #{tpu_custom_call.1} parent=71 // pred_fallthru
          _
        // Predicated region
        $region89: #{tpu_custom_call.1} parent=71 // pred_check
          %p476 = pneg %p200
        $region90: #{tpu_custom_call.1} parent=71 // pred_check_branch
          %478 = sbr.rel (%p476) target = $region92
        $region91: #{tpu_custom_call.1} parent=71 // pred_region
          %479 = dma.done [#allocation9], 4096
        $region92: #{tpu_custom_call.1} parent=71 // pred_fallthru
          _
        %s480 = sand.u32 %s40, 1
        %s481 = scalar_lea.sflag [#allocation3], %s480
        %s482 = sand.u32 %s40, 1
        %s483 = smul.addr %s482, 64
        %s484 = scalar_lea.vmem [#allocation2], %s483
        %p485 = pneg %p53
        %p486 = pneg %p50
        %p487 = pneg %p74
        %p488 = pneg %p71
        %p489 = pneg %p95
        %p490 = pneg %p92
        %p491 = pneg %p116
        %p492 = pneg %p113
        %p493 = pneg %p137
        %p494 = pneg %p134
        %p495 = pneg %p158
        %p496 = pneg %p155
        %p497 = pneg %p179
        %p498 = pneg %p176
        %p499 = pneg %p200
        %p500 = pneg %p197
        %p501 = pneg %p221
        %p502 = pneg %p218
        %p503 = pneg %p242
        %p504 = pneg %p239
        %p505 = pneg %p263
        %p506 = pneg %p260
        %p507 = pneg %p284
        %p508 = pneg %p281
        %p509 = pneg %p305
        %p510 = pneg %p302
        %p511 = pneg %p331
        %p512 = pneg %p328
        %s513 = sand.u32 %s318, 1
        %s514 = scalar_lea.sflag [#allocation4], %s513
        %s515 = sand.u32 %s318, 1
        %s516 = smul.addr %s515, 64
        %s517 = scalar_lea.vmem [#allocation11], %s516
        %s518 = smul.u32 4, %s32
        %s519 = smul.u32 4, %s32
        %v520 = vld [vmem:[%s459] sm:$0xff]
        %v521 = vld [vmem:[%s459 + $0x8] sm:$0xff]
        %v522 = vld [vmem:[%s459 + $0x10] sm:$0xff]
        %v523 = vld [vmem:[%s459 + $0x18] sm:$0xff]
        %v524 = vld [vmem:[%s459 + $0x20] sm:$0xff]
        %v525 = vld [vmem:[%s459 + $0x28] sm:$0xff]
        %v526 = vld [vmem:[%s459 + $0x30] sm:$0xff]
        %v527 = vld [vmem:[%s459 + $0x38] sm:$0xff]
        %v528 = vld [vmem:[%s9] sm:$0x1]
        %v529 = vld [vmem:[%s10] sm:$0x1]
        %530 = vadd.xlane.f32.xlu0 %v520
        %v531 = vpop.xlane.xlu0 %530
        %532 = vadd.xlane.f32.xlu0 %v521
        %v533 = vpop.xlane.xlu0 %532
        %534 = vadd.xlane.f32.xlu0 %v522
        %v535 = vpop.xlane.xlu0 %534
        %536 = vadd.xlane.f32.xlu0 %v523
        %v537 = vpop.xlane.xlu0 %536
        %538 = vadd.xlane.f32.xlu0 %v524
        %v539 = vpop.xlane.xlu0 %538
        %540 = vadd.xlane.f32.xlu0 %v525
        %v541 = vpop.xlane.xlu0 %540
        %542 = vadd.xlane.f32.xlu0 %v526
        %v543 = vpop.xlane.xlu0 %542
        %544 = vadd.xlane.f32.xlu0 %v527
        %v545 = vpop.xlane.xlu0 %544
        %v546 = vrcp.pop 128.0
        %v547 = vmul.f32 %v531, %v546
        %v548 = vmul.f32 %v533, %v546
        %v549 = vmul.f32 %v535, %v546
        %v550 = vmul.f32 %v537, %v546
        %v551 = vmul.f32 %v539, %v546
        %v552 = vmul.f32 %v541, %v546
        %v553 = vmul.f32 %v543, %v546
        %v554 = vmul.f32 %v545, %v546
        %v555 = vsub.f32 %v520, %v547
        %v556 = vsub.f32 %v521, %v548
        %v557 = vsub.f32 %v522, %v549
        %v558 = vsub.f32 %v523, %v550
        %v559 = vsub.f32 %v524, %v551
        %v560 = vsub.f32 %v525, %v552
        %v561 = vsub.f32 %v526, %v553
        %v562 = vsub.f32 %v527, %v554
        %v563 = vmul.f32 %v555, %v555
        %v564 = vmul.f32 %v556, %v556
        %v565 = vmul.f32 %v557, %v557
        %v566 = vmul.f32 %v558, %v558
        %v567 = vmul.f32 %v559, %v559
        %v568 = vmul.f32 %v560, %v560
        %v569 = vmul.f32 %v561, %v561
        %v570 = vmul.f32 %v562, %v562
        %571 = vadd.xlane.f32.xlu0 %v563
        %v572 = vpop.xlane.xlu0 %571
        %573 = vadd.xlane.f32.xlu0 %v564
        %v574 = vpop.xlane.xlu0 %573
        %575 = vadd.xlane.f32.xlu0 %v565
        %v576 = vpop.xlane.xlu0 %575
        %577 = vadd.xlane.f32.xlu0 %v566
        %v578 = vpop.xlane.xlu0 %577
        %579 = vadd.xlane.f32.xlu0 %v567
        %v580 = vpop.xlane.xlu0 %579
        %581 = vadd.xlane.f32.xlu0 %v568
        %v582 = vpop.xlane.xlu0 %581
        %583 = vadd.xlane.f32.xlu0 %v569
        %v584 = vpop.xlane.xlu0 %583
        %585 = vadd.xlane.f32.xlu0 %v570
        %v586 = vpop.xlane.xlu0 %585
        %v587 = vmul.f32 %v572, %v546
        %v588 = vmul.f32 %v574, %v546
        %v589 = vmul.f32 %v576, %v546
        %v590 = vmul.f32 %v578, %v546
        %v591 = vmul.f32 %v580, %v546
        %v592 = vmul.f32 %v582, %v546
        %v593 = vmul.f32 %v584, %v546
        %v594 = vmul.f32 %v586, %v546
        %v595 = vadd.f32 %v587, 1e-05
        %v596 = vadd.f32 %v588, 1e-05
        %v597 = vadd.f32 %v589, 1e-05
        %v598 = vadd.f32 %v590, 1e-05
        %v599 = vadd.f32 %v591, 1e-05
        %v600 = vadd.f32 %v592, 1e-05
        %v601 = vadd.f32 %v593, 1e-05
        %v602 = vadd.f32 %v594, 1e-05
        %v603 = vrsqrt.pop %v595
        %v604 = vrsqrt.pop %v596
        %v605 = vrsqrt.pop %v597
        %v606 = vrsqrt.pop %v598
        %v607 = vrsqrt.pop %v599
        %v608 = vrsqrt.pop %v600
        %v609 = vrsqrt.pop %v601
        %v610 = vrsqrt.pop %v602
        %v611 = vmul.f32 %v555, %v603
        %v612 = vmul.f32 %v556, %v604
        %v613 = vmul.f32 %v557, %v605
        %v614 = vmul.f32 %v558, %v606
        %v615 = vmul.f32 %v559, %v607
        %v616 = vmul.f32 %v560, %v608
        %v617 = vmul.f32 %v561, %v609
        %v618 = vmul.f32 %v562, %v610
        %v620 = vlaneseq
        %v621 = vshrl.u32 %v620, 7
        %v622 = vsub.s32 0, %v621
        %v623 = vrot.slane %v528, %v622
        %v625 = vmul.f32 %v611, %v623
        %v626 = vmul.f32 %v612, %v623
        %v627 = vmul.f32 %v613, %v623
        %v628 = vmul.f32 %v614, %v623
        %v629 = vmul.f32 %v615, %v623
        %v630 = vmul.f32 %v616, %v623
        %v631 = vmul.f32 %v617, %v623
        %v632 = vmul.f32 %v618, %v623
        %v634 = vlaneseq
        %v635 = vshrl.u32 %v634, 7
        %v636 = vsub.s32 0, %v635
        %v637 = vrot.slane %v529, %v636
        %v639 = vadd.f32 %v625, %v637
        %v640 = vadd.f32 %v626, %v637
        %v641 = vadd.f32 %v627, %v637
        %v642 = vadd.f32 %v628, %v637
        %v643 = vadd.f32 %v629, %v637
        %v644 = vadd.f32 %v630, %v637
        %v645 = vadd.f32 %v631, %v637
        %v646 = vadd.f32 %v632, %v637
        %v647 = vld [vmem:[#allocation5] sm:$0xff]
        %v648 = vld [vmem:[#allocation5 + $0x8] sm:$0xff]
        %v649 = vld [vmem:[#allocation5 + $0x10] sm:$0xff]
        %v650 = vld [vmem:[#allocation5 + $0x18] sm:$0xff]
        %v651 = vld [vmem:[#allocation5 + $0x20] sm:$0xff]
        %v652 = vld [vmem:[#allocation5 + $0x28] sm:$0xff]
        %v653 = vld [vmem:[#allocation5 + $0x30] sm:$0xff]
        %v654 = vld [vmem:[#allocation5 + $0x38] sm:$0xff]
        %v655 = vld [vmem:[#allocation5 + $0x40] sm:$0xff]
        %v656 = vld [vmem:[#allocation5 + $0x48] sm:$0xff]
        %v657 = vld [vmem:[#allocation5 + $0x50] sm:$0xff]
        %v658 = vld [vmem:[#allocation5 + $0x58] sm:$0xff]
        %v659 = vld [vmem:[#allocation5 + $0x60] sm:$0xff]
        %v660 = vld [vmem:[#allocation5 + $0x68] sm:$0xff]
        %v661 = vld [vmem:[#allocation5 + $0x70] sm:$0xff]
        %v662 = vld [vmem:[#allocation5 + $0x78] sm:$0xff]
        %v663 = vld [vmem:[#allocation5 + $0x80] sm:$0xff]
        %v664 = vld [vmem:[#allocation5 + $0x88] sm:$0xff]
        %v665 = vld [vmem:[#allocation5 + $0x90] sm:$0xff]
        %v666 = vld [vmem:[#allocation5 + $0x98] sm:$0xff]
        %v667 = vld [vmem:[#allocation5 + $0xa0] sm:$0xff]
        %v668 = vld [vmem:[#allocation5 + $0xa8] sm:$0xff]
        %v669 = vld [vmem:[#allocation5 + $0xb0] sm:$0xff]
        %v670 = vld [vmem:[#allocation5 + $0xb8] sm:$0xff]
        %v671 = vld [vmem:[#allocation5 + $0xc0] sm:$0xff]
        %v672 = vld [vmem:[#allocation5 + $0xc8] sm:$0xff]
        %v673 = vld [vmem:[#allocation5 + $0xd0] sm:$0xff]
        %v674 = vld [vmem:[#allocation5 + $0xd8] sm:$0xff]
        %v675 = vld [vmem:[#allocation5 + $0xe0] sm:$0xff]
        %v676 = vld [vmem:[#allocation5 + $0xe8] sm:$0xff]
        %v677 = vld [vmem:[#allocation5 + $0xf0] sm:$0xff]
        %v678 = vld [vmem:[#allocation5 + $0xf8] sm:$0xff]
        %v679 = vld [vmem:[#allocation5 + $0x100] sm:$0xff]
        %v680 = vld [vmem:[#allocation5 + $0x108] sm:$0xff]
        %v681 = vld [vmem:[#allocation5 + $0x110] sm:$0xff]
        %v682 = vld [vmem:[#allocation5 + $0x118] sm:$0xff]
        %v683 = vld [vmem:[#allocation5 + $0x120] sm:$0xff]
        %v684 = vld [vmem:[#allocation5 + $0x128] sm:$0xff]
        %v685 = vld [vmem:[#allocation5 + $0x130] sm:$0xff]
        %v686 = vld [vmem:[#allocation5 + $0x138] sm:$0xff]
        %v687 = vld [vmem:[#allocation5 + $0x140] sm:$0xff]
        %v688 = vld [vmem:[#allocation5 + $0x148] sm:$0xff]
        %v689 = vld [vmem:[#allocation5 + $0x150] sm:$0xff]
        %v690 = vld [vmem:[#allocation5 + $0x158] sm:$0xff]
        %v691 = vld [vmem:[#allocation5 + $0x160] sm:$0xff]
        %v692 = vld [vmem:[#allocation5 + $0x168] sm:$0xff]
        %v693 = vld [vmem:[#allocation5 + $0x170] sm:$0xff]
        %v694 = vld [vmem:[#allocation5 + $0x178] sm:$0xff]
        %v695 = vld [vmem:[%s2] sm:$0x7]
        %v697 = vlaneseq
        %v698 = vshrl.u32 %v697, 7
        %v699 = vsub.s32 0, %v698
        %v700 = vrot.slane %v695, %v699
        %v701 = vlaneseq
        %v702 = vshrl.u32 %v701, 7
        %v703 = vsub.s32 1, %v702
        %v704 = vrot.slane %v695, %v703
        %v705 = vlaneseq
        %v706 = vshrl.u32 %v705, 7
        %v707 = vsub.s32 2, %v706
        %v708 = vrot.slane %v695, %v707
        %712 = vmatprep.subr.mxu0 %v648
        %713 = vmatpush1.msra.mxu0 %v647
        %714 = vmatprep.subr.mxu0 %v651
        %715 = vmatpush1.msra.mxu0 %v650
        %716 = vmatprep.subr.mxu0 %v654
        %717 = vmatpush1.msra.mxu0 %v653
        %718 = vmatprep.subr.mxu0 %v657
        %719 = vmatpush1.msra.mxu0 %v656
        %720 = vmatprep.subr.mxu0 %v660
        %721 = vmatpush1.msra.mxu0 %v659
        %722 = vmatprep.subr.mxu0 %v663
        %723 = vmatpush1.msra.mxu0 %v662
        %724 = vmatprep.subr.mxu0 %v666
        %725 = vmatpush1.msra.mxu0 %v665
        %726 = vmatprep.subr.mxu0 %v669
        %727 = vmatpush1.msra.mxu0 %v668
        %728 = vmatprep.subr.mxu0 %v672
        %729 = vmatpush1.msra.mxu0 %v671
        %730 = vmatprep.subr.mxu0 %v675
        %731 = vmatpush1.msra.mxu0 %v674
        %732 = vmatprep.subr.mxu0 %v678
        %733 = vmatpush1.msra.mxu0 %v677
        %734 = vmatprep.subr.mxu0 %v681
        %735 = vmatpush1.msra.mxu0 %v680
        %736 = vmatprep.subr.mxu0 %v684
        %737 = vmatpush1.msra.mxu0 %v683
        %738 = vmatprep.subr.mxu0 %v687
        %739 = vmatpush1.msra.mxu0 %v686
        %740 = vmatprep.subr.mxu0 %v690
        %741 = vmatpush1.msra.mxu0 %v689
        %742 = vmatprep.subr.mxu0 %v693
        %743 = vmatpush1.msra.mxu0 %v692
        %744 = vmatprep.subr.mxu0 0.0
        %745 = vmatpush1.msra.mxu0 0.0
        %746 = vmatprep.subr.mxu0 0.0
        %747 = vmatpush1.msra.mxu0 0.0
        %748 = vmatprep.subr.mxu0 0.0
        %749 = vmatpush1.msra.mxu0 0.0
        %750 = vmatprep.subr.mxu0 0.0
        %751 = vmatpush1.msra.mxu0 0.0
        %752 = vmatprep.subr.mxu0 0.0
        %753 = vmatpush1.msra.mxu0 0.0
        %754 = vmatprep.subr.mxu0 0.0
        %755 = vmatpush1.msra.mxu0 0.0
        %756 = vmatprep.subr.mxu0 0.0
        %757 = vmatpush1.msra.mxu0 0.0
        %758 = vmatprep.subr.mxu0 0.0
        %759 = vmatpush1.msra.mxu0 0.0
        %760 = vmatprep.subr.mxu0 0.0
        %761 = vmatpush1.msra.mxu0 0.0
        %762 = vmatprep.subr.mxu0 0.0
        %763 = vmatpush1.msra.mxu0 0.0
        %764 = vmatprep.subr.mxu0 0.0
        %765 = vmatpush1.msra.mxu0 0.0
        %766 = vmatprep.subr.mxu0 0.0
        %767 = vmatpush1.msra.mxu0 0.0
        %768 = vmatprep.subr.mxu0 0.0
        %769 = vmatpush1.msra.mxu0 0.0
        %770 = vmatprep.subr.mxu0 0.0
        %771 = vmatpush1.msra.mxu0 0.0
        %772 = vmatprep.subr.mxu0 0.0
        %773 = vmatpush1.msra.mxu0 0.0
        %774 = vmatprep.subr.mxu0 0.0
        %775 = vmatpush1.msra.mxu0 0.0
        %776 = vmatprep.mubr.f32.mxu0 0.0
        %777 = vmatmul.mubr.f32.gmra.mrb[0].mxu0 %v639
        %v778 = vpop.f32.mrb[0].mxu0
        %v779 = vadd.f32 %v700, %v778
        %v780 = vpop.f32.mrb[0].mxu0
        %v781 = vadd.f32 %v704, %v780
        %782 = vmatprep.mubr.f32.mxu0 0.0
        %783 = vmatmul.mubr.f32.gmra.mrb[0].mxu0 %v640
        %v784 = vpop.f32.mrb[0].mxu0
        %v785 = vadd.f32 %v700, %v784
        %v786 = vpop.f32.mrb[0].mxu0
        %v787 = vadd.f32 %v704, %v786
        %788 = vmatprep.mubr.f32.mxu0 0.0
        %789 = vmatmul.mubr.f32.gmra.mrb[0].mxu0 %v641
        %v790 = vpop.f32.mrb[0].mxu0
        %v791 = vadd.f32 %v700, %v790
        %v792 = vpop.f32.mrb[0].mxu0
        %v793 = vadd.f32 %v704, %v792
        %794 = vmatprep.mubr.f32.mxu0 0.0
        %795 = vmatmul.mubr.f32.gmra.mrb[0].mxu0 %v642
        %v796 = vpop.f32.mrb[0].mxu0
        %v797 = vadd.f32 %v700, %v796
        %v798 = vpop.f32.mrb[0].mxu0
        %v799 = vadd.f32 %v704, %v798
        %800 = vmatprep.mubr.f32.mxu0 0.0
        %801 = vmatmul.mubr.f32.gmra.mrb[0].mxu0 %v643
        %v802 = vpop.f32.mrb[0].mxu0
        %v803 = vadd.f32 %v700, %v802
        %v804 = vpop.f32.mrb[0].mxu0
        %v805 = vadd.f32 %v704, %v804
        %806 = vmatprep.mubr.f32.mxu0 0.0
        %807 = vmatmul.mubr.f32.gmra.mrb[0].mxu0 %v644
        %v808 = vpop.f32.mrb[0].mxu0
        %v809 = vadd.f32 %v700, %v808
        %v810 = vpop.f32.mrb[0].mxu0
        %v811 = vadd.f32 %v704, %v810
        %812 = vmatprep.mubr.f32.mxu0 0.0
        %813 = vmatmul.mubr.f32.gmra.mrb[0].mxu0 %v645
        %v814 = vpop.f32.mrb[0].mxu0
        %v815 = vadd.f32 %v700, %v814
        %v816 = vpop.f32.mrb[0].mxu0
        %v817 = vadd.f32 %v704, %v816
        %818 = vmatprep.mubr.f32.mxu0 0.0
        %819 = vmatmul.mubr.f32.gmra.mrb[0].mxu0 %v646
        %v820 = vpop.f32.mrb[0].mxu0
        %v821 = vadd.f32 %v700, %v820
        %v822 = vpop.f32.mrb[0].mxu0
        %v823 = vadd.f32 %v704, %v822
        %824 = vdwg.mxu0
        %825 = vmatprep.subr.mxu0 0.0
        %826 = vmatpush1.msra.mxu0 %v649
        %827 = vmatprep.subr.mxu0 0.0
        %828 = vmatpush1.msra.mxu0 %v652
        %829 = vmatprep.subr.mxu0 0.0
        %830 = vmatpush1.msra.mxu0 %v655
        %831 = vmatprep.subr.mxu0 0.0
        %832 = vmatpush1.msra.mxu0 %v658
        %833 = vmatprep.subr.mxu0 0.0
        %834 = vmatpush1.msra.mxu0 %v661
        %835 = vmatprep.subr.mxu0 0.0
        %836 = vmatpush1.msra.mxu0 %v664
        %837 = vmatprep.subr.mxu0 0.0
        %838 = vmatpush1.msra.mxu0 %v667
        %839 = vmatprep.subr.mxu0 0.0
        %840 = vmatpush1.msra.mxu0 %v670
        %841 = vmatprep.subr.mxu0 0.0
        %842 = vmatpush1.msra.mxu0 %v673
        %843 = vmatprep.subr.mxu0 0.0
        %844 = vmatpush1.msra.mxu0 %v676
        %845 = vmatprep.subr.mxu0 0.0
        %846 = vmatpush1.msra.mxu0 %v679
        %847 = vmatprep.subr.mxu0 0.0
        %848 = vmatpush1.msra.mxu0 %v682
        %849 = vmatprep.subr.mxu0 0.0
        %850 = vmatpush1.msra.mxu0 %v685
        %851 = vmatprep.subr.mxu0 0.0
        %852 = vmatpush1.msra.mxu0 %v688
        %853 = vmatprep.subr.mxu0 0.0
        %854 = vmatpush1.msra.mxu0 %v691
        %855 = vmatprep.subr.mxu0 0.0
        %856 = vmatpush1.msra.mxu0 %v694
        %857 = vmatprep.subr.mxu0 0.0
        %858 = vmatpush1.msra.mxu0 0.0
        %859 = vmatprep.subr.mxu0 0.0
        %860 = vmatpush1.msra.mxu0 0.0
        %861 = vmatprep.subr.mxu0 0.0
        %862 = vmatpush1.msra.mxu0 0.0
        %863 = vmatprep.subr.mxu0 0.0
        %864 = vmatpush1.msra.mxu0 0.0
        %865 = vmatprep.subr.mxu0 0.0
        %866 = vmatpush1.msra.mxu0 0.0
        %867 = vmatprep.subr.mxu0 0.0
        %868 = vmatpush1.msra.mxu0 0.0
        %869 = vmatprep.subr.mxu0 0.0
        %870 = vmatpush1.msra.mxu0 0.0
        %871 = vmatprep.subr.mxu0 0.0
        %872 = vmatpush1.msra.mxu0 0.0
        %873 = vmatprep.subr.mxu0 0.0
        %874 = vmatpush1.msra.mxu0 0.0
        %875 = vmatprep.subr.mxu0 0.0
        %876 = vmatpush1.msra.mxu0 0.0
        %877 = vmatprep.subr.mxu0 0.0
        %878 = vmatpush1.msra.mxu0 0.0
        %879 = vmatprep.subr.mxu0 0.0
        %880 = vmatpush1.msra.mxu0 0.0
        %881 = vmatprep.subr.mxu0 0.0
        %882 = vmatpush1.msra.mxu0 0.0
        %883 = vmatprep.subr.mxu0 0.0
        %884 = vmatpush1.msra.mxu0 0.0
        %885 = vmatprep.subr.mxu0 0.0
        %886 = vmatpush1.msra.mxu0 0.0
        %887 = vmatprep.subr.mxu0 0.0
        %888 = vmatpush1.msra.mxu0 0.0
        %889 = vmatprep.mubr.f32.mxu0 0.0
        %890 = vmatmul.mubr.f32.gmra.mrb[0].mxu0 %v639
        %v891 = vpop.f32.mrb[0].mxu0
        %v892 = vadd.f32 %v708, %v891
        %v893 = vpop.f32.mrb[0].mxu0
        %894 = vmatprep.mubr.f32.mxu0 0.0
        %895 = vmatmul.mubr.f32.gmra.mrb[0].mxu0 %v640
        %v896 = vpop.f32.mrb[0].mxu0
        %v897 = vadd.f32 %v708, %v896
        %v898 = vpop.f32.mrb[0].mxu0
        %899 = vmatprep.mubr.f32.mxu0 0.0
        %900 = vmatmul.mubr.f32.gmra.mrb[0].mxu0 %v641
        %v901 = vpop.f32.mrb[0].mxu0
        %v902 = vadd.f32 %v708, %v901
        %v903 = vpop.f32.mrb[0].mxu0
        %904 = vmatprep.mubr.f32.mxu0 0.0
        %905 = vmatmul.mubr.f32.gmra.mrb[0].mxu0 %v642
        %v906 = vpop.f32.mrb[0].mxu0
        %v907 = vadd.f32 %v708, %v906
        %v908 = vpop.f32.mrb[0].mxu0
        %909 = vmatprep.mubr.f32.mxu0 0.0
        %910 = vmatmul.mubr.f32.gmra.mrb[0].mxu0 %v643
        %v911 = vpop.f32.mrb[0].mxu0
        %v912 = vadd.f32 %v708, %v911
        %v913 = vpop.f32.mrb[0].mxu0
        %914 = vmatprep.mubr.f32.mxu0 0.0
        %915 = vmatmul.mubr.f32.gmra.mrb[0].mxu0 %v644
        %v916 = vpop.f32.mrb[0].mxu0
        %v917 = vadd.f32 %v708, %v916
        %v918 = vpop.f32.mrb[0].mxu0
        %919 = vmatprep.mubr.f32.mxu0 0.0
        %920 = vmatmul.mubr.f32.gmra.mrb[0].mxu0 %v645
        %v921 = vpop.f32.mrb[0].mxu0
        %v922 = vadd.f32 %v708, %v921
        %v923 = vpop.f32.mrb[0].mxu0
        %924 = vmatprep.mubr.f32.mxu0 0.0
        %925 = vmatmul.mubr.f32.gmra.mrb[0].mxu0 %v646
        %v926 = vpop.f32.mrb[0].mxu0
        %v927 = vadd.f32 %v708, %v926
        %v928 = vpop.f32.mrb[0].mxu0
        %929 = vdwg.mxu0
        %938 = vrot.lane.b32.xlu0 %v779, 96
        %v939 = vpop.permute.xlu0 %938
        %940 = vrot.lane.b32.xlu0 %v785, 96
        %v941 = vpop.permute.xlu0 %940
        %942 = vrot.lane.b32.xlu0 %v791, 96
        %v943 = vpop.permute.xlu0 %942
        %944 = vrot.lane.b32.xlu0 %v797, 96
        %v945 = vpop.permute.xlu0 %944
        %946 = vrot.lane.b32.xlu0 %v803, 96
        %v947 = vpop.permute.xlu0 %946
        %948 = vrot.lane.b32.xlu0 %v809, 96
        %v949 = vpop.permute.xlu0 %948
        %950 = vrot.lane.b32.xlu0 %v815, 96
        %v951 = vpop.permute.xlu0 %950
        %952 = vrot.lane.b32.xlu0 %v821, 96
        %v953 = vpop.permute.xlu0 %952
        %954 = vrot.lane.b32.xlu0 %v779, 64
        %v955 = vpop.permute.xlu0 %954
        %956 = vrot.lane.b32.xlu0 %v785, 64
        %v957 = vpop.permute.xlu0 %956
        %958 = vrot.lane.b32.xlu0 %v791, 64
        %v959 = vpop.permute.xlu0 %958
        %960 = vrot.lane.b32.xlu0 %v797, 64
        %v961 = vpop.permute.xlu0 %960
        %962 = vrot.lane.b32.xlu0 %v803, 64
        %v963 = vpop.permute.xlu0 %962
        %964 = vrot.lane.b32.xlu0 %v809, 64
        %v965 = vpop.permute.xlu0 %964
        %966 = vrot.lane.b32.xlu0 %v815, 64
        %v967 = vpop.permute.xlu0 %966
        %968 = vrot.lane.b32.xlu0 %v821, 64
        %v969 = vpop.permute.xlu0 %968
        %970 = vrot.lane.b32.xlu0 %v779, 32
        %v971 = vpop.permute.xlu0 %970
        %972 = vrot.lane.b32.xlu0 %v785, 32
        %v973 = vpop.permute.xlu0 %972
        %974 = vrot.lane.b32.xlu0 %v791, 32
        %v975 = vpop.permute.xlu0 %974
        %976 = vrot.lane.b32.xlu0 %v797, 32
        %v977 = vpop.permute.xlu0 %976
        %978 = vrot.lane.b32.xlu0 %v803, 32
        %v979 = vpop.permute.xlu0 %978
        %980 = vrot.lane.b32.xlu0 %v809, 32
        %v981 = vpop.permute.xlu0 %980
        %982 = vrot.lane.b32.xlu0 %v815, 32
        %v983 = vpop.permute.xlu0 %982
        %984 = vrot.lane.b32.xlu0 %v821, 32
        %v985 = vpop.permute.xlu0 %984
        %994 = vrot.lane.b32.xlu0 %v781, 96
        %v995 = vpop.permute.xlu0 %994
        %996 = vrot.lane.b32.xlu0 %v787, 96
        %v997 = vpop.permute.xlu0 %996
        %998 = vrot.lane.b32.xlu0 %v793, 96
        %v999 = vpop.permute.xlu0 %998
        %1000 = vrot.lane.b32.xlu0 %v799, 96
        %v1001 = vpop.permute.xlu0 %1000
        %1002 = vrot.lane.b32.xlu0 %v805, 96
        %v1003 = vpop.permute.xlu0 %1002
        %1004 = vrot.lane.b32.xlu0 %v811, 96
        %v1005 = vpop.permute.xlu0 %1004
        %1006 = vrot.lane.b32.xlu0 %v817, 96
        %v1007 = vpop.permute.xlu0 %1006
        %1008 = vrot.lane.b32.xlu0 %v823, 96
        %v1009 = vpop.permute.xlu0 %1008
        %1010 = vrot.lane.b32.xlu0 %v781, 64
        %v1011 = vpop.permute.xlu0 %1010
        %1012 = vrot.lane.b32.xlu0 %v787, 64
        %v1013 = vpop.permute.xlu0 %1012
        %1014 = vrot.lane.b32.xlu0 %v793, 64
        %v1015 = vpop.permute.xlu0 %1014
        %1016 = vrot.lane.b32.xlu0 %v799, 64
        %v1017 = vpop.permute.xlu0 %1016
        %1018 = vrot.lane.b32.xlu0 %v805, 64
        %v1019 = vpop.permute.xlu0 %1018
        %1020 = vrot.lane.b32.xlu0 %v811, 64
        %v1021 = vpop.permute.xlu0 %1020
        %1022 = vrot.lane.b32.xlu0 %v817, 64
        %v1023 = vpop.permute.xlu0 %1022
        %1024 = vrot.lane.b32.xlu0 %v823, 64
        %v1025 = vpop.permute.xlu0 %1024
        %1026 = vrot.lane.b32.xlu0 %v781, 32
        %v1027 = vpop.permute.xlu0 %1026
        %1028 = vrot.lane.b32.xlu0 %v787, 32
        %v1029 = vpop.permute.xlu0 %1028
        %1030 = vrot.lane.b32.xlu0 %v793, 32
        %v1031 = vpop.permute.xlu0 %1030
        %1032 = vrot.lane.b32.xlu0 %v799, 32
        %v1033 = vpop.permute.xlu0 %1032
        %1034 = vrot.lane.b32.xlu0 %v805, 32
        %v1035 = vpop.permute.xlu0 %1034
        %1036 = vrot.lane.b32.xlu0 %v811, 32
        %v1037 = vpop.permute.xlu0 %1036
        %1038 = vrot.lane.b32.xlu0 %v817, 32
        %v1039 = vpop.permute.xlu0 %1038
        %1040 = vrot.lane.b32.xlu0 %v823, 32
        %v1041 = vpop.permute.xlu0 %1040
        %1050 = vrot.lane.b32.xlu0 %v892, 96
        %v1051 = vpop.permute.xlu0 %1050
        %1052 = vrot.lane.b32.xlu0 %v897, 96
        %v1053 = vpop.permute.xlu0 %1052
        %1054 = vrot.lane.b32.xlu0 %v902, 96
        %v1055 = vpop.permute.xlu0 %1054
        %1056 = vrot.lane.b32.xlu0 %v907, 96
        %v1057 = vpop.permute.xlu0 %1056
        %1058 = vrot.lane.b32.xlu0 %v912, 96
        %v1059 = vpop.permute.xlu0 %1058
        %1060 = vrot.lane.b32.xlu0 %v917, 96
        %v1061 = vpop.permute.xlu0 %1060
        %1062 = vrot.lane.b32.xlu0 %v922, 96
        %v1063 = vpop.permute.xlu0 %1062
        %1064 = vrot.lane.b32.xlu0 %v927, 96
        %v1065 = vpop.permute.xlu0 %1064
        %1074 = vrot.lane.b32.xlu0 %v892, 64
        %v1075 = vpop.permute.xlu0 %1074
        %1076 = vrot.lane.b32.xlu0 %v897, 64
        %v1077 = vpop.permute.xlu0 %1076
        %1078 = vrot.lane.b32.xlu0 %v902, 64
        %v1079 = vpop.permute.xlu0 %1078
        %1080 = vrot.lane.b32.xlu0 %v907, 64
        %v1081 = vpop.permute.xlu0 %1080
        %1082 = vrot.lane.b32.xlu0 %v912, 64
        %v1083 = vpop.permute.xlu0 %1082
        %1084 = vrot.lane.b32.xlu0 %v917, 64
        %v1085 = vpop.permute.xlu0 %1084
        %1086 = vrot.lane.b32.xlu0 %v922, 64
        %v1087 = vpop.permute.xlu0 %1086
        %1088 = vrot.lane.b32.xlu0 %v927, 64
        %v1089 = vpop.permute.xlu0 %1088
        %1098 = vrot.lane.b32.xlu0 %v892, 32
        %v1099 = vpop.permute.xlu0 %1098
        %1100 = vrot.lane.b32.xlu0 %v897, 32
        %v1101 = vpop.permute.xlu0 %1100
        %1102 = vrot.lane.b32.xlu0 %v902, 32
        %v1103 = vpop.permute.xlu0 %1102
        %1104 = vrot.lane.b32.xlu0 %v907, 32
        %v1105 = vpop.permute.xlu0 %1104
        %1106 = vrot.lane.b32.xlu0 %v912, 32
        %v1107 = vpop.permute.xlu0 %1106
        %1108 = vrot.lane.b32.xlu0 %v917, 32
        %v1109 = vpop.permute.xlu0 %1108
        %1110 = vrot.lane.b32.xlu0 %v922, 32
        %v1111 = vpop.permute.xlu0 %1110
        %1112 = vrot.lane.b32.xlu0 %v927, 32
        %v1113 = vpop.permute.xlu0 %1112
        %vm1122 = vcmask 261120
        %v1123 = vsel %vm1122, %v779, 0
        %v1125 = vsel %vm1122, %v785, 0
        %v1127 = vsel %vm1122, %v781, 0
        %v1129 = vsel %vm1122, %v787, 0
        %1131 = vmatprep.subr.mxu0 0.0
        %1132 = vmatpush1.xpose.msra.mxu0 %v1127
        %1133 = vmatprep.subr.mxu0 0.0
        %1134 = vmatpush1.xpose.msra.mxu0 %v1129
        %1135 = vmatprep.subr.mxu0 0.0
        %1136 = vmatpush1.xpose.msra.mxu0 0.0
        %1137 = vmatprep.subr.mxu0 0.0
        %1138 = vmatpush1.xpose.msra.mxu0 0.0
        %1139 = vmatprep.subr.mxu0 0.0
        %1140 = vmatpush1.xpose.msra.mxu0 0.0
        %1141 = vmatprep.subr.mxu0 0.0
        %1142 = vmatpush1.xpose.msra.mxu0 0.0
        %1143 = vmatprep.subr.mxu0 0.0
        %1144 = vmatpush1.xpose.msra.mxu0 0.0
        %1145 = vmatprep.subr.mxu0 0.0
        %1146 = vmatpush1.xpose.msra.mxu0 0.0
        %1147 = vmatprep.subr.mxu0 0.0
        %1148 = vmatpush1.xpose.msra.mxu0 0.0
        %1149 = vmatprep.subr.mxu0 0.0
        %1150 = vmatpush1.xpose.msra.mxu0 0.0
        %1151 = vmatprep.subr.mxu0 0.0
        %1152 = vmatpush1.xpose.msra.mxu0 0.0
        %1153 = vmatprep.subr.mxu0 0.0
        %1154 = vmatpush1.xpose.msra.mxu0 0.0
        %1155 = vmatprep.subr.mxu0 0.0
        %1156 = vmatpush1.xpose.msra.mxu0 0.0
        %1157 = vmatprep.subr.mxu0 0.0
        %1158 = vmatpush1.xpose.msra.mxu0 0.0
        %1159 = vmatprep.subr.mxu0 0.0
        %1160 = vmatpush1.xpose.msra.mxu0 0.0
        %1161 = vmatprep.subr.mxu0 0.0
        %1162 = vmatpush1.xpose.msra.mxu0 0.0
        %1163 = vmatprep.subr.mxu0 0.0
        %1164 = vmatpush1.xpose.msra.mxu0 0.0
        %1165 = vmatprep.subr.mxu0 0.0
        %1166 = vmatpush1.xpose.msra.mxu0 0.0
        %1167 = vmatprep.subr.mxu0 0.0
        %1168 = vmatpush1.xpose.msra.mxu0 0.0
        %1169 = vmatprep.subr.mxu0 0.0
        %1170 = vmatpush1.xpose.msra.mxu0 0.0
        %1171 = vmatprep.subr.mxu0 0.0
        %1172 = vmatpush1.xpose.msra.mxu0 0.0
        %1173 = vmatprep.subr.mxu0 0.0
        %1174 = vmatpush1.xpose.msra.mxu0 0.0
        %1175 = vmatprep.subr.mxu0 0.0
        %1176 = vmatpush1.xpose.msra.mxu0 0.0
        %1177 = vmatprep.subr.mxu0 0.0
        %1178 = vmatpush1.xpose.msra.mxu0 0.0
        %1179 = vmatprep.subr.mxu0 0.0
        %1180 = vmatpush1.xpose.msra.mxu0 0.0
        %1181 = vmatprep.subr.mxu0 0.0
        %1182 = vmatpush1.xpose.msra.mxu0 0.0
        %1183 = vmatprep.subr.mxu0 0.0
        %1184 = vmatpush1.xpose.msra.mxu0 0.0
        %1185 = vmatprep.subr.mxu0 0.0
        %1186 = vmatpush1.xpose.msra.mxu0 0.0
        %1187 = vmatprep.subr.mxu0 0.0
        %1188 = vmatpush1.xpose.msra.mxu0 0.0
        %1189 = vmatprep.subr.mxu0 0.0
        %1190 = vmatpush1.xpose.msra.mxu0 0.0
        %1191 = vmatprep.subr.mxu0 0.0
        %1192 = vmatpush1.xpose.msra.mxu0 0.0
        %1193 = vmatprep.subr.mxu0 0.0
        %1194 = vmatpush1.xpose.msra.mxu0 0.0
        %1195 = vmatprep.mubr.f32.mxu0 0.0
        %1196 = vmatmul.mubr.f32.gmra.mrb[0].mxu0 %v1123
        %v1197 = vpop.f32.mrb[0].mxu0
        %v1198 = vadd.f32 0.0, %v1197
        %v1199 = vpop.f32.mrb[0].mxu0
        %1200 = vmatprep.mubr.f32.mxu0 0.0
        %1201 = vmatmul.mubr.f32.gmra.mrb[0].mxu0 %v1125
        %v1202 = vpop.f32.mrb[0].mxu0
        %v1203 = vadd.f32 0.0, %v1202
        %v1204 = vpop.f32.mrb[0].mxu0
        %1205 = vdwg.mxu0
        %v1206 = vsel %vm1122, %v791, 0
        %v1208 = vsel %vm1122, %v797, 0
        %v1210 = vsel %vm1122, %v793, 0
        %v1212 = vsel %vm1122, %v799, 0
        %1214 = vmatprep.subr.mxu0 0.0
        %1215 = vmatpush1.xpose.msra.mxu0 %v1210
        %1216 = vmatprep.subr.mxu0 0.0
        %1217 = vmatpush1.xpose.msra.mxu0 %v1212
        %1218 = vmatprep.subr.mxu0 0.0
        %1219 = vmatpush1.xpose.msra.mxu0 0.0
        %1220 = vmatprep.subr.mxu0 0.0
        %1221 = vmatpush1.xpose.msra.mxu0 0.0
        %1222 = vmatprep.subr.mxu0 0.0
        %1223 = vmatpush1.xpose.msra.mxu0 0.0
        %1224 = vmatprep.subr.mxu0 0.0
        %1225 = vmatpush1.xpose.msra.mxu0 0.0
        %1226 = vmatprep.subr.mxu0 0.0
        %1227 = vmatpush1.xpose.msra.mxu0 0.0
        %1228 = vmatprep.subr.mxu0 0.0
        %1229 = vmatpush1.xpose.msra.mxu0 0.0
        %1230 = vmatprep.subr.mxu0 0.0
        %1231 = vmatpush1.xpose.msra.mxu0 0.0
        %1232 = vmatprep.subr.mxu0 0.0
        %1233 = vmatpush1.xpose.msra.mxu0 0.0
        %1234 = vmatprep.subr.mxu0 0.0
        %1235 = vmatpush1.xpose.msra.mxu0 0.0
        %1236 = vmatprep.subr.mxu0 0.0
        %1237 = vmatpush1.xpose.msra.mxu0 0.0
        %1238 = vmatprep.subr.mxu0 0.0
        %1239 = vmatpush1.xpose.msra.mxu0 0.0
        %1240 = vmatprep.subr.mxu0 0.0
        %1241 = vmatpush1.xpose.msra.mxu0 0.0
        %1242 = vmatprep.subr.mxu0 0.0
        %1243 = vmatpush1.xpose.msra.mxu0 0.0
        %1244 = vmatprep.subr.mxu0 0.0
        %1245 = vmatpush1.xpose.msra.mxu0 0.0
        %1246 = vmatprep.subr.mxu0 0.0
        %1247 = vmatpush1.xpose.msra.mxu0 0.0
        %1248 = vmatprep.subr.mxu0 0.0
        %1249 = vmatpush1.xpose.msra.mxu0 0.0
        %1250 = vmatprep.subr.mxu0 0.0
        %1251 = vmatpush1.xpose.msra.mxu0 0.0
        %1252 = vmatprep.subr.mxu0 0.0
        %1253 = vmatpush1.xpose.msra.mxu0 0.0
        %1254 = vmatprep.subr.mxu0 0.0
        %1255 = vmatpush1.xpose.msra.mxu0 0.0
        %1256 = vmatprep.subr.mxu0 0.0
        %1257 = vmatpush1.xpose.msra.mxu0 0.0
        %1258 = vmatprep.subr.mxu0 0.0
        %1259 = vmatpush1.xpose.msra.mxu0 0.0
        %1260 = vmatprep.subr.mxu0 0.0
        %1261 = vmatpush1.xpose.msra.mxu0 0.0
        %1262 = vmatprep.subr.mxu0 0.0
        %1263 = vmatpush1.xpose.msra.mxu0 0.0
        %1264 = vmatprep.subr.mxu0 0.0
        %1265 = vmatpush1.xpose.msra.mxu0 0.0
        %1266 = vmatprep.subr.mxu0 0.0
        %1267 = vmatpush1.xpose.msra.mxu0 0.0
        %1268 = vmatprep.subr.mxu0 0.0
        %1269 = vmatpush1.xpose.msra.mxu0 0.0
        %1270 = vmatprep.subr.mxu0 0.0
        %1271 = vmatpush1.xpose.msra.mxu0 0.0
        %1272 = vmatprep.subr.mxu0 0.0
        %1273 = vmatpush1.xpose.msra.mxu0 0.0
        %1274 = vmatprep.subr.mxu0 0.0
        %1275 = vmatpush1.xpose.msra.mxu0 0.0
        %1276 = vmatprep.subr.mxu0 0.0
        %1277 = vmatpush1.xpose.msra.mxu0 0.0
        %1278 = vmatprep.mubr.f32.mxu0 0.0
        %1279 = vmatmul.mubr.f32.gmra.mrb[0].mxu0 %v1206
        %v1280 = vpop.f32.mrb[0].mxu0
        %v1281 = vadd.f32 0.0, %v1280
        %v1282 = vpop.f32.mrb[0].mxu0
        %1283 = vmatprep.mubr.f32.mxu0 0.0
        %1284 = vmatmul.mubr.f32.gmra.mrb[0].mxu0 %v1208
        %v1285 = vpop.f32.mrb[0].mxu0
        %v1286 = vadd.f32 0.0, %v1285
        %v1287 = vpop.f32.mrb[0].mxu0
        %1288 = vdwg.mxu0
        %v1289 = vsel %vm1122, %v803, 0
        %v1291 = vsel %vm1122, %v809, 0
        %v1293 = vsel %vm1122, %v805, 0
        %v1295 = vsel %vm1122, %v811, 0
        %1297 = vmatprep.subr.mxu0 0.0
        %1298 = vmatpush1.xpose.msra.mxu0 %v1293
        %1299 = vmatprep.subr.mxu0 0.0
        %1300 = vmatpush1.xpose.msra.mxu0 %v1295
        %1301 = vmatprep.subr.mxu0 0.0
        %1302 = vmatpush1.xpose.msra.mxu0 0.0
        %1303 = vmatprep.subr.mxu0 0.0
        %1304 = vmatpush1.xpose.msra.mxu0 0.0
        %1305 = vmatprep.subr.mxu0 0.0
        %1306 = vmatpush1.xpose.msra.mxu0 0.0
        %1307 = vmatprep.subr.mxu0 0.0
        %1308 = vmatpush1.xpose.msra.mxu0 0.0
        %1309 = vmatprep.subr.mxu0 0.0
        %1310 = vmatpush1.xpose.msra.mxu0 0.0
        %1311 = vmatprep.subr.mxu0 0.0
        %1312 = vmatpush1.xpose.msra.mxu0 0.0
        %1313 = vmatprep.subr.mxu0 0.0
        %1314 = vmatpush1.xpose.msra.mxu0 0.0
        %1315 = vmatprep.subr.mxu0 0.0
        %1316 = vmatpush1.xpose.msra.mxu0 0.0
        %1317 = vmatprep.subr.mxu0 0.0
        %1318 = vmatpush1.xpose.msra.mxu0 0.0
        %1319 = vmatprep.subr.mxu0 0.0
        %1320 = vmatpush1.xpose.msra.mxu0 0.0
        %1321 = vmatprep.subr.mxu0 0.0
        %1322 = vmatpush1.xpose.msra.mxu0 0.0
        %1323 = vmatprep.subr.mxu0 0.0
        %1324 = vmatpush1.xpose.msra.mxu0 0.0
        %1325 = vmatprep.subr.mxu0 0.0
        %1326 = vmatpush1.xpose.msra.mxu0 0.0
        %1327 = vmatprep.subr.mxu0 0.0
        %1328 = vmatpush1.xpose.msra.mxu0 0.0
        %1329 = vmatprep.subr.mxu0 0.0
        %1330 = vmatpush1.xpose.msra.mxu0 0.0
        %1331 = vmatprep.subr.mxu0 0.0
        %1332 = vmatpush1.xpose.msra.mxu0 0.0
        %1333 = vmatprep.subr.mxu0 0.0
        %1334 = vmatpush1.xpose.msra.mxu0 0.0
        %1335 = vmatprep.subr.mxu0 0.0
        %1336 = vmatpush1.xpose.msra.mxu0 0.0
        %1337 = vmatprep.subr.mxu0 0.0
        %1338 = vmatpush1.xpose.msra.mxu0 0.0
        %1339 = vmatprep.subr.mxu0 0.0
        %1340 = vmatpush1.xpose.msra.mxu0 0.0
        %1341 = vmatprep.subr.mxu0 0.0
        %1342 = vmatpush1.xpose.msra.mxu0 0.0
        %1343 = vmatprep.subr.mxu0 0.0
        %1344 = vmatpush1.xpose.msra.mxu0 0.0
        %1345 = vmatprep.subr.mxu0 0.0
        %1346 = vmatpush1.xpose.msra.mxu0 0.0
        %1347 = vmatprep.subr.mxu0 0.0
        %1348 = vmatpush1.xpose.msra.mxu0 0.0
        %1349 = vmatprep.subr.mxu0 0.0
        %1350 = vmatpush1.xpose.msra.mxu0 0.0
        %1351 = vmatprep.subr.mxu0 0.0
        %1352 = vmatpush1.xpose.msra.mxu0 0.0
        %1353 = vmatprep.subr.mxu0 0.0
        %1354 = vmatpush1.xpose.msra.mxu0 0.0
        %1355 = vmatprep.subr.mxu0 0.0
        %1356 = vmatpush1.xpose.msra.mxu0 0.0
        %1357 = vmatprep.subr.mxu0 0.0
        %1358 = vmatpush1.xpose.msra.mxu0 0.0
        %1359 = vmatprep.subr.mxu0 0.0
        %1360 = vmatpush1.xpose.msra.mxu0 0.0
        %1361 = vmatprep.mubr.f32.mxu0 0.0
        %1362 = vmatmul.mubr.f32.gmra.mrb[0].mxu0 %v1289
        %v1363 = vpop.f32.mrb[0].mxu0
        %v1364 = vadd.f32 0.0, %v1363
        %v1365 = vpop.f32.mrb[0].mxu0
        %1366 = vmatprep.mubr.f32.mxu0 0.0
        %1367 = vmatmul.mubr.f32.gmra.mrb[0].mxu0 %v1291
        %v1368 = vpop.f32.mrb[0].mxu0
        %v1369 = vadd.f32 0.0, %v1368
        %v1370 = vpop.f32.mrb[0].mxu0
        %1371 = vdwg.mxu0
        %v1372 = vsel %vm1122, %v815, 0
        %v1374 = vsel %vm1122, %v821, 0
        %v1376 = vsel %vm1122, %v817, 0
        %v1378 = vsel %vm1122, %v823, 0
        %1380 = vmatprep.subr.mxu0 0.0
        %1381 = vmatpush1.xpose.msra.mxu0 %v1376
        %1382 = vmatprep.subr.mxu0 0.0
        %1383 = vmatpush1.xpose.msra.mxu0 %v1378
        %1384 = vmatprep.subr.mxu0 0.0
        %1385 = vmatpush1.xpose.msra.mxu0 0.0
        %1386 = vmatprep.subr.mxu0 0.0
        %1387 = vmatpush1.xpose.msra.mxu0 0.0
        %1388 = vmatprep.subr.mxu0 0.0
        %1389 = vmatpush1.xpose.msra.mxu0 0.0
        %1390 = vmatprep.subr.mxu0 0.0
        %1391 = vmatpush1.xpose.msra.mxu0 0.0
        %1392 = vmatprep.subr.mxu0 0.0
        %1393 = vmatpush1.xpose.msra.mxu0 0.0
        %1394 = vmatprep.subr.mxu0 0.0
        %1395 = vmatpush1.xpose.msra.mxu0 0.0
        %1396 = vmatprep.subr.mxu0 0.0
        %1397 = vmatpush1.xpose.msra.mxu0 0.0
        %1398 = vmatprep.subr.mxu0 0.0
        %1399 = vmatpush1.xpose.msra.mxu0 0.0
        %1400 = vmatprep.subr.mxu0 0.0
        %1401 = vmatpush1.xpose.msra.mxu0 0.0
        %1402 = vmatprep.subr.mxu0 0.0
        %1403 = vmatpush1.xpose.msra.mxu0 0.0
        %1404 = vmatprep.subr.mxu0 0.0
        %1405 = vmatpush1.xpose.msra.mxu0 0.0
        %1406 = vmatprep.subr.mxu0 0.0
        %1407 = vmatpush1.xpose.msra.mxu0 0.0
        %1408 = vmatprep.subr.mxu0 0.0
        %1409 = vmatpush1.xpose.msra.mxu0 0.0
        %1410 = vmatprep.subr.mxu0 0.0
        %1411 = vmatpush1.xpose.msra.mxu0 0.0
        %1412 = vmatprep.subr.mxu0 0.0
        %1413 = vmatpush1.xpose.msra.mxu0 0.0
        %1414 = vmatprep.subr.mxu0 0.0
        %1415 = vmatpush1.xpose.msra.mxu0 0.0
        %1416 = vmatprep.subr.mxu0 0.0
        %1417 = vmatpush1.xpose.msra.mxu0 0.0
        %1418 = vmatprep.subr.mxu0 0.0
        %1419 = vmatpush1.xpose.msra.mxu0 0.0
        %1420 = vmatprep.subr.mxu0 0.0
        %1421 = vmatpush1.xpose.msra.mxu0 0.0
        %1422 = vmatprep.subr.mxu0 0.0
        %1423 = vmatpush1.xpose.msra.mxu0 0.0
        %1424 = vmatprep.subr.mxu0 0.0
        %1425 = vmatpush1.xpose.msra.mxu0 0.0
        %1426 = vmatprep.subr.mxu0 0.0
        %1427 = vmatpush1.xpose.msra.mxu0 0.0
        %1428 = vmatprep.subr.mxu0 0.0
        %1429 = vmatpush1.xpose.msra.mxu0 0.0
        %1430 = vmatprep.subr.mxu0 0.0
        %1431 = vmatpush1.xpose.msra.mxu0 0.0
        %1432 = vmatprep.subr.mxu0 0.0
        %1433 = vmatpush1.xpose.msra.mxu0 0.0
        %1434 = vmatprep.subr.mxu0 0.0
        %1435 = vmatpush1.xpose.msra.mxu0 0.0
        %1436 = vmatprep.subr.mxu0 0.0
        %1437 = vmatpush1.xpose.msra.mxu0 0.0
        %1438 = vmatprep.subr.mxu0 0.0
        %1439 = vmatpush1.xpose.msra.mxu0 0.0
        %1440 = vmatprep.subr.mxu0 0.0
        %1441 = vmatpush1.xpose.msra.mxu0 0.0
        %1442 = vmatprep.subr.mxu0 0.0
        %1443 = vmatpush1.xpose.msra.mxu0 0.0
        %1444 = vmatprep.mubr.f32.mxu0 0.0
        %1445 = vmatmul.mubr.f32.gmra.mrb[0].mxu0 %v1372
        %v1446 = vpop.f32.mrb[0].mxu0
        %v1447 = vadd.f32 0.0, %v1446
        %v1448 = vpop.f32.mrb[0].mxu0
        %1449 = vmatprep.mubr.f32.mxu0 0.0
        %1450 = vmatmul.mubr.f32.gmra.mrb[0].mxu0 %v1374
        %v1451 = vpop.f32.mrb[0].mxu0
        %v1452 = vadd.f32 0.0, %v1451
        %v1453 = vpop.f32.mrb[0].mxu0
        %1454 = vdwg.mxu0
        %v1455 = vsel %vm1122, %v939, 0
        %v1457 = vsel %vm1122, %v941, 0
        %v1459 = vsel %vm1122, %v995, 0
        %v1461 = vsel %vm1122, %v997, 0
        %1463 = vmatprep.subr.mxu0 0.0
        %1464 = vmatpush1.xpose.msra.mxu0 %v1459
        %1465 = vmatprep.subr.mxu0 0.0
        %1466 = vmatpush1.xpose.msra.mxu0 %v1461
        %1467 = vmatprep.subr.mxu0 0.0
        %1468 = vmatpush1.xpose.msra.mxu0 0.0
        %1469 = vmatprep.subr.mxu0 0.0
        %1470 = vmatpush1.xpose.msra.mxu0 0.0
        %1471 = vmatprep.subr.mxu0 0.0
        %1472 = vmatpush1.xpose.msra.mxu0 0.0
        %1473 = vmatprep.subr.mxu0 0.0
        %1474 = vmatpush1.xpose.msra.mxu0 0.0
        %1475 = vmatprep.subr.mxu0 0.0
        %1476 = vmatpush1.xpose.msra.mxu0 0.0
        %1477 = vmatprep.subr.mxu0 0.0
        %1478 = vmatpush1.xpose.msra.mxu0 0.0
        %1479 = vmatprep.subr.mxu0 0.0
        %1480 = vmatpush1.xpose.msra.mxu0 0.0
        %1481 = vmatprep.subr.mxu0 0.0
        %1482 = vmatpush1.xpose.msra.mxu0 0.0
        %1483 = vmatprep.subr.mxu0 0.0
        %1484 = vmatpush1.xpose.msra.mxu0 0.0
        %1485 = vmatprep.subr.mxu0 0.0
        %1486 = vmatpush1.xpose.msra.mxu0 0.0
        %1487 = vmatprep.subr.mxu0 0.0
        %1488 = vmatpush1.xpose.msra.mxu0 0.0
        %1489 = vmatprep.subr.mxu0 0.0
        %1490 = vmatpush1.xpose.msra.mxu0 0.0
        %1491 = vmatprep.subr.mxu0 0.0
        %1492 = vmatpush1.xpose.msra.mxu0 0.0
        %1493 = vmatprep.subr.mxu0 0.0
        %1494 = vmatpush1.xpose.msra.mxu0 0.0
        %1495 = vmatprep.subr.mxu0 0.0
        %1496 = vmatpush1.xpose.msra.mxu0 0.0
        %1497 = vmatprep.subr.mxu0 0.0
        %1498 = vmatpush1.xpose.msra.mxu0 0.0
        %1499 = vmatprep.subr.mxu0 0.0
        %1500 = vmatpush1.xpose.msra.mxu0 0.0
        %1501 = vmatprep.subr.mxu0 0.0
        %1502 = vmatpush1.xpose.msra.mxu0 0.0
        %1503 = vmatprep.subr.mxu0 0.0
        %1504 = vmatpush1.xpose.msra.mxu0 0.0
        %1505 = vmatprep.subr.mxu0 0.0
        %1506 = vmatpush1.xpose.msra.mxu0 0.0
        %1507 = vmatprep.subr.mxu0 0.0
        %1508 = vmatpush1.xpose.msra.mxu0 0.0
        %1509 = vmatprep.subr.mxu0 0.0
        %1510 = vmatpush1.xpose.msra.mxu0 0.0
        %1511 = vmatprep.subr.mxu0 0.0
        %1512 = vmatpush1.xpose.msra.mxu0 0.0
        %1513 = vmatprep.subr.mxu0 0.0
        %1514 = vmatpush1.xpose.msra.mxu0 0.0
        %1515 = vmatprep.subr.mxu0 0.0
        %1516 = vmatpush1.xpose.msra.mxu0 0.0
        %1517 = vmatprep.subr.mxu0 0.0
        %1518 = vmatpush1.xpose.msra.mxu0 0.0
        %1519 = vmatprep.subr.mxu0 0.0
        %1520 = vmatpush1.xpose.msra.mxu0 0.0
        %1521 = vmatprep.subr.mxu0 0.0
        %1522 = vmatpush1.xpose.msra.mxu0 0.0
        %1523 = vmatprep.subr.mxu0 0.0
        %1524 = vmatpush1.xpose.msra.mxu0 0.0
        %1525 = vmatprep.subr.mxu0 0.0
        %1526 = vmatpush1.xpose.msra.mxu0 0.0
        %1527 = vmatprep.mubr.f32.mxu0 0.0
        %1528 = vmatmul.mubr.f32.gmra.mrb[0].mxu0 %v1455
        %v1529 = vpop.f32.mrb[0].mxu0
        %v1530 = vadd.f32 0.0, %v1529
        %v1531 = vpop.f32.mrb[0].mxu0
        %1532 = vmatprep.mubr.f32.mxu0 0.0
        %1533 = vmatmul.mubr.f32.gmra.mrb[0].mxu0 %v1457
        %v1534 = vpop.f32.mrb[0].mxu0
        %v1535 = vadd.f32 0.0, %v1534
        %v1536 = vpop.f32.mrb[0].mxu0
        %1537 = vdwg.mxu0
        %v1538 = vsel %vm1122, %v943, 0
        %v1540 = vsel %vm1122, %v945, 0
        %v1542 = vsel %vm1122, %v999, 0
        %v1544 = vsel %vm1122, %v1001, 0
        %1546 = vmatprep.subr.mxu0 0.0
        %1547 = vmatpush1.xpose.msra.mxu0 %v1542
        %1548 = vmatprep.subr.mxu0 0.0
        %1549 = vmatpush1.xpose.msra.mxu0 %v1544
        %1550 = vmatprep.subr.mxu0 0.0
        %1551 = vmatpush1.xpose.msra.mxu0 0.0
        %1552 = vmatprep.subr.mxu0 0.0
        %1553 = vmatpush1.xpose.msra.mxu0 0.0
        %1554 = vmatprep.subr.mxu0 0.0
        %1555 = vmatpush1.xpose.msra.mxu0 0.0
        %1556 = vmatprep.subr.mxu0 0.0
        %1557 = vmatpush1.xpose.msra.mxu0 0.0
        %1558 = vmatprep.subr.mxu0 0.0
        %1559 = vmatpush1.xpose.msra.mxu0 0.0
        %1560 = vmatprep.subr.mxu0 0.0
        %1561 = vmatpush1.xpose.msra.mxu0 0.0
        %1562 = vmatprep.subr.mxu0 0.0
        %1563 = vmatpush1.xpose.msra.mxu0 0.0
        %1564 = vmatprep.subr.mxu0 0.0
        %1565 = vmatpush1.xpose.msra.mxu0 0.0
        %1566 = vmatprep.subr.mxu0 0.0
        %1567 = vmatpush1.xpose.msra.mxu0 0.0
        %1568 = vmatprep.subr.mxu0 0.0
        %1569 = vmatpush1.xpose.msra.mxu0 0.0
        %1570 = vmatprep.subr.mxu0 0.0
        %1571 = vmatpush1.xpose.msra.mxu0 0.0
        %1572 = vmatprep.subr.mxu0 0.0
        %1573 = vmatpush1.xpose.msra.mxu0 0.0
        %1574 = vmatprep.subr.mxu0 0.0
        %1575 = vmatpush1.xpose.msra.mxu0 0.0
        %1576 = vmatprep.subr.mxu0 0.0
        %1577 = vmatpush1.xpose.msra.mxu0 0.0
        %1578 = vmatprep.subr.mxu0 0.0
        %1579 = vmatpush1.xpose.msra.mxu0 0.0
        %1580 = vmatprep.subr.mxu0 0.0
        %1581 = vmatpush1.xpose.msra.mxu0 0.0
        %1582 = vmatprep.subr.mxu0 0.0
        %1583 = vmatpush1.xpose.msra.mxu0 0.0
        %1584 = vmatprep.subr.mxu0 0.0
        %1585 = vmatpush1.xpose.msra.mxu0 0.0
        %1586 = vmatprep.subr.mxu0 0.0
        %1587 = vmatpush1.xpose.msra.mxu0 0.0
        %1588 = vmatprep.subr.mxu0 0.0
        %1589 = vmatpush1.xpose.msra.mxu0 0.0
        %1590 = vmatprep.subr.mxu0 0.0
        %1591 = vmatpush1.xpose.msra.mxu0 0.0
        %1592 = vmatprep.subr.mxu0 0.0
        %1593 = vmatpush1.xpose.msra.mxu0 0.0
        %1594 = vmatprep.subr.mxu0 0.0
        %1595 = vmatpush1.xpose.msra.mxu0 0.0
        %1596 = vmatprep.subr.mxu0 0.0
        %1597 = vmatpush1.xpose.msra.mxu0 0.0
        %1598 = vmatprep.subr.mxu0 0.0
        %1599 = vmatpush1.xpose.msra.mxu0 0.0
        %1600 = vmatprep.subr.mxu0 0.0
        %1601 = vmatpush1.xpose.msra.mxu0 0.0
        %1602 = vmatprep.subr.mxu0 0.0
        %1603 = vmatpush1.xpose.msra.mxu0 0.0
        %1604 = vmatprep.subr.mxu0 0.0
        %1605 = vmatpush1.xpose.msra.mxu0 0.0
        %1606 = vmatprep.subr.mxu0 0.0
        %1607 = vmatpush1.xpose.msra.mxu0 0.0
        %1608 = vmatprep.subr.mxu0 0.0
        %1609 = vmatpush1.xpose.msra.mxu0 0.0
        %1610 = vmatprep.mubr.f32.mxu0 0.0
        %1611 = vmatmul.mubr.f32.gmra.mrb[0].mxu0 %v1538
        %v1612 = vpop.f32.mrb[0].mxu0
        %v1613 = vadd.f32 0.0, %v1612
        %v1614 = vpop.f32.mrb[0].mxu0
        %1615 = vmatprep.mubr.f32.mxu0 0.0
        %1616 = vmatmul.mubr.f32.gmra.mrb[0].mxu0 %v1540
        %v1617 = vpop.f32.mrb[0].mxu0
        %v1618 = vadd.f32 0.0, %v1617
        %v1619 = vpop.f32.mrb[0].mxu0
        %1620 = vdwg.mxu0
        %v1621 = vsel %vm1122, %v947, 0
        %v1623 = vsel %vm1122, %v949, 0
        %v1625 = vsel %vm1122, %v1003, 0
        %v1627 = vsel %vm1122, %v1005, 0
        %1629 = vmatprep.subr.mxu0 0.0
        %1630 = vmatpush1.xpose.msra.mxu0 %v1625
        %1631 = vmatprep.subr.mxu0 0.0
        %1632 = vmatpush1.xpose.msra.mxu0 %v1627
        %1633 = vmatprep.subr.mxu0 0.0
        %1634 = vmatpush1.xpose.msra.mxu0 0.0
        %1635 = vmatprep.subr.mxu0 0.0
        %1636 = vmatpush1.xpose.msra.mxu0 0.0
        %1637 = vmatprep.subr.mxu0 0.0
        %1638 = vmatpush1.xpose.msra.mxu0 0.0
        %1639 = vmatprep.subr.mxu0 0.0
        %1640 = vmatpush1.xpose.msra.mxu0 0.0
        %1641 = vmatprep.subr.mxu0 0.0
        %1642 = vmatpush1.xpose.msra.mxu0 0.0
        %1643 = vmatprep.subr.mxu0 0.0
        %1644 = vmatpush1.xpose.msra.mxu0 0.0
        %1645 = vmatprep.subr.mxu0 0.0
        %1646 = vmatpush1.xpose.msra.mxu0 0.0
        %1647 = vmatprep.subr.mxu0 0.0
        %1648 = vmatpush1.xpose.msra.mxu0 0.0
        %1649 = vmatprep.subr.mxu0 0.0
        %1650 = vmatpush1.xpose.msra.mxu0 0.0
        %1651 = vmatprep.subr.mxu0 0.0
        %1652 = vmatpush1.xpose.msra.mxu0 0.0
        %1653 = vmatprep.subr.mxu0 0.0
        %1654 = vmatpush1.xpose.msra.mxu0 0.0
        %1655 = vmatprep.subr.mxu0 0.0
        %1656 = vmatpush1.xpose.msra.mxu0 0.0
        %1657 = vmatprep.subr.mxu0 0.0
        %1658 = vmatpush1.xpose.msra.mxu0 0.0
        %1659 = vmatprep.subr.mxu0 0.0
        %1660 = vmatpush1.xpose.msra.mxu0 0.0
        %1661 = vmatprep.subr.mxu0 0.0
        %1662 = vmatpush1.xpose.msra.mxu0 0.0
        %1663 = vmatprep.subr.mxu0 0.0
        %1664 = vmatpush1.xpose.msra.mxu0 0.0
        %1665 = vmatprep.subr.mxu0 0.0
        %1666 = vmatpush1.xpose.msra.mxu0 0.0
        %1667 = vmatprep.subr.mxu0 0.0
        %1668 = vmatpush1.xpose.msra.mxu0 0.0
        %1669 = vmatprep.subr.mxu0 0.0
        %1670 = vmatpush1.xpose.msra.mxu0 0.0
        %1671 = vmatprep.subr.mxu0 0.0
        %1672 = vmatpush1.xpose.msra.mxu0 0.0
        %1673 = vmatprep.subr.mxu0 0.0
        %1674 = vmatpush1.xpose.msra.mxu0 0.0
        %1675 = vmatprep.subr.mxu0 0.0
        %1676 = vmatpush1.xpose.msra.mxu0 0.0
        %1677 = vmatprep.subr.mxu0 0.0
        %1678 = vmatpush1.xpose.msra.mxu0 0.0
        %1679 = vmatprep.subr.mxu0 0.0
        %1680 = vmatpush1.xpose.msra.mxu0 0.0
        %1681 = vmatprep.subr.mxu0 0.0
        %1682 = vmatpush1.xpose.msra.mxu0 0.0
        %1683 = vmatprep.subr.mxu0 0.0
        %1684 = vmatpush1.xpose.msra.mxu0 0.0
        %1685 = vmatprep.subr.mxu0 0.0
        %1686 = vmatpush1.xpose.msra.mxu0 0.0
        %1687 = vmatprep.subr.mxu0 0.0
        %1688 = vmatpush1.xpose.msra.mxu0 0.0
        %1689 = vmatprep.subr.mxu0 0.0
        %1690 = vmatpush1.xpose.msra.mxu0 0.0
        %1691 = vmatprep.subr.mxu0 0.0
        %1692 = vmatpush1.xpose.msra.mxu0 0.0
        %1693 = vmatprep.mubr.f32.mxu0 0.0
        %1694 = vmatmul.mubr.f32.gmra.mrb[0].mxu0 %v1621
        %v1695 = vpop.f32.mrb[0].mxu0
        %v1696 = vadd.f32 0.0, %v1695
        %v1697 = vpop.f32.mrb[0].mxu0
        %1698 = vmatprep.mubr.f32.mxu0 0.0
        %1699 = vmatmul.mubr.f32.gmra.mrb[0].mxu0 %v1623
        %v1700 = vpop.f32.mrb[0].mxu0
        %v1701 = vadd.f32 0.0, %v1700
        %v1702 = vpop.f32.mrb[0].mxu0
        %1703 = vdwg.mxu0
        %v1704 = vsel %vm1122, %v951, 0
        %v1706 = vsel %vm1122, %v953, 0
        %v1708 = vsel %vm1122, %v1007, 0
        %v1710 = vsel %vm1122, %v1009, 0
        %1712 = vmatprep.subr.mxu0 0.0
        %1713 = vmatpush1.xpose.msra.mxu0 %v1708
        %1714 = vmatprep.subr.mxu0 0.0
        %1715 = vmatpush1.xpose.msra.mxu0 %v1710
        %1716 = vmatprep.subr.mxu0 0.0
        %1717 = vmatpush1.xpose.msra.mxu0 0.0
        %1718 = vmatprep.subr.mxu0 0.0
        %1719 = vmatpush1.xpose.msra.mxu0 0.0
        %1720 = vmatprep.subr.mxu0 0.0
        %1721 = vmatpush1.xpose.msra.mxu0 0.0
        %1722 = vmatprep.subr.mxu0 0.0
        %1723 = vmatpush1.xpose.msra.mxu0 0.0
        %1724 = vmatprep.subr.mxu0 0.0
        %1725 = vmatpush1.xpose.msra.mxu0 0.0
        %1726 = vmatprep.subr.mxu0 0.0
        %1727 = vmatpush1.xpose.msra.mxu0 0.0
        %1728 = vmatprep.subr.mxu0 0.0
        %1729 = vmatpush1.xpose.msra.mxu0 0.0
        %1730 = vmatprep.subr.mxu0 0.0
        %1731 = vmatpush1.xpose.msra.mxu0 0.0
        %1732 = vmatprep.subr.mxu0 0.0
        %1733 = vmatpush1.xpose.msra.mxu0 0.0
        %1734 = vmatprep.subr.mxu0 0.0
        %1735 = vmatpush1.xpose.msra.mxu0 0.0
        %1736 = vmatprep.subr.mxu0 0.0
        %1737 = vmatpush1.xpose.msra.mxu0 0.0
        %1738 = vmatprep.subr.mxu0 0.0
        %1739 = vmatpush1.xpose.msra.mxu0 0.0
        %1740 = vmatprep.subr.mxu0 0.0
        %1741 = vmatpush1.xpose.msra.mxu0 0.0
        %1742 = vmatprep.subr.mxu0 0.0
        %1743 = vmatpush1.xpose.msra.mxu0 0.0
        %1744 = vmatprep.subr.mxu0 0.0
        %1745 = vmatpush1.xpose.msra.mxu0 0.0
        %1746 = vmatprep.subr.mxu0 0.0
        %1747 = vmatpush1.xpose.msra.mxu0 0.0
        %1748 = vmatprep.subr.mxu0 0.0
        %1749 = vmatpush1.xpose.msra.mxu0 0.0
        %1750 = vmatprep.subr.mxu0 0.0
        %1751 = vmatpush1.xpose.msra.mxu0 0.0
        %1752 = vmatprep.subr.mxu0 0.0
        %1753 = vmatpush1.xpose.msra.mxu0 0.0
        %1754 = vmatprep.subr.mxu0 0.0
        %1755 = vmatpush1.xpose.msra.mxu0 0.0
        %1756 = vmatprep.subr.mxu0 0.0
        %1757 = vmatpush1.xpose.msra.mxu0 0.0
        %1758 = vmatprep.subr.mxu0 0.0
        %1759 = vmatpush1.xpose.msra.mxu0 0.0
        %1760 = vmatprep.subr.mxu0 0.0
        %1761 = vmatpush1.xpose.msra.mxu0 0.0
        %1762 = vmatprep.subr.mxu0 0.0
        %1763 = vmatpush1.xpose.msra.mxu0 0.0
        %1764 = vmatprep.subr.mxu0 0.0
        %1765 = vmatpush1.xpose.msra.mxu0 0.0
        %1766 = vmatprep.subr.mxu0 0.0
        %1767 = vmatpush1.xpose.msra.mxu0 0.0
        %1768 = vmatprep.subr.mxu0 0.0
        %1769 = vmatpush1.xpose.msra.mxu0 0.0
        %1770 = vmatprep.subr.mxu0 0.0
        %1771 = vmatpush1.xpose.msra.mxu0 0.0
        %1772 = vmatprep.subr.mxu0 0.0
        %1773 = vmatpush1.xpose.msra.mxu0 0.0
        %1774 = vmatprep.subr.mxu0 0.0
        %1775 = vmatpush1.xpose.msra.mxu0 0.0
        %1776 = vmatprep.mubr.f32.mxu0 0.0
        %1777 = vmatmul.mubr.f32.gmra.mrb[0].mxu0 %v1704
        %v1778 = vpop.f32.mrb[0].mxu0
        %v1779 = vadd.f32 0.0, %v1778
        %v1780 = vpop.f32.mrb[0].mxu0
        %1781 = vmatprep.mubr.f32.mxu0 0.0
        %1782 = vmatmul.mubr.f32.gmra.mrb[0].mxu0 %v1706
        %v1783 = vpop.f32.mrb[0].mxu0
        %v1784 = vadd.f32 0.0, %v1783
        %v1785 = vpop.f32.mrb[0].mxu0
        %1786 = vdwg.mxu0
        %v1787 = vsel %vm1122, %v955, 0
        %v1789 = vsel %vm1122, %v957, 0
        %v1791 = vsel %vm1122, %v1011, 0
        %v1793 = vsel %vm1122, %v1013, 0
        %1795 = vmatprep.subr.mxu0 0.0
        %1796 = vmatpush1.xpose.msra.mxu0 %v1791
        %1797 = vmatprep.subr.mxu0 0.0
        %1798 = vmatpush1.xpose.msra.mxu0 %v1793
        %1799 = vmatprep.subr.mxu0 0.0
        %1800 = vmatpush1.xpose.msra.mxu0 0.0
        %1801 = vmatprep.subr.mxu0 0.0
        %1802 = vmatpush1.xpose.msra.mxu0 0.0
        %1803 = vmatprep.subr.mxu0 0.0
        %1804 = vmatpush1.xpose.msra.mxu0 0.0
        %1805 = vmatprep.subr.mxu0 0.0
        %1806 = vmatpush1.xpose.msra.mxu0 0.0
        %1807 = vmatprep.subr.mxu0 0.0
        %1808 = vmatpush1.xpose.msra.mxu0 0.0
        %1809 = vmatprep.subr.mxu0 0.0
        %1810 = vmatpush1.xpose.msra.mxu0 0.0
        %1811 = vmatprep.subr.mxu0 0.0
        %1812 = vmatpush1.xpose.msra.mxu0 0.0
        %1813 = vmatprep.subr.mxu0 0.0
        %1814 = vmatpush1.xpose.msra.mxu0 0.0
        %1815 = vmatprep.subr.mxu0 0.0
        %1816 = vmatpush1.xpose.msra.mxu0 0.0
        %1817 = vmatprep.subr.mxu0 0.0
        %1818 = vmatpush1.xpose.msra.mxu0 0.0
        %1819 = vmatprep.subr.mxu0 0.0
        %1820 = vmatpush1.xpose.msra.mxu0 0.0
        %1821 = vmatprep.subr.mxu0 0.0
        %1822 = vmatpush1.xpose.msra.mxu0 0.0
        %1823 = vmatprep.subr.mxu0 0.0
        %1824 = vmatpush1.xpose.msra.mxu0 0.0
        %1825 = vmatprep.subr.mxu0 0.0
        %1826 = vmatpush1.xpose.msra.mxu0 0.0
        %1827 = vmatprep.subr.mxu0 0.0
        %1828 = vmatpush1.xpose.msra.mxu0 0.0
        %1829 = vmatprep.subr.mxu0 0.0
        %1830 = vmatpush1.xpose.msra.mxu0 0.0
        %1831 = vmatprep.subr.mxu0 0.0
        %1832 = vmatpush1.xpose.msra.mxu0 0.0
        %1833 = vmatprep.subr.mxu0 0.0
        %1834 = vmatpush1.xpose.msra.mxu0 0.0
        %1835 = vmatprep.subr.mxu0 0.0
        %1836 = vmatpush1.xpose.msra.mxu0 0.0
        %1837 = vmatprep.subr.mxu0 0.0
        %1838 = vmatpush1.xpose.msra.mxu0 0.0
        %1839 = vmatprep.subr.mxu0 0.0
        %1840 = vmatpush1.xpose.msra.mxu0 0.0
        %1841 = vmatprep.subr.mxu0 0.0
        %1842 = vmatpush1.xpose.msra.mxu0 0.0
        %1843 = vmatprep.subr.mxu0 0.0
        %1844 = vmatpush1.xpose.msra.mxu0 0.0
        %1845 = vmatprep.subr.mxu0 0.0
        %1846 = vmatpush1.xpose.msra.mxu0 0.0
        %1847 = vmatprep.subr.mxu0 0.0
        %1848 = vmatpush1.xpose.msra.mxu0 0.0
        %1849 = vmatprep.subr.mxu0 0.0
        %1850 = vmatpush1.xpose.msra.mxu0 0.0
        %1851 = vmatprep.subr.mxu0 0.0
        %1852 = vmatpush1.xpose.msra.mxu0 0.0
        %1853 = vmatprep.subr.mxu0 0.0
        %1854 = vmatpush1.xpose.msra.mxu0 0.0
        %1855 = vmatprep.subr.mxu0 0.0
        %1856 = vmatpush1.xpose.msra.mxu0 0.0
        %1857 = vmatprep.subr.mxu0 0.0
        %1858 = vmatpush1.xpose.msra.mxu0 0.0
        %1859 = vmatprep.mubr.f32.mxu0 0.0
        %1860 = vmatmul.mubr.f32.gmra.mrb[0].mxu0 %v1787
        %v1861 = vpop.f32.mrb[0].mxu0
        %v1862 = vadd.f32 0.0, %v1861
        %v1863 = vpop.f32.mrb[0].mxu0
        %1864 = vmatprep.mubr.f32.mxu0 0.0
        %1865 = vmatmul.mubr.f32.gmra.mrb[0].mxu0 %v1789
        %v1866 = vpop.f32.mrb[0].mxu0
        %v1867 = vadd.f32 0.0, %v1866
        %v1868 = vpop.f32.mrb[0].mxu0
        %1869 = vdwg.mxu0
        %v1870 = vsel %vm1122, %v959, 0
        %v1872 = vsel %vm1122, %v961, 0
        %v1874 = vsel %vm1122, %v1015, 0
        %v1876 = vsel %vm1122, %v1017, 0
        %1878 = vmatprep.subr.mxu0 0.0
        %1879 = vmatpush1.xpose.msra.mxu0 %v1874
        %1880 = vmatprep.subr.mxu0 0.0
        %1881 = vmatpush1.xpose.msra.mxu0 %v1876
        %1882 = vmatprep.subr.mxu0 0.0
        %1883 = vmatpush1.xpose.msra.mxu0 0.0
        %1884 = vmatprep.subr.mxu0 0.0
        %1885 = vmatpush1.xpose.msra.mxu0 0.0
        %1886 = vmatprep.subr.mxu0 0.0
        %1887 = vmatpush1.xpose.msra.mxu0 0.0
        %1888 = vmatprep.subr.mxu0 0.0
        %1889 = vmatpush1.xpose.msra.mxu0 0.0
        %1890 = vmatprep.subr.mxu0 0.0
        %1891 = vmatpush1.xpose.msra.mxu0 0.0
        %1892 = vmatprep.subr.mxu0 0.0
        %1893 = vmatpush1.xpose.msra.mxu0 0.0
        %1894 = vmatprep.subr.mxu0 0.0
        %1895 = vmatpush1.xpose.msra.mxu0 0.0
        %1896 = vmatprep.subr.mxu0 0.0
        %1897 = vmatpush1.xpose.msra.mxu0 0.0
        %1898 = vmatprep.subr.mxu0 0.0
        %1899 = vmatpush1.xpose.msra.mxu0 0.0
        %1900 = vmatprep.subr.mxu0 0.0
        %1901 = vmatpush1.xpose.msra.mxu0 0.0
        %1902 = vmatprep.subr.mxu0 0.0
        %1903 = vmatpush1.xpose.msra.mxu0 0.0
        %1904 = vmatprep.subr.mxu0 0.0
        %1905 = vmatpush1.xpose.msra.mxu0 0.0
        %1906 = vmatprep.subr.mxu0 0.0
        %1907 = vmatpush1.xpose.msra.mxu0 0.0
        %1908 = vmatprep.subr.mxu0 0.0
        %1909 = vmatpush1.xpose.msra.mxu0 0.0
        %1910 = vmatprep.subr.mxu0 0.0
        %1911 = vmatpush1.xpose.msra.mxu0 0.0
        %1912 = vmatprep.subr.mxu0 0.0
        %1913 = vmatpush1.xpose.msra.mxu0 0.0
        %1914 = vmatprep.subr.mxu0 0.0
        %1915 = vmatpush1.xpose.msra.mxu0 0.0
        %1916 = vmatprep.subr.mxu0 0.0
        %1917 = vmatpush1.xpose.msra.mxu0 0.0
        %1918 = vmatprep.subr.mxu0 0.0
        %1919 = vmatpush1.xpose.msra.mxu0 0.0
        %1920 = vmatprep.subr.mxu0 0.0
        %1921 = vmatpush1.xpose.msra.mxu0 0.0
        %1922 = vmatprep.subr.mxu0 0.0
        %1923 = vmatpush1.xpose.msra.mxu0 0.0
        %1924 = vmatprep.subr.mxu0 0.0
        %1925 = vmatpush1.xpose.msra.mxu0 0.0
        %1926 = vmatprep.subr.mxu0 0.0
        %1927 = vmatpush1.xpose.msra.mxu0 0.0
        %1928 = vmatprep.subr.mxu0 0.0
        %1929 = vmatpush1.xpose.msra.mxu0 0.0
        %1930 = vmatprep.subr.mxu0 0.0
        %1931 = vmatpush1.xpose.msra.mxu0 0.0
        %1932 = vmatprep.subr.mxu0 0.0
        %1933 = vmatpush1.xpose.msra.mxu0 0.0
        %1934 = vmatprep.subr.mxu0 0.0
        %1935 = vmatpush1.xpose.msra.mxu0 0.0
        %1936 = vmatprep.subr.mxu0 0.0
        %1937 = vmatpush1.xpose.msra.mxu0 0.0
        %1938 = vmatprep.subr.mxu0 0.0
        %1939 = vmatpush1.xpose.msra.mxu0 0.0
        %1940 = vmatprep.subr.mxu0 0.0
        %1941 = vmatpush1.xpose.msra.mxu0 0.0
        %1942 = vmatprep.mubr.f32.mxu0 0.0
        %1943 = vmatmul.mubr.f32.gmra.mrb[0].mxu0 %v1870
        %v1944 = vpop.f32.mrb[0].mxu0
        %v1945 = vadd.f32 0.0, %v1944
        %v1946 = vpop.f32.mrb[0].mxu0
        %1947 = vmatprep.mubr.f32.mxu0 0.0
        %1948 = vmatmul.mubr.f32.gmra.mrb[0].mxu0 %v1872
        %v1949 = vpop.f32.mrb[0].mxu0
        %v1950 = vadd.f32 0.0, %v1949
        %v1951 = vpop.f32.mrb[0].mxu0
        %1952 = vdwg.mxu0
        %v1953 = vsel %vm1122, %v963, 0
        %v1955 = vsel %vm1122, %v965, 0
        %v1957 = vsel %vm1122, %v1019, 0
        %v1959 = vsel %vm1122, %v1021, 0
        %1961 = vmatprep.subr.mxu0 0.0
        %1962 = vmatpush1.xpose.msra.mxu0 %v1957
        %1963 = vmatprep.subr.mxu0 0.0
        %1964 = vmatpush1.xpose.msra.mxu0 %v1959
        %1965 = vmatprep.subr.mxu0 0.0
        %1966 = vmatpush1.xpose.msra.mxu0 0.0
        %1967 = vmatprep.subr.mxu0 0.0
        %1968 = vmatpush1.xpose.msra.mxu0 0.0
        %1969 = vmatprep.subr.mxu0 0.0
        %1970 = vmatpush1.xpose.msra.mxu0 0.0
        %1971 = vmatprep.subr.mxu0 0.0
        %1972 = vmatpush1.xpose.msra.mxu0 0.0
        %1973 = vmatprep.subr.mxu0 0.0
        %1974 = vmatpush1.xpose.msra.mxu0 0.0
        %1975 = vmatprep.subr.mxu0 0.0
        %1976 = vmatpush1.xpose.msra.mxu0 0.0
        %1977 = vmatprep.subr.mxu0 0.0
        %1978 = vmatpush1.xpose.msra.mxu0 0.0
        %1979 = vmatprep.subr.mxu0 0.0
        %1980 = vmatpush1.xpose.msra.mxu0 0.0
        %1981 = vmatprep.subr.mxu0 0.0
        %1982 = vmatpush1.xpose.msra.mxu0 0.0
        %1983 = vmatprep.subr.mxu0 0.0
        %1984 = vmatpush1.xpose.msra.mxu0 0.0
        %1985 = vmatprep.subr.mxu0 0.0
        %1986 = vmatpush1.xpose.msra.mxu0 0.0
        %1987 = vmatprep.subr.mxu0 0.0
        %1988 = vmatpush1.xpose.msra.mxu0 0.0
        %1989 = vmatprep.subr.mxu0 0.0
        %1990 = vmatpush1.xpose.msra.mxu0 0.0
        %1991 = vmatprep.subr.mxu0 0.0
        %1992 = vmatpush1.xpose.msra.mxu0 0.0
        %1993 = vmatprep.subr.mxu0 0.0
        %1994 = vmatpush1.xpose.msra.mxu0 0.0
        %1995 = vmatprep.subr.mxu0 0.0
        %1996 = vmatpush1.xpose.msra.mxu0 0.0
        %1997 = vmatprep.subr.mxu0 0.0
        %1998 = vmatpush1.xpose.msra.mxu0 0.0
        %1999 = vmatprep.subr.mxu0 0.0
        %2000 = vmatpush1.xpose.msra.mxu0 0.0
        %2001 = vmatprep.subr.mxu0 0.0
        %2002 = vmatpush1.xpose.msra.mxu0 0.0
        %2003 = vmatprep.subr.mxu0 0.0
        %2004 = vmatpush1.xpose.msra.mxu0 0.0
        %2005 = vmatprep.subr.mxu0 0.0
        %2006 = vmatpush1.xpose.msra.mxu0 0.0
        %2007 = vmatprep.subr.mxu0 0.0
        %2008 = vmatpush1.xpose.msra.mxu0 0.0
        %2009 = vmatprep.subr.mxu0 0.0
        %2010 = vmatpush1.xpose.msra.mxu0 0.0
        %2011 = vmatprep.subr.mxu0 0.0
        %2012 = vmatpush1.xpose.msra.mxu0 0.0
        %2013 = vmatprep.subr.mxu0 0.0
        %2014 = vmatpush1.xpose.msra.mxu0 0.0
        %2015 = vmatprep.subr.mxu0 0.0
        %2016 = vmatpush1.xpose.msra.mxu0 0.0
        %2017 = vmatprep.subr.mxu0 0.0
        %2018 = vmatpush1.xpose.msra.mxu0 0.0
        %2019 = vmatprep.subr.mxu0 0.0
        %2020 = vmatpush1.xpose.msra.mxu0 0.0
        %2021 = vmatprep.subr.mxu0 0.0
        %2022 = vmatpush1.xpose.msra.mxu0 0.0
        %2023 = vmatprep.subr.mxu0 0.0
        %2024 = vmatpush1.xpose.msra.mxu0 0.0
        %2025 = vmatprep.mubr.f32.mxu0 0.0
        %2026 = vmatmul.mubr.f32.gmra.mrb[0].mxu0 %v1953
        %v2027 = vpop.f32.mrb[0].mxu0
        %v2028 = vadd.f32 0.0, %v2027
        %v2029 = vpop.f32.mrb[0].mxu0
        %2030 = vmatprep.mubr.f32.mxu0 0.0
        %2031 = vmatmul.mubr.f32.gmra.mrb[0].mxu0 %v1955
        %v2032 = vpop.f32.mrb[0].mxu0
        %v2033 = vadd.f32 0.0, %v2032
        %v2034 = vpop.f32.mrb[0].mxu0
        %2035 = vdwg.mxu0
        %v2036 = vsel %vm1122, %v967, 0
        %v2038 = vsel %vm1122, %v969, 0
        %v2040 = vsel %vm1122, %v1023, 0
        %v2042 = vsel %vm1122, %v1025, 0
        %2044 = vmatprep.subr.mxu0 0.0
        %2045 = vmatpush1.xpose.msra.mxu0 %v2040
        %2046 = vmatprep.subr.mxu0 0.0
        %2047 = vmatpush1.xpose.msra.mxu0 %v2042
        %2048 = vmatprep.subr.mxu0 0.0
        %2049 = vmatpush1.xpose.msra.mxu0 0.0
        %2050 = vmatprep.subr.mxu0 0.0
        %2051 = vmatpush1.xpose.msra.mxu0 0.0
        %2052 = vmatprep.subr.mxu0 0.0
        %2053 = vmatpush1.xpose.msra.mxu0 0.0
        %2054 = vmatprep.subr.mxu0 0.0
        %2055 = vmatpush1.xpose.msra.mxu0 0.0
        %2056 = vmatprep.subr.mxu0 0.0
        %2057 = vmatpush1.xpose.msra.mxu0 0.0
        %2058 = vmatprep.subr.mxu0 0.0
        %2059 = vmatpush1.xpose.msra.mxu0 0.0
        %2060 = vmatprep.subr.mxu0 0.0
        %2061 = vmatpush1.xpose.msra.mxu0 0.0
        %2062 = vmatprep.subr.mxu0 0.0
        %2063 = vmatpush1.xpose.msra.mxu0 0.0
        %2064 = vmatprep.subr.mxu0 0.0
        %2065 = vmatpush1.xpose.msra.mxu0 0.0
        %2066 = vmatprep.subr.mxu0 0.0
        %2067 = vmatpush1.xpose.msra.mxu0 0.0
        %2068 = vmatprep.subr.mxu0 0.0
        %2069 = vmatpush1.xpose.msra.mxu0 0.0
        %2070 = vmatprep.subr.mxu0 0.0
        %2071 = vmatpush1.xpose.msra.mxu0 0.0
        %2072 = vmatprep.subr.mxu0 0.0
        %2073 = vmatpush1.xpose.msra.mxu0 0.0
        %2074 = vmatprep.subr.mxu0 0.0
        %2075 = vmatpush1.xpose.msra.mxu0 0.0
        %2076 = vmatprep.subr.mxu0 0.0
        %2077 = vmatpush1.xpose.msra.mxu0 0.0
        %2078 = vmatprep.subr.mxu0 0.0
        %2079 = vmatpush1.xpose.msra.mxu0 0.0
        %2080 = vmatprep.subr.mxu0 0.0
        %2081 = vmatpush1.xpose.msra.mxu0 0.0
        %2082 = vmatprep.subr.mxu0 0.0
        %2083 = vmatpush1.xpose.msra.mxu0 0.0
        %2084 = vmatprep.subr.mxu0 0.0
        %2085 = vmatpush1.xpose.msra.mxu0 0.0
        %2086 = vmatprep.subr.mxu0 0.0
        %2087 = vmatpush1.xpose.msra.mxu0 0.0
        %2088 = vmatprep.subr.mxu0 0.0
        %2089 = vmatpush1.xpose.msra.mxu0 0.0
        %2090 = vmatprep.subr.mxu0 0.0
        %2091 = vmatpush1.xpose.msra.mxu0 0.0
        %2092 = vmatprep.subr.mxu0 0.0
        %2093 = vmatpush1.xpose.msra.mxu0 0.0
        %2094 = vmatprep.subr.mxu0 0.0
        %2095 = vmatpush1.xpose.msra.mxu0 0.0
        %2096 = vmatprep.subr.mxu0 0.0
        %2097 = vmatpush1.xpose.msra.mxu0 0.0
        %2098 = vmatprep.subr.mxu0 0.0
        %2099 = vmatpush1.xpose.msra.mxu0 0.0
        %2100 = vmatprep.subr.mxu0 0.0
        %2101 = vmatpush1.xpose.msra.mxu0 0.0
        %2102 = vmatprep.subr.mxu0 0.0
        %2103 = vmatpush1.xpose.msra.mxu0 0.0
        %2104 = vmatprep.subr.mxu0 0.0
        %2105 = vmatpush1.xpose.msra.mxu0 0.0
        %2106 = vmatprep.subr.mxu0 0.0
        %2107 = vmatpush1.xpose.msra.mxu0 0.0
        %2108 = vmatprep.mubr.f32.mxu0 0.0
        %2109 = vmatmul.mubr.f32.gmra.mrb[0].mxu0 %v2036
        %v2110 = vpop.f32.mrb[0].mxu0
        %v2111 = vadd.f32 0.0, %v2110
        %v2112 = vpop.f32.mrb[0].mxu0
        %2113 = vmatprep.mubr.f32.mxu0 0.0
        %2114 = vmatmul.mubr.f32.gmra.mrb[0].mxu0 %v2038
        %v2115 = vpop.f32.mrb[0].mxu0
        %v2116 = vadd.f32 0.0, %v2115
        %v2117 = vpop.f32.mrb[0].mxu0
        %2118 = vdwg.mxu0
        %v2119 = vsel %vm1122, %v971, 0
        %v2121 = vsel %vm1122, %v973, 0
        %v2123 = vsel %vm1122, %v1027, 0
        %v2125 = vsel %vm1122, %v1029, 0
        %2127 = vmatprep.subr.mxu0 0.0
        %2128 = vmatpush1.xpose.msra.mxu0 %v2123
        %2129 = vmatprep.subr.mxu0 0.0
        %2130 = vmatpush1.xpose.msra.mxu0 %v2125
        %2131 = vmatprep.subr.mxu0 0.0
        %2132 = vmatpush1.xpose.msra.mxu0 0.0
        %2133 = vmatprep.subr.mxu0 0.0
        %2134 = vmatpush1.xpose.msra.mxu0 0.0
        %2135 = vmatprep.subr.mxu0 0.0
        %2136 = vmatpush1.xpose.msra.mxu0 0.0
        %2137 = vmatprep.subr.mxu0 0.0
        %2138 = vmatpush1.xpose.msra.mxu0 0.0
        %2139 = vmatprep.subr.mxu0 0.0
        %2140 = vmatpush1.xpose.msra.mxu0 0.0
        %2141 = vmatprep.subr.mxu0 0.0
        %2142 = vmatpush1.xpose.msra.mxu0 0.0
        %2143 = vmatprep.subr.mxu0 0.0
        %2144 = vmatpush1.xpose.msra.mxu0 0.0
        %2145 = vmatprep.subr.mxu0 0.0
        %2146 = vmatpush1.xpose.msra.mxu0 0.0
        %2147 = vmatprep.subr.mxu0 0.0
        %2148 = vmatpush1.xpose.msra.mxu0 0.0
        %2149 = vmatprep.subr.mxu0 0.0
        %2150 = vmatpush1.xpose.msra.mxu0 0.0
        %2151 = vmatprep.subr.mxu0 0.0
        %2152 = vmatpush1.xpose.msra.mxu0 0.0
        %2153 = vmatprep.subr.mxu0 0.0
        %2154 = vmatpush1.xpose.msra.mxu0 0.0
        %2155 = vmatprep.subr.mxu0 0.0
        %2156 = vmatpush1.xpose.msra.mxu0 0.0
        %2157 = vmatprep.subr.mxu0 0.0
        %2158 = vmatpush1.xpose.msra.mxu0 0.0
        %2159 = vmatprep.subr.mxu0 0.0
        %2160 = vmatpush1.xpose.msra.mxu0 0.0
        %2161 = vmatprep.subr.mxu0 0.0
        %2162 = vmatpush1.xpose.msra.mxu0 0.0
        %2163 = vmatprep.subr.mxu0 0.0
        %2164 = vmatpush1.xpose.msra.mxu0 0.0
        %2165 = vmatprep.subr.mxu0 0.0
        %2166 = vmatpush1.xpose.msra.mxu0 0.0
        %2167 = vmatprep.subr.mxu0 0.0
        %2168 = vmatpush1.xpose.msra.mxu0 0.0
        %2169 = vmatprep.subr.mxu0 0.0
        %2170 = vmatpush1.xpose.msra.mxu0 0.0
        %2171 = vmatprep.subr.mxu0 0.0
        %2172 = vmatpush1.xpose.msra.mxu0 0.0
        %2173 = vmatprep.subr.mxu0 0.0
        %2174 = vmatpush1.xpose.msra.mxu0 0.0
        %2175 = vmatprep.subr.mxu0 0.0
        %2176 = vmatpush1.xpose.msra.mxu0 0.0
        %2177 = vmatprep.subr.mxu0 0.0
        %2178 = vmatpush1.xpose.msra.mxu0 0.0
        %2179 = vmatprep.subr.mxu0 0.0
        %2180 = vmatpush1.xpose.msra.mxu0 0.0
        %2181 = vmatprep.subr.mxu0 0.0
        %2182 = vmatpush1.xpose.msra.mxu0 0.0
        %2183 = vmatprep.subr.mxu0 0.0
        %2184 = vmatpush1.xpose.msra.mxu0 0.0
        %2185 = vmatprep.subr.mxu0 0.0
        %2186 = vmatpush1.xpose.msra.mxu0 0.0
        %2187 = vmatprep.subr.mxu0 0.0
        %2188 = vmatpush1.xpose.msra.mxu0 0.0
        %2189 = vmatprep.subr.mxu0 0.0
        %2190 = vmatpush1.xpose.msra.mxu0 0.0
        %2191 = vmatprep.mubr.f32.mxu0 0.0
        %2192 = vmatmul.mubr.f32.gmra.mrb[0].mxu0 %v2119
        %v2193 = vpop.f32.mrb[0].mxu0
        %v2194 = vadd.f32 0.0, %v2193
        %v2195 = vpop.f32.mrb[0].mxu0
        %2196 = vmatprep.mubr.f32.mxu0 0.0
        %2197 = vmatmul.mubr.f32.gmra.mrb[0].mxu0 %v2121
        %v2198 = vpop.f32.mrb[0].mxu0
        %v2199 = vadd.f32 0.0, %v2198
        %v2200 = vpop.f32.mrb[0].mxu0
        %2201 = vdwg.mxu0
        %v2202 = vsel %vm1122, %v975, 0
        %v2204 = vsel %vm1122, %v977, 0
        %v2206 = vsel %vm1122, %v1031, 0
        %v2208 = vsel %vm1122, %v1033, 0
        %2210 = vmatprep.subr.mxu0 0.0
        %2211 = vmatpush1.xpose.msra.mxu0 %v2206
        %2212 = vmatprep.subr.mxu0 0.0
        %2213 = vmatpush1.xpose.msra.mxu0 %v2208
        %2214 = vmatprep.subr.mxu0 0.0
        %2215 = vmatpush1.xpose.msra.mxu0 0.0
        %2216 = vmatprep.subr.mxu0 0.0
        %2217 = vmatpush1.xpose.msra.mxu0 0.0
        %2218 = vmatprep.subr.mxu0 0.0
        %2219 = vmatpush1.xpose.msra.mxu0 0.0
        %2220 = vmatprep.subr.mxu0 0.0
        %2221 = vmatpush1.xpose.msra.mxu0 0.0
        %2222 = vmatprep.subr.mxu0 0.0
        %2223 = vmatpush1.xpose.msra.mxu0 0.0
        %2224 = vmatprep.subr.mxu0 0.0
        %2225 = vmatpush1.xpose.msra.mxu0 0.0
        %2226 = vmatprep.subr.mxu0 0.0
        %2227 = vmatpush1.xpose.msra.mxu0 0.0
        %2228 = vmatprep.subr.mxu0 0.0
        %2229 = vmatpush1.xpose.msra.mxu0 0.0
        %2230 = vmatprep.subr.mxu0 0.0
        %2231 = vmatpush1.xpose.msra.mxu0 0.0
        %2232 = vmatprep.subr.mxu0 0.0
        %2233 = vmatpush1.xpose.msra.mxu0 0.0
        %2234 = vmatprep.subr.mxu0 0.0
        %2235 = vmatpush1.xpose.msra.mxu0 0.0
        %2236 = vmatprep.subr.mxu0 0.0
        %2237 = vmatpush1.xpose.msra.mxu0 0.0
        %2238 = vmatprep.subr.mxu0 0.0
        %2239 = vmatpush1.xpose.msra.mxu0 0.0
        %2240 = vmatprep.subr.mxu0 0.0
        %2241 = vmatpush1.xpose.msra.mxu0 0.0
        %2242 = vmatprep.subr.mxu0 0.0
        %2243 = vmatpush1.xpose.msra.mxu0 0.0
        %2244 = vmatprep.subr.mxu0 0.0
        %2245 = vmatpush1.xpose.msra.mxu0 0.0
        %2246 = vmatprep.subr.mxu0 0.0
        %2247 = vmatpush1.xpose.msra.mxu0 0.0
        %2248 = vmatprep.subr.mxu0 0.0
        %2249 = vmatpush1.xpose.msra.mxu0 0.0
        %2250 = vmatprep.subr.mxu0 0.0
        %2251 = vmatpush1.xpose.msra.mxu0 0.0
        %2252 = vmatprep.subr.mxu0 0.0
        %2253 = vmatpush1.xpose.msra.mxu0 0.0
        %2254 = vmatprep.subr.mxu0 0.0
        %2255 = vmatpush1.xpose.msra.mxu0 0.0
        %2256 = vmatprep.subr.mxu0 0.0
        %2257 = vmatpush1.xpose.msra.mxu0 0.0
        %2258 = vmatprep.subr.mxu0 0.0
        %2259 = vmatpush1.xpose.msra.mxu0 0.0
        %2260 = vmatprep.subr.mxu0 0.0
        %2261 = vmatpush1.xpose.msra.mxu0 0.0
        %2262 = vmatprep.subr.mxu0 0.0
        %2263 = vmatpush1.xpose.msra.mxu0 0.0
        %2264 = vmatprep.subr.mxu0 0.0
        %2265 = vmatpush1.xpose.msra.mxu0 0.0
        %2266 = vmatprep.subr.mxu0 0.0
        %2267 = vmatpush1.xpose.msra.mxu0 0.0
        %2268 = vmatprep.subr.mxu0 0.0
        %2269 = vmatpush1.xpose.msra.mxu0 0.0
        %2270 = vmatprep.subr.mxu0 0.0
        %2271 = vmatpush1.xpose.msra.mxu0 0.0
        %2272 = vmatprep.subr.mxu0 0.0
        %2273 = vmatpush1.xpose.msra.mxu0 0.0
        %2274 = vmatprep.mubr.f32.mxu0 0.0
        %2275 = vmatmul.mubr.f32.gmra.mrb[0].mxu0 %v2202
        %v2276 = vpop.f32.mrb[0].mxu0
        %v2277 = vadd.f32 0.0, %v2276
        %v2278 = vpop.f32.mrb[0].mxu0
        %2279 = vmatprep.mubr.f32.mxu0 0.0
        %2280 = vmatmul.mubr.f32.gmra.mrb[0].mxu0 %v2204
        %v2281 = vpop.f32.mrb[0].mxu0
        %v2282 = vadd.f32 0.0, %v2281
        %v2283 = vpop.f32.mrb[0].mxu0
        %2284 = vdwg.mxu0
        %v2285 = vsel %vm1122, %v979, 0
        %v2287 = vsel %vm1122, %v981, 0
        %v2289 = vsel %vm1122, %v1035, 0
        %v2291 = vsel %vm1122, %v1037, 0
        %2293 = vmatprep.subr.mxu0 0.0
        %2294 = vmatpush1.xpose.msra.mxu0 %v2289
        %2295 = vmatprep.subr.mxu0 0.0
        %2296 = vmatpush1.xpose.msra.mxu0 %v2291
        %2297 = vmatprep.subr.mxu0 0.0
        %2298 = vmatpush1.xpose.msra.mxu0 0.0
        %2299 = vmatprep.subr.mxu0 0.0
        %2300 = vmatpush1.xpose.msra.mxu0 0.0
        %2301 = vmatprep.subr.mxu0 0.0
        %2302 = vmatpush1.xpose.msra.mxu0 0.0
        %2303 = vmatprep.subr.mxu0 0.0
        %2304 = vmatpush1.xpose.msra.mxu0 0.0
        %2305 = vmatprep.subr.mxu0 0.0
        %2306 = vmatpush1.xpose.msra.mxu0 0.0
        %2307 = vmatprep.subr.mxu0 0.0
        %2308 = vmatpush1.xpose.msra.mxu0 0.0
        %2309 = vmatprep.subr.mxu0 0.0
        %2310 = vmatpush1.xpose.msra.mxu0 0.0
        %2311 = vmatprep.subr.mxu0 0.0
        %2312 = vmatpush1.xpose.msra.mxu0 0.0
        %2313 = vmatprep.subr.mxu0 0.0
        %2314 = vmatpush1.xpose.msra.mxu0 0.0
        %2315 = vmatprep.subr.mxu0 0.0
        %2316 = vmatpush1.xpose.msra.mxu0 0.0
        %2317 = vmatprep.subr.mxu0 0.0
        %2318 = vmatpush1.xpose.msra.mxu0 0.0
        %2319 = vmatprep.subr.mxu0 0.0
        %2320 = vmatpush1.xpose.msra.mxu0 0.0
        %2321 = vmatprep.subr.mxu0 0.0
        %2322 = vmatpush1.xpose.msra.mxu0 0.0
        %2323 = vmatprep.subr.mxu0 0.0
        %2324 = vmatpush1.xpose.msra.mxu0 0.0
        %2325 = vmatprep.subr.mxu0 0.0
        %2326 = vmatpush1.xpose.msra.mxu0 0.0
        %2327 = vmatprep.subr.mxu0 0.0
        %2328 = vmatpush1.xpose.msra.mxu0 0.0
        %2329 = vmatprep.subr.mxu0 0.0
        %2330 = vmatpush1.xpose.msra.mxu0 0.0
        %2331 = vmatprep.subr.mxu0 0.0
        %2332 = vmatpush1.xpose.msra.mxu0 0.0
        %2333 = vmatprep.subr.mxu0 0.0
        %2334 = vmatpush1.xpose.msra.mxu0 0.0
        %2335 = vmatprep.subr.mxu0 0.0
        %2336 = vmatpush1.xpose.msra.mxu0 0.0
        %2337 = vmatprep.subr.mxu0 0.0
        %2338 = vmatpush1.xpose.msra.mxu0 0.0
        %2339 = vmatprep.subr.mxu0 0.0
        %2340 = vmatpush1.xpose.msra.mxu0 0.0
        %2341 = vmatprep.subr.mxu0 0.0
        %2342 = vmatpush1.xpose.msra.mxu0 0.0
        %2343 = vmatprep.subr.mxu0 0.0
        %2344 = vmatpush1.xpose.msra.mxu0 0.0
        %2345 = vmatprep.subr.mxu0 0.0
        %2346 = vmatpush1.xpose.msra.mxu0 0.0
        %2347 = vmatprep.subr.mxu0 0.0
        %2348 = vmatpush1.xpose.msra.mxu0 0.0
        %2349 = vmatprep.subr.mxu0 0.0
        %2350 = vmatpush1.xpose.msra.mxu0 0.0
        %2351 = vmatprep.subr.mxu0 0.0
        %2352 = vmatpush1.xpose.msra.mxu0 0.0
        %2353 = vmatprep.subr.mxu0 0.0
        %2354 = vmatpush1.xpose.msra.mxu0 0.0
        %2355 = vmatprep.subr.mxu0 0.0
        %2356 = vmatpush1.xpose.msra.mxu0 0.0
        %2357 = vmatprep.mubr.f32.mxu0 0.0
        %2358 = vmatmul.mubr.f32.gmra.mrb[0].mxu0 %v2285
        %v2359 = vpop.f32.mrb[0].mxu0
        %v2360 = vadd.f32 0.0, %v2359
        %v2361 = vpop.f32.mrb[0].mxu0
        %2362 = vmatprep.mubr.f32.mxu0 0.0
        %2363 = vmatmul.mubr.f32.gmra.mrb[0].mxu0 %v2287
        %v2364 = vpop.f32.mrb[0].mxu0
        %v2365 = vadd.f32 0.0, %v2364
        %v2366 = vpop.f32.mrb[0].mxu0
        %2367 = vdwg.mxu0
        %v2368 = vsel %vm1122, %v983, 0
        %v2370 = vsel %vm1122, %v985, 0
        %v2372 = vsel %vm1122, %v1039, 0
        %v2374 = vsel %vm1122, %v1041, 0
        %2376 = vmatprep.subr.mxu0 0.0
        %2377 = vmatpush1.xpose.msra.mxu0 %v2372
        %2378 = vmatprep.subr.mxu0 0.0
        %2379 = vmatpush1.xpose.msra.mxu0 %v2374
        %2380 = vmatprep.subr.mxu0 0.0
        %2381 = vmatpush1.xpose.msra.mxu0 0.0
        %2382 = vmatprep.subr.mxu0 0.0
        %2383 = vmatpush1.xpose.msra.mxu0 0.0
        %2384 = vmatprep.subr.mxu0 0.0
        %2385 = vmatpush1.xpose.msra.mxu0 0.0
        %2386 = vmatprep.subr.mxu0 0.0
        %2387 = vmatpush1.xpose.msra.mxu0 0.0
        %2388 = vmatprep.subr.mxu0 0.0
        %2389 = vmatpush1.xpose.msra.mxu0 0.0
        %2390 = vmatprep.subr.mxu0 0.0
        %2391 = vmatpush1.xpose.msra.mxu0 0.0
        %2392 = vmatprep.subr.mxu0 0.0
        %2393 = vmatpush1.xpose.msra.mxu0 0.0
        %2394 = vmatprep.subr.mxu0 0.0
        %2395 = vmatpush1.xpose.msra.mxu0 0.0
        %2396 = vmatprep.subr.mxu0 0.0
        %2397 = vmatpush1.xpose.msra.mxu0 0.0
        %2398 = vmatprep.subr.mxu0 0.0
        %2399 = vmatpush1.xpose.msra.mxu0 0.0
        %2400 = vmatprep.subr.mxu0 0.0
        %2401 = vmatpush1.xpose.msra.mxu0 0.0
        %2402 = vmatprep.subr.mxu0 0.0
        %2403 = vmatpush1.xpose.msra.mxu0 0.0
        %2404 = vmatprep.subr.mxu0 0.0
        %2405 = vmatpush1.xpose.msra.mxu0 0.0
        %2406 = vmatprep.subr.mxu0 0.0
        %2407 = vmatpush1.xpose.msra.mxu0 0.0
        %2408 = vmatprep.subr.mxu0 0.0
        %2409 = vmatpush1.xpose.msra.mxu0 0.0
        %2410 = vmatprep.subr.mxu0 0.0
        %2411 = vmatpush1.xpose.msra.mxu0 0.0
        %2412 = vmatprep.subr.mxu0 0.0
        %2413 = vmatpush1.xpose.msra.mxu0 0.0
        %2414 = vmatprep.subr.mxu0 0.0
        %2415 = vmatpush1.xpose.msra.mxu0 0.0
        %2416 = vmatprep.subr.mxu0 0.0
        %2417 = vmatpush1.xpose.msra.mxu0 0.0
        %2418 = vmatprep.subr.mxu0 0.0
        %2419 = vmatpush1.xpose.msra.mxu0 0.0
        %2420 = vmatprep.subr.mxu0 0.0
        %2421 = vmatpush1.xpose.msra.mxu0 0.0
        %2422 = vmatprep.subr.mxu0 0.0
        %2423 = vmatpush1.xpose.msra.mxu0 0.0
        %2424 = vmatprep.subr.mxu0 0.0
        %2425 = vmatpush1.xpose.msra.mxu0 0.0
        %2426 = vmatprep.subr.mxu0 0.0
        %2427 = vmatpush1.xpose.msra.mxu0 0.0
        %2428 = vmatprep.subr.mxu0 0.0
        %2429 = vmatpush1.xpose.msra.mxu0 0.0
        %2430 = vmatprep.subr.mxu0 0.0
        %2431 = vmatpush1.xpose.msra.mxu0 0.0
        %2432 = vmatprep.subr.mxu0 0.0
        %2433 = vmatpush1.xpose.msra.mxu0 0.0
        %2434 = vmatprep.subr.mxu0 0.0
        %2435 = vmatpush1.xpose.msra.mxu0 0.0
        %2436 = vmatprep.subr.mxu0 0.0
        %2437 = vmatpush1.xpose.msra.mxu0 0.0
        %2438 = vmatprep.subr.mxu0 0.0
        %2439 = vmatpush1.xpose.msra.mxu0 0.0
        %2440 = vmatprep.mubr.f32.mxu0 0.0
        %2441 = vmatmul.mubr.f32.gmra.mrb[0].mxu0 %v2368
        %v2442 = vpop.f32.mrb[0].mxu0
        %v2443 = vadd.f32 0.0, %v2442
        %v2444 = vpop.f32.mrb[0].mxu0
        %2445 = vmatprep.mubr.f32.mxu0 0.0
        %2446 = vmatmul.mubr.f32.gmra.mrb[0].mxu0 %v2370
        %v2447 = vpop.f32.mrb[0].mxu0
        %v2448 = vadd.f32 0.0, %v2447
        %v2449 = vpop.f32.mrb[0].mxu0
        %2450 = vdwg.mxu0
        %vm2451 = vcmask 130048
        %v2452 = vsel %vm2451, %v1198, -inf
        %2453 = vmax.xlane.f32.xlu0 %v2452
        %v2454 = vpop.xlane.xlu0 %2453
        %v2455 = vsel %vm2451, %v1203, -inf
        %2456 = vmax.xlane.f32.xlu0 %v2455
        %v2457 = vpop.xlane.xlu0 %2456
        %v2458 = vsel %vm2451, %v1281, -inf
        %2459 = vmax.xlane.f32.xlu0 %v2458
        %v2460 = vpop.xlane.xlu0 %2459
        %v2461 = vsel %vm2451, %v1286, -inf
        %2462 = vmax.xlane.f32.xlu0 %v2461
        %v2463 = vpop.xlane.xlu0 %2462
        %v2464 = vsel %vm2451, %v1364, -inf
        %2465 = vmax.xlane.f32.xlu0 %v2464
        %v2466 = vpop.xlane.xlu0 %2465
        %v2467 = vsel %vm2451, %v1369, -inf
        %2468 = vmax.xlane.f32.xlu0 %v2467
        %v2469 = vpop.xlane.xlu0 %2468
        %v2470 = vsel %vm2451, %v1447, -inf
        %2471 = vmax.xlane.f32.xlu0 %v2470
        %v2472 = vpop.xlane.xlu0 %2471
        %v2473 = vsel %vm2451, %v1452, -inf
        %2474 = vmax.xlane.f32.xlu0 %v2473
        %v2475 = vpop.xlane.xlu0 %2474
        %v2476 = vsel %vm2451, %v1530, -inf
        %2477 = vmax.xlane.f32.xlu0 %v2476
        %v2478 = vpop.xlane.xlu0 %2477
        %v2479 = vsel %vm2451, %v1535, -inf
        %2480 = vmax.xlane.f32.xlu0 %v2479
        %v2481 = vpop.xlane.xlu0 %2480
        %v2482 = vsel %vm2451, %v1613, -inf
        %2483 = vmax.xlane.f32.xlu0 %v2482
        %v2484 = vpop.xlane.xlu0 %2483
        %v2485 = vsel %vm2451, %v1618, -inf
        %2486 = vmax.xlane.f32.xlu0 %v2485
        %v2487 = vpop.xlane.xlu0 %2486
        %v2488 = vsel %vm2451, %v1696, -inf
        %2489 = vmax.xlane.f32.xlu0 %v2488
        %v2490 = vpop.xlane.xlu0 %2489
        %v2491 = vsel %vm2451, %v1701, -inf
        %2492 = vmax.xlane.f32.xlu0 %v2491
        %v2493 = vpop.xlane.xlu0 %2492
        %v2494 = vsel %vm2451, %v1779, -inf
        %2495 = vmax.xlane.f32.xlu0 %v2494
        %v2496 = vpop.xlane.xlu0 %2495
        %v2497 = vsel %vm2451, %v1784, -inf
        %2498 = vmax.xlane.f32.xlu0 %v2497
        %v2499 = vpop.xlane.xlu0 %2498
        %v2500 = vsel %vm2451, %v1862, -inf
        %2501 = vmax.xlane.f32.xlu0 %v2500
        %v2502 = vpop.xlane.xlu0 %2501
        %v2503 = vsel %vm2451, %v1867, -inf
        %2504 = vmax.xlane.f32.xlu0 %v2503
        %v2505 = vpop.xlane.xlu0 %2504
        %v2506 = vsel %vm2451, %v1945, -inf
        %2507 = vmax.xlane.f32.xlu0 %v2506
        %v2508 = vpop.xlane.xlu0 %2507
        %v2509 = vsel %vm2451, %v1950, -inf
        %2510 = vmax.xlane.f32.xlu0 %v2509
        %v2511 = vpop.xlane.xlu0 %2510
        %v2512 = vsel %vm2451, %v2028, -inf
        %2513 = vmax.xlane.f32.xlu0 %v2512
        %v2514 = vpop.xlane.xlu0 %2513
        %v2515 = vsel %vm2451, %v2033, -inf
        %2516 = vmax.xlane.f32.xlu0 %v2515
        %v2517 = vpop.xlane.xlu0 %2516
        %v2518 = vsel %vm2451, %v2111, -inf
        %2519 = vmax.xlane.f32.xlu0 %v2518
        %v2520 = vpop.xlane.xlu0 %2519
        %v2521 = vsel %vm2451, %v2116, -inf
        %2522 = vmax.xlane.f32.xlu0 %v2521
        %v2523 = vpop.xlane.xlu0 %2522
        %v2524 = vsel %vm2451, %v2194, -inf
        %2525 = vmax.xlane.f32.xlu0 %v2524
        %v2526 = vpop.xlane.xlu0 %2525
        %v2527 = vsel %vm2451, %v2199, -inf
        %2528 = vmax.xlane.f32.xlu0 %v2527
        %v2529 = vpop.xlane.xlu0 %2528
        %v2530 = vsel %vm2451, %v2277, -inf
        %2531 = vmax.xlane.f32.xlu0 %v2530
        %v2532 = vpop.xlane.xlu0 %2531
        %v2533 = vsel %vm2451, %v2282, -inf
        %2534 = vmax.xlane.f32.xlu0 %v2533
        %v2535 = vpop.xlane.xlu0 %2534
        %v2536 = vsel %vm2451, %v2360, -inf
        %2537 = vmax.xlane.f32.xlu0 %v2536
        %v2538 = vpop.xlane.xlu0 %2537
        %v2539 = vsel %vm2451, %v2365, -inf
        %2540 = vmax.xlane.f32.xlu0 %v2539
        %v2541 = vpop.xlane.xlu0 %2540
        %v2542 = vsel %vm2451, %v2443, -inf
        %2543 = vmax.xlane.f32.xlu0 %v2542
        %v2544 = vpop.xlane.xlu0 %2543
        %v2545 = vsel %vm2451, %v2448, -inf
        %2546 = vmax.xlane.f32.xlu0 %v2545
        %v2547 = vpop.xlane.xlu0 %2546
        %v2548 = vsub.f32 %v1198, %v2454
        %v2549 = vsub.f32 %v1203, %v2457
        %v2550 = vsub.f32 %v1281, %v2460
        %v2551 = vsub.f32 %v1286, %v2463
        %v2552 = vsub.f32 %v1364, %v2466
        %v2553 = vsub.f32 %v1369, %v2469
        %v2554 = vsub.f32 %v1447, %v2472
        %v2555 = vsub.f32 %v1452, %v2475
        %v2556 = vsub.f32 %v1530, %v2478
        %v2557 = vsub.f32 %v1535, %v2481
        %v2558 = vsub.f32 %v1613, %v2484
        %v2559 = vsub.f32 %v1618, %v2487
        %v2560 = vsub.f32 %v1696, %v2490
        %v2561 = vsub.f32 %v1701, %v2493
        %v2562 = vsub.f32 %v1779, %v2496
        %v2563 = vsub.f32 %v1784, %v2499
        %v2564 = vsub.f32 %v1862, %v2502
        %v2565 = vsub.f32 %v1867, %v2505
        %v2566 = vsub.f32 %v1945, %v2508
        %v2567 = vsub.f32 %v1950, %v2511
        %v2568 = vsub.f32 %v2028, %v2514
        %v2569 = vsub.f32 %v2033, %v2517
        %v2570 = vsub.f32 %v2111, %v2520
        %v2571 = vsub.f32 %v2116, %v2523
        %v2572 = vsub.f32 %v2194, %v2526
        %v2573 = vsub.f32 %v2199, %v2529
        %v2574 = vsub.f32 %v2277, %v2532
        %v2575 = vsub.f32 %v2282, %v2535
        %v2576 = vsub.f32 %v2360, %v2538
        %v2577 = vsub.f32 %v2365, %v2541
        %v2578 = vsub.f32 %v2443, %v2544
        %v2579 = vsub.f32 %v2448, %v2547
        %v2580 = vmul.f32 %v2548, 1.442695
        %v2581 = vpow.pop %v2580
        %v2582 = vmul.f32 %v2549, 1.442695
        %v2583 = vpow.pop %v2582
        %v2584 = vmul.f32 %v2550, 1.442695
        %v2585 = vpow.pop %v2584
        %v2586 = vmul.f32 %v2551, 1.442695
        %v2587 = vpow.pop %v2586
        %v2588 = vmul.f32 %v2552, 1.442695
        %v2589 = vpow.pop %v2588
        %v2590 = vmul.f32 %v2553, 1.442695
        %v2591 = vpow.pop %v2590
        %v2592 = vmul.f32 %v2554, 1.442695
        %v2593 = vpow.pop %v2592
        %v2594 = vmul.f32 %v2555, 1.442695
        %v2595 = vpow.pop %v2594
        %v2596 = vmul.f32 %v2556, 1.442695
        %v2597 = vpow.pop %v2596
        %v2598 = vmul.f32 %v2557, 1.442695
        %v2599 = vpow.pop %v2598
        %v2600 = vmul.f32 %v2558, 1.442695
        %v2601 = vpow.pop %v2600
        %v2602 = vmul.f32 %v2559, 1.442695
        %v2603 = vpow.pop %v2602
        %v2604 = vmul.f32 %v2560, 1.442695
        %v2605 = vpow.pop %v2604
        %v2606 = vmul.f32 %v2561, 1.442695
        %v2607 = vpow.pop %v2606
        %v2608 = vmul.f32 %v2562, 1.442695
        %v2609 = vpow.pop %v2608
        %v2610 = vmul.f32 %v2563, 1.442695
        %v2611 = vpow.pop %v2610
        %v2612 = vmul.f32 %v2564, 1.442695
        %v2613 = vpow.pop %v2612
        %v2614 = vmul.f32 %v2565, 1.442695
        %v2615 = vpow.pop %v2614
        %v2616 = vmul.f32 %v2566, 1.442695
        %v2617 = vpow.pop %v2616
        %v2618 = vmul.f32 %v2567, 1.442695
        %v2619 = vpow.pop %v2618
        %v2620 = vmul.f32 %v2568, 1.442695
        %v2621 = vpow.pop %v2620
        %v2622 = vmul.f32 %v2569, 1.442695
        %v2623 = vpow.pop %v2622
        %v2624 = vmul.f32 %v2570, 1.442695
        %v2625 = vpow.pop %v2624
        %v2626 = vmul.f32 %v2571, 1.442695
        %v2627 = vpow.pop %v2626
        %v2628 = vmul.f32 %v2572, 1.442695
        %v2629 = vpow.pop %v2628
        %v2630 = vmul.f32 %v2573, 1.442695
        %v2631 = vpow.pop %v2630
        %v2632 = vmul.f32 %v2574, 1.442695
        %v2633 = vpow.pop %v2632
        %v2634 = vmul.f32 %v2575, 1.442695
        %v2635 = vpow.pop %v2634
        %v2636 = vmul.f32 %v2576, 1.442695
        %v2637 = vpow.pop %v2636
        %v2638 = vmul.f32 %v2577, 1.442695
        %v2639 = vpow.pop %v2638
        %v2640 = vmul.f32 %v2578, 1.442695
        %v2641 = vpow.pop %v2640
        %v2642 = vmul.f32 %v2579, 1.442695
        %v2643 = vpow.pop %v2642
        %v2644 = vsel %vm2451, %v2581, 0.0
        %2645 = vadd.xlane.f32.xlu0 %v2644
        %v2646 = vpop.xlane.xlu0 %2645
        %v2647 = vsel %vm2451, %v2583, 0.0
        %2648 = vadd.xlane.f32.xlu0 %v2647
        %v2649 = vpop.xlane.xlu0 %2648
        %v2650 = vsel %vm2451, %v2585, 0.0
        %2651 = vadd.xlane.f32.xlu0 %v2650
        %v2652 = vpop.xlane.xlu0 %2651
        %v2653 = vsel %vm2451, %v2587, 0.0
        %2654 = vadd.xlane.f32.xlu0 %v2653
        %v2655 = vpop.xlane.xlu0 %2654
        %v2656 = vsel %vm2451, %v2589, 0.0
        %2657 = vadd.xlane.f32.xlu0 %v2656
        %v2658 = vpop.xlane.xlu0 %2657
        %v2659 = vsel %vm2451, %v2591, 0.0
        %2660 = vadd.xlane.f32.xlu0 %v2659
        %v2661 = vpop.xlane.xlu0 %2660
        %v2662 = vsel %vm2451, %v2593, 0.0
        %2663 = vadd.xlane.f32.xlu0 %v2662
        %v2664 = vpop.xlane.xlu0 %2663
        %v2665 = vsel %vm2451, %v2595, 0.0
        %2666 = vadd.xlane.f32.xlu0 %v2665
        %v2667 = vpop.xlane.xlu0 %2666
        %v2668 = vsel %vm2451, %v2597, 0.0
        %2669 = vadd.xlane.f32.xlu0 %v2668
        %v2670 = vpop.xlane.xlu0 %2669
        %v2671 = vsel %vm2451, %v2599, 0.0
        %2672 = vadd.xlane.f32.xlu0 %v2671
        %v2673 = vpop.xlane.xlu0 %2672
        %v2674 = vsel %vm2451, %v2601, 0.0
        %2675 = vadd.xlane.f32.xlu0 %v2674
        %v2676 = vpop.xlane.xlu0 %2675
        %v2677 = vsel %vm2451, %v2603, 0.0
        %2678 = vadd.xlane.f32.xlu0 %v2677
        %v2679 = vpop.xlane.xlu0 %2678
        %v2680 = vsel %vm2451, %v2605, 0.0
        %2681 = vadd.xlane.f32.xlu0 %v2680
        %v2682 = vpop.xlane.xlu0 %2681
        %v2683 = vsel %vm2451, %v2607, 0.0
        %2684 = vadd.xlane.f32.xlu0 %v2683
        %v2685 = vpop.xlane.xlu0 %2684
        %v2686 = vsel %vm2451, %v2609, 0.0
        %2687 = vadd.xlane.f32.xlu0 %v2686
        %v2688 = vpop.xlane.xlu0 %2687
        %v2689 = vsel %vm2451, %v2611, 0.0
        %2690 = vadd.xlane.f32.xlu0 %v2689
        %v2691 = vpop.xlane.xlu0 %2690
        %v2692 = vsel %vm2451, %v2613, 0.0
        %2693 = vadd.xlane.f32.xlu0 %v2692
        %v2694 = vpop.xlane.xlu0 %2693
        %v2695 = vsel %vm2451, %v2615, 0.0
        %2696 = vadd.xlane.f32.xlu0 %v2695
        %v2697 = vpop.xlane.xlu0 %2696
        %v2698 = vsel %vm2451, %v2617, 0.0
        %2699 = vadd.xlane.f32.xlu0 %v2698
        %v2700 = vpop.xlane.xlu0 %2699
        %v2701 = vsel %vm2451, %v2619, 0.0
        %2702 = vadd.xlane.f32.xlu0 %v2701
        %v2703 = vpop.xlane.xlu0 %2702
        %v2704 = vsel %vm2451, %v2621, 0.0
        %2705 = vadd.xlane.f32.xlu0 %v2704
        %v2706 = vpop.xlane.xlu0 %2705
        %v2707 = vsel %vm2451, %v2623, 0.0
        %2708 = vadd.xlane.f32.xlu0 %v2707
        %v2709 = vpop.xlane.xlu0 %2708
        %v2710 = vsel %vm2451, %v2625, 0.0
        %2711 = vadd.xlane.f32.xlu0 %v2710
        %v2712 = vpop.xlane.xlu0 %2711
        %v2713 = vsel %vm2451, %v2627, 0.0
        %2714 = vadd.xlane.f32.xlu0 %v2713
        %v2715 = vpop.xlane.xlu0 %2714
        %v2716 = vsel %vm2451, %v2629, 0.0
        %2717 = vadd.xlane.f32.xlu0 %v2716
        %v2718 = vpop.xlane.xlu0 %2717
        %v2719 = vsel %vm2451, %v2631, 0.0
        %2720 = vadd.xlane.f32.xlu0 %v2719
        %v2721 = vpop.xlane.xlu0 %2720
        %v2722 = vsel %vm2451, %v2633, 0.0
        %2723 = vadd.xlane.f32.xlu0 %v2722
        %v2724 = vpop.xlane.xlu0 %2723
        %v2725 = vsel %vm2451, %v2635, 0.0
        %2726 = vadd.xlane.f32.xlu0 %v2725
        %v2727 = vpop.xlane.xlu0 %2726
        %v2728 = vsel %vm2451, %v2637, 0.0
        %2729 = vadd.xlane.f32.xlu0 %v2728
        %v2730 = vpop.xlane.xlu0 %2729
        %v2731 = vsel %vm2451, %v2639, 0.0
        %2732 = vadd.xlane.f32.xlu0 %v2731
        %v2733 = vpop.xlane.xlu0 %2732
        %v2734 = vsel %vm2451, %v2641, 0.0
        %2735 = vadd.xlane.f32.xlu0 %v2734
        %v2736 = vpop.xlane.xlu0 %2735
        %v2737 = vsel %vm2451, %v2643, 0.0
        %2738 = vadd.xlane.f32.xlu0 %v2737
        %v2739 = vpop.xlane.xlu0 %2738
        %v2741 = vsel %vm2451, %v2581, 0
        %v2744 = vsel %vm2451, %v2583, 0
        %2746 = vmatprep.subr.mxu0 0.0
        %2747 = vmatpush1.msra.mxu0 %v892
        %2748 = vmatprep.subr.mxu0 0.0
        %2749 = vmatpush1.msra.mxu0 %v897
        %2750 = vmatprep.subr.mxu0 0.0
        %2751 = vmatpush1.msra.mxu0 0.0
        %2752 = vmatprep.subr.mxu0 0.0
        %2753 = vmatpush1.msra.mxu0 0.0
        %2754 = vmatprep.subr.mxu0 0.0
        %2755 = vmatpush1.msra.mxu0 0.0
        %2756 = vmatprep.subr.mxu0 0.0
        %2757 = vmatpush1.msra.mxu0 0.0
        %2758 = vmatprep.subr.mxu0 0.0
        %2759 = vmatpush1.msra.mxu0 0.0
        %2760 = vmatprep.subr.mxu0 0.0
        %2761 = vmatpush1.msra.mxu0 0.0
        %2762 = vmatprep.subr.mxu0 0.0
        %2763 = vmatpush1.msra.mxu0 0.0
        %2764 = vmatprep.subr.mxu0 0.0
        %2765 = vmatpush1.msra.mxu0 0.0
        %2766 = vmatprep.subr.mxu0 0.0
        %2767 = vmatpush1.msra.mxu0 0.0
        %2768 = vmatprep.subr.mxu0 0.0
        %2769 = vmatpush1.msra.mxu0 0.0
        %2770 = vmatprep.subr.mxu0 0.0
        %2771 = vmatpush1.msra.mxu0 0.0
        %2772 = vmatprep.subr.mxu0 0.0
        %2773 = vmatpush1.msra.mxu0 0.0
        %2774 = vmatprep.subr.mxu0 0.0
        %2775 = vmatpush1.msra.mxu0 0.0
        %2776 = vmatprep.subr.mxu0 0.0
        %2777 = vmatpush1.msra.mxu0 0.0
        %2778 = vmatprep.subr.mxu0 0.0
        %2779 = vmatpush1.msra.mxu0 0.0
        %2780 = vmatprep.subr.mxu0 0.0
        %2781 = vmatpush1.msra.mxu0 0.0
        %2782 = vmatprep.subr.mxu0 0.0
        %2783 = vmatpush1.msra.mxu0 0.0
        %2784 = vmatprep.subr.mxu0 0.0
        %2785 = vmatpush1.msra.mxu0 0.0
        %2786 = vmatprep.subr.mxu0 0.0
        %2787 = vmatpush1.msra.mxu0 0.0
        %2788 = vmatprep.subr.mxu0 0.0
        %2789 = vmatpush1.msra.mxu0 0.0
        %2790 = vmatprep.subr.mxu0 0.0
        %2791 = vmatpush1.msra.mxu0 0.0
        %2792 = vmatprep.subr.mxu0 0.0
        %2793 = vmatpush1.msra.mxu0 0.0
        %2794 = vmatprep.subr.mxu0 0.0
        %2795 = vmatpush1.msra.mxu0 0.0
        %2796 = vmatprep.subr.mxu0 0.0
        %2797 = vmatpush1.msra.mxu0 0.0
        %2798 = vmatprep.subr.mxu0 0.0
        %2799 = vmatpush1.msra.mxu0 0.0
        %2800 = vmatprep.subr.mxu0 0.0
        %2801 = vmatpush1.msra.mxu0 0.0
        %2802 = vmatprep.subr.mxu0 0.0
        %2803 = vmatpush1.msra.mxu0 0.0
        %2804 = vmatprep.subr.mxu0 0.0
        %2805 = vmatpush1.msra.mxu0 0.0
        %2806 = vmatprep.subr.mxu0 0.0
        %2807 = vmatpush1.msra.mxu0 0.0
        %2808 = vmatprep.subr.mxu0 0.0
        %2809 = vmatpush1.msra.mxu0 0.0
        %2810 = vmatprep.mubr.f32.mxu0 0.0
        %2811 = vmatmul.mubr.f32.gmra.mrb[0].mxu0 %v2741
        %v2812 = vpop.f32.mrb[0].mxu0
        %v2813 = vadd.f32 0.0, %v2812
        %v2814 = vpop.f32.mrb[0].mxu0
        %2815 = vmatprep.mubr.f32.mxu0 0.0
        %2816 = vmatmul.mubr.f32.gmra.mrb[0].mxu0 %v2744
        %v2817 = vpop.f32.mrb[0].mxu0
        %v2818 = vadd.f32 0.0, %v2817
        %v2819 = vpop.f32.mrb[0].mxu0
        %2820 = vdwg.mxu0
        %v2822 = vsel %vm2451, %v2585, 0
        %v2825 = vsel %vm2451, %v2587, 0
        %2827 = vmatprep.subr.mxu0 0.0
        %2828 = vmatpush1.msra.mxu0 %v902
        %2829 = vmatprep.subr.mxu0 0.0
        %2830 = vmatpush1.msra.mxu0 %v907
        %2831 = vmatprep.subr.mxu0 0.0
        %2832 = vmatpush1.msra.mxu0 0.0
        %2833 = vmatprep.subr.mxu0 0.0
        %2834 = vmatpush1.msra.mxu0 0.0
        %2835 = vmatprep.subr.mxu0 0.0
        %2836 = vmatpush1.msra.mxu0 0.0
        %2837 = vmatprep.subr.mxu0 0.0
        %2838 = vmatpush1.msra.mxu0 0.0
        %2839 = vmatprep.subr.mxu0 0.0
        %2840 = vmatpush1.msra.mxu0 0.0
        %2841 = vmatprep.subr.mxu0 0.0
        %2842 = vmatpush1.msra.mxu0 0.0
        %2843 = vmatprep.subr.mxu0 0.0
        %2844 = vmatpush1.msra.mxu0 0.0
        %2845 = vmatprep.subr.mxu0 0.0
        %2846 = vmatpush1.msra.mxu0 0.0
        %2847 = vmatprep.subr.mxu0 0.0
        %2848 = vmatpush1.msra.mxu0 0.0
        %2849 = vmatprep.subr.mxu0 0.0
        %2850 = vmatpush1.msra.mxu0 0.0
        %2851 = vmatprep.subr.mxu0 0.0
        %2852 = vmatpush1.msra.mxu0 0.0
        %2853 = vmatprep.subr.mxu0 0.0
        %2854 = vmatpush1.msra.mxu0 0.0
        %2855 = vmatprep.subr.mxu0 0.0
        %2856 = vmatpush1.msra.mxu0 0.0
        %2857 = vmatprep.subr.mxu0 0.0
        %2858 = vmatpush1.msra.mxu0 0.0
        %2859 = vmatprep.subr.mxu0 0.0
        %2860 = vmatpush1.msra.mxu0 0.0
        %2861 = vmatprep.subr.mxu0 0.0
        %2862 = vmatpush1.msra.mxu0 0.0
        %2863 = vmatprep.subr.mxu0 0.0
        %2864 = vmatpush1.msra.mxu0 0.0
        %2865 = vmatprep.subr.mxu0 0.0
        %2866 = vmatpush1.msra.mxu0 0.0
        %2867 = vmatprep.subr.mxu0 0.0
        %2868 = vmatpush1.msra.mxu0 0.0
        %2869 = vmatprep.subr.mxu0 0.0
        %2870 = vmatpush1.msra.mxu0 0.0
        %2871 = vmatprep.subr.mxu0 0.0
        %2872 = vmatpush1.msra.mxu0 0.0
        %2873 = vmatprep.subr.mxu0 0.0
        %2874 = vmatpush1.msra.mxu0 0.0
        %2875 = vmatprep.subr.mxu0 0.0
        %2876 = vmatpush1.msra.mxu0 0.0
        %2877 = vmatprep.subr.mxu0 0.0
        %2878 = vmatpush1.msra.mxu0 0.0
        %2879 = vmatprep.subr.mxu0 0.0
        %2880 = vmatpush1.msra.mxu0 0.0
        %2881 = vmatprep.subr.mxu0 0.0
        %2882 = vmatpush1.msra.mxu0 0.0
        %2883 = vmatprep.subr.mxu0 0.0
        %2884 = vmatpush1.msra.mxu0 0.0
        %2885 = vmatprep.subr.mxu0 0.0
        %2886 = vmatpush1.msra.mxu0 0.0
        %2887 = vmatprep.subr.mxu0 0.0
        %2888 = vmatpush1.msra.mxu0 0.0
        %2889 = vmatprep.subr.mxu0 0.0
        %2890 = vmatpush1.msra.mxu0 0.0
        %2891 = vmatprep.mubr.f32.mxu0 0.0
        %2892 = vmatmul.mubr.f32.gmra.mrb[0].mxu0 %v2822
        %v2893 = vpop.f32.mrb[0].mxu0
        %v2894 = vadd.f32 0.0, %v2893
        %v2895 = vpop.f32.mrb[0].mxu0
        %2896 = vmatprep.mubr.f32.mxu0 0.0
        %2897 = vmatmul.mubr.f32.gmra.mrb[0].mxu0 %v2825
        %v2898 = vpop.f32.mrb[0].mxu0
        %v2899 = vadd.f32 0.0, %v2898
        %v2900 = vpop.f32.mrb[0].mxu0
        %2901 = vdwg.mxu0
        %v2903 = vsel %vm2451, %v2589, 0
        %v2906 = vsel %vm2451, %v2591, 0
        %2908 = vmatprep.subr.mxu0 0.0
        %2909 = vmatpush1.msra.mxu0 %v912
        %2910 = vmatprep.subr.mxu0 0.0
        %2911 = vmatpush1.msra.mxu0 %v917
        %2912 = vmatprep.subr.mxu0 0.0
        %2913 = vmatpush1.msra.mxu0 0.0
        %2914 = vmatprep.subr.mxu0 0.0
        %2915 = vmatpush1.msra.mxu0 0.0
        %2916 = vmatprep.subr.mxu0 0.0
        %2917 = vmatpush1.msra.mxu0 0.0
        %2918 = vmatprep.subr.mxu0 0.0
        %2919 = vmatpush1.msra.mxu0 0.0
        %2920 = vmatprep.subr.mxu0 0.0
        %2921 = vmatpush1.msra.mxu0 0.0
        %2922 = vmatprep.subr.mxu0 0.0
        %2923 = vmatpush1.msra.mxu0 0.0
        %2924 = vmatprep.subr.mxu0 0.0
        %2925 = vmatpush1.msra.mxu0 0.0
        %2926 = vmatprep.subr.mxu0 0.0
        %2927 = vmatpush1.msra.mxu0 0.0
        %2928 = vmatprep.subr.mxu0 0.0
        %2929 = vmatpush1.msra.mxu0 0.0
        %2930 = vmatprep.subr.mxu0 0.0
        %2931 = vmatpush1.msra.mxu0 0.0
        %2932 = vmatprep.subr.mxu0 0.0
        %2933 = vmatpush1.msra.mxu0 0.0
        %2934 = vmatprep.subr.mxu0 0.0
        %2935 = vmatpush1.msra.mxu0 0.0
        %2936 = vmatprep.subr.mxu0 0.0
        %2937 = vmatpush1.msra.mxu0 0.0
        %2938 = vmatprep.subr.mxu0 0.0
        %2939 = vmatpush1.msra.mxu0 0.0
        %2940 = vmatprep.subr.mxu0 0.0
        %2941 = vmatpush1.msra.mxu0 0.0
        %2942 = vmatprep.subr.mxu0 0.0
        %2943 = vmatpush1.msra.mxu0 0.0
        %2944 = vmatprep.subr.mxu0 0.0
        %2945 = vmatpush1.msra.mxu0 0.0
        %2946 = vmatprep.subr.mxu0 0.0
        %2947 = vmatpush1.msra.mxu0 0.0
        %2948 = vmatprep.subr.mxu0 0.0
        %2949 = vmatpush1.msra.mxu0 0.0
        %2950 = vmatprep.subr.mxu0 0.0
        %2951 = vmatpush1.msra.mxu0 0.0
        %2952 = vmatprep.subr.mxu0 0.0
        %2953 = vmatpush1.msra.mxu0 0.0
        %2954 = vmatprep.subr.mxu0 0.0
        %2955 = vmatpush1.msra.mxu0 0.0
        %2956 = vmatprep.subr.mxu0 0.0
        %2957 = vmatpush1.msra.mxu0 0.0
        %2958 = vmatprep.subr.mxu0 0.0
        %2959 = vmatpush1.msra.mxu0 0.0
        %2960 = vmatprep.subr.mxu0 0.0
        %2961 = vmatpush1.msra.mxu0 0.0
        %2962 = vmatprep.subr.mxu0 0.0
        %2963 = vmatpush1.msra.mxu0 0.0
        %2964 = vmatprep.subr.mxu0 0.0
        %2965 = vmatpush1.msra.mxu0 0.0
        %2966 = vmatprep.subr.mxu0 0.0
        %2967 = vmatpush1.msra.mxu0 0.0
        %2968 = vmatprep.subr.mxu0 0.0
        %2969 = vmatpush1.msra.mxu0 0.0
        %2970 = vmatprep.subr.mxu0 0.0
        %2971 = vmatpush1.msra.mxu0 0.0
        %2972 = vmatprep.mubr.f32.mxu0 0.0
        %2973 = vmatmul.mubr.f32.gmra.mrb[0].mxu0 %v2903
        %v2974 = vpop.f32.mrb[0].mxu0
        %v2975 = vadd.f32 0.0, %v2974
        %v2976 = vpop.f32.mrb[0].mxu0
        %2977 = vmatprep.mubr.f32.mxu0 0.0
        %2978 = vmatmul.mubr.f32.gmra.mrb[0].mxu0 %v2906
        %v2979 = vpop.f32.mrb[0].mxu0
        %v2980 = vadd.f32 0.0, %v2979
        %v2981 = vpop.f32.mrb[0].mxu0
        %2982 = vdwg.mxu0
        %v2984 = vsel %vm2451, %v2593, 0
        %v2987 = vsel %vm2451, %v2595, 0
        %2989 = vmatprep.subr.mxu0 0.0
        %2990 = vmatpush1.msra.mxu0 %v922
        %2991 = vmatprep.subr.mxu0 0.0
        %2992 = vmatpush1.msra.mxu0 %v927
        %2993 = vmatprep.subr.mxu0 0.0
        %2994 = vmatpush1.msra.mxu0 0.0
        %2995 = vmatprep.subr.mxu0 0.0
        %2996 = vmatpush1.msra.mxu0 0.0
        %2997 = vmatprep.subr.mxu0 0.0
        %2998 = vmatpush1.msra.mxu0 0.0
        %2999 = vmatprep.subr.mxu0 0.0
        %3000 = vmatpush1.msra.mxu0 0.0
        %3001 = vmatprep.subr.mxu0 0.0
        %3002 = vmatpush1.msra.mxu0 0.0
        %3003 = vmatprep.subr.mxu0 0.0
        %3004 = vmatpush1.msra.mxu0 0.0
        %3005 = vmatprep.subr.mxu0 0.0
        %3006 = vmatpush1.msra.mxu0 0.0
        %3007 = vmatprep.subr.mxu0 0.0
        %3008 = vmatpush1.msra.mxu0 0.0
        %3009 = vmatprep.subr.mxu0 0.0
        %3010 = vmatpush1.msra.mxu0 0.0
        %3011 = vmatprep.subr.mxu0 0.0
        %3012 = vmatpush1.msra.mxu0 0.0
        %3013 = vmatprep.subr.mxu0 0.0
        %3014 = vmatpush1.msra.mxu0 0.0
        %3015 = vmatprep.subr.mxu0 0.0
        %3016 = vmatpush1.msra.mxu0 0.0
        %3017 = vmatprep.subr.mxu0 0.0
        %3018 = vmatpush1.msra.mxu0 0.0
        %3019 = vmatprep.subr.mxu0 0.0
        %3020 = vmatpush1.msra.mxu0 0.0
        %3021 = vmatprep.subr.mxu0 0.0
        %3022 = vmatpush1.msra.mxu0 0.0
        %3023 = vmatprep.subr.mxu0 0.0
        %3024 = vmatpush1.msra.mxu0 0.0
        %3025 = vmatprep.subr.mxu0 0.0
        %3026 = vmatpush1.msra.mxu0 0.0
        %3027 = vmatprep.subr.mxu0 0.0
        %3028 = vmatpush1.msra.mxu0 0.0
        %3029 = vmatprep.subr.mxu0 0.0
        %3030 = vmatpush1.msra.mxu0 0.0
        %3031 = vmatprep.subr.mxu0 0.0
        %3032 = vmatpush1.msra.mxu0 0.0
        %3033 = vmatprep.subr.mxu0 0.0
        %3034 = vmatpush1.msra.mxu0 0.0
        %3035 = vmatprep.subr.mxu0 0.0
        %3036 = vmatpush1.msra.mxu0 0.0
        %3037 = vmatprep.subr.mxu0 0.0
        %3038 = vmatpush1.msra.mxu0 0.0
        %3039 = vmatprep.subr.mxu0 0.0
        %3040 = vmatpush1.msra.mxu0 0.0
        %3041 = vmatprep.subr.mxu0 0.0
        %3042 = vmatpush1.msra.mxu0 0.0
        %3043 = vmatprep.subr.mxu0 0.0
        %3044 = vmatpush1.msra.mxu0 0.0
        %3045 = vmatprep.subr.mxu0 0.0
        %3046 = vmatpush1.msra.mxu0 0.0
        %3047 = vmatprep.subr.mxu0 0.0
        %3048 = vmatpush1.msra.mxu0 0.0
        %3049 = vmatprep.subr.mxu0 0.0
        %3050 = vmatpush1.msra.mxu0 0.0
        %3051 = vmatprep.subr.mxu0 0.0
        %3052 = vmatpush1.msra.mxu0 0.0
        %3053 = vmatprep.mubr.f32.mxu0 0.0
        %3054 = vmatmul.mubr.f32.gmra.mrb[0].mxu0 %v2984
        %v3055 = vpop.f32.mrb[0].mxu0
        %v3056 = vadd.f32 0.0, %v3055
        %v3057 = vpop.f32.mrb[0].mxu0
        %3058 = vmatprep.mubr.f32.mxu0 0.0
        %3059 = vmatmul.mubr.f32.gmra.mrb[0].mxu0 %v2987
        %v3060 = vpop.f32.mrb[0].mxu0
        %v3061 = vadd.f32 0.0, %v3060
        %v3062 = vpop.f32.mrb[0].mxu0
        %3063 = vdwg.mxu0
        %v3065 = vsel %vm2451, %v2597, 0
        %v3068 = vsel %vm2451, %v2599, 0
        %3070 = vmatprep.subr.mxu0 0.0
        %3071 = vmatpush1.msra.mxu0 %v1051
        %3072 = vmatprep.subr.mxu0 0.0
        %3073 = vmatpush1.msra.mxu0 %v1053
        %3074 = vmatprep.subr.mxu0 0.0
        %3075 = vmatpush1.msra.mxu0 0.0
        %3076 = vmatprep.subr.mxu0 0.0
        %3077 = vmatpush1.msra.mxu0 0.0
        %3078 = vmatprep.subr.mxu0 0.0
        %3079 = vmatpush1.msra.mxu0 0.0
        %3080 = vmatprep.subr.mxu0 0.0
        %3081 = vmatpush1.msra.mxu0 0.0
        %3082 = vmatprep.subr.mxu0 0.0
        %3083 = vmatpush1.msra.mxu0 0.0
        %3084 = vmatprep.subr.mxu0 0.0
        %3085 = vmatpush1.msra.mxu0 0.0
        %3086 = vmatprep.subr.mxu0 0.0
        %3087 = vmatpush1.msra.mxu0 0.0
        %3088 = vmatprep.subr.mxu0 0.0
        %3089 = vmatpush1.msra.mxu0 0.0
        %3090 = vmatprep.subr.mxu0 0.0
        %3091 = vmatpush1.msra.mxu0 0.0
        %3092 = vmatprep.subr.mxu0 0.0
        %3093 = vmatpush1.msra.mxu0 0.0
        %3094 = vmatprep.subr.mxu0 0.0
        %3095 = vmatpush1.msra.mxu0 0.0
        %3096 = vmatprep.subr.mxu0 0.0
        %3097 = vmatpush1.msra.mxu0 0.0
        %3098 = vmatprep.subr.mxu0 0.0
        %3099 = vmatpush1.msra.mxu0 0.0
        %3100 = vmatprep.subr.mxu0 0.0
        %3101 = vmatpush1.msra.mxu0 0.0
        %3102 = vmatprep.subr.mxu0 0.0
        %3103 = vmatpush1.msra.mxu0 0.0
        %3104 = vmatprep.subr.mxu0 0.0
        %3105 = vmatpush1.msra.mxu0 0.0
        %3106 = vmatprep.subr.mxu0 0.0
        %3107 = vmatpush1.msra.mxu0 0.0
        %3108 = vmatprep.subr.mxu0 0.0
        %3109 = vmatpush1.msra.mxu0 0.0
        %3110 = vmatprep.subr.mxu0 0.0
        %3111 = vmatpush1.msra.mxu0 0.0
        %3112 = vmatprep.subr.mxu0 0.0
        %3113 = vmatpush1.msra.mxu0 0.0
        %3114 = vmatprep.subr.mxu0 0.0
        %3115 = vmatpush1.msra.mxu0 0.0
        %3116 = vmatprep.subr.mxu0 0.0
        %3117 = vmatpush1.msra.mxu0 0.0
        %3118 = vmatprep.subr.mxu0 0.0
        %3119 = vmatpush1.msra.mxu0 0.0
        %3120 = vmatprep.subr.mxu0 0.0
        %3121 = vmatpush1.msra.mxu0 0.0
        %3122 = vmatprep.subr.mxu0 0.0
        %3123 = vmatpush1.msra.mxu0 0.0
        %3124 = vmatprep.subr.mxu0 0.0
        %3125 = vmatpush1.msra.mxu0 0.0
        %3126 = vmatprep.subr.mxu0 0.0
        %3127 = vmatpush1.msra.mxu0 0.0
        %3128 = vmatprep.subr.mxu0 0.0
        %3129 = vmatpush1.msra.mxu0 0.0
        %3130 = vmatprep.subr.mxu0 0.0
        %3131 = vmatpush1.msra.mxu0 0.0
        %3132 = vmatprep.subr.mxu0 0.0
        %3133 = vmatpush1.msra.mxu0 0.0
        %3134 = vmatprep.mubr.f32.mxu0 0.0
        %3135 = vmatmul.mubr.f32.gmra.mrb[0].mxu0 %v3065
        %v3136 = vpop.f32.mrb[0].mxu0
        %v3137 = vadd.f32 0.0, %v3136
        %v3138 = vpop.f32.mrb[0].mxu0
        %3139 = vmatprep.mubr.f32.mxu0 0.0
        %3140 = vmatmul.mubr.f32.gmra.mrb[0].mxu0 %v3068
        %v3141 = vpop.f32.mrb[0].mxu0
        %v3142 = vadd.f32 0.0, %v3141
        %v3143 = vpop.f32.mrb[0].mxu0
        %3144 = vdwg.mxu0
        %v3146 = vsel %vm2451, %v2601, 0
        %v3149 = vsel %vm2451, %v2603, 0
        %3151 = vmatprep.subr.mxu0 0.0
        %3152 = vmatpush1.msra.mxu0 %v1055
        %3153 = vmatprep.subr.mxu0 0.0
        %3154 = vmatpush1.msra.mxu0 %v1057
        %3155 = vmatprep.subr.mxu0 0.0
        %3156 = vmatpush1.msra.mxu0 0.0
        %3157 = vmatprep.subr.mxu0 0.0
        %3158 = vmatpush1.msra.mxu0 0.0
        %3159 = vmatprep.subr.mxu0 0.0
        %3160 = vmatpush1.msra.mxu0 0.0
        %3161 = vmatprep.subr.mxu0 0.0
        %3162 = vmatpush1.msra.mxu0 0.0
        %3163 = vmatprep.subr.mxu0 0.0
        %3164 = vmatpush1.msra.mxu0 0.0
        %3165 = vmatprep.subr.mxu0 0.0
        %3166 = vmatpush1.msra.mxu0 0.0
        %3167 = vmatprep.subr.mxu0 0.0
        %3168 = vmatpush1.msra.mxu0 0.0
        %3169 = vmatprep.subr.mxu0 0.0
        %3170 = vmatpush1.msra.mxu0 0.0
        %3171 = vmatprep.subr.mxu0 0.0
        %3172 = vmatpush1.msra.mxu0 0.0
        %3173 = vmatprep.subr.mxu0 0.0
        %3174 = vmatpush1.msra.mxu0 0.0
        %3175 = vmatprep.subr.mxu0 0.0
        %3176 = vmatpush1.msra.mxu0 0.0
        %3177 = vmatprep.subr.mxu0 0.0
        %3178 = vmatpush1.msra.mxu0 0.0
        %3179 = vmatprep.subr.mxu0 0.0
        %3180 = vmatpush1.msra.mxu0 0.0
        %3181 = vmatprep.subr.mxu0 0.0
        %3182 = vmatpush1.msra.mxu0 0.0
        %3183 = vmatprep.subr.mxu0 0.0
        %3184 = vmatpush1.msra.mxu0 0.0
        %3185 = vmatprep.subr.mxu0 0.0
        %3186 = vmatpush1.msra.mxu0 0.0
        %3187 = vmatprep.subr.mxu0 0.0
        %3188 = vmatpush1.msra.mxu0 0.0
        %3189 = vmatprep.subr.mxu0 0.0
        %3190 = vmatpush1.msra.mxu0 0.0
        %3191 = vmatprep.subr.mxu0 0.0
        %3192 = vmatpush1.msra.mxu0 0.0
        %3193 = vmatprep.subr.mxu0 0.0
        %3194 = vmatpush1.msra.mxu0 0.0
        %3195 = vmatprep.subr.mxu0 0.0
        %3196 = vmatpush1.msra.mxu0 0.0
        %3197 = vmatprep.subr.mxu0 0.0
        %3198 = vmatpush1.msra.mxu0 0.0
        %3199 = vmatprep.subr.mxu0 0.0
        %3200 = vmatpush1.msra.mxu0 0.0
        %3201 = vmatprep.subr.mxu0 0.0
        %3202 = vmatpush1.msra.mxu0 0.0
        %3203 = vmatprep.subr.mxu0 0.0
        %3204 = vmatpush1.msra.mxu0 0.0
        %3205 = vmatprep.subr.mxu0 0.0
        %3206 = vmatpush1.msra.mxu0 0.0
        %3207 = vmatprep.subr.mxu0 0.0
        %3208 = vmatpush1.msra.mxu0 0.0
        %3209 = vmatprep.subr.mxu0 0.0
        %3210 = vmatpush1.msra.mxu0 0.0
        %3211 = vmatprep.subr.mxu0 0.0
        %3212 = vmatpush1.msra.mxu0 0.0
        %3213 = vmatprep.subr.mxu0 0.0
        %3214 = vmatpush1.msra.mxu0 0.0
        %3215 = vmatprep.mubr.f32.mxu0 0.0
        %3216 = vmatmul.mubr.f32.gmra.mrb[0].mxu0 %v3146
        %v3217 = vpop.f32.mrb[0].mxu0
        %v3218 = vadd.f32 0.0, %v3217
        %v3219 = vpop.f32.mrb[0].mxu0
        %3220 = vmatprep.mubr.f32.mxu0 0.0
        %3221 = vmatmul.mubr.f32.gmra.mrb[0].mxu0 %v3149
        %v3222 = vpop.f32.mrb[0].mxu0
        %v3223 = vadd.f32 0.0, %v3222
        %v3224 = vpop.f32.mrb[0].mxu0
        %3225 = vdwg.mxu0
        %v3227 = vsel %vm2451, %v2605, 0
        %v3230 = vsel %vm2451, %v2607, 0
        %3232 = vmatprep.subr.mxu0 0.0
        %3233 = vmatpush1.msra.mxu0 %v1059
        %3234 = vmatprep.subr.mxu0 0.0
        %3235 = vmatpush1.msra.mxu0 %v1061
        %3236 = vmatprep.subr.mxu0 0.0
        %3237 = vmatpush1.msra.mxu0 0.0
        %3238 = vmatprep.subr.mxu0 0.0
        %3239 = vmatpush1.msra.mxu0 0.0
        %3240 = vmatprep.subr.mxu0 0.0
        %3241 = vmatpush1.msra.mxu0 0.0
        %3242 = vmatprep.subr.mxu0 0.0
        %3243 = vmatpush1.msra.mxu0 0.0
        %3244 = vmatprep.subr.mxu0 0.0
        %3245 = vmatpush1.msra.mxu0 0.0
        %3246 = vmatprep.subr.mxu0 0.0
        %3247 = vmatpush1.msra.mxu0 0.0
        %3248 = vmatprep.subr.mxu0 0.0
        %3249 = vmatpush1.msra.mxu0 0.0
        %3250 = vmatprep.subr.mxu0 0.0
        %3251 = vmatpush1.msra.mxu0 0.0
        %3252 = vmatprep.subr.mxu0 0.0
        %3253 = vmatpush1.msra.mxu0 0.0
        %3254 = vmatprep.subr.mxu0 0.0
        %3255 = vmatpush1.msra.mxu0 0.0
        %3256 = vmatprep.subr.mxu0 0.0
        %3257 = vmatpush1.msra.mxu0 0.0
        %3258 = vmatprep.subr.mxu0 0.0
        %3259 = vmatpush1.msra.mxu0 0.0
        %3260 = vmatprep.subr.mxu0 0.0
        %3261 = vmatpush1.msra.mxu0 0.0
        %3262 = vmatprep.subr.mxu0 0.0
        %3263 = vmatpush1.msra.mxu0 0.0
        %3264 = vmatprep.subr.mxu0 0.0
        %3265 = vmatpush1.msra.mxu0 0.0
        %3266 = vmatprep.subr.mxu0 0.0
        %3267 = vmatpush1.msra.mxu0 0.0
        %3268 = vmatprep.subr.mxu0 0.0
        %3269 = vmatpush1.msra.mxu0 0.0
        %3270 = vmatprep.subr.mxu0 0.0
        %3271 = vmatpush1.msra.mxu0 0.0
        %3272 = vmatprep.subr.mxu0 0.0
        %3273 = vmatpush1.msra.mxu0 0.0
        %3274 = vmatprep.subr.mxu0 0.0
        %3275 = vmatpush1.msra.mxu0 0.0
        %3276 = vmatprep.subr.mxu0 0.0
        %3277 = vmatpush1.msra.mxu0 0.0
        %3278 = vmatprep.subr.mxu0 0.0
        %3279 = vmatpush1.msra.mxu0 0.0
        %3280 = vmatprep.subr.mxu0 0.0
        %3281 = vmatpush1.msra.mxu0 0.0
        %3282 = vmatprep.subr.mxu0 0.0
        %3283 = vmatpush1.msra.mxu0 0.0
        %3284 = vmatprep.subr.mxu0 0.0
        %3285 = vmatpush1.msra.mxu0 0.0
        %3286 = vmatprep.subr.mxu0 0.0
        %3287 = vmatpush1.msra.mxu0 0.0
        %3288 = vmatprep.subr.mxu0 0.0
        %3289 = vmatpush1.msra.mxu0 0.0
        %3290 = vmatprep.subr.mxu0 0.0
        %3291 = vmatpush1.msra.mxu0 0.0
        %3292 = vmatprep.subr.mxu0 0.0
        %3293 = vmatpush1.msra.mxu0 0.0
        %3294 = vmatprep.subr.mxu0 0.0
        %3295 = vmatpush1.msra.mxu0 0.0
        %3296 = vmatprep.mubr.f32.mxu0 0.0
        %3297 = vmatmul.mubr.f32.gmra.mrb[0].mxu0 %v3227
        %v3298 = vpop.f32.mrb[0].mxu0
        %v3299 = vadd.f32 0.0, %v3298
        %v3300 = vpop.f32.mrb[0].mxu0
        %3301 = vmatprep.mubr.f32.mxu0 0.0
        %3302 = vmatmul.mubr.f32.gmra.mrb[0].mxu0 %v3230
        %v3303 = vpop.f32.mrb[0].mxu0
        %v3304 = vadd.f32 0.0, %v3303
        %v3305 = vpop.f32.mrb[0].mxu0
        %3306 = vdwg.mxu0
        %v3308 = vsel %vm2451, %v2609, 0
        %v3311 = vsel %vm2451, %v2611, 0
        %3313 = vmatprep.subr.mxu0 0.0
        %3314 = vmatpush1.msra.mxu0 %v1063
        %3315 = vmatprep.subr.mxu0 0.0
        %3316 = vmatpush1.msra.mxu0 %v1065
        %3317 = vmatprep.subr.mxu0 0.0
        %3318 = vmatpush1.msra.mxu0 0.0
        %3319 = vmatprep.subr.mxu0 0.0
        %3320 = vmatpush1.msra.mxu0 0.0
        %3321 = vmatprep.subr.mxu0 0.0
        %3322 = vmatpush1.msra.mxu0 0.0
        %3323 = vmatprep.subr.mxu0 0.0
        %3324 = vmatpush1.msra.mxu0 0.0
        %3325 = vmatprep.subr.mxu0 0.0
        %3326 = vmatpush1.msra.mxu0 0.0
        %3327 = vmatprep.subr.mxu0 0.0
        %3328 = vmatpush1.msra.mxu0 0.0
        %3329 = vmatprep.subr.mxu0 0.0
        %3330 = vmatpush1.msra.mxu0 0.0
        %3331 = vmatprep.subr.mxu0 0.0
        %3332 = vmatpush1.msra.mxu0 0.0
        %3333 = vmatprep.subr.mxu0 0.0
        %3334 = vmatpush1.msra.mxu0 0.0
        %3335 = vmatprep.subr.mxu0 0.0
        %3336 = vmatpush1.msra.mxu0 0.0
        %3337 = vmatprep.subr.mxu0 0.0
        %3338 = vmatpush1.msra.mxu0 0.0
        %3339 = vmatprep.subr.mxu0 0.0
        %3340 = vmatpush1.msra.mxu0 0.0
        %3341 = vmatprep.subr.mxu0 0.0
        %3342 = vmatpush1.msra.mxu0 0.0
        %3343 = vmatprep.subr.mxu0 0.0
        %3344 = vmatpush1.msra.mxu0 0.0
        %3345 = vmatprep.subr.mxu0 0.0
        %3346 = vmatpush1.msra.mxu0 0.0
        %3347 = vmatprep.subr.mxu0 0.0
        %3348 = vmatpush1.msra.mxu0 0.0
        %3349 = vmatprep.subr.mxu0 0.0
        %3350 = vmatpush1.msra.mxu0 0.0
        %3351 = vmatprep.subr.mxu0 0.0
        %3352 = vmatpush1.msra.mxu0 0.0
        %3353 = vmatprep.subr.mxu0 0.0
        %3354 = vmatpush1.msra.mxu0 0.0
        %3355 = vmatprep.subr.mxu0 0.0
        %3356 = vmatpush1.msra.mxu0 0.0
        %3357 = vmatprep.subr.mxu0 0.0
        %3358 = vmatpush1.msra.mxu0 0.0
        %3359 = vmatprep.subr.mxu0 0.0
        %3360 = vmatpush1.msra.mxu0 0.0
        %3361 = vmatprep.subr.mxu0 0.0
        %3362 = vmatpush1.msra.mxu0 0.0
        %3363 = vmatprep.subr.mxu0 0.0
        %3364 = vmatpush1.msra.mxu0 0.0
        %3365 = vmatprep.subr.mxu0 0.0
        %3366 = vmatpush1.msra.mxu0 0.0
        %3367 = vmatprep.subr.mxu0 0.0
        %3368 = vmatpush1.msra.mxu0 0.0
        %3369 = vmatprep.subr.mxu0 0.0
        %3370 = vmatpush1.msra.mxu0 0.0
        %3371 = vmatprep.subr.mxu0 0.0
        %3372 = vmatpush1.msra.mxu0 0.0
        %3373 = vmatprep.subr.mxu0 0.0
        %3374 = vmatpush1.msra.mxu0 0.0
        %3375 = vmatprep.subr.mxu0 0.0
        %3376 = vmatpush1.msra.mxu0 0.0
        %3377 = vmatprep.mubr.f32.mxu0 0.0
        %3378 = vmatmul.mubr.f32.gmra.mrb[0].mxu0 %v3308
        %v3379 = vpop.f32.mrb[0].mxu0
        %v3380 = vadd.f32 0.0, %v3379
        %v3381 = vpop.f32.mrb[0].mxu0
        %3382 = vmatprep.mubr.f32.mxu0 0.0
        %3383 = vmatmul.mubr.f32.gmra.mrb[0].mxu0 %v3311
        %v3384 = vpop.f32.mrb[0].mxu0
        %v3385 = vadd.f32 0.0, %v3384
        %v3386 = vpop.f32.mrb[0].mxu0
        %3387 = vdwg.mxu0
        %v3389 = vsel %vm2451, %v2613, 0
        %v3392 = vsel %vm2451, %v2615, 0
        %3394 = vmatprep.subr.mxu0 0.0
        %3395 = vmatpush1.msra.mxu0 %v1075
        %3396 = vmatprep.subr.mxu0 0.0
        %3397 = vmatpush1.msra.mxu0 %v1077
        %3398 = vmatprep.subr.mxu0 0.0
        %3399 = vmatpush1.msra.mxu0 0.0
        %3400 = vmatprep.subr.mxu0 0.0
        %3401 = vmatpush1.msra.mxu0 0.0
        %3402 = vmatprep.subr.mxu0 0.0
        %3403 = vmatpush1.msra.mxu0 0.0
        %3404 = vmatprep.subr.mxu0 0.0
        %3405 = vmatpush1.msra.mxu0 0.0
        %3406 = vmatprep.subr.mxu0 0.0
        %3407 = vmatpush1.msra.mxu0 0.0
        %3408 = vmatprep.subr.mxu0 0.0
        %3409 = vmatpush1.msra.mxu0 0.0
        %3410 = vmatprep.subr.mxu0 0.0
        %3411 = vmatpush1.msra.mxu0 0.0
        %3412 = vmatprep.subr.mxu0 0.0
        %3413 = vmatpush1.msra.mxu0 0.0
        %3414 = vmatprep.subr.mxu0 0.0
        %3415 = vmatpush1.msra.mxu0 0.0
        %3416 = vmatprep.subr.mxu0 0.0
        %3417 = vmatpush1.msra.mxu0 0.0
        %3418 = vmatprep.subr.mxu0 0.0
        %3419 = vmatpush1.msra.mxu0 0.0
        %3420 = vmatprep.subr.mxu0 0.0
        %3421 = vmatpush1.msra.mxu0 0.0
        %3422 = vmatprep.subr.mxu0 0.0
        %3423 = vmatpush1.msra.mxu0 0.0
        %3424 = vmatprep.subr.mxu0 0.0
        %3425 = vmatpush1.msra.mxu0 0.0
        %3426 = vmatprep.subr.mxu0 0.0
        %3427 = vmatpush1.msra.mxu0 0.0
        %3428 = vmatprep.subr.mxu0 0.0
        %3429 = vmatpush1.msra.mxu0 0.0
        %3430 = vmatprep.subr.mxu0 0.0
        %3431 = vmatpush1.msra.mxu0 0.0
        %3432 = vmatprep.subr.mxu0 0.0
        %3433 = vmatpush1.msra.mxu0 0.0
        %3434 = vmatprep.subr.mxu0 0.0
        %3435 = vmatpush1.msra.mxu0 0.0
        %3436 = vmatprep.subr.mxu0 0.0
        %3437 = vmatpush1.msra.mxu0 0.0
        %3438 = vmatprep.subr.mxu0 0.0
        %3439 = vmatpush1.msra.mxu0 0.0
        %3440 = vmatprep.subr.mxu0 0.0
        %3441 = vmatpush1.msra.mxu0 0.0
        %3442 = vmatprep.subr.mxu0 0.0
        %3443 = vmatpush1.msra.mxu0 0.0
        %3444 = vmatprep.subr.mxu0 0.0
        %3445 = vmatpush1.msra.mxu0 0.0
        %3446 = vmatprep.subr.mxu0 0.0
        %3447 = vmatpush1.msra.mxu0 0.0
        %3448 = vmatprep.subr.mxu0 0.0
        %3449 = vmatpush1.msra.mxu0 0.0
        %3450 = vmatprep.subr.mxu0 0.0
        %3451 = vmatpush1.msra.mxu0 0.0
        %3452 = vmatprep.subr.mxu0 0.0
        %3453 = vmatpush1.msra.mxu0 0.0
        %3454 = vmatprep.subr.mxu0 0.0
        %3455 = vmatpush1.msra.mxu0 0.0
        %3456 = vmatprep.subr.mxu0 0.0
        %3457 = vmatpush1.msra.mxu0 0.0
        %3458 = vmatprep.mubr.f32.mxu0 0.0
        %3459 = vmatmul.mubr.f32.gmra.mrb[0].mxu0 %v3389
        %v3460 = vpop.f32.mrb[0].mxu0
        %v3461 = vadd.f32 0.0, %v3460
        %v3462 = vpop.f32.mrb[0].mxu0
        %3463 = vmatprep.mubr.f32.mxu0 0.0
        %3464 = vmatmul.mubr.f32.gmra.mrb[0].mxu0 %v3392
        %v3465 = vpop.f32.mrb[0].mxu0
        %v3466 = vadd.f32 0.0, %v3465
        %v3467 = vpop.f32.mrb[0].mxu0
        %3468 = vdwg.mxu0
        %v3470 = vsel %vm2451, %v2617, 0
        %v3473 = vsel %vm2451, %v2619, 0
        %3475 = vmatprep.subr.mxu0 0.0
        %3476 = vmatpush1.msra.mxu0 %v1079
        %3477 = vmatprep.subr.mxu0 0.0
        %3478 = vmatpush1.msra.mxu0 %v1081
        %3479 = vmatprep.subr.mxu0 0.0
        %3480 = vmatpush1.msra.mxu0 0.0
        %3481 = vmatprep.subr.mxu0 0.0
        %3482 = vmatpush1.msra.mxu0 0.0
        %3483 = vmatprep.subr.mxu0 0.0
        %3484 = vmatpush1.msra.mxu0 0.0
        %3485 = vmatprep.subr.mxu0 0.0
        %3486 = vmatpush1.msra.mxu0 0.0
        %3487 = vmatprep.subr.mxu0 0.0
        %3488 = vmatpush1.msra.mxu0 0.0
        %3489 = vmatprep.subr.mxu0 0.0
        %3490 = vmatpush1.msra.mxu0 0.0
        %3491 = vmatprep.subr.mxu0 0.0
        %3492 = vmatpush1.msra.mxu0 0.0
        %3493 = vmatprep.subr.mxu0 0.0
        %3494 = vmatpush1.msra.mxu0 0.0
        %3495 = vmatprep.subr.mxu0 0.0
        %3496 = vmatpush1.msra.mxu0 0.0
        %3497 = vmatprep.subr.mxu0 0.0
        %3498 = vmatpush1.msra.mxu0 0.0
        %3499 = vmatprep.subr.mxu0 0.0
        %3500 = vmatpush1.msra.mxu0 0.0
        %3501 = vmatprep.subr.mxu0 0.0
        %3502 = vmatpush1.msra.mxu0 0.0
        %3503 = vmatprep.subr.mxu0 0.0
        %3504 = vmatpush1.msra.mxu0 0.0
        %3505 = vmatprep.subr.mxu0 0.0
        %3506 = vmatpush1.msra.mxu0 0.0
        %3507 = vmatprep.subr.mxu0 0.0
        %3508 = vmatpush1.msra.mxu0 0.0
        %3509 = vmatprep.subr.mxu0 0.0
        %3510 = vmatpush1.msra.mxu0 0.0
        %3511 = vmatprep.subr.mxu0 0.0
        %3512 = vmatpush1.msra.mxu0 0.0
        %3513 = vmatprep.subr.mxu0 0.0
        %3514 = vmatpush1.msra.mxu0 0.0
        %3515 = vmatprep.subr.mxu0 0.0
        %3516 = vmatpush1.msra.mxu0 0.0
        %3517 = vmatprep.subr.mxu0 0.0
        %3518 = vmatpush1.msra.mxu0 0.0
        %3519 = vmatprep.subr.mxu0 0.0
        %3520 = vmatpush1.msra.mxu0 0.0
        %3521 = vmatprep.subr.mxu0 0.0
        %3522 = vmatpush1.msra.mxu0 0.0
        %3523 = vmatprep.subr.mxu0 0.0
        %3524 = vmatpush1.msra.mxu0 0.0
        %3525 = vmatprep.subr.mxu0 0.0
        %3526 = vmatpush1.msra.mxu0 0.0
        %3527 = vmatprep.subr.mxu0 0.0
        %3528 = vmatpush1.msra.mxu0 0.0
        %3529 = vmatprep.subr.mxu0 0.0
        %3530 = vmatpush1.msra.mxu0 0.0
        %3531 = vmatprep.subr.mxu0 0.0
        %3532 = vmatpush1.msra.mxu0 0.0
        %3533 = vmatprep.subr.mxu0 0.0
        %3534 = vmatpush1.msra.mxu0 0.0
        %3535 = vmatprep.subr.mxu0 0.0
        %3536 = vmatpush1.msra.mxu0 0.0
        %3537 = vmatprep.subr.mxu0 0.0
        %3538 = vmatpush1.msra.mxu0 0.0
        %3539 = vmatprep.mubr.f32.mxu0 0.0
        %3540 = vmatmul.mubr.f32.gmra.mrb[0].mxu0 %v3470
        %v3541 = vpop.f32.mrb[0].mxu0
        %v3542 = vadd.f32 0.0, %v3541
        %v3543 = vpop.f32.mrb[0].mxu0
        %3544 = vmatprep.mubr.f32.mxu0 0.0
        %3545 = vmatmul.mubr.f32.gmra.mrb[0].mxu0 %v3473
        %v3546 = vpop.f32.mrb[0].mxu0
        %v3547 = vadd.f32 0.0, %v3546
        %v3548 = vpop.f32.mrb[0].mxu0
        %3549 = vdwg.mxu0
        %v3551 = vsel %vm2451, %v2621, 0
        %v3554 = vsel %vm2451, %v2623, 0
        %3556 = vmatprep.subr.mxu0 0.0
        %3557 = vmatpush1.msra.mxu0 %v1083
        %3558 = vmatprep.subr.mxu0 0.0
        %3559 = vmatpush1.msra.mxu0 %v1085
        %3560 = vmatprep.subr.mxu0 0.0
        %3561 = vmatpush1.msra.mxu0 0.0
        %3562 = vmatprep.subr.mxu0 0.0
        %3563 = vmatpush1.msra.mxu0 0.0
        %3564 = vmatprep.subr.mxu0 0.0
        %3565 = vmatpush1.msra.mxu0 0.0
        %3566 = vmatprep.subr.mxu0 0.0
        %3567 = vmatpush1.msra.mxu0 0.0
        %3568 = vmatprep.subr.mxu0 0.0
        %3569 = vmatpush1.msra.mxu0 0.0
        %3570 = vmatprep.subr.mxu0 0.0
        %3571 = vmatpush1.msra.mxu0 0.0
        %3572 = vmatprep.subr.mxu0 0.0
        %3573 = vmatpush1.msra.mxu0 0.0
        %3574 = vmatprep.subr.mxu0 0.0
        %3575 = vmatpush1.msra.mxu0 0.0
        %3576 = vmatprep.subr.mxu0 0.0
        %3577 = vmatpush1.msra.mxu0 0.0
        %3578 = vmatprep.subr.mxu0 0.0
        %3579 = vmatpush1.msra.mxu0 0.0
        %3580 = vmatprep.subr.mxu0 0.0
        %3581 = vmatpush1.msra.mxu0 0.0
        %3582 = vmatprep.subr.mxu0 0.0
        %3583 = vmatpush1.msra.mxu0 0.0
        %3584 = vmatprep.subr.mxu0 0.0
        %3585 = vmatpush1.msra.mxu0 0.0
        %3586 = vmatprep.subr.mxu0 0.0
        %3587 = vmatpush1.msra.mxu0 0.0
        %3588 = vmatprep.subr.mxu0 0.0
        %3589 = vmatpush1.msra.mxu0 0.0
        %3590 = vmatprep.subr.mxu0 0.0
        %3591 = vmatpush1.msra.mxu0 0.0
        %3592 = vmatprep.subr.mxu0 0.0
        %3593 = vmatpush1.msra.mxu0 0.0
        %3594 = vmatprep.subr.mxu0 0.0
        %3595 = vmatpush1.msra.mxu0 0.0
        %3596 = vmatprep.subr.mxu0 0.0
        %3597 = vmatpush1.msra.mxu0 0.0
        %3598 = vmatprep.subr.mxu0 0.0
        %3599 = vmatpush1.msra.mxu0 0.0
        %3600 = vmatprep.subr.mxu0 0.0
        %3601 = vmatpush1.msra.mxu0 0.0
        %3602 = vmatprep.subr.mxu0 0.0
        %3603 = vmatpush1.msra.mxu0 0.0
        %3604 = vmatprep.subr.mxu0 0.0
        %3605 = vmatpush1.msra.mxu0 0.0
        %3606 = vmatprep.subr.mxu0 0.0
        %3607 = vmatpush1.msra.mxu0 0.0
        %3608 = vmatprep.subr.mxu0 0.0
        %3609 = vmatpush1.msra.mxu0 0.0
        %3610 = vmatprep.subr.mxu0 0.0
        %3611 = vmatpush1.msra.mxu0 0.0
        %3612 = vmatprep.subr.mxu0 0.0
        %3613 = vmatpush1.msra.mxu0 0.0
        %3614 = vmatprep.subr.mxu0 0.0
        %3615 = vmatpush1.msra.mxu0 0.0
        %3616 = vmatprep.subr.mxu0 0.0
        %3617 = vmatpush1.msra.mxu0 0.0
        %3618 = vmatprep.subr.mxu0 0.0
        %3619 = vmatpush1.msra.mxu0 0.0
        %3620 = vmatprep.mubr.f32.mxu0 0.0
        %3621 = vmatmul.mubr.f32.gmra.mrb[0].mxu0 %v3551
        %v3622 = vpop.f32.mrb[0].mxu0
        %v3623 = vadd.f32 0.0, %v3622
        %v3624 = vpop.f32.mrb[0].mxu0
        %3625 = vmatprep.mubr.f32.mxu0 0.0
        %3626 = vmatmul.mubr.f32.gmra.mrb[0].mxu0 %v3554
        %v3627 = vpop.f32.mrb[0].mxu0
        %v3628 = vadd.f32 0.0, %v3627
        %v3629 = vpop.f32.mrb[0].mxu0
        %3630 = vdwg.mxu0
        %v3632 = vsel %vm2451, %v2625, 0
        %v3635 = vsel %vm2451, %v2627, 0
        %3637 = vmatprep.subr.mxu0 0.0
        %3638 = vmatpush1.msra.mxu0 %v1087
        %3639 = vmatprep.subr.mxu0 0.0
        %3640 = vmatpush1.msra.mxu0 %v1089
        %3641 = vmatprep.subr.mxu0 0.0
        %3642 = vmatpush1.msra.mxu0 0.0
        %3643 = vmatprep.subr.mxu0 0.0
        %3644 = vmatpush1.msra.mxu0 0.0
        %3645 = vmatprep.subr.mxu0 0.0
        %3646 = vmatpush1.msra.mxu0 0.0
        %3647 = vmatprep.subr.mxu0 0.0
        %3648 = vmatpush1.msra.mxu0 0.0
        %3649 = vmatprep.subr.mxu0 0.0
        %3650 = vmatpush1.msra.mxu0 0.0
        %3651 = vmatprep.subr.mxu0 0.0
        %3652 = vmatpush1.msra.mxu0 0.0
        %3653 = vmatprep.subr.mxu0 0.0
        %3654 = vmatpush1.msra.mxu0 0.0
        %3655 = vmatprep.subr.mxu0 0.0
        %3656 = vmatpush1.msra.mxu0 0.0
        %3657 = vmatprep.subr.mxu0 0.0
        %3658 = vmatpush1.msra.mxu0 0.0
        %3659 = vmatprep.subr.mxu0 0.0
        %3660 = vmatpush1.msra.mxu0 0.0
        %3661 = vmatprep.subr.mxu0 0.0
        %3662 = vmatpush1.msra.mxu0 0.0
        %3663 = vmatprep.subr.mxu0 0.0
        %3664 = vmatpush1.msra.mxu0 0.0
        %3665 = vmatprep.subr.mxu0 0.0
        %3666 = vmatpush1.msra.mxu0 0.0
        %3667 = vmatprep.subr.mxu0 0.0
        %3668 = vmatpush1.msra.mxu0 0.0
        %3669 = vmatprep.subr.mxu0 0.0
        %3670 = vmatpush1.msra.mxu0 0.0
        %3671 = vmatprep.subr.mxu0 0.0
        %3672 = vmatpush1.msra.mxu0 0.0
        %3673 = vmatprep.subr.mxu0 0.0
        %3674 = vmatpush1.msra.mxu0 0.0
        %3675 = vmatprep.subr.mxu0 0.0
        %3676 = vmatpush1.msra.mxu0 0.0
        %3677 = vmatprep.subr.mxu0 0.0
        %3678 = vmatpush1.msra.mxu0 0.0
        %3679 = vmatprep.subr.mxu0 0.0
        %3680 = vmatpush1.msra.mxu0 0.0
        %3681 = vmatprep.subr.mxu0 0.0
        %3682 = vmatpush1.msra.mxu0 0.0
        %3683 = vmatprep.subr.mxu0 0.0
        %3684 = vmatpush1.msra.mxu0 0.0
        %3685 = vmatprep.subr.mxu0 0.0
        %3686 = vmatpush1.msra.mxu0 0.0
        %3687 = vmatprep.subr.mxu0 0.0
        %3688 = vmatpush1.msra.mxu0 0.0
        %3689 = vmatprep.subr.mxu0 0.0
        %3690 = vmatpush1.msra.mxu0 0.0
        %3691 = vmatprep.subr.mxu0 0.0
        %3692 = vmatpush1.msra.mxu0 0.0
        %3693 = vmatprep.subr.mxu0 0.0
        %3694 = vmatpush1.msra.mxu0 0.0
        %3695 = vmatprep.subr.mxu0 0.0
        %3696 = vmatpush1.msra.mxu0 0.0
        %3697 = vmatprep.subr.mxu0 0.0
        %3698 = vmatpush1.msra.mxu0 0.0
        %3699 = vmatprep.subr.mxu0 0.0
        %3700 = vmatpush1.msra.mxu0 0.0
        %3701 = vmatprep.mubr.f32.mxu0 0.0
        %3702 = vmatmul.mubr.f32.gmra.mrb[0].mxu0 %v3632
        %v3703 = vpop.f32.mrb[0].mxu0
        %v3704 = vadd.f32 0.0, %v3703
        %v3705 = vpop.f32.mrb[0].mxu0
        %3706 = vmatprep.mubr.f32.mxu0 0.0
        %3707 = vmatmul.mubr.f32.gmra.mrb[0].mxu0 %v3635
        %v3708 = vpop.f32.mrb[0].mxu0
        %v3709 = vadd.f32 0.0, %v3708
        %v3710 = vpop.f32.mrb[0].mxu0
        %3711 = vdwg.mxu0
        %v3713 = vsel %vm2451, %v2629, 0
        %v3716 = vsel %vm2451, %v2631, 0
        %3718 = vmatprep.subr.mxu0 0.0
        %3719 = vmatpush1.msra.mxu0 %v1099
        %3720 = vmatprep.subr.mxu0 0.0
        %3721 = vmatpush1.msra.mxu0 %v1101
        %3722 = vmatprep.subr.mxu0 0.0
        %3723 = vmatpush1.msra.mxu0 0.0
        %3724 = vmatprep.subr.mxu0 0.0
        %3725 = vmatpush1.msra.mxu0 0.0
        %3726 = vmatprep.subr.mxu0 0.0
        %3727 = vmatpush1.msra.mxu0 0.0
        %3728 = vmatprep.subr.mxu0 0.0
        %3729 = vmatpush1.msra.mxu0 0.0
        %3730 = vmatprep.subr.mxu0 0.0
        %3731 = vmatpush1.msra.mxu0 0.0
        %3732 = vmatprep.subr.mxu0 0.0
        %3733 = vmatpush1.msra.mxu0 0.0
        %3734 = vmatprep.subr.mxu0 0.0
        %3735 = vmatpush1.msra.mxu0 0.0
        %3736 = vmatprep.subr.mxu0 0.0
        %3737 = vmatpush1.msra.mxu0 0.0
        %3738 = vmatprep.subr.mxu0 0.0
        %3739 = vmatpush1.msra.mxu0 0.0
        %3740 = vmatprep.subr.mxu0 0.0
        %3741 = vmatpush1.msra.mxu0 0.0
        %3742 = vmatprep.subr.mxu0 0.0
        %3743 = vmatpush1.msra.mxu0 0.0
        %3744 = vmatprep.subr.mxu0 0.0
        %3745 = vmatpush1.msra.mxu0 0.0
        %3746 = vmatprep.subr.mxu0 0.0
        %3747 = vmatpush1.msra.mxu0 0.0
        %3748 = vmatprep.subr.mxu0 0.0
        %3749 = vmatpush1.msra.mxu0 0.0
        %3750 = vmatprep.subr.mxu0 0.0
        %3751 = vmatpush1.msra.mxu0 0.0
        %3752 = vmatprep.subr.mxu0 0.0
        %3753 = vmatpush1.msra.mxu0 0.0
        %3754 = vmatprep.subr.mxu0 0.0
        %3755 = vmatpush1.msra.mxu0 0.0
        %3756 = vmatprep.subr.mxu0 0.0
        %3757 = vmatpush1.msra.mxu0 0.0
        %3758 = vmatprep.subr.mxu0 0.0
        %3759 = vmatpush1.msra.mxu0 0.0
        %3760 = vmatprep.subr.mxu0 0.0
        %3761 = vmatpush1.msra.mxu0 0.0
        %3762 = vmatprep.subr.mxu0 0.0
        %3763 = vmatpush1.msra.mxu0 0.0
        %3764 = vmatprep.subr.mxu0 0.0
        %3765 = vmatpush1.msra.mxu0 0.0
        %3766 = vmatprep.subr.mxu0 0.0
        %3767 = vmatpush1.msra.mxu0 0.0
        %3768 = vmatprep.subr.mxu0 0.0
        %3769 = vmatpush1.msra.mxu0 0.0
        %3770 = vmatprep.subr.mxu0 0.0
        %3771 = vmatpush1.msra.mxu0 0.0
        %3772 = vmatprep.subr.mxu0 0.0
        %3773 = vmatpush1.msra.mxu0 0.0
        %3774 = vmatprep.subr.mxu0 0.0
        %3775 = vmatpush1.msra.mxu0 0.0
        %3776 = vmatprep.subr.mxu0 0.0
        %3777 = vmatpush1.msra.mxu0 0.0
        %3778 = vmatprep.subr.mxu0 0.0
        %3779 = vmatpush1.msra.mxu0 0.0
        %3780 = vmatprep.subr.mxu0 0.0
        %3781 = vmatpush1.msra.mxu0 0.0
        %3782 = vmatprep.mubr.f32.mxu0 0.0
        %3783 = vmatmul.mubr.f32.gmra.mrb[0].mxu0 %v3713
        %v3784 = vpop.f32.mrb[0].mxu0
        %v3785 = vadd.f32 0.0, %v3784
        %v3786 = vpop.f32.mrb[0].mxu0
        %3787 = vmatprep.mubr.f32.mxu0 0.0
        %3788 = vmatmul.mubr.f32.gmra.mrb[0].mxu0 %v3716
        %v3789 = vpop.f32.mrb[0].mxu0
        %v3790 = vadd.f32 0.0, %v3789
        %v3791 = vpop.f32.mrb[0].mxu0
        %3792 = vdwg.mxu0
        %v3794 = vsel %vm2451, %v2633, 0
        %v3797 = vsel %vm2451, %v2635, 0
        %3799 = vmatprep.subr.mxu0 0.0
        %3800 = vmatpush1.msra.mxu0 %v1103
        %3801 = vmatprep.subr.mxu0 0.0
        %3802 = vmatpush1.msra.mxu0 %v1105
        %3803 = vmatprep.subr.mxu0 0.0
        %3804 = vmatpush1.msra.mxu0 0.0
        %3805 = vmatprep.subr.mxu0 0.0
        %3806 = vmatpush1.msra.mxu0 0.0
        %3807 = vmatprep.subr.mxu0 0.0
        %3808 = vmatpush1.msra.mxu0 0.0
        %3809 = vmatprep.subr.mxu0 0.0
        %3810 = vmatpush1.msra.mxu0 0.0
        %3811 = vmatprep.subr.mxu0 0.0
        %3812 = vmatpush1.msra.mxu0 0.0
        %3813 = vmatprep.subr.mxu0 0.0
        %3814 = vmatpush1.msra.mxu0 0.0
        %3815 = vmatprep.subr.mxu0 0.0
        %3816 = vmatpush1.msra.mxu0 0.0
        %3817 = vmatprep.subr.mxu0 0.0
        %3818 = vmatpush1.msra.mxu0 0.0
        %3819 = vmatprep.subr.mxu0 0.0
        %3820 = vmatpush1.msra.mxu0 0.0
        %3821 = vmatprep.subr.mxu0 0.0
        %3822 = vmatpush1.msra.mxu0 0.0
        %3823 = vmatprep.subr.mxu0 0.0
        %3824 = vmatpush1.msra.mxu0 0.0
        %3825 = vmatprep.subr.mxu0 0.0
        %3826 = vmatpush1.msra.mxu0 0.0
        %3827 = vmatprep.subr.mxu0 0.0
        %3828 = vmatpush1.msra.mxu0 0.0
        %3829 = vmatprep.subr.mxu0 0.0
        %3830 = vmatpush1.msra.mxu0 0.0
        %3831 = vmatprep.subr.mxu0 0.0
        %3832 = vmatpush1.msra.mxu0 0.0
        %3833 = vmatprep.subr.mxu0 0.0
        %3834 = vmatpush1.msra.mxu0 0.0
        %3835 = vmatprep.subr.mxu0 0.0
        %3836 = vmatpush1.msra.mxu0 0.0
        %3837 = vmatprep.subr.mxu0 0.0
        %3838 = vmatpush1.msra.mxu0 0.0
        %3839 = vmatprep.subr.mxu0 0.0
        %3840 = vmatpush1.msra.mxu0 0.0
        %3841 = vmatprep.subr.mxu0 0.0
        %3842 = vmatpush1.msra.mxu0 0.0
        %3843 = vmatprep.subr.mxu0 0.0
        %3844 = vmatpush1.msra.mxu0 0.0
        %3845 = vmatprep.subr.mxu0 0.0
        %3846 = vmatpush1.msra.mxu0 0.0
        %3847 = vmatprep.subr.mxu0 0.0
        %3848 = vmatpush1.msra.mxu0 0.0
        %3849 = vmatprep.subr.mxu0 0.0
        %3850 = vmatpush1.msra.mxu0 0.0
        %3851 = vmatprep.subr.mxu0 0.0
        %3852 = vmatpush1.msra.mxu0 0.0
        %3853 = vmatprep.subr.mxu0 0.0
        %3854 = vmatpush1.msra.mxu0 0.0
        %3855 = vmatprep.subr.mxu0 0.0
        %3856 = vmatpush1.msra.mxu0 0.0
        %3857 = vmatprep.subr.mxu0 0.0
        %3858 = vmatpush1.msra.mxu0 0.0
        %3859 = vmatprep.subr.mxu0 0.0
        %3860 = vmatpush1.msra.mxu0 0.0
        %3861 = vmatprep.subr.mxu0 0.0
        %3862 = vmatpush1.msra.mxu0 0.0
        %3863 = vmatprep.mubr.f32.mxu0 0.0
        %3864 = vmatmul.mubr.f32.gmra.mrb[0].mxu0 %v3794
        %v3865 = vpop.f32.mrb[0].mxu0
        %v3866 = vadd.f32 0.0, %v3865
        %v3867 = vpop.f32.mrb[0].mxu0
        %3868 = vmatprep.mubr.f32.mxu0 0.0
        %3869 = vmatmul.mubr.f32.gmra.mrb[0].mxu0 %v3797
        %v3870 = vpop.f32.mrb[0].mxu0
        %v3871 = vadd.f32 0.0, %v3870
        %v3872 = vpop.f32.mrb[0].mxu0
        %3873 = vdwg.mxu0
        %v3875 = vsel %vm2451, %v2637, 0
        %v3878 = vsel %vm2451, %v2639, 0
        %3880 = vmatprep.subr.mxu0 0.0
        %3881 = vmatpush1.msra.mxu0 %v1107
        %3882 = vmatprep.subr.mxu0 0.0
        %3883 = vmatpush1.msra.mxu0 %v1109
        %3884 = vmatprep.subr.mxu0 0.0
        %3885 = vmatpush1.msra.mxu0 0.0
        %3886 = vmatprep.subr.mxu0 0.0
        %3887 = vmatpush1.msra.mxu0 0.0
        %3888 = vmatprep.subr.mxu0 0.0
        %3889 = vmatpush1.msra.mxu0 0.0
        %3890 = vmatprep.subr.mxu0 0.0
        %3891 = vmatpush1.msra.mxu0 0.0
        %3892 = vmatprep.subr.mxu0 0.0
        %3893 = vmatpush1.msra.mxu0 0.0
        %3894 = vmatprep.subr.mxu0 0.0
        %3895 = vmatpush1.msra.mxu0 0.0
        %3896 = vmatprep.subr.mxu0 0.0
        %3897 = vmatpush1.msra.mxu0 0.0
        %3898 = vmatprep.subr.mxu0 0.0
        %3899 = vmatpush1.msra.mxu0 0.0
        %3900 = vmatprep.subr.mxu0 0.0
        %3901 = vmatpush1.msra.mxu0 0.0
        %3902 = vmatprep.subr.mxu0 0.0
        %3903 = vmatpush1.msra.mxu0 0.0
        %3904 = vmatprep.subr.mxu0 0.0
        %3905 = vmatpush1.msra.mxu0 0.0
        %3906 = vmatprep.subr.mxu0 0.0
        %3907 = vmatpush1.msra.mxu0 0.0
        %3908 = vmatprep.subr.mxu0 0.0
        %3909 = vmatpush1.msra.mxu0 0.0
        %3910 = vmatprep.subr.mxu0 0.0
        %3911 = vmatpush1.msra.mxu0 0.0
        %3912 = vmatprep.subr.mxu0 0.0
        %3913 = vmatpush1.msra.mxu0 0.0
        %3914 = vmatprep.subr.mxu0 0.0
        %3915 = vmatpush1.msra.mxu0 0.0
        %3916 = vmatprep.subr.mxu0 0.0
        %3917 = vmatpush1.msra.mxu0 0.0
        %3918 = vmatprep.subr.mxu0 0.0
        %3919 = vmatpush1.msra.mxu0 0.0
        %3920 = vmatprep.subr.mxu0 0.0
        %3921 = vmatpush1.msra.mxu0 0.0
        %3922 = vmatprep.subr.mxu0 0.0
        %3923 = vmatpush1.msra.mxu0 0.0
        %3924 = vmatprep.subr.mxu0 0.0
        %3925 = vmatpush1.msra.mxu0 0.0
        %3926 = vmatprep.subr.mxu0 0.0
        %3927 = vmatpush1.msra.mxu0 0.0
        %3928 = vmatprep.subr.mxu0 0.0
        %3929 = vmatpush1.msra.mxu0 0.0
        %3930 = vmatprep.subr.mxu0 0.0
        %3931 = vmatpush1.msra.mxu0 0.0
        %3932 = vmatprep.subr.mxu0 0.0
        %3933 = vmatpush1.msra.mxu0 0.0
        %3934 = vmatprep.subr.mxu0 0.0
        %3935 = vmatpush1.msra.mxu0 0.0
        %3936 = vmatprep.subr.mxu0 0.0
        %3937 = vmatpush1.msra.mxu0 0.0
        %3938 = vmatprep.subr.mxu0 0.0
        %3939 = vmatpush1.msra.mxu0 0.0
        %3940 = vmatprep.subr.mxu0 0.0
        %3941 = vmatpush1.msra.mxu0 0.0
        %3942 = vmatprep.subr.mxu0 0.0
        %3943 = vmatpush1.msra.mxu0 0.0
        %3944 = vmatprep.mubr.f32.mxu0 0.0
        %3945 = vmatmul.mubr.f32.gmra.mrb[0].mxu0 %v3875
        %v3946 = vpop.f32.mrb[0].mxu0
        %v3947 = vadd.f32 0.0, %v3946
        %v3948 = vpop.f32.mrb[0].mxu0
        %3949 = vmatprep.mubr.f32.mxu0 0.0
        %3950 = vmatmul.mubr.f32.gmra.mrb[0].mxu0 %v3878
        %v3951 = vpop.f32.mrb[0].mxu0
        %v3952 = vadd.f32 0.0, %v3951
        %v3953 = vpop.f32.mrb[0].mxu0
        %3954 = vdwg.mxu0
        %v3956 = vsel %vm2451, %v2641, 0
        %v3959 = vsel %vm2451, %v2643, 0
        %3961 = vmatprep.subr.mxu0 0.0
        %3962 = vmatpush1.msra.mxu0 %v1111
        %3963 = vmatprep.subr.mxu0 0.0
        %3964 = vmatpush1.msra.mxu0 %v1113
        %3965 = vmatprep.subr.mxu0 0.0
        %3966 = vmatpush1.msra.mxu0 0.0
        %3967 = vmatprep.subr.mxu0 0.0
        %3968 = vmatpush1.msra.mxu0 0.0
        %3969 = vmatprep.subr.mxu0 0.0
        %3970 = vmatpush1.msra.mxu0 0.0
        %3971 = vmatprep.subr.mxu0 0.0
        %3972 = vmatpush1.msra.mxu0 0.0
        %3973 = vmatprep.subr.mxu0 0.0
        %3974 = vmatpush1.msra.mxu0 0.0
        %3975 = vmatprep.subr.mxu0 0.0
        %3976 = vmatpush1.msra.mxu0 0.0
        %3977 = vmatprep.subr.mxu0 0.0
        %3978 = vmatpush1.msra.mxu0 0.0
        %3979 = vmatprep.subr.mxu0 0.0
        %3980 = vmatpush1.msra.mxu0 0.0
        %3981 = vmatprep.subr.mxu0 0.0
        %3982 = vmatpush1.msra.mxu0 0.0
        %3983 = vmatprep.subr.mxu0 0.0
        %3984 = vmatpush1.msra.mxu0 0.0
        %3985 = vmatprep.subr.mxu0 0.0
        %3986 = vmatpush1.msra.mxu0 0.0
        %3987 = vmatprep.subr.mxu0 0.0
        %3988 = vmatpush1.msra.mxu0 0.0
        %3989 = vmatprep.subr.mxu0 0.0
        %3990 = vmatpush1.msra.mxu0 0.0
        %3991 = vmatprep.subr.mxu0 0.0
        %3992 = vmatpush1.msra.mxu0 0.0
        %3993 = vmatprep.subr.mxu0 0.0
        %3994 = vmatpush1.msra.mxu0 0.0
        %3995 = vmatprep.subr.mxu0 0.0
        %3996 = vmatpush1.msra.mxu0 0.0
        %3997 = vmatprep.subr.mxu0 0.0
        %3998 = vmatpush1.msra.mxu0 0.0
        %3999 = vmatprep.subr.mxu0 0.0
        %4000 = vmatpush1.msra.mxu0 0.0
        %4001 = vmatprep.subr.mxu0 0.0
        %4002 = vmatpush1.msra.mxu0 0.0
        %4003 = vmatprep.subr.mxu0 0.0
        %4004 = vmatpush1.msra.mxu0 0.0
        %4005 = vmatprep.subr.mxu0 0.0
        %4006 = vmatpush1.msra.mxu0 0.0
        %4007 = vmatprep.subr.mxu0 0.0
        %4008 = vmatpush1.msra.mxu0 0.0
        %4009 = vmatprep.subr.mxu0 0.0
        %4010 = vmatpush1.msra.mxu0 0.0
        %4011 = vmatprep.subr.mxu0 0.0
        %4012 = vmatpush1.msra.mxu0 0.0
        %4013 = vmatprep.subr.mxu0 0.0
        %4014 = vmatpush1.msra.mxu0 0.0
        %4015 = vmatprep.subr.mxu0 0.0
        %4016 = vmatpush1.msra.mxu0 0.0
        %4017 = vmatprep.subr.mxu0 0.0
        %4018 = vmatpush1.msra.mxu0 0.0
        %4019 = vmatprep.subr.mxu0 0.0
        %4020 = vmatpush1.msra.mxu0 0.0
        %4021 = vmatprep.subr.mxu0 0.0
        %4022 = vmatpush1.msra.mxu0 0.0
        %4023 = vmatprep.subr.mxu0 0.0
        %4024 = vmatpush1.msra.mxu0 0.0
        %4025 = vmatprep.mubr.f32.mxu0 0.0
        %4026 = vmatmul.mubr.f32.gmra.mrb[0].mxu0 %v3956
        %v4027 = vpop.f32.mrb[0].mxu0
        %v4028 = vadd.f32 0.0, %v4027
        %v4029 = vpop.f32.mrb[0].mxu0
        %4030 = vmatprep.mubr.f32.mxu0 0.0
        %4031 = vmatmul.mubr.f32.gmra.mrb[0].mxu0 %v3959
        %v4032 = vpop.f32.mrb[0].mxu0
        %v4033 = vadd.f32 0.0, %v4032
        %v4034 = vpop.f32.mrb[0].mxu0
        %4035 = vdwg.mxu0
        %v4036 = vrcp.pop %v2646
        %v4037 = vrcp.pop %v2649
        %v4038 = vrcp.pop %v2652
        %v4039 = vrcp.pop %v2655
        %v4040 = vrcp.pop %v2658
        %v4041 = vrcp.pop %v2661
        %v4042 = vrcp.pop %v2664
        %v4043 = vrcp.pop %v2667
        %v4044 = vrcp.pop %v2670
        %v4045 = vrcp.pop %v2673
        %v4046 = vrcp.pop %v2676
        %v4047 = vrcp.pop %v2679
        %v4048 = vrcp.pop %v2682
        %v4049 = vrcp.pop %v2685
        %v4050 = vrcp.pop %v2688
        %v4051 = vrcp.pop %v2691
        %v4052 = vrcp.pop %v2694
        %v4053 = vrcp.pop %v2697
        %v4054 = vrcp.pop %v2700
        %v4055 = vrcp.pop %v2703
        %v4056 = vrcp.pop %v2706
        %v4057 = vrcp.pop %v2709
        %v4058 = vrcp.pop %v2712
        %v4059 = vrcp.pop %v2715
        %v4060 = vrcp.pop %v2718
        %v4061 = vrcp.pop %v2721
        %v4062 = vrcp.pop %v2724
        %v4063 = vrcp.pop %v2727
        %v4064 = vrcp.pop %v2730
        %v4065 = vrcp.pop %v2733
        %v4066 = vrcp.pop %v2736
        %v4067 = vrcp.pop %v2739
        %v4068 = vmul.f32 %v2813, %v4036
        %v4069 = vmul.f32 %v2818, %v4037
        %v4070 = vmul.f32 %v2894, %v4038
        %v4071 = vmul.f32 %v2899, %v4039
        %v4072 = vmul.f32 %v2975, %v4040
        %v4073 = vmul.f32 %v2980, %v4041
        %v4074 = vmul.f32 %v3056, %v4042
        %v4075 = vmul.f32 %v3061, %v4043
        %v4076 = vmul.f32 %v3137, %v4044
        %v4077 = vmul.f32 %v3142, %v4045
        %v4078 = vmul.f32 %v3218, %v4046
        %v4079 = vmul.f32 %v3223, %v4047
        %v4080 = vmul.f32 %v3299, %v4048
        %v4081 = vmul.f32 %v3304, %v4049
        %v4082 = vmul.f32 %v3380, %v4050
        %v4083 = vmul.f32 %v3385, %v4051
        %v4084 = vmul.f32 %v3461, %v4052
        %v4085 = vmul.f32 %v3466, %v4053
        %v4086 = vmul.f32 %v3542, %v4054
        %v4087 = vmul.f32 %v3547, %v4055
        %v4088 = vmul.f32 %v3623, %v4056
        %v4089 = vmul.f32 %v3628, %v4057
        %v4090 = vmul.f32 %v3704, %v4058
        %v4091 = vmul.f32 %v3709, %v4059
        %v4092 = vmul.f32 %v3785, %v4060
        %v4093 = vmul.f32 %v3790, %v4061
        %v4094 = vmul.f32 %v3866, %v4062
        %v4095 = vmul.f32 %v3871, %v4063
        %v4096 = vmul.f32 %v3947, %v4064
        %v4097 = vmul.f32 %v3952, %v4065
        %v4098 = vmul.f32 %v4028, %v4066
        %v4099 = vmul.f32 %v4033, %v4067
        %4108 = vrot.lane.b32.xlu0 %v4076, 32
        %v4109 = vpop.permute.xlu0 %4108
        %4110 = vrot.lane.b32.xlu0 %v4077, 32
        %v4111 = vpop.permute.xlu0 %4110
        %4112 = vrot.lane.b32.xlu0 %v4078, 32
        %v4113 = vpop.permute.xlu0 %4112
        %4114 = vrot.lane.b32.xlu0 %v4079, 32
        %v4115 = vpop.permute.xlu0 %4114
        %4116 = vrot.lane.b32.xlu0 %v4080, 32
        %v4117 = vpop.permute.xlu0 %4116
        %4118 = vrot.lane.b32.xlu0 %v4081, 32
        %v4119 = vpop.permute.xlu0 %4118
        %4120 = vrot.lane.b32.xlu0 %v4082, 32
        %v4121 = vpop.permute.xlu0 %4120
        %4122 = vrot.lane.b32.xlu0 %v4083, 32
        %v4123 = vpop.permute.xlu0 %4122
        %4140 = vrot.lane.b32.xlu0 %v4084, 64
        %v4141 = vpop.permute.xlu0 %4140
        %4142 = vrot.lane.b32.xlu0 %v4085, 64
        %v4143 = vpop.permute.xlu0 %4142
        %4144 = vrot.lane.b32.xlu0 %v4086, 64
        %v4145 = vpop.permute.xlu0 %4144
        %4146 = vrot.lane.b32.xlu0 %v4087, 64
        %v4147 = vpop.permute.xlu0 %4146
        %4148 = vrot.lane.b32.xlu0 %v4088, 64
        %v4149 = vpop.permute.xlu0 %4148
        %4150 = vrot.lane.b32.xlu0 %v4089, 64
        %v4151 = vpop.permute.xlu0 %4150
        %4152 = vrot.lane.b32.xlu0 %v4090, 64
        %v4153 = vpop.permute.xlu0 %4152
        %4154 = vrot.lane.b32.xlu0 %v4091, 64
        %v4155 = vpop.permute.xlu0 %4154
        %4172 = vrot.lane.b32.xlu0 %v4092, 96
        %v4173 = vpop.permute.xlu0 %4172
        %4174 = vrot.lane.b32.xlu0 %v4093, 96
        %v4175 = vpop.permute.xlu0 %4174
        %4176 = vrot.lane.b32.xlu0 %v4094, 96
        %v4177 = vpop.permute.xlu0 %4176
        %4178 = vrot.lane.b32.xlu0 %v4095, 96
        %v4179 = vpop.permute.xlu0 %4178
        %4180 = vrot.lane.b32.xlu0 %v4096, 96
        %v4181 = vpop.permute.xlu0 %4180
        %4182 = vrot.lane.b32.xlu0 %v4097, 96
        %v4183 = vpop.permute.xlu0 %4182
        %4184 = vrot.lane.b32.xlu0 %v4098, 96
        %v4185 = vpop.permute.xlu0 %4184
        %4186 = vrot.lane.b32.xlu0 %v4099, 96
        %v4187 = vpop.permute.xlu0 %4186
        %v4196 = vsel %vm1122, %v4068, %v4109
        %v4197 = vsel %vm1122, %v4069, %v4111
        %v4198 = vsel %vm1122, %v4070, %v4113
        %v4199 = vsel %vm1122, %v4071, %v4115
        %v4200 = vsel %vm1122, %v4072, %v4117
        %v4201 = vsel %vm1122, %v4073, %v4119
        %v4202 = vsel %vm1122, %v4074, %v4121
        %v4203 = vsel %vm1122, %v4075, %v4123
        %vm4204 = vcmask 523264
        %v4205 = vsel %vm4204, %v4196, %v4141
        %v4206 = vsel %vm4204, %v4197, %v4143
        %v4207 = vsel %vm4204, %v4198, %v4145
        %v4208 = vsel %vm4204, %v4199, %v4147
        %v4209 = vsel %vm4204, %v4200, %v4149
        %v4210 = vsel %vm4204, %v4201, %v4151
        %v4211 = vsel %vm4204, %v4202, %v4153
        %v4212 = vsel %vm4204, %v4203, %v4155
        %vm4213 = vcmask 785408
        %v4214 = vsel %vm4213, %v4205, %v4173
        %v4215 = vsel %vm4213, %v4206, %v4175
        %v4216 = vsel %vm4213, %v4207, %v4177
        %v4217 = vsel %vm4213, %v4208, %v4179
        %v4218 = vsel %vm4213, %v4209, %v4181
        %v4219 = vsel %vm4213, %v4210, %v4183
        %v4220 = vsel %vm4213, %v4211, %v4185
        %v4221 = vsel %vm4213, %v4212, %v4187
        %v4222 = vld [vmem:[#allocation7] sm:$0xff]
        %v4223 = vld [vmem:[#allocation7 + $0x8] sm:$0xff]
        %v4224 = vld [vmem:[#allocation7 + $0x10] sm:$0xff]
        %v4225 = vld [vmem:[#allocation7 + $0x18] sm:$0xff]
        %v4226 = vld [vmem:[#allocation7 + $0x20] sm:$0xff]
        %v4227 = vld [vmem:[#allocation7 + $0x28] sm:$0xff]
        %v4228 = vld [vmem:[#allocation7 + $0x30] sm:$0xff]
        %v4229 = vld [vmem:[#allocation7 + $0x38] sm:$0xff]
        %v4230 = vld [vmem:[#allocation7 + $0x40] sm:$0xff]
        %v4231 = vld [vmem:[#allocation7 + $0x48] sm:$0xff]
        %v4232 = vld [vmem:[#allocation7 + $0x50] sm:$0xff]
        %v4233 = vld [vmem:[#allocation7 + $0x58] sm:$0xff]
        %v4234 = vld [vmem:[#allocation7 + $0x60] sm:$0xff]
        %v4235 = vld [vmem:[#allocation7 + $0x68] sm:$0xff]
        %v4236 = vld [vmem:[#allocation7 + $0x70] sm:$0xff]
        %v4237 = vld [vmem:[#allocation7 + $0x78] sm:$0xff]
        %v4238 = vld [vmem:[%s4] sm:$0x1]
        %v4240 = vlaneseq
        %v4241 = vshrl.u32 %v4240, 7
        %v4242 = vsub.s32 0, %v4241
        %v4243 = vrot.slane %v4238, %v4242
        %4245 = vmatprep.subr.mxu0 0.0
        %4246 = vmatpush1.msra.mxu0 %v4222
        %4247 = vmatprep.subr.mxu0 0.0
        %4248 = vmatpush1.msra.mxu0 %v4223
        %4249 = vmatprep.subr.mxu0 0.0
        %4250 = vmatpush1.msra.mxu0 %v4224
        %4251 = vmatprep.subr.mxu0 0.0
        %4252 = vmatpush1.msra.mxu0 %v4225
        %4253 = vmatprep.subr.mxu0 0.0
        %4254 = vmatpush1.msra.mxu0 %v4226
        %4255 = vmatprep.subr.mxu0 0.0
        %4256 = vmatpush1.msra.mxu0 %v4227
        %4257 = vmatprep.subr.mxu0 0.0
        %4258 = vmatpush1.msra.mxu0 %v4228
        %4259 = vmatprep.subr.mxu0 0.0
        %4260 = vmatpush1.msra.mxu0 %v4229
        %4261 = vmatprep.subr.mxu0 0.0
        %4262 = vmatpush1.msra.mxu0 %v4230
        %4263 = vmatprep.subr.mxu0 0.0
        %4264 = vmatpush1.msra.mxu0 %v4231
        %4265 = vmatprep.subr.mxu0 0.0
        %4266 = vmatpush1.msra.mxu0 %v4232
        %4267 = vmatprep.subr.mxu0 0.0
        %4268 = vmatpush1.msra.mxu0 %v4233
        %4269 = vmatprep.subr.mxu0 0.0
        %4270 = vmatpush1.msra.mxu0 %v4234
        %4271 = vmatprep.subr.mxu0 0.0
        %4272 = vmatpush1.msra.mxu0 %v4235
        %4273 = vmatprep.subr.mxu0 0.0
        %4274 = vmatpush1.msra.mxu0 %v4236
        %4275 = vmatprep.subr.mxu0 0.0
        %4276 = vmatpush1.msra.mxu0 %v4237
        %4277 = vmatprep.subr.mxu0 0.0
        %4278 = vmatpush1.msra.mxu0 0.0
        %4279 = vmatprep.subr.mxu0 0.0
        %4280 = vmatpush1.msra.mxu0 0.0
        %4281 = vmatprep.subr.mxu0 0.0
        %4282 = vmatpush1.msra.mxu0 0.0
        %4283 = vmatprep.subr.mxu0 0.0
        %4284 = vmatpush1.msra.mxu0 0.0
        %4285 = vmatprep.subr.mxu0 0.0
        %4286 = vmatpush1.msra.mxu0 0.0
        %4287 = vmatprep.subr.mxu0 0.0
        %4288 = vmatpush1.msra.mxu0 0.0
        %4289 = vmatprep.subr.mxu0 0.0
        %4290 = vmatpush1.msra.mxu0 0.0
        %4291 = vmatprep.subr.mxu0 0.0
        %4292 = vmatpush1.msra.mxu0 0.0
        %4293 = vmatprep.subr.mxu0 0.0
        %4294 = vmatpush1.msra.mxu0 0.0
        %4295 = vmatprep.subr.mxu0 0.0
        %4296 = vmatpush1.msra.mxu0 0.0
        %4297 = vmatprep.subr.mxu0 0.0
        %4298 = vmatpush1.msra.mxu0 0.0
        %4299 = vmatprep.subr.mxu0 0.0
        %4300 = vmatpush1.msra.mxu0 0.0
        %4301 = vmatprep.subr.mxu0 0.0
        %4302 = vmatpush1.msra.mxu0 0.0
        %4303 = vmatprep.subr.mxu0 0.0
        %4304 = vmatpush1.msra.mxu0 0.0
        %4305 = vmatprep.subr.mxu0 0.0
        %4306 = vmatpush1.msra.mxu0 0.0
        %4307 = vmatprep.subr.mxu0 0.0
        %4308 = vmatpush1.msra.mxu0 0.0
        %4309 = vmatprep.mubr.f32.mxu0 0.0
        %4310 = vmatmul.mubr.f32.gmra.mrb[0].mxu0 %v4214
        %v4311 = vpop.f32.mrb[0].mxu0
        %v4312 = vadd.f32 %v4243, %v4311
        %v4313 = vpop.f32.mrb[0].mxu0
        %4314 = vmatprep.mubr.f32.mxu0 0.0
        %4315 = vmatmul.mubr.f32.gmra.mrb[0].mxu0 %v4215
        %v4316 = vpop.f32.mrb[0].mxu0
        %v4317 = vadd.f32 %v4243, %v4316
        %v4318 = vpop.f32.mrb[0].mxu0
        %4319 = vmatprep.mubr.f32.mxu0 0.0
        %4320 = vmatmul.mubr.f32.gmra.mrb[0].mxu0 %v4216
        %v4321 = vpop.f32.mrb[0].mxu0
        %v4322 = vadd.f32 %v4243, %v4321
        %v4323 = vpop.f32.mrb[0].mxu0
        %4324 = vmatprep.mubr.f32.mxu0 0.0
        %4325 = vmatmul.mubr.f32.gmra.mrb[0].mxu0 %v4217
        %v4326 = vpop.f32.mrb[0].mxu0
        %v4327 = vadd.f32 %v4243, %v4326
        %v4328 = vpop.f32.mrb[0].mxu0
        %4329 = vmatprep.mubr.f32.mxu0 0.0
        %4330 = vmatmul.mubr.f32.gmra.mrb[0].mxu0 %v4218
        %v4331 = vpop.f32.mrb[0].mxu0
        %v4332 = vadd.f32 %v4243, %v4331
        %v4333 = vpop.f32.mrb[0].mxu0
        %4334 = vmatprep.mubr.f32.mxu0 0.0
        %4335 = vmatmul.mubr.f32.gmra.mrb[0].mxu0 %v4219
        %v4336 = vpop.f32.mrb[0].mxu0
        %v4337 = vadd.f32 %v4243, %v4336
        %v4338 = vpop.f32.mrb[0].mxu0
        %4339 = vmatprep.mubr.f32.mxu0 0.0
        %4340 = vmatmul.mubr.f32.gmra.mrb[0].mxu0 %v4220
        %v4341 = vpop.f32.mrb[0].mxu0
        %v4342 = vadd.f32 %v4243, %v4341
        %v4343 = vpop.f32.mrb[0].mxu0
        %4344 = vmatprep.mubr.f32.mxu0 0.0
        %4345 = vmatmul.mubr.f32.gmra.mrb[0].mxu0 %v4221
        %v4346 = vpop.f32.mrb[0].mxu0
        %v4347 = vadd.f32 %v4243, %v4346
        %v4348 = vpop.f32.mrb[0].mxu0
        %4349 = vdwg.mxu0
        %v4350 = vadd.f32 %v520, %v4312
        %v4351 = vadd.f32 %v521, %v4317
        %v4352 = vadd.f32 %v522, %v4322
        %v4353 = vadd.f32 %v523, %v4327
        %v4354 = vadd.f32 %v524, %v4332
        %v4355 = vadd.f32 %v525, %v4337
        %v4356 = vadd.f32 %v526, %v4342
        %v4357 = vadd.f32 %v527, %v4347
        %v4358 = vld [vmem:[%s11] sm:$0x1]
        %v4359 = vld [vmem:[%s12] sm:$0x1]
        %4360 = vadd.xlane.f32.xlu0 %v4350
        %v4361 = vpop.xlane.xlu0 %4360
        %4362 = vadd.xlane.f32.xlu0 %v4351
        %v4363 = vpop.xlane.xlu0 %4362
        %4364 = vadd.xlane.f32.xlu0 %v4352
        %v4365 = vpop.xlane.xlu0 %4364
        %4366 = vadd.xlane.f32.xlu0 %v4353
        %v4367 = vpop.xlane.xlu0 %4366
        %4368 = vadd.xlane.f32.xlu0 %v4354
        %v4369 = vpop.xlane.xlu0 %4368
        %4370 = vadd.xlane.f32.xlu0 %v4355
        %v4371 = vpop.xlane.xlu0 %4370
        %4372 = vadd.xlane.f32.xlu0 %v4356
        %v4373 = vpop.xlane.xlu0 %4372
        %4374 = vadd.xlane.f32.xlu0 %v4357
        %v4375 = vpop.xlane.xlu0 %4374
        %v4376 = vmul.f32 %v4361, %v546
        %v4377 = vmul.f32 %v4363, %v546
        %v4378 = vmul.f32 %v4365, %v546
        %v4379 = vmul.f32 %v4367, %v546
        %v4380 = vmul.f32 %v4369, %v546
        %v4381 = vmul.f32 %v4371, %v546
        %v4382 = vmul.f32 %v4373, %v546
        %v4383 = vmul.f32 %v4375, %v546
        %v4384 = vsub.f32 %v4350, %v4376
        %v4385 = vsub.f32 %v4351, %v4377
        %v4386 = vsub.f32 %v4352, %v4378
        %v4387 = vsub.f32 %v4353, %v4379
        %v4388 = vsub.f32 %v4354, %v4380
        %v4389 = vsub.f32 %v4355, %v4381
        %v4390 = vsub.f32 %v4356, %v4382
        %v4391 = vsub.f32 %v4357, %v4383
        %v4392 = vmul.f32 %v4384, %v4384
        %v4393 = vmul.f32 %v4385, %v4385
        %v4394 = vmul.f32 %v4386, %v4386
        %v4395 = vmul.f32 %v4387, %v4387
        %v4396 = vmul.f32 %v4388, %v4388
        %v4397 = vmul.f32 %v4389, %v4389
        %v4398 = vmul.f32 %v4390, %v4390
        %v4399 = vmul.f32 %v4391, %v4391
        %4400 = vadd.xlane.f32.xlu0 %v4392
        %v4401 = vpop.xlane.xlu0 %4400
        %4402 = vadd.xlane.f32.xlu0 %v4393
        %v4403 = vpop.xlane.xlu0 %4402
        %4404 = vadd.xlane.f32.xlu0 %v4394
        %v4405 = vpop.xlane.xlu0 %4404
        %4406 = vadd.xlane.f32.xlu0 %v4395
        %v4407 = vpop.xlane.xlu0 %4406
        %4408 = vadd.xlane.f32.xlu0 %v4396
        %v4409 = vpop.xlane.xlu0 %4408
        %4410 = vadd.xlane.f32.xlu0 %v4397
        %v4411 = vpop.xlane.xlu0 %4410
        %4412 = vadd.xlane.f32.xlu0 %v4398
        %v4413 = vpop.xlane.xlu0 %4412
        %4414 = vadd.xlane.f32.xlu0 %v4399
        %v4415 = vpop.xlane.xlu0 %4414
        %v4416 = vmul.f32 %v4401, %v546
        %v4417 = vmul.f32 %v4403, %v546
        %v4418 = vmul.f32 %v4405, %v546
        %v4419 = vmul.f32 %v4407, %v546
        %v4420 = vmul.f32 %v4409, %v546
        %v4421 = vmul.f32 %v4411, %v546
        %v4422 = vmul.f32 %v4413, %v546
        %v4423 = vmul.f32 %v4415, %v546
        %v4424 = vadd.f32 %v4416, 1e-05
        %v4425 = vadd.f32 %v4417, 1e-05
        %v4426 = vadd.f32 %v4418, 1e-05
        %v4427 = vadd.f32 %v4419, 1e-05
        %v4428 = vadd.f32 %v4420, 1e-05
        %v4429 = vadd.f32 %v4421, 1e-05
        %v4430 = vadd.f32 %v4422, 1e-05
        %v4431 = vadd.f32 %v4423, 1e-05
        %v4432 = vrsqrt.pop %v4424
        %v4433 = vrsqrt.pop %v4425
        %v4434 = vrsqrt.pop %v4426
        %v4435 = vrsqrt.pop %v4427
        %v4436 = vrsqrt.pop %v4428
        %v4437 = vrsqrt.pop %v4429
        %v4438 = vrsqrt.pop %v4430
        %v4439 = vrsqrt.pop %v4431
        %v4440 = vmul.f32 %v4384, %v4432
        %v4441 = vmul.f32 %v4385, %v4433
        %v4442 = vmul.f32 %v4386, %v4434
        %v4443 = vmul.f32 %v4387, %v4435
        %v4444 = vmul.f32 %v4388, %v4436
        %v4445 = vmul.f32 %v4389, %v4437
        %v4446 = vmul.f32 %v4390, %v4438
        %v4447 = vmul.f32 %v4391, %v4439
        %v4449 = vlaneseq
        %v4450 = vshrl.u32 %v4449, 7
        %v4451 = vsub.s32 0, %v4450
        %v4452 = vrot.slane %v4358, %v4451
        %v4454 = vmul.f32 %v4440, %v4452
        %v4455 = vmul.f32 %v4441, %v4452
        %v4456 = vmul.f32 %v4442, %v4452
        %v4457 = vmul.f32 %v4443, %v4452
        %v4458 = vmul.f32 %v4444, %v4452
        %v4459 = vmul.f32 %v4445, %v4452
        %v4460 = vmul.f32 %v4446, %v4452
        %v4461 = vmul.f32 %v4447, %v4452
        %v4463 = vlaneseq
        %v4464 = vshrl.u32 %v4463, 7
        %v4465 = vsub.s32 0, %v4464
        %v4466 = vrot.slane %v4359, %v4465
        %v4468 = vadd.f32 %v4454, %v4466
        %v4469 = vadd.f32 %v4455, %v4466
        %v4470 = vadd.f32 %v4456, %v4466
        %v4471 = vadd.f32 %v4457, %v4466
        %v4472 = vadd.f32 %v4458, %v4466
        %v4473 = vadd.f32 %v4459, %v4466
        %v4474 = vadd.f32 %v4460, %v4466
        %v4475 = vadd.f32 %v4461, %v4466
        %v4476 = vld [vmem:[#allocation8] sm:$0xff]
        %v4477 = vld [vmem:[#allocation8 + $0x8] sm:$0xff]
        %v4478 = vld [vmem:[#allocation8 + $0x10] sm:$0xff]
        %v4479 = vld [vmem:[#allocation8 + $0x18] sm:$0xff]
        %v4480 = vld [vmem:[#allocation8 + $0x20] sm:$0xff]
        %v4481 = vld [vmem:[#allocation8 + $0x28] sm:$0xff]
        %v4482 = vld [vmem:[#allocation8 + $0x30] sm:$0xff]
        %v4483 = vld [vmem:[#allocation8 + $0x38] sm:$0xff]
        %v4484 = vld [vmem:[#allocation8 + $0x40] sm:$0xff]
        %v4485 = vld [vmem:[#allocation8 + $0x48] sm:$0xff]
        %v4486 = vld [vmem:[#allocation8 + $0x50] sm:$0xff]
        %v4487 = vld [vmem:[#allocation8 + $0x58] sm:$0xff]
        %v4488 = vld [vmem:[#allocation8 + $0x60] sm:$0xff]
        %v4489 = vld [vmem:[#allocation8 + $0x68] sm:$0xff]
        %v4490 = vld [vmem:[#allocation8 + $0x70] sm:$0xff]
        %v4491 = vld [vmem:[#allocation8 + $0x78] sm:$0xff]
        %v4492 = vld [vmem:[#allocation8 + $0x80] sm:$0xff]
        %v4493 = vld [vmem:[#allocation8 + $0x88] sm:$0xff]
        %v4494 = vld [vmem:[#allocation8 + $0x90] sm:$0xff]
        %v4495 = vld [vmem:[#allocation8 + $0x98] sm:$0xff]
        %v4496 = vld [vmem:[#allocation8 + $0xa0] sm:$0xff]
        %v4497 = vld [vmem:[#allocation8 + $0xa8] sm:$0xff]
        %v4498 = vld [vmem:[#allocation8 + $0xb0] sm:$0xff]
        %v4499 = vld [vmem:[#allocation8 + $0xb8] sm:$0xff]
        %v4500 = vld [vmem:[#allocation8 + $0xc0] sm:$0xff]
        %v4501 = vld [vmem:[#allocation8 + $0xc8] sm:$0xff]
        %v4502 = vld [vmem:[#allocation8 + $0xd0] sm:$0xff]
        %v4503 = vld [vmem:[#allocation8 + $0xd8] sm:$0xff]
        %v4504 = vld [vmem:[#allocation8 + $0xe0] sm:$0xff]
        %v4505 = vld [vmem:[#allocation8 + $0xe8] sm:$0xff]
        %v4506 = vld [vmem:[#allocation8 + $0xf0] sm:$0xff]
        %v4507 = vld [vmem:[#allocation8 + $0xf8] sm:$0xff]
        %v4508 = vld [vmem:[%s6] sm:$0x3]
        %v4510 = vlaneseq
        %v4511 = vshrl.u32 %v4510, 7
        %v4512 = vsub.s32 0, %v4511
        %v4513 = vrot.slane %v4508, %v4512
        %v4514 = vlaneseq
        %v4515 = vshrl.u32 %v4514, 7
        %v4516 = vsub.s32 1, %v4515
        %v4517 = vrot.slane %v4508, %v4516
        %4520 = vmatprep.subr.mxu0 %v4477
        %4521 = vmatpush1.msra.mxu0 %v4476
        %4522 = vmatprep.subr.mxu0 %v4479
        %4523 = vmatpush1.msra.mxu0 %v4478
        %4524 = vmatprep.subr.mxu0 %v4481
        %4525 = vmatpush1.msra.mxu0 %v4480
        %4526 = vmatprep.subr.mxu0 %v4483
        %4527 = vmatpush1.msra.mxu0 %v4482
        %4528 = vmatprep.subr.mxu0 %v4485
        %4529 = vmatpush1.msra.mxu0 %v4484
        %4530 = vmatprep.subr.mxu0 %v4487
        %4531 = vmatpush1.msra.mxu0 %v4486
        %4532 = vmatprep.subr.mxu0 %v4489
        %4533 = vmatpush1.msra.mxu0 %v4488
        %4534 = vmatprep.subr.mxu0 %v4491
        %4535 = vmatpush1.msra.mxu0 %v4490
        %4536 = vmatprep.subr.mxu0 %v4493
        %4537 = vmatpush1.msra.mxu0 %v4492
        %4538 = vmatprep.subr.mxu0 %v4495
        %4539 = vmatpush1.msra.mxu0 %v4494
        %4540 = vmatprep.subr.mxu0 %v4497
        %4541 = vmatpush1.msra.mxu0 %v4496
        %4542 = vmatprep.subr.mxu0 %v4499
        %4543 = vmatpush1.msra.mxu0 %v4498
        %4544 = vmatprep.subr.mxu0 %v4501
        %4545 = vmatpush1.msra.mxu0 %v4500
        %4546 = vmatprep.subr.mxu0 %v4503
        %4547 = vmatpush1.msra.mxu0 %v4502
        %4548 = vmatprep.subr.mxu0 %v4505
        %4549 = vmatpush1.msra.mxu0 %v4504
        %4550 = vmatprep.subr.mxu0 %v4507
        %4551 = vmatpush1.msra.mxu0 %v4506
        %4552 = vmatprep.subr.mxu0 0.0
        %4553 = vmatpush1.msra.mxu0 0.0
        %4554 = vmatprep.subr.mxu0 0.0
        %4555 = vmatpush1.msra.mxu0 0.0
        %4556 = vmatprep.subr.mxu0 0.0
        %4557 = vmatpush1.msra.mxu0 0.0
        %4558 = vmatprep.subr.mxu0 0.0
        %4559 = vmatpush1.msra.mxu0 0.0
        %4560 = vmatprep.subr.mxu0 0.0
        %4561 = vmatpush1.msra.mxu0 0.0
        %4562 = vmatprep.subr.mxu0 0.0
        %4563 = vmatpush1.msra.mxu0 0.0
        %4564 = vmatprep.subr.mxu0 0.0
        %4565 = vmatpush1.msra.mxu0 0.0
        %4566 = vmatprep.subr.mxu0 0.0
        %4567 = vmatpush1.msra.mxu0 0.0
        %4568 = vmatprep.subr.mxu0 0.0
        %4569 = vmatpush1.msra.mxu0 0.0
        %4570 = vmatprep.subr.mxu0 0.0
        %4571 = vmatpush1.msra.mxu0 0.0
        %4572 = vmatprep.subr.mxu0 0.0
        %4573 = vmatpush1.msra.mxu0 0.0
        %4574 = vmatprep.subr.mxu0 0.0
        %4575 = vmatpush1.msra.mxu0 0.0
        %4576 = vmatprep.subr.mxu0 0.0
        %4577 = vmatpush1.msra.mxu0 0.0
        %4578 = vmatprep.subr.mxu0 0.0
        %4579 = vmatpush1.msra.mxu0 0.0
        %4580 = vmatprep.subr.mxu0 0.0
        %4581 = vmatpush1.msra.mxu0 0.0
        %4582 = vmatprep.subr.mxu0 0.0
        %4583 = vmatpush1.msra.mxu0 0.0
        %4584 = vmatprep.mubr.f32.mxu0 0.0
        %4585 = vmatmul.mubr.f32.gmra.mrb[0].mxu0 %v4468
        %v4586 = vpop.f32.mrb[0].mxu0
        %v4587 = vadd.f32 %v4513, %v4586
        %v4588 = vpop.f32.mrb[0].mxu0
        %v4589 = vadd.f32 %v4517, %v4588
        %4590 = vmatprep.mubr.f32.mxu0 0.0
        %4591 = vmatmul.mubr.f32.gmra.mrb[0].mxu0 %v4469
        %v4592 = vpop.f32.mrb[0].mxu0
        %v4593 = vadd.f32 %v4513, %v4592
        %v4594 = vpop.f32.mrb[0].mxu0
        %v4595 = vadd.f32 %v4517, %v4594
        %4596 = vmatprep.mubr.f32.mxu0 0.0
        %4597 = vmatmul.mubr.f32.gmra.mrb[0].mxu0 %v4470
        %v4598 = vpop.f32.mrb[0].mxu0
        %v4599 = vadd.f32 %v4513, %v4598
        %v4600 = vpop.f32.mrb[0].mxu0
        %v4601 = vadd.f32 %v4517, %v4600
        %4602 = vmatprep.mubr.f32.mxu0 0.0
        %4603 = vmatmul.mubr.f32.gmra.mrb[0].mxu0 %v4471
        %v4604 = vpop.f32.mrb[0].mxu0
        %v4605 = vadd.f32 %v4513, %v4604
        %v4606 = vpop.f32.mrb[0].mxu0
        %v4607 = vadd.f32 %v4517, %v4606
        %4608 = vmatprep.mubr.f32.mxu0 0.0
        %4609 = vmatmul.mubr.f32.gmra.mrb[0].mxu0 %v4472
        %v4610 = vpop.f32.mrb[0].mxu0
        %v4611 = vadd.f32 %v4513, %v4610
        %v4612 = vpop.f32.mrb[0].mxu0
        %v4613 = vadd.f32 %v4517, %v4612
        %4614 = vmatprep.mubr.f32.mxu0 0.0
        %4615 = vmatmul.mubr.f32.gmra.mrb[0].mxu0 %v4473
        %v4616 = vpop.f32.mrb[0].mxu0
        %v4617 = vadd.f32 %v4513, %v4616
        %v4618 = vpop.f32.mrb[0].mxu0
        %v4619 = vadd.f32 %v4517, %v4618
        %4620 = vmatprep.mubr.f32.mxu0 0.0
        %4621 = vmatmul.mubr.f32.gmra.mrb[0].mxu0 %v4474
        %v4622 = vpop.f32.mrb[0].mxu0
        %v4623 = vadd.f32 %v4513, %v4622
        %v4624 = vpop.f32.mrb[0].mxu0
        %v4625 = vadd.f32 %v4517, %v4624
        %4626 = vmatprep.mubr.f32.mxu0 0.0
        %4627 = vmatmul.mubr.f32.gmra.mrb[0].mxu0 %v4475
        %v4628 = vpop.f32.mrb[0].mxu0
        %v4629 = vadd.f32 %v4513, %v4628
        %v4630 = vpop.f32.mrb[0].mxu0
        %v4631 = vadd.f32 %v4517, %v4630
        %4632 = vdwg.mxu0
        %v4633 = vmax.f32 %v4587, 0.0
        %v4634 = vmax.f32 %v4589, 0.0
        %v4635 = vmax.f32 %v4593, 0.0
        %v4636 = vmax.f32 %v4595, 0.0
        %v4637 = vmax.f32 %v4599, 0.0
        %v4638 = vmax.f32 %v4601, 0.0
        %v4639 = vmax.f32 %v4605, 0.0
        %v4640 = vmax.f32 %v4607, 0.0
        %v4641 = vmax.f32 %v4611, 0.0
        %v4642 = vmax.f32 %v4613, 0.0
        %v4643 = vmax.f32 %v4617, 0.0
        %v4644 = vmax.f32 %v4619, 0.0
        %v4645 = vmax.f32 %v4623, 0.0
        %v4646 = vmax.f32 %v4625, 0.0
        %v4647 = vmax.f32 %v4629, 0.0
        %v4648 = vmax.f32 %v4631, 0.0
        %v4649 = vld [vmem:[#allocation10] sm:$0xff]
        %v4650 = vld [vmem:[#allocation10 + $0x8] sm:$0xff]
        %v4651 = vld [vmem:[#allocation10 + $0x10] sm:$0xff]
        %v4652 = vld [vmem:[#allocation10 + $0x18] sm:$0xff]
        %v4653 = vld [vmem:[#allocation10 + $0x20] sm:$0xff]
        %v4654 = vld [vmem:[#allocation10 + $0x28] sm:$0xff]
        %v4655 = vld [vmem:[#allocation10 + $0x30] sm:$0xff]
        %v4656 = vld [vmem:[#allocation10 + $0x38] sm:$0xff]
        %v4657 = vld [vmem:[#allocation10 + $0x40] sm:$0xff]
        %v4658 = vld [vmem:[#allocation10 + $0x48] sm:$0xff]
        %v4659 = vld [vmem:[#allocation10 + $0x50] sm:$0xff]
        %v4660 = vld [vmem:[#allocation10 + $0x58] sm:$0xff]
        %v4661 = vld [vmem:[#allocation10 + $0x60] sm:$0xff]
        %v4662 = vld [vmem:[#allocation10 + $0x68] sm:$0xff]
        %v4663 = vld [vmem:[#allocation10 + $0x70] sm:$0xff]
        %v4664 = vld [vmem:[#allocation10 + $0x78] sm:$0xff]
        %v4665 = vld [vmem:[#allocation10 + $0x80] sm:$0xff]
        %v4666 = vld [vmem:[#allocation10 + $0x88] sm:$0xff]
        %v4667 = vld [vmem:[#allocation10 + $0x90] sm:$0xff]
        %v4668 = vld [vmem:[#allocation10 + $0x98] sm:$0xff]
        %v4669 = vld [vmem:[#allocation10 + $0xa0] sm:$0xff]
        %v4670 = vld [vmem:[#allocation10 + $0xa8] sm:$0xff]
        %v4671 = vld [vmem:[#allocation10 + $0xb0] sm:$0xff]
        %v4672 = vld [vmem:[#allocation10 + $0xb8] sm:$0xff]
        %v4673 = vld [vmem:[#allocation10 + $0xc0] sm:$0xff]
        %v4674 = vld [vmem:[#allocation10 + $0xc8] sm:$0xff]
        %v4675 = vld [vmem:[#allocation10 + $0xd0] sm:$0xff]
        %v4676 = vld [vmem:[#allocation10 + $0xd8] sm:$0xff]
        %v4677 = vld [vmem:[#allocation10 + $0xe0] sm:$0xff]
        %v4678 = vld [vmem:[#allocation10 + $0xe8] sm:$0xff]
        %v4679 = vld [vmem:[#allocation10 + $0xf0] sm:$0xff]
        %v4680 = vld [vmem:[#allocation10 + $0xf8] sm:$0xff]
        %v4681 = vld [vmem:[%s8] sm:$0x1]
        %v4683 = vlaneseq
        %v4684 = vshrl.u32 %v4683, 7
        %v4685 = vsub.s32 0, %v4684
        %v4686 = vrot.slane %v4681, %v4685
        %4688 = vmatprep.subr.mxu0 0.0
        %4689 = vmatpush1.msra.mxu0 %v4649
        %4690 = vmatprep.subr.mxu0 0.0
        %4691 = vmatpush1.msra.mxu0 %v4650
        %4692 = vmatprep.subr.mxu0 0.0
        %4693 = vmatpush1.msra.mxu0 %v4651
        %4694 = vmatprep.subr.mxu0 0.0
        %4695 = vmatpush1.msra.mxu0 %v4652
        %4696 = vmatprep.subr.mxu0 0.0
        %4697 = vmatpush1.msra.mxu0 %v4653
        %4698 = vmatprep.subr.mxu0 0.0
        %4699 = vmatpush1.msra.mxu0 %v4654
        %4700 = vmatprep.subr.mxu0 0.0
        %4701 = vmatpush1.msra.mxu0 %v4655
        %4702 = vmatprep.subr.mxu0 0.0
        %4703 = vmatpush1.msra.mxu0 %v4656
        %4704 = vmatprep.subr.mxu0 0.0
        %4705 = vmatpush1.msra.mxu0 %v4657
        %4706 = vmatprep.subr.mxu0 0.0
        %4707 = vmatpush1.msra.mxu0 %v4658
        %4708 = vmatprep.subr.mxu0 0.0
        %4709 = vmatpush1.msra.mxu0 %v4659
        %4710 = vmatprep.subr.mxu0 0.0
        %4711 = vmatpush1.msra.mxu0 %v4660
        %4712 = vmatprep.subr.mxu0 0.0
        %4713 = vmatpush1.msra.mxu0 %v4661
        %4714 = vmatprep.subr.mxu0 0.0
        %4715 = vmatpush1.msra.mxu0 %v4662
        %4716 = vmatprep.subr.mxu0 0.0
        %4717 = vmatpush1.msra.mxu0 %v4663
        %4718 = vmatprep.subr.mxu0 0.0
        %4719 = vmatpush1.msra.mxu0 %v4664
        %4720 = vmatprep.subr.mxu0 0.0
        %4721 = vmatpush1.msra.mxu0 %v4665
        %4722 = vmatprep.subr.mxu0 0.0
        %4723 = vmatpush1.msra.mxu0 %v4666
        %4724 = vmatprep.subr.mxu0 0.0
        %4725 = vmatpush1.msra.mxu0 %v4667
        %4726 = vmatprep.subr.mxu0 0.0
        %4727 = vmatpush1.msra.mxu0 %v4668
        %4728 = vmatprep.subr.mxu0 0.0
        %4729 = vmatpush1.msra.mxu0 %v4669
        %4730 = vmatprep.subr.mxu0 0.0
        %4731 = vmatpush1.msra.mxu0 %v4670
        %4732 = vmatprep.subr.mxu0 0.0
        %4733 = vmatpush1.msra.mxu0 %v4671
        %4734 = vmatprep.subr.mxu0 0.0
        %4735 = vmatpush1.msra.mxu0 %v4672
        %4736 = vmatprep.subr.mxu0 0.0
        %4737 = vmatpush1.msra.mxu0 %v4673
        %4738 = vmatprep.subr.mxu0 0.0
        %4739 = vmatpush1.msra.mxu0 %v4674
        %4740 = vmatprep.subr.mxu0 0.0
        %4741 = vmatpush1.msra.mxu0 %v4675
        %4742 = vmatprep.subr.mxu0 0.0
        %4743 = vmatpush1.msra.mxu0 %v4676
        %4744 = vmatprep.subr.mxu0 0.0
        %4745 = vmatpush1.msra.mxu0 %v4677
        %4746 = vmatprep.subr.mxu0 0.0
        %4747 = vmatpush1.msra.mxu0 %v4678
        %4748 = vmatprep.subr.mxu0 0.0
        %4749 = vmatpush1.msra.mxu0 %v4679
        %4750 = vmatprep.subr.mxu0 0.0
        %4751 = vmatpush1.msra.mxu0 %v4680
        %4752 = vmatprep.mubr.f32.mxu0 %v4634
        %4753 = vmatmul.mubr.f32.gmra.mrb[0].mxu0 %v4633
        %v4754 = vpop.f32.mrb[0].mxu0
        %v4755 = vadd.f32 %v4686, %v4754
        %v4756 = vpop.f32.mrb[0].mxu0
        %4757 = vmatprep.mubr.f32.mxu0 %v4636
        %4758 = vmatmul.mubr.f32.gmra.mrb[0].mxu0 %v4635
        %v4759 = vpop.f32.mrb[0].mxu0
        %v4760 = vadd.f32 %v4686, %v4759
        %v4761 = vpop.f32.mrb[0].mxu0
        %4762 = vmatprep.mubr.f32.mxu0 %v4638
        %4763 = vmatmul.mubr.f32.gmra.mrb[0].mxu0 %v4637
        %v4764 = vpop.f32.mrb[0].mxu0
        %v4765 = vadd.f32 %v4686, %v4764
        %v4766 = vpop.f32.mrb[0].mxu0
        %4767 = vmatprep.mubr.f32.mxu0 %v4640
        %4768 = vmatmul.mubr.f32.gmra.mrb[0].mxu0 %v4639
        %v4769 = vpop.f32.mrb[0].mxu0
        %v4770 = vadd.f32 %v4686, %v4769
        %v4771 = vpop.f32.mrb[0].mxu0
        %4772 = vmatprep.mubr.f32.mxu0 %v4642
        %4773 = vmatmul.mubr.f32.gmra.mrb[0].mxu0 %v4641
        %v4774 = vpop.f32.mrb[0].mxu0
        %v4775 = vadd.f32 %v4686, %v4774
        %v4776 = vpop.f32.mrb[0].mxu0
        %4777 = vmatprep.mubr.f32.mxu0 %v4644
        %4778 = vmatmul.mubr.f32.gmra.mrb[0].mxu0 %v4643
        %v4779 = vpop.f32.mrb[0].mxu0
        %v4780 = vadd.f32 %v4686, %v4779
        %v4781 = vpop.f32.mrb[0].mxu0
        %4782 = vmatprep.mubr.f32.mxu0 %v4646
        %4783 = vmatmul.mubr.f32.gmra.mrb[0].mxu0 %v4645
        %v4784 = vpop.f32.mrb[0].mxu0
        %v4785 = vadd.f32 %v4686, %v4784
        %v4786 = vpop.f32.mrb[0].mxu0
        %4787 = vmatprep.mubr.f32.mxu0 %v4648
        %4788 = vmatmul.mubr.f32.gmra.mrb[0].mxu0 %v4647
        %v4789 = vpop.f32.mrb[0].mxu0
        %v4790 = vadd.f32 %v4686, %v4789
        %v4791 = vpop.f32.mrb[0].mxu0
        %4792 = vdwg.mxu0
        %v4793 = vadd.f32 %v4350, %v4755
        %v4794 = vadd.f32 %v4351, %v4760
        %v4795 = vadd.f32 %v4352, %v4765
        %v4796 = vadd.f32 %v4353, %v4770
        %v4797 = vadd.f32 %v4354, %v4775
        %v4798 = vadd.f32 %v4355, %v4780
        %v4799 = vadd.f32 %v4356, %v4785
        %v4800 = vadd.f32 %v4357, %v4790
        %4801 = vst [vmem:[%s517] sm:$0xff] %v4793
        %4802 = vst [vmem:[%s517 + $0x8] sm:$0xff] %v4794
        %4803 = vst [vmem:[%s517 + $0x10] sm:$0xff] %v4795
        %4804 = vst [vmem:[%s517 + $0x18] sm:$0xff] %v4796
        %4805 = vst [vmem:[%s517 + $0x20] sm:$0xff] %v4797
        %4806 = vst [vmem:[%s517 + $0x28] sm:$0xff] %v4798
        %4807 = vst [vmem:[%s517 + $0x30] sm:$0xff] %v4799
        %4808 = vst [vmem:[%s517 + $0x38] sm:$0xff] %v4800
        %s4809 = sand.u32 %s318, 1
        %s4810 = scalar_lea.sflag [#allocation4], %s4809
        %s4811 = sand.u32 %s318, 1
        %s4812 = smul.addr %s4811, 64
        %s4813 = scalar_lea.vmem [#allocation11], %s4812
        // Predicated region
        $region93: #{tpu_custom_call.1} parent=71 // pred_check
          %p4814 = pneg %p328
        $region94: #{tpu_custom_call.1} parent=71 // pred_check_branch
          %4816 = sbr.rel (%p4814) target = $region96
        $region95: #{tpu_custom_call.1} parent=71 // pred_region
          %s4817 = smul.u32 4, %s32
          %s4819 = ssub.s32 1024, 1024
          %4820 = vsyncadd %s4810, %s4819
          %s4821 = smul.addr %s4817, 2
          %s4822 = smul.addr %s4821, 128
          %s4823 = scalar_lea.hbm %s13, %s4822
          %s4824 = sshll.u32 %s4813, 4
          %s4825 = int_to_ptr.vmem [resolvable:$true] %s4824
          %4830 = dma.vmem_to_hbm [thread:$0]  %s4825, 1024, %s4823, %s4810, 128, 128, 8
        $region96: #{tpu_custom_call.1} parent=71 // pred_fallthru
          _
      $region72: #{tpu_custom_call.1} parent=5 // pred_fallthru
        _
      %p4831 = scmp.le.s32.totalorder 2, %s27
      // Predicated region
      $region97: #{tpu_custom_call.1} parent=5 // pred_check
        %p4832 = pneg %p4831
      $region98: #{tpu_custom_call.1} parent=5 // pred_check_branch
        %4834 = sbr.rel (%p4832) target = $region100
      $region99: #{tpu_custom_call.1} parent=5 // pred_region
        %s4835 = ssub.s32 %s27, 2
        // Predicated region
        $region101: #{tpu_custom_call.1} parent=99 // pred_check
          %p4836 = pneg %p334
        $region102: #{tpu_custom_call.1} parent=99 // pred_check_branch
          %4838 = sbr.rel (%p4836) target = $region104
        $region103: #{tpu_custom_call.1} parent=99 // pred_region
          %s4839 = sand.u32 %s319, 1
          %s4840 = scalar_lea.sflag [#allocation4], %s4839
          %s4841 = sand.u32 %s319, 1
          %s4842 = smul.addr %s4841, 64
          %s4843 = scalar_lea.vmem [#allocation11], %s4842
          %4844 = dma.done %s4840, 1024
        $region104: #{tpu_custom_call.1} parent=99 // pred_fallthru
          _
      $region100: #{tpu_custom_call.1} parent=5 // pred_fallthru
        _
    $region6: #{tpu_custom_call.1} parent=1 // loop_footer
      %s31 = sadd.s32 1, %s27
    $region7: #{tpu_custom_call.1} parent=1 // loop_footer_branch
      %26 = sbr.rel target = $region3
    $region8: #{tpu_custom_call.1} parent=1 // loop_exit
      _
    %4845 = vsyncpa [#allocation3], 1
    %s4846 = scalar_lea.sflag [#allocation3], 1
    %4847 = vsyncpa %s4846, 1
    %4848 = vsyncpa [#allocation6], 1
    %4849 = vsyncpa [#allocation9], 1
    %4850 = vsyncpa [#allocation4], 1
    %s4851 = scalar_lea.sflag [#allocation4], 1
    %4852 = vsyncpa %s4851, 1

</llo_original>
